<compile_context>
chip_gen: v7x
topology: tpu7x:2x2x1
jax: 0.10.0
libtpu: 0.0.40
codegen_flags: <defaults>
</compile_context>

<pallas_src>
from functools import partial

import jax
import jax.numpy as jnp
from jax import lax
from jax.experimental import pallas as pl
from jax.experimental.pallas import tpu as pltpu

N_CH1 = 40          # conv channels
K_W = 13            # conv1 kernel width
PAD_H = 6
PAD_W = 7
POOL_W = 10
POOL_S = 2
DROP_P = 0.5
BN_EPS = 1e-5


def _shallow_kernel(x_ref,              # (TB, H1p, Wp)  padded single-channel input
                    w_ref,              # (40, KH*13)    fused conv weights (BN scale folded)
                    b_ref,              # (40, 1)        fused bias (BN shift folded)
                    pool_ref,           # (TB*W1, TB*Wpool) banded 1/POOL_W pooling matrix
                    mask_ref,           # (TB, 40, H2*Wpool) dropout keep/(1-p) mask
                    out_ref,            # (TB, 40, H2*Wpool)
                    *, TB, H1p, W1, KH, H2, Wpool):
    x = x_ref[...]                      # (TB, H1p, Wp)
    w = w_ref[...]                      # (40, KH*13)
    b = b_ref[...]                      # (40, 1)
    P = pool_ref[...]                   # (TB*W1, TB*Wpool)

    # Tap blocks: for every (batch t, padded row r) a (13, W1) matrix whose k-th
    # row is that input row shifted by k.  Built only with static slices and
    # concatenations (no reshapes/transposes) so Mosaic lowering stays simple.
    taps = []
    for t in range(TB):
        xt = x[t]                                                     # (H1p, Wp)
        taps_t = []
        for r in range(H1p):
            row = xt[r:r + 1, :]                                      # (1, Wp)
            taps_t.append(jnp.concatenate(
                [row[:, k:k + W1] for k in range(K_W)], axis=0))      # (13, W1)
        taps.append(taps_t)

    # Fused conv + BN + square + avg-pool, one output row h at a time.
    rows = [[] for _ in range(TB)]      # rows[t][h] -> (40, Wpool)
    for h in range(H2):
        # im2col columns for this output row: (KH*13, TB*W1)
        cols = jnp.concatenate(
            [jnp.concatenate([taps[t][h + kh] for kh in range(KH)], axis=0)
             for t in range(TB)], axis=1)
        z = jnp.dot(w, cols, preferred_element_type=jnp.float32) + b  # (40, TB*W1)
        zsq = z * z
        pooled = jnp.dot(zsq, P, preferred_element_type=jnp.float32)  # (40, TB*Wpool)
        for t in range(TB):
            rows[t].append(pooled[:, t * Wpool:(t + 1) * Wpool])

    # Per batch element: log, dropout, lane-dense channel-major store.
    for t in range(TB):
        feat = jnp.log(jnp.concatenate(rows[t], axis=1))              # (40, H2*Wpool)
        out_ref[t] = feat * mask_ref[t]


def feature_dims(input_ch, T):
    H1p = input_ch + 2 * PAD_H
    W1 = T + 2 * PAD_W - K_W + 1
    H2 = H1p - input_ch + 1
    Wpool = (W1 - POOL_W) // POOL_S + 1
    return H2, Wpool


def make_dropout_mask(key, B, input_ch, T, p=DROP_P):
    """Scaled Bernoulli keep mask (0 or 1/(1-p)), threshold compare (any p)."""
    H2, Wpool = feature_dims(input_ch, T)
    keep = 1.0 - p
    u = jax.random.uniform(key, (B, N_CH1, H2 * Wpool), jnp.float32)
    return (u < keep).astype(jnp.float32) / keep


def _fused_params(params, input_ch):
    """Fold conv1 o conv2 o BatchNorm(eval) into one (KH,13)-tap conv."""
    w1 = params["w1"]                       # (40, 1, 1, 13)   torch OIHW
    b1 = params["b1"]                       # (40,)
    w2 = params["w2"]                       # (40, 40, KH, 1)  torch OIHW
    gamma, beta = params["gamma"], params["beta"]
    rmean, rvar = params["running_mean"], params["running_var"]

    A = w1[:, 0, 0, :]                      # (40_mid, 13)
    Bm = w2[:, :, :, 0]                     # (40_out, 40_mid, KH)
    w_eff = jnp.einsum("ock,cw->okw", Bm, A)     # (40_out, KH, 13)
    b_eff = jnp.einsum("ock,c->o", Bm, b1)       # (40_out,)

    inv_std = 1.0 / jnp.sqrt(rvar + BN_EPS)
    scale = gamma * inv_std
    shift = beta - rmean * scale

    w_eff = (w_eff * scale[:, None, None]).reshape(N_CH1, input_ch * K_W)
    b_eff = (b_eff * scale + shift).reshape(N_CH1, 1)
    return w_eff, b_eff


def shallow_convnet_features_reduced(x, params, dropout_mask):
    """x: (B, input_ch, T, 1) f32; dropout_mask: (B, 40, H2*Wpool) f32."""
    B, H, T, _ = x.shape
    input_ch = params["w2"].shape[2]
    assert H == input_ch

    # permute(0,3,1,2) -> NCHW with C=1; drop unit channel and zero-pad (6,7).
    x2d = jnp.transpose(x, (0, 3, 1, 2))[:, 0]                    # (B, H, T)
    x_pad = jnp.pad(x2d, ((0, 0), (PAD_H, PAD_H), (PAD_W, PAD_W)))
    H1p = H + 2 * PAD_H
    Wp = T + 2 * PAD_W
    W1 = Wp - K_W + 1
    H2 = H1p - input_ch + 1
    Wpool = (W1 - POOL_W) // POOL_S + 1

    # Batch elements per grid step (amortize ~600-cycle step overhead).
    TB = next(d for d in (8, 4, 2, 1) if B % d == 0)
    # TODO(synk): add a W-tiling grid axis (overlap POOL_W-POOL_S cols) for very
    # long T so the per-step (TB*W1)-wide working set stays within v7x VMEM.

    w_eff, b_eff = _fused_params(params, input_ch)

    # Banded average-pool matrix, block-diagonal over the TB batch elements.
    wi = jnp.arange(W1)[:, None]
    pi = jnp.arange(Wpool)[None, :]
    band = ((wi >= POOL_S * pi) & (wi < POOL_S * pi + POOL_W)
            ).astype(jnp.float32) / POOL_W                        # (W1, Wpool)
    pool_mat = jnp.kron(jnp.eye(TB, dtype=jnp.float32), band)     # (TB*W1, TB*Wpool)

    kern = partial(_shallow_kernel, TB=TB, H1p=H1p, W1=W1, KH=input_ch,
                   H2=H2, Wpool=Wpool)

    out = pl.pallas_call(
        kern,
        out_shape=jax.ShapeDtypeStruct((B, N_CH1, H2 * Wpool), jnp.float32),
        grid=(B // TB,),
        in_specs=[
            pl.BlockSpec((TB, H1p, Wp), lambda bb: (bb, 0, 0)),
            pl.BlockSpec((N_CH1, input_ch * K_W), lambda bb: (0, 0)),
            pl.BlockSpec((N_CH1, 1), lambda bb: (0, 0)),
            pl.BlockSpec((TB * W1, TB * Wpool), lambda bb: (0, 0)),
            pl.BlockSpec((TB, N_CH1, H2 * Wpool), lambda bb: (bb, 0, 0)),
        ],
        out_specs=pl.BlockSpec((TB, N_CH1, H2 * Wpool), lambda bb: (bb, 0, 0)),
        compiler_params=pltpu.CompilerParams(
            dimension_semantics=("parallel",),
            vmem_limit_bytes=32 * 1024 * 1024),
    )(x_pad, w_eff, b_eff, pool_mat, dropout_mask)

    # torch flatten(1) of NCHW (B, 40, H2, Wpool): channel-major features.
    # out is already channel-major, so this reshape is order-preserving.
    return out.reshape(B, -1)


def _reference(x, params, dropout_mask):
    """Pure-JAX reference of the torch forward (same dropout mask applied)."""
    w1, b1, w2 = params["w1"], params["b1"], params["w2"]
    gamma, beta = params["gamma"], params["beta"]
    rmean, rvar = params["running_mean"], params["running_var"]
    B = x.shape[0]

    dn = ("NCHW", "OIHW", "NCHW")
    xn = jnp.transpose(x, (0, 3, 1, 2))                           # (B,1,H,T)
    y = lax.conv_general_dilated(xn, w1, (1, 1),
                                 ((PAD_H, PAD_H), (PAD_W, PAD_W)),
                                 dimension_numbers=dn,
                                 precision=lax.Precision.HIGHEST)
    y = y + b1.reshape(1, -1, 1, 1)
    y = lax.conv_general_dilated(y, w2, (1, 1), "VALID",
                                 dimension_numbers=dn,
                                 precision=lax.Precision.HIGHEST)
    inv_std = 1.0 / jnp.sqrt(rvar + BN_EPS)
    scale = gamma * inv_std
    shift = beta - rmean * scale
    y = y * scale.reshape(1, -1, 1, 1) + shift.reshape(1, -1, 1, 1)
    y = y * y
    y = lax.reduce_window(y, 0.0, lax.add, (1, 1, 1, POOL_W),
                          (1, 1, 1, POOL_S), "VALID") / POOL_W
    y = jnp.log(y)
    return y.reshape(B, -1) * dropout_mask.reshape(B, -1)


def init_params(key, input_ch):
    ks = jax.random.split(key, 6)
    w1 = 0.1 * jax.random.normal(ks[0], (N_CH1, 1, 1, K_W), jnp.float32)
    b1 = 0.1 * jax.random.normal(ks[1], (N_CH1,), jnp.float32)
    w2 = 0.1 * jax.random.normal(ks[2], (N_CH1, N_CH1, input_ch, 1), jnp.float32)
    gamma = 1.0 + 0.1 * jax.random.normal(ks[3], (N_CH1,), jnp.float32)
    beta = 0.1 * jax.random.normal(ks[4], (N_CH1,), jnp.float32)
    rmean = 0.1 * jax.random.normal(ks[5], (N_CH1,), jnp.float32)
    rvar = jnp.ones((N_CH1,), jnp.float32)
    return dict(w1=w1, b1=b1, w2=w2, gamma=gamma, beta=beta,
                running_mean=rmean, running_var=rvar)


if __name__ == "__main__":
    key = jax.random.PRNGKey(0)
    kx, kp, kd = jax.random.split(key, 3)
    B, input_ch, T = 2, 4, 16
    x = jax.random.normal(kx, (B, input_ch, T, 1), jnp.float32)
    params = init_params(kp, input_ch)
    mask = make_dropout_mask(kd, B, input_ch, T)

    out = shallow_convnet_features_reduced(x, params, mask)
    out = jax.block_until_ready(out)

    H2, Wpool = feature_dims(input_ch, T)                          # (13, 5)
    assert out.shape == (B, N_CH1 * H2 * Wpool), out.shape
    assert bool(jnp.all(jnp.isfinite(out))), "non-finite output"

    ref = _reference(x, params, mask)
    max_err = float(jnp.max(jnp.abs(out - ref)))
    assert bool(jnp.all(jnp.abs(out - ref) <= 5e-2 + 5e-2 * jnp.abs(ref))), max_err

    print("KERNEL_OK")
</pallas_src>

<mosaic_0001>
module attributes {stable_mosaic.version = 11 : i64} {
  func.func @_shallow_kernel(%arg0: i32, %arg1: memref<2x16x30xf32, #tpu.memory_space<vmem>>, %arg2: memref<40x52xf32, #tpu.memory_space<vmem>>, %arg3: memref<40x1xf32, #tpu.memory_space<vmem>>, %arg4: memref<36x10xf32, #tpu.memory_space<vmem>>, %arg5: memref<2x40x65xf32, #tpu.memory_space<vmem>>, %arg6: memref<2x40x65xf32, #tpu.memory_space<vmem>>) attributes {dimension_semantics = [#tpu.dimension_semantics<parallel>], iteration_bounds = array<i64: 1>, scalar_prefetch = 0 : i64, scratch_operands = 0 : i64, tpu.core_type = #tpu.core_type<tc>, window_params = [{transform_indices = @transform_0, window_bounds = array<i64: 2, 16, 30>}, {pipeline_mode = #tpu.pipeline_mode<synchronous>, transform_indices = @transform_1, window_bounds = array<i64: 40, 52>}, {pipeline_mode = #tpu.pipeline_mode<synchronous>, transform_indices = @transform_2, window_bounds = array<i64: 40, 1>}, {pipeline_mode = #tpu.pipeline_mode<synchronous>, transform_indices = @transform_3, window_bounds = array<i64: 36, 10>}, {transform_indices = @transform_4, window_bounds = array<i64: 2, 40, 65>}, {transform_indices = @transform_5, window_bounds = array<i64: 2, 40, 65>}]} {
    %c0 = arith.constant 0 : index
    %c0_0 = arith.constant 0 : index
    %c0_1 = arith.constant 0 : index
    %0 = vector.load %arg1[%c0, %c0_0, %c0_1] : memref<2x16x30xf32, #tpu.memory_space<vmem>>, vector<2x16x30xf32>
    %c0_2 = arith.constant 0 : index
    %c0_3 = arith.constant 0 : index
    %1 = vector.load %arg2[%c0_2, %c0_3] : memref<40x52xf32, #tpu.memory_space<vmem>>, vector<40x52xf32>
    %c0_4 = arith.constant 0 : index
    %c0_5 = arith.constant 0 : index
    %2 = vector.load %arg3[%c0_4, %c0_5] : memref<40x1xf32, #tpu.memory_space<vmem>>, vector<40x1xf32>
    %c0_6 = arith.constant 0 : index
    %c0_7 = arith.constant 0 : index
    %3 = vector.load %arg4[%c0_6, %c0_7] : memref<36x10xf32, #tpu.memory_space<vmem>>, vector<36x10xf32>
    %4 = vector.extract_strided_slice %0 {offsets = [0, 0, 0], sizes = [1, 16, 30], strides = [1, 1, 1]} : vector<2x16x30xf32> to vector<1x16x30xf32>
    %5 = vector.shape_cast %4 : vector<1x16x30xf32> to vector<16x30xf32>
    %6 = vector.extract_strided_slice %5 {offsets = [0, 0], sizes = [1, 30], strides = [1, 1]} : vector<16x30xf32> to vector<1x30xf32>
    %7 = vector.extract_strided_slice %6 {offsets = [0, 0], sizes = [1, 18], strides = [1, 1]} : vector<1x30xf32> to vector<1x18xf32>
    %8 = vector.extract_strided_slice %6 {offsets = [0, 1], sizes = [1, 18], strides = [1, 1]} : vector<1x30xf32> to vector<1x18xf32>
    %9 = vector.extract_strided_slice %6 {offsets = [0, 2], sizes = [1, 18], strides = [1, 1]} : vector<1x30xf32> to vector<1x18xf32>
    %10 = vector.extract_strided_slice %6 {offsets = [0, 3], sizes = [1, 18], strides = [1, 1]} : vector<1x30xf32> to vector<1x18xf32>
    %11 = vector.extract_strided_slice %6 {offsets = [0, 4], sizes = [1, 18], strides = [1, 1]} : vector<1x30xf32> to vector<1x18xf32>
    %12 = vector.extract_strided_slice %6 {offsets = [0, 5], sizes = [1, 18], strides = [1, 1]} : vector<1x30xf32> to vector<1x18xf32>
    %13 = vector.extract_strided_slice %6 {offsets = [0, 6], sizes = [1, 18], strides = [1, 1]} : vector<1x30xf32> to vector<1x18xf32>
    %14 = vector.extract_strided_slice %6 {offsets = [0, 7], sizes = [1, 18], strides = [1, 1]} : vector<1x30xf32> to vector<1x18xf32>
    %15 = vector.extract_strided_slice %6 {offsets = [0, 8], sizes = [1, 18], strides = [1, 1]} : vector<1x30xf32> to vector<1x18xf32>
    %16 = vector.extract_strided_slice %6 {offsets = [0, 9], sizes = [1, 18], strides = [1, 1]} : vector<1x30xf32> to vector<1x18xf32>
    %17 = vector.extract_strided_slice %6 {offsets = [0, 10], sizes = [1, 18], strides = [1, 1]} : vector<1x30xf32> to vector<1x18xf32>
    %18 = vector.extract_strided_slice %6 {offsets = [0, 11], sizes = [1, 18], strides = [1, 1]} : vector<1x30xf32> to vector<1x18xf32>
    %19 = vector.extract_strided_slice %6 {offsets = [0, 12], sizes = [1, 18], strides = [1, 1]} : vector<1x30xf32> to vector<1x18xf32>
    %20 = tpu.concatenate %7, %8, %9, %10, %11, %12, %13, %14, %15, %16, %17, %18, %19 in 0 : vector<1x18xf32>, vector<1x18xf32>, vector<1x18xf32>, vector<1x18xf32>, vector<1x18xf32>, vector<1x18xf32>, vector<1x18xf32>, vector<1x18xf32>, vector<1x18xf32>, vector<1x18xf32>, vector<1x18xf32>, vector<1x18xf32>, vector<1x18xf32> -> vector<13x18xf32>
    %21 = vector.extract_strided_slice %5 {offsets = [1, 0], sizes = [1, 30], strides = [1, 1]} : vector<16x30xf32> to vector<1x30xf32>
    %22 = vector.extract_strided_slice %21 {offsets = [0, 0], sizes = [1, 18], strides = [1, 1]} : vector<1x30xf32> to vector<1x18xf32>
    %23 = vector.extract_strided_slice %21 {offsets = [0, 1], sizes = [1, 18], strides = [1, 1]} : vector<1x30xf32> to vector<1x18xf32>
    %24 = vector.extract_strided_slice %21 {offsets = [0, 2], sizes = [1, 18], strides = [1, 1]} : vector<1x30xf32> to vector<1x18xf32>
    %25 = vector.extract_strided_slice %21 {offsets = [0, 3], sizes = [1, 18], strides = [1, 1]} : vector<1x30xf32> to vector<1x18xf32>
    %26 = vector.extract_strided_slice %21 {offsets = [0, 4], sizes = [1, 18], strides = [1, 1]} : vector<1x30xf32> to vector<1x18xf32>
    %27 = vector.extract_strided_slice %21 {offsets = [0, 5], sizes = [1, 18], strides = [1, 1]} : vector<1x30xf32> to vector<1x18xf32>
    %28 = vector.extract_strided_slice %21 {offsets = [0, 6], sizes = [1, 18], strides = [1, 1]} : vector<1x30xf32> to vector<1x18xf32>
    %29 = vector.extract_strided_slice %21 {offsets = [0, 7], sizes = [1, 18], strides = [1, 1]} : vector<1x30xf32> to vector<1x18xf32>
    %30 = vector.extract_strided_slice %21 {offsets = [0, 8], sizes = [1, 18], strides = [1, 1]} : vector<1x30xf32> to vector<1x18xf32>
    %31 = vector.extract_strided_slice %21 {offsets = [0, 9], sizes = [1, 18], strides = [1, 1]} : vector<1x30xf32> to vector<1x18xf32>
    %32 = vector.extract_strided_slice %21 {offsets = [0, 10], sizes = [1, 18], strides = [1, 1]} : vector<1x30xf32> to vector<1x18xf32>
    %33 = vector.extract_strided_slice %21 {offsets = [0, 11], sizes = [1, 18], strides = [1, 1]} : vector<1x30xf32> to vector<1x18xf32>
    %34 = vector.extract_strided_slice %21 {offsets = [0, 12], sizes = [1, 18], strides = [1, 1]} : vector<1x30xf32> to vector<1x18xf32>
    %35 = tpu.concatenate %22, %23, %24, %25, %26, %27, %28, %29, %30, %31, %32, %33, %34 in 0 : vector<1x18xf32>, vector<1x18xf32>, vector<1x18xf32>, vector<1x18xf32>, vector<1x18xf32>, vector<1x18xf32>, vector<1x18xf32>, vector<1x18xf32>, vector<1x18xf32>, vector<1x18xf32>, vector<1x18xf32>, vector<1x18xf32>, vector<1x18xf32> -> vector<13x18xf32>
    %36 = vector.extract_strided_slice %5 {offsets = [2, 0], sizes = [1, 30], strides = [1, 1]} : vector<16x30xf32> to vector<1x30xf32>
    %37 = vector.extract_strided_slice %36 {offsets = [0, 0], sizes = [1, 18], strides = [1, 1]} : vector<1x30xf32> to vector<1x18xf32>
    %38 = vector.extract_strided_slice %36 {offsets = [0, 1], sizes = [1, 18], strides = [1, 1]} : vector<1x30xf32> to vector<1x18xf32>
    %39 = vector.extract_strided_slice %36 {offsets = [0, 2], sizes = [1, 18], strides = [1, 1]} : vector<1x30xf32> to vector<1x18xf32>
    %40 = vector.extract_strided_slice %36 {offsets = [0, 3], sizes = [1, 18], strides = [1, 1]} : vector<1x30xf32> to vector<1x18xf32>
    %41 = vector.extract_strided_slice %36 {offsets = [0, 4], sizes = [1, 18], strides = [1, 1]} : vector<1x30xf32> to vector<1x18xf32>
    %42 = vector.extract_strided_slice %36 {offsets = [0, 5], sizes = [1, 18], strides = [1, 1]} : vector<1x30xf32> to vector<1x18xf32>
    %43 = vector.extract_strided_slice %36 {offsets = [0, 6], sizes = [1, 18], strides = [1, 1]} : vector<1x30xf32> to vector<1x18xf32>
    %44 = vector.extract_strided_slice %36 {offsets = [0, 7], sizes = [1, 18], strides = [1, 1]} : vector<1x30xf32> to vector<1x18xf32>
    %45 = vector.extract_strided_slice %36 {offsets = [0, 8], sizes = [1, 18], strides = [1, 1]} : vector<1x30xf32> to vector<1x18xf32>
    %46 = vector.extract_strided_slice %36 {offsets = [0, 9], sizes = [1, 18], strides = [1, 1]} : vector<1x30xf32> to vector<1x18xf32>
    %47 = vector.extract_strided_slice %36 {offsets = [0, 10], sizes = [1, 18], strides = [1, 1]} : vector<1x30xf32> to vector<1x18xf32>
    %48 = vector.extract_strided_slice %36 {offsets = [0, 11], sizes = [1, 18], strides = [1, 1]} : vector<1x30xf32> to vector<1x18xf32>
    %49 = vector.extract_strided_slice %36 {offsets = [0, 12], sizes = [1, 18], strides = [1, 1]} : vector<1x30xf32> to vector<1x18xf32>
    %50 = tpu.concatenate %37, %38, %39, %40, %41, %42, %43, %44, %45, %46, %47, %48, %49 in 0 : vector<1x18xf32>, vector<1x18xf32>, vector<1x18xf32>, vector<1x18xf32>, vector<1x18xf32>, vector<1x18xf32>, vector<1x18xf32>, vector<1x18xf32>, vector<1x18xf32>, vector<1x18xf32>, vector<1x18xf32>, vector<1x18xf32>, vector<1x18xf32> -> vector<13x18xf32>
    %51 = vector.extract_strided_slice %5 {offsets = [3, 0], sizes = [1, 30], strides = [1, 1]} : vector<16x30xf32> to vector<1x30xf32>
    %52 = vector.extract_strided_slice %51 {offsets = [0, 0], sizes = [1, 18], strides = [1, 1]} : vector<1x30xf32> to vector<1x18xf32>
    %53 = vector.extract_strided_slice %51 {offsets = [0, 1], sizes = [1, 18], strides = [1, 1]} : vector<1x30xf32> to vector<1x18xf32>
    %54 = vector.extract_strided_slice %51 {offsets = [0, 2], sizes = [1, 18], strides = [1, 1]} : vector<1x30xf32> to vector<1x18xf32>
    %55 = vector.extract_strided_slice %51 {offsets = [0, 3], sizes = [1, 18], strides = [1, 1]} : vector<1x30xf32> to vector<1x18xf32>
    %56 = vector.extract_strided_slice %51 {offsets = [0, 4], sizes = [1, 18], strides = [1, 1]} : vector<1x30xf32> to vector<1x18xf32>
    %57 = vector.extract_strided_slice %51 {offsets = [0, 5], sizes = [1, 18], strides = [1, 1]} : vector<1x30xf32> to vector<1x18xf32>
    %58 = vector.extract_strided_slice %51 {offsets = [0, 6], sizes = [1, 18], strides = [1, 1]} : vector<1x30xf32> to vector<1x18xf32>
    %59 = vector.extract_strided_slice %51 {offsets = [0, 7], sizes = [1, 18], strides = [1, 1]} : vector<1x30xf32> to vector<1x18xf32>
    %60 = vector.extract_strided_slice %51 {offsets = [0, 8], sizes = [1, 18], strides = [1, 1]} : vector<1x30xf32> to vector<1x18xf32>
    %61 = vector.extract_strided_slice %51 {offsets = [0, 9], sizes = [1, 18], strides = [1, 1]} : vector<1x30xf32> to vector<1x18xf32>
    %62 = vector.extract_strided_slice %51 {offsets = [0, 10], sizes = [1, 18], strides = [1, 1]} : vector<1x30xf32> to vector<1x18xf32>
    %63 = vector.extract_strided_slice %51 {offsets = [0, 11], sizes = [1, 18], strides = [1, 1]} : vector<1x30xf32> to vector<1x18xf32>
    %64 = vector.extract_strided_slice %51 {offsets = [0, 12], sizes = [1, 18], strides = [1, 1]} : vector<1x30xf32> to vector<1x18xf32>
    %65 = tpu.concatenate %52, %53, %54, %55, %56, %57, %58, %59, %60, %61, %62, %63, %64 in 0 : vector<1x18xf32>, vector<1x18xf32>, vector<1x18xf32>, vector<1x18xf32>, vector<1x18xf32>, vector<1x18xf32>, vector<1x18xf32>, vector<1x18xf32>, vector<1x18xf32>, vector<1x18xf32>, vector<1x18xf32>, vector<1x18xf32>, vector<1x18xf32> -> vector<13x18xf32>
    %66 = vector.extract_strided_slice %5 {offsets = [4, 0], sizes = [1, 30], strides = [1, 1]} : vector<16x30xf32> to vector<1x30xf32>
    %67 = vector.extract_strided_slice %66 {offsets = [0, 0], sizes = [1, 18], strides = [1, 1]} : vector<1x30xf32> to vector<1x18xf32>
    %68 = vector.extract_strided_slice %66 {offsets = [0, 1], sizes = [1, 18], strides = [1, 1]} : vector<1x30xf32> to vector<1x18xf32>
    %69 = vector.extract_strided_slice %66 {offsets = [0, 2], sizes = [1, 18], strides = [1, 1]} : vector<1x30xf32> to vector<1x18xf32>
    %70 = vector.extract_strided_slice %66 {offsets = [0, 3], sizes = [1, 18], strides = [1, 1]} : vector<1x30xf32> to vector<1x18xf32>
    %71 = vector.extract_strided_slice %66 {offsets = [0, 4], sizes = [1, 18], strides = [1, 1]} : vector<1x30xf32> to vector<1x18xf32>
    %72 = vector.extract_strided_slice %66 {offsets = [0, 5], sizes = [1, 18], strides = [1, 1]} : vector<1x30xf32> to vector<1x18xf32>
    %73 = vector.extract_strided_slice %66 {offsets = [0, 6], sizes = [1, 18], strides = [1, 1]} : vector<1x30xf32> to vector<1x18xf32>
    %74 = vector.extract_strided_slice %66 {offsets = [0, 7], sizes = [1, 18], strides = [1, 1]} : vector<1x30xf32> to vector<1x18xf32>
    %75 = vector.extract_strided_slice %66 {offsets = [0, 8], sizes = [1, 18], strides = [1, 1]} : vector<1x30xf32> to vector<1x18xf32>
    %76 = vector.extract_strided_slice %66 {offsets = [0, 9], sizes = [1, 18], strides = [1, 1]} : vector<1x30xf32> to vector<1x18xf32>
    %77 = vector.extract_strided_slice %66 {offsets = [0, 10], sizes = [1, 18], strides = [1, 1]} : vector<1x30xf32> to vector<1x18xf32>
    %78 = vector.extract_strided_slice %66 {offsets = [0, 11], sizes = [1, 18], strides = [1, 1]} : vector<1x30xf32> to vector<1x18xf32>
    %79 = vector.extract_strided_slice %66 {offsets = [0, 12], sizes = [1, 18], strides = [1, 1]} : vector<1x30xf32> to vector<1x18xf32>
    %80 = tpu.concatenate %67, %68, %69, %70, %71, %72, %73, %74, %75, %76, %77, %78, %79 in 0 : vector<1x18xf32>, vector<1x18xf32>, vector<1x18xf32>, vector<1x18xf32>, vector<1x18xf32>, vector<1x18xf32>, vector<1x18xf32>, vector<1x18xf32>, vector<1x18xf32>, vector<1x18xf32>, vector<1x18xf32>, vector<1x18xf32>, vector<1x18xf32> -> vector<13x18xf32>
    %81 = vector.extract_strided_slice %5 {offsets = [5, 0], sizes = [1, 30], strides = [1, 1]} : vector<16x30xf32> to vector<1x30xf32>
    %82 = vector.extract_strided_slice %81 {offsets = [0, 0], sizes = [1, 18], strides = [1, 1]} : vector<1x30xf32> to vector<1x18xf32>
    %83 = vector.extract_strided_slice %81 {offsets = [0, 1], sizes = [1, 18], strides = [1, 1]} : vector<1x30xf32> to vector<1x18xf32>
    %84 = vector.extract_strided_slice %81 {offsets = [0, 2], sizes = [1, 18], strides = [1, 1]} : vector<1x30xf32> to vector<1x18xf32>
    %85 = vector.extract_strided_slice %81 {offsets = [0, 3], sizes = [1, 18], strides = [1, 1]} : vector<1x30xf32> to vector<1x18xf32>
    %86 = vector.extract_strided_slice %81 {offsets = [0, 4], sizes = [1, 18], strides = [1, 1]} : vector<1x30xf32> to vector<1x18xf32>
    %87 = vector.extract_strided_slice %81 {offsets = [0, 5], sizes = [1, 18], strides = [1, 1]} : vector<1x30xf32> to vector<1x18xf32>
    %88 = vector.extract_strided_slice %81 {offsets = [0, 6], sizes = [1, 18], strides = [1, 1]} : vector<1x30xf32> to vector<1x18xf32>
    %89 = vector.extract_strided_slice %81 {offsets = [0, 7], sizes = [1, 18], strides = [1, 1]} : vector<1x30xf32> to vector<1x18xf32>
    %90 = vector.extract_strided_slice %81 {offsets = [0, 8], sizes = [1, 18], strides = [1, 1]} : vector<1x30xf32> to vector<1x18xf32>
    %91 = vector.extract_strided_slice %81 {offsets = [0, 9], sizes = [1, 18], strides = [1, 1]} : vector<1x30xf32> to vector<1x18xf32>
    %92 = vector.extract_strided_slice %81 {offsets = [0, 10], sizes = [1, 18], strides = [1, 1]} : vector<1x30xf32> to vector<1x18xf32>
    %93 = vector.extract_strided_slice %81 {offsets = [0, 11], sizes = [1, 18], strides = [1, 1]} : vector<1x30xf32> to vector<1x18xf32>
    %94 = vector.extract_strided_slice %81 {offsets = [0, 12], sizes = [1, 18], strides = [1, 1]} : vector<1x30xf32> to vector<1x18xf32>
    %95 = tpu.concatenate %82, %83, %84, %85, %86, %87, %88, %89, %90, %91, %92, %93, %94 in 0 : vector<1x18xf32>, vector<1x18xf32>, vector<1x18xf32>, vector<1x18xf32>, vector<1x18xf32>, vector<1x18xf32>, vector<1x18xf32>, vector<1x18xf32>, vector<1x18xf32>, vector<1x18xf32>, vector<1x18xf32>, vector<1x18xf32>, vector<1x18xf32> -> vector<13x18xf32>
    %96 = vector.extract_strided_slice %5 {offsets = [6, 0], sizes = [1, 30], strides = [1, 1]} : vector<16x30xf32> to vector<1x30xf32>
    %97 = vector.extract_strided_slice %96 {offsets = [0, 0], sizes = [1, 18], strides = [1, 1]} : vector<1x30xf32> to vector<1x18xf32>
    %98 = vector.extract_strided_slice %96 {offsets = [0, 1], sizes = [1, 18], strides = [1, 1]} : vector<1x30xf32> to vector<1x18xf32>
    %99 = vector.extract_strided_slice %96 {offsets = [0, 2], sizes = [1, 18], strides = [1, 1]} : vector<1x30xf32> to vector<1x18xf32>
    %100 = vector.extract_strided_slice %96 {offsets = [0, 3], sizes = [1, 18], strides = [1, 1]} : vector<1x30xf32> to vector<1x18xf32>
    %101 = vector.extract_strided_slice %96 {offsets = [0, 4], sizes = [1, 18], strides = [1, 1]} : vector<1x30xf32> to vector<1x18xf32>
    %102 = vector.extract_strided_slice %96 {offsets = [0, 5], sizes = [1, 18], strides = [1, 1]} : vector<1x30xf32> to vector<1x18xf32>
    %103 = vector.extract_strided_slice %96 {offsets = [0, 6], sizes = [1, 18], strides = [1, 1]} : vector<1x30xf32> to vector<1x18xf32>
    %104 = vector.extract_strided_slice %96 {offsets = [0, 7], sizes = [1, 18], strides = [1, 1]} : vector<1x30xf32> to vector<1x18xf32>
    %105 = vector.extract_strided_slice %96 {offsets = [0, 8], sizes = [1, 18], strides = [1, 1]} : vector<1x30xf32> to vector<1x18xf32>
    %106 = vector.extract_strided_slice %96 {offsets = [0, 9], sizes = [1, 18], strides = [1, 1]} : vector<1x30xf32> to vector<1x18xf32>
    %107 = vector.extract_strided_slice %96 {offsets = [0, 10], sizes = [1, 18], strides = [1, 1]} : vector<1x30xf32> to vector<1x18xf32>
    %108 = vector.extract_strided_slice %96 {offsets = [0, 11], sizes = [1, 18], strides = [1, 1]} : vector<1x30xf32> to vector<1x18xf32>
    %109 = vector.extract_strided_slice %96 {offsets = [0, 12], sizes = [1, 18], strides = [1, 1]} : vector<1x30xf32> to vector<1x18xf32>
    %110 = tpu.concatenate %97, %98, %99, %100, %101, %102, %103, %104, %105, %106, %107, %108, %109 in 0 : vector<1x18xf32>, vector<1x18xf32>, vector<1x18xf32>, vector<1x18xf32>, vector<1x18xf32>, vector<1x18xf32>, vector<1x18xf32>, vector<1x18xf32>, vector<1x18xf32>, vector<1x18xf32>, vector<1x18xf32>, vector<1x18xf32>, vector<1x18xf32> -> vector<13x18xf32>
    %111 = vector.extract_strided_slice %5 {offsets = [7, 0], sizes = [1, 30], strides = [1, 1]} : vector<16x30xf32> to vector<1x30xf32>
    %112 = vector.extract_strided_slice %111 {offsets = [0, 0], sizes = [1, 18], strides = [1, 1]} : vector<1x30xf32> to vector<1x18xf32>
    %113 = vector.extract_strided_slice %111 {offsets = [0, 1], sizes = [1, 18], strides = [1, 1]} : vector<1x30xf32> to vector<1x18xf32>
    %114 = vector.extract_strided_slice %111 {offsets = [0, 2], sizes = [1, 18], strides = [1, 1]} : vector<1x30xf32> to vector<1x18xf32>
    %115 = vector.extract_strided_slice %111 {offsets = [0, 3], sizes = [1, 18], strides = [1, 1]} : vector<1x30xf32> to vector<1x18xf32>
    %116 = vector.extract_strided_slice %111 {offsets = [0, 4], sizes = [1, 18], strides = [1, 1]} : vector<1x30xf32> to vector<1x18xf32>
    %117 = vector.extract_strided_slice %111 {offsets = [0, 5], sizes = [1, 18], strides = [1, 1]} : vector<1x30xf32> to vector<1x18xf32>
    %118 = vector.extract_strided_slice %111 {offsets = [0, 6], sizes = [1, 18], strides = [1, 1]} : vector<1x30xf32> to vector<1x18xf32>
    %119 = vector.extract_strided_slice %111 {offsets = [0, 7], sizes = [1, 18], strides = [1, 1]} : vector<1x30xf32> to vector<1x18xf32>
    %120 = vector.extract_strided_slice %111 {offsets = [0, 8], sizes = [1, 18], strides = [1, 1]} : vector<1x30xf32> to vector<1x18xf32>
    %121 = vector.extract_strided_slice %111 {offsets = [0, 9], sizes = [1, 18], strides = [1, 1]} : vector<1x30xf32> to vector<1x18xf32>
    %122 = vector.extract_strided_slice %111 {offsets = [0, 10], sizes = [1, 18], strides = [1, 1]} : vector<1x30xf32> to vector<1x18xf32>
    %123 = vector.extract_strided_slice %111 {offsets = [0, 11], sizes = [1, 18], strides = [1, 1]} : vector<1x30xf32> to vector<1x18xf32>
    %124 = vector.extract_strided_slice %111 {offsets = [0, 12], sizes = [1, 18], strides = [1, 1]} : vector<1x30xf32> to vector<1x18xf32>
    %125 = tpu.concatenate %112, %113, %114, %115, %116, %117, %118, %119, %120, %121, %122, %123, %124 in 0 : vector<1x18xf32>, vector<1x18xf32>, vector<1x18xf32>, vector<1x18xf32>, vector<1x18xf32>, vector<1x18xf32>, vector<1x18xf32>, vector<1x18xf32>, vector<1x18xf32>, vector<1x18xf32>, vector<1x18xf32>, vector<1x18xf32>, vector<1x18xf32> -> vector<13x18xf32>
    %126 = vector.extract_strided_slice %5 {offsets = [8, 0], sizes = [1, 30], strides = [1, 1]} : vector<16x30xf32> to vector<1x30xf32>
    %127 = vector.extract_strided_slice %126 {offsets = [0, 0], sizes = [1, 18], strides = [1, 1]} : vector<1x30xf32> to vector<1x18xf32>
    %128 = vector.extract_strided_slice %126 {offsets = [0, 1], sizes = [1, 18], strides = [1, 1]} : vector<1x30xf32> to vector<1x18xf32>
    %129 = vector.extract_strided_slice %126 {offsets = [0, 2], sizes = [1, 18], strides = [1, 1]} : vector<1x30xf32> to vector<1x18xf32>
    %130 = vector.extract_strided_slice %126 {offsets = [0, 3], sizes = [1, 18], strides = [1, 1]} : vector<1x30xf32> to vector<1x18xf32>
    %131 = vector.extract_strided_slice %126 {offsets = [0, 4], sizes = [1, 18], strides = [1, 1]} : vector<1x30xf32> to vector<1x18xf32>
    %132 = vector.extract_strided_slice %126 {offsets = [0, 5], sizes = [1, 18], strides = [1, 1]} : vector<1x30xf32> to vector<1x18xf32>
    %133 = vector.extract_strided_slice %126 {offsets = [0, 6], sizes = [1, 18], strides = [1, 1]} : vector<1x30xf32> to vector<1x18xf32>
    %134 = vector.extract_strided_slice %126 {offsets = [0, 7], sizes = [1, 18], strides = [1, 1]} : vector<1x30xf32> to vector<1x18xf32>
    %135 = vector.extract_strided_slice %126 {offsets = [0, 8], sizes = [1, 18], strides = [1, 1]} : vector<1x30xf32> to vector<1x18xf32>
    %136 = vector.extract_strided_slice %126 {offsets = [0, 9], sizes = [1, 18], strides = [1, 1]} : vector<1x30xf32> to vector<1x18xf32>
    %137 = vector.extract_strided_slice %126 {offsets = [0, 10], sizes = [1, 18], strides = [1, 1]} : vector<1x30xf32> to vector<1x18xf32>
    %138 = vector.extract_strided_slice %126 {offsets = [0, 11], sizes = [1, 18], strides = [1, 1]} : vector<1x30xf32> to vector<1x18xf32>
    %139 = vector.extract_strided_slice %126 {offsets = [0, 12], sizes = [1, 18], strides = [1, 1]} : vector<1x30xf32> to vector<1x18xf32>
    %140 = tpu.concatenate %127, %128, %129, %130, %131, %132, %133, %134, %135, %136, %137, %138, %139 in 0 : vector<1x18xf32>, vector<1x18xf32>, vector<1x18xf32>, vector<1x18xf32>, vector<1x18xf32>, vector<1x18xf32>, vector<1x18xf32>, vector<1x18xf32>, vector<1x18xf32>, vector<1x18xf32>, vector<1x18xf32>, vector<1x18xf32>, vector<1x18xf32> -> vector<13x18xf32>
    %141 = vector.extract_strided_slice %5 {offsets = [9, 0], sizes = [1, 30], strides = [1, 1]} : vector<16x30xf32> to vector<1x30xf32>
    %142 = vector.extract_strided_slice %141 {offsets = [0, 0], sizes = [1, 18], strides = [1, 1]} : vector<1x30xf32> to vector<1x18xf32>
    %143 = vector.extract_strided_slice %141 {offsets = [0, 1], sizes = [1, 18], strides = [1, 1]} : vector<1x30xf32> to vector<1x18xf32>
    %144 = vector.extract_strided_slice %141 {offsets = [0, 2], sizes = [1, 18], strides = [1, 1]} : vector<1x30xf32> to vector<1x18xf32>
    %145 = vector.extract_strided_slice %141 {offsets = [0, 3], sizes = [1, 18], strides = [1, 1]} : vector<1x30xf32> to vector<1x18xf32>
    %146 = vector.extract_strided_slice %141 {offsets = [0, 4], sizes = [1, 18], strides = [1, 1]} : vector<1x30xf32> to vector<1x18xf32>
    %147 = vector.extract_strided_slice %141 {offsets = [0, 5], sizes = [1, 18], strides = [1, 1]} : vector<1x30xf32> to vector<1x18xf32>
    %148 = vector.extract_strided_slice %141 {offsets = [0, 6], sizes = [1, 18], strides = [1, 1]} : vector<1x30xf32> to vector<1x18xf32>
    %149 = vector.extract_strided_slice %141 {offsets = [0, 7], sizes = [1, 18], strides = [1, 1]} : vector<1x30xf32> to vector<1x18xf32>
    %150 = vector.extract_strided_slice %141 {offsets = [0, 8], sizes = [1, 18], strides = [1, 1]} : vector<1x30xf32> to vector<1x18xf32>
    %151 = vector.extract_strided_slice %141 {offsets = [0, 9], sizes = [1, 18], strides = [1, 1]} : vector<1x30xf32> to vector<1x18xf32>
    %152 = vector.extract_strided_slice %141 {offsets = [0, 10], sizes = [1, 18], strides = [1, 1]} : vector<1x30xf32> to vector<1x18xf32>
    %153 = vector.extract_strided_slice %141 {offsets = [0, 11], sizes = [1, 18], strides = [1, 1]} : vector<1x30xf32> to vector<1x18xf32>
    %154 = vector.extract_strided_slice %141 {offsets = [0, 12], sizes = [1, 18], strides = [1, 1]} : vector<1x30xf32> to vector<1x18xf32>
    %155 = tpu.concatenate %142, %143, %144, %145, %146, %147, %148, %149, %150, %151, %152, %153, %154 in 0 : vector<1x18xf32>, vector<1x18xf32>, vector<1x18xf32>, vector<1x18xf32>, vector<1x18xf32>, vector<1x18xf32>, vector<1x18xf32>, vector<1x18xf32>, vector<1x18xf32>, vector<1x18xf32>, vector<1x18xf32>, vector<1x18xf32>, vector<1x18xf32> -> vector<13x18xf32>
    %156 = vector.extract_strided_slice %5 {offsets = [10, 0], sizes = [1, 30], strides = [1, 1]} : vector<16x30xf32> to vector<1x30xf32>
    %157 = vector.extract_strided_slice %156 {offsets = [0, 0], sizes = [1, 18], strides = [1, 1]} : vector<1x30xf32> to vector<1x18xf32>
    %158 = vector.extract_strided_slice %156 {offsets = [0, 1], sizes = [1, 18], strides = [1, 1]} : vector<1x30xf32> to vector<1x18xf32>
    %159 = vector.extract_strided_slice %156 {offsets = [0, 2], sizes = [1, 18], strides = [1, 1]} : vector<1x30xf32> to vector<1x18xf32>
    %160 = vector.extract_strided_slice %156 {offsets = [0, 3], sizes = [1, 18], strides = [1, 1]} : vector<1x30xf32> to vector<1x18xf32>
    %161 = vector.extract_strided_slice %156 {offsets = [0, 4], sizes = [1, 18], strides = [1, 1]} : vector<1x30xf32> to vector<1x18xf32>
    %162 = vector.extract_strided_slice %156 {offsets = [0, 5], sizes = [1, 18], strides = [1, 1]} : vector<1x30xf32> to vector<1x18xf32>
    %163 = vector.extract_strided_slice %156 {offsets = [0, 6], sizes = [1, 18], strides = [1, 1]} : vector<1x30xf32> to vector<1x18xf32>
    %164 = vector.extract_strided_slice %156 {offsets = [0, 7], sizes = [1, 18], strides = [1, 1]} : vector<1x30xf32> to vector<1x18xf32>
    %165 = vector.extract_strided_slice %156 {offsets = [0, 8], sizes = [1, 18], strides = [1, 1]} : vector<1x30xf32> to vector<1x18xf32>
    %166 = vector.extract_strided_slice %156 {offsets = [0, 9], sizes = [1, 18], strides = [1, 1]} : vector<1x30xf32> to vector<1x18xf32>
    %167 = vector.extract_strided_slice %156 {offsets = [0, 10], sizes = [1, 18], strides = [1, 1]} : vector<1x30xf32> to vector<1x18xf32>
    %168 = vector.extract_strided_slice %156 {offsets = [0, 11], sizes = [1, 18], strides = [1, 1]} : vector<1x30xf32> to vector<1x18xf32>
    %169 = vector.extract_strided_slice %156 {offsets = [0, 12], sizes = [1, 18], strides = [1, 1]} : vector<1x30xf32> to vector<1x18xf32>
    %170 = tpu.concatenate %157, %158, %159, %160, %161, %162, %163, %164, %165, %166, %167, %168, %169 in 0 : vector<1x18xf32>, vector<1x18xf32>, vector<1x18xf32>, vector<1x18xf32>, vector<1x18xf32>, vector<1x18xf32>, vector<1x18xf32>, vector<1x18xf32>, vector<1x18xf32>, vector<1x18xf32>, vector<1x18xf32>, vector<1x18xf32>, vector<1x18xf32> -> vector<13x18xf32>
    %171 = vector.extract_strided_slice %5 {offsets = [11, 0], sizes = [1, 30], strides = [1, 1]} : vector<16x30xf32> to vector<1x30xf32>
    %172 = vector.extract_strided_slice %171 {offsets = [0, 0], sizes = [1, 18], strides = [1, 1]} : vector<1x30xf32> to vector<1x18xf32>
    %173 = vector.extract_strided_slice %171 {offsets = [0, 1], sizes = [1, 18], strides = [1, 1]} : vector<1x30xf32> to vector<1x18xf32>
    %174 = vector.extract_strided_slice %171 {offsets = [0, 2], sizes = [1, 18], strides = [1, 1]} : vector<1x30xf32> to vector<1x18xf32>
    %175 = vector.extract_strided_slice %171 {offsets = [0, 3], sizes = [1, 18], strides = [1, 1]} : vector<1x30xf32> to vector<1x18xf32>
    %176 = vector.extract_strided_slice %171 {offsets = [0, 4], sizes = [1, 18], strides = [1, 1]} : vector<1x30xf32> to vector<1x18xf32>
    %177 = vector.extract_strided_slice %171 {offsets = [0, 5], sizes = [1, 18], strides = [1, 1]} : vector<1x30xf32> to vector<1x18xf32>
    %178 = vector.extract_strided_slice %171 {offsets = [0, 6], sizes = [1, 18], strides = [1, 1]} : vector<1x30xf32> to vector<1x18xf32>
    %179 = vector.extract_strided_slice %171 {offsets = [0, 7], sizes = [1, 18], strides = [1, 1]} : vector<1x30xf32> to vector<1x18xf32>
    %180 = vector.extract_strided_slice %171 {offsets = [0, 8], sizes = [1, 18], strides = [1, 1]} : vector<1x30xf32> to vector<1x18xf32>
    %181 = vector.extract_strided_slice %171 {offsets = [0, 9], sizes = [1, 18], strides = [1, 1]} : vector<1x30xf32> to vector<1x18xf32>
    %182 = vector.extract_strided_slice %171 {offsets = [0, 10], sizes = [1, 18], strides = [1, 1]} : vector<1x30xf32> to vector<1x18xf32>
    %183 = vector.extract_strided_slice %171 {offsets = [0, 11], sizes = [1, 18], strides = [1, 1]} : vector<1x30xf32> to vector<1x18xf32>
    %184 = vector.extract_strided_slice %171 {offsets = [0, 12], sizes = [1, 18], strides = [1, 1]} : vector<1x30xf32> to vector<1x18xf32>
    %185 = tpu.concatenate %172, %173, %174, %175, %176, %177, %178, %179, %180, %181, %182, %183, %184 in 0 : vector<1x18xf32>, vector<1x18xf32>, vector<1x18xf32>, vector<1x18xf32>, vector<1x18xf32>, vector<1x18xf32>, vector<1x18xf32>, vector<1x18xf32>, vector<1x18xf32>, vector<1x18xf32>, vector<1x18xf32>, vector<1x18xf32>, vector<1x18xf32> -> vector<13x18xf32>
    %186 = vector.extract_strided_slice %5 {offsets = [12, 0], sizes = [1, 30], strides = [1, 1]} : vector<16x30xf32> to vector<1x30xf32>
    %187 = vector.extract_strided_slice %186 {offsets = [0, 0], sizes = [1, 18], strides = [1, 1]} : vector<1x30xf32> to vector<1x18xf32>
    %188 = vector.extract_strided_slice %186 {offsets = [0, 1], sizes = [1, 18], strides = [1, 1]} : vector<1x30xf32> to vector<1x18xf32>
    %189 = vector.extract_strided_slice %186 {offsets = [0, 2], sizes = [1, 18], strides = [1, 1]} : vector<1x30xf32> to vector<1x18xf32>
    %190 = vector.extract_strided_slice %186 {offsets = [0, 3], sizes = [1, 18], strides = [1, 1]} : vector<1x30xf32> to vector<1x18xf32>
    %191 = vector.extract_strided_slice %186 {offsets = [0, 4], sizes = [1, 18], strides = [1, 1]} : vector<1x30xf32> to vector<1x18xf32>
    %192 = vector.extract_strided_slice %186 {offsets = [0, 5], sizes = [1, 18], strides = [1, 1]} : vector<1x30xf32> to vector<1x18xf32>
    %193 = vector.extract_strided_slice %186 {offsets = [0, 6], sizes = [1, 18], strides = [1, 1]} : vector<1x30xf32> to vector<1x18xf32>
    %194 = vector.extract_strided_slice %186 {offsets = [0, 7], sizes = [1, 18], strides = [1, 1]} : vector<1x30xf32> to vector<1x18xf32>
    %195 = vector.extract_strided_slice %186 {offsets = [0, 8], sizes = [1, 18], strides = [1, 1]} : vector<1x30xf32> to vector<1x18xf32>
    %196 = vector.extract_strided_slice %186 {offsets = [0, 9], sizes = [1, 18], strides = [1, 1]} : vector<1x30xf32> to vector<1x18xf32>
    %197 = vector.extract_strided_slice %186 {offsets = [0, 10], sizes = [1, 18], strides = [1, 1]} : vector<1x30xf32> to vector<1x18xf32>
    %198 = vector.extract_strided_slice %186 {offsets = [0, 11], sizes = [1, 18], strides = [1, 1]} : vector<1x30xf32> to vector<1x18xf32>
    %199 = vector.extract_strided_slice %186 {offsets = [0, 12], sizes = [1, 18], strides = [1, 1]} : vector<1x30xf32> to vector<1x18xf32>
    %200 = tpu.concatenate %187, %188, %189, %190, %191, %192, %193, %194, %195, %196, %197, %198, %199 in 0 : vector<1x18xf32>, vector<1x18xf32>, vector<1x18xf32>, vector<1x18xf32>, vector<1x18xf32>, vector<1x18xf32>, vector<1x18xf32>, vector<1x18xf32>, vector<1x18xf32>, vector<1x18xf32>, vector<1x18xf32>, vector<1x18xf32>, vector<1x18xf32> -> vector<13x18xf32>
    %201 = vector.extract_strided_slice %5 {offsets = [13, 0], sizes = [1, 30], strides = [1, 1]} : vector<16x30xf32> to vector<1x30xf32>
    %202 = vector.extract_strided_slice %201 {offsets = [0, 0], sizes = [1, 18], strides = [1, 1]} : vector<1x30xf32> to vector<1x18xf32>
    %203 = vector.extract_strided_slice %201 {offsets = [0, 1], sizes = [1, 18], strides = [1, 1]} : vector<1x30xf32> to vector<1x18xf32>
    %204 = vector.extract_strided_slice %201 {offsets = [0, 2], sizes = [1, 18], strides = [1, 1]} : vector<1x30xf32> to vector<1x18xf32>
    %205 = vector.extract_strided_slice %201 {offsets = [0, 3], sizes = [1, 18], strides = [1, 1]} : vector<1x30xf32> to vector<1x18xf32>
    %206 = vector.extract_strided_slice %201 {offsets = [0, 4], sizes = [1, 18], strides = [1, 1]} : vector<1x30xf32> to vector<1x18xf32>
    %207 = vector.extract_strided_slice %201 {offsets = [0, 5], sizes = [1, 18], strides = [1, 1]} : vector<1x30xf32> to vector<1x18xf32>
    %208 = vector.extract_strided_slice %201 {offsets = [0, 6], sizes = [1, 18], strides = [1, 1]} : vector<1x30xf32> to vector<1x18xf32>
    %209 = vector.extract_strided_slice %201 {offsets = [0, 7], sizes = [1, 18], strides = [1, 1]} : vector<1x30xf32> to vector<1x18xf32>
    %210 = vector.extract_strided_slice %201 {offsets = [0, 8], sizes = [1, 18], strides = [1, 1]} : vector<1x30xf32> to vector<1x18xf32>
    %211 = vector.extract_strided_slice %201 {offsets = [0, 9], sizes = [1, 18], strides = [1, 1]} : vector<1x30xf32> to vector<1x18xf32>
    %212 = vector.extract_strided_slice %201 {offsets = [0, 10], sizes = [1, 18], strides = [1, 1]} : vector<1x30xf32> to vector<1x18xf32>
    %213 = vector.extract_strided_slice %201 {offsets = [0, 11], sizes = [1, 18], strides = [1, 1]} : vector<1x30xf32> to vector<1x18xf32>
    %214 = vector.extract_strided_slice %201 {offsets = [0, 12], sizes = [1, 18], strides = [1, 1]} : vector<1x30xf32> to vector<1x18xf32>
    %215 = tpu.concatenate %202, %203, %204, %205, %206, %207, %208, %209, %210, %211, %212, %213, %214 in 0 : vector<1x18xf32>, vector<1x18xf32>, vector<1x18xf32>, vector<1x18xf32>, vector<1x18xf32>, vector<1x18xf32>, vector<1x18xf32>, vector<1x18xf32>, vector<1x18xf32>, vector<1x18xf32>, vector<1x18xf32>, vector<1x18xf32>, vector<1x18xf32> -> vector<13x18xf32>
    %216 = vector.extract_strided_slice %5 {offsets = [14, 0], sizes = [1, 30], strides = [1, 1]} : vector<16x30xf32> to vector<1x30xf32>
    %217 = vector.extract_strided_slice %216 {offsets = [0, 0], sizes = [1, 18], strides = [1, 1]} : vector<1x30xf32> to vector<1x18xf32>
    %218 = vector.extract_strided_slice %216 {offsets = [0, 1], sizes = [1, 18], strides = [1, 1]} : vector<1x30xf32> to vector<1x18xf32>
    %219 = vector.extract_strided_slice %216 {offsets = [0, 2], sizes = [1, 18], strides = [1, 1]} : vector<1x30xf32> to vector<1x18xf32>
    %220 = vector.extract_strided_slice %216 {offsets = [0, 3], sizes = [1, 18], strides = [1, 1]} : vector<1x30xf32> to vector<1x18xf32>
    %221 = vector.extract_strided_slice %216 {offsets = [0, 4], sizes = [1, 18], strides = [1, 1]} : vector<1x30xf32> to vector<1x18xf32>
    %222 = vector.extract_strided_slice %216 {offsets = [0, 5], sizes = [1, 18], strides = [1, 1]} : vector<1x30xf32> to vector<1x18xf32>
    %223 = vector.extract_strided_slice %216 {offsets = [0, 6], sizes = [1, 18], strides = [1, 1]} : vector<1x30xf32> to vector<1x18xf32>
    %224 = vector.extract_strided_slice %216 {offsets = [0, 7], sizes = [1, 18], strides = [1, 1]} : vector<1x30xf32> to vector<1x18xf32>
    %225 = vector.extract_strided_slice %216 {offsets = [0, 8], sizes = [1, 18], strides = [1, 1]} : vector<1x30xf32> to vector<1x18xf32>
    %226 = vector.extract_strided_slice %216 {offsets = [0, 9], sizes = [1, 18], strides = [1, 1]} : vector<1x30xf32> to vector<1x18xf32>
    %227 = vector.extract_strided_slice %216 {offsets = [0, 10], sizes = [1, 18], strides = [1, 1]} : vector<1x30xf32> to vector<1x18xf32>
    %228 = vector.extract_strided_slice %216 {offsets = [0, 11], sizes = [1, 18], strides = [1, 1]} : vector<1x30xf32> to vector<1x18xf32>
    %229 = vector.extract_strided_slice %216 {offsets = [0, 12], sizes = [1, 18], strides = [1, 1]} : vector<1x30xf32> to vector<1x18xf32>
    %230 = tpu.concatenate %217, %218, %219, %220, %221, %222, %223, %224, %225, %226, %227, %228, %229 in 0 : vector<1x18xf32>, vector<1x18xf32>, vector<1x18xf32>, vector<1x18xf32>, vector<1x18xf32>, vector<1x18xf32>, vector<1x18xf32>, vector<1x18xf32>, vector<1x18xf32>, vector<1x18xf32>, vector<1x18xf32>, vector<1x18xf32>, vector<1x18xf32> -> vector<13x18xf32>
    %231 = vector.extract_strided_slice %5 {offsets = [15, 0], sizes = [1, 30], strides = [1, 1]} : vector<16x30xf32> to vector<1x30xf32>
    %232 = vector.extract_strided_slice %231 {offsets = [0, 0], sizes = [1, 18], strides = [1, 1]} : vector<1x30xf32> to vector<1x18xf32>
    %233 = vector.extract_strided_slice %231 {offsets = [0, 1], sizes = [1, 18], strides = [1, 1]} : vector<1x30xf32> to vector<1x18xf32>
    %234 = vector.extract_strided_slice %231 {offsets = [0, 2], sizes = [1, 18], strides = [1, 1]} : vector<1x30xf32> to vector<1x18xf32>
    %235 = vector.extract_strided_slice %231 {offsets = [0, 3], sizes = [1, 18], strides = [1, 1]} : vector<1x30xf32> to vector<1x18xf32>
    %236 = vector.extract_strided_slice %231 {offsets = [0, 4], sizes = [1, 18], strides = [1, 1]} : vector<1x30xf32> to vector<1x18xf32>
    %237 = vector.extract_strided_slice %231 {offsets = [0, 5], sizes = [1, 18], strides = [1, 1]} : vector<1x30xf32> to vector<1x18xf32>
    %238 = vector.extract_strided_slice %231 {offsets = [0, 6], sizes = [1, 18], strides = [1, 1]} : vector<1x30xf32> to vector<1x18xf32>
    %239 = vector.extract_strided_slice %231 {offsets = [0, 7], sizes = [1, 18], strides = [1, 1]} : vector<1x30xf32> to vector<1x18xf32>
    %240 = vector.extract_strided_slice %231 {offsets = [0, 8], sizes = [1, 18], strides = [1, 1]} : vector<1x30xf32> to vector<1x18xf32>
    %241 = vector.extract_strided_slice %231 {offsets = [0, 9], sizes = [1, 18], strides = [1, 1]} : vector<1x30xf32> to vector<1x18xf32>
    %242 = vector.extract_strided_slice %231 {offsets = [0, 10], sizes = [1, 18], strides = [1, 1]} : vector<1x30xf32> to vector<1x18xf32>
    %243 = vector.extract_strided_slice %231 {offsets = [0, 11], sizes = [1, 18], strides = [1, 1]} : vector<1x30xf32> to vector<1x18xf32>
    %244 = vector.extract_strided_slice %231 {offsets = [0, 12], sizes = [1, 18], strides = [1, 1]} : vector<1x30xf32> to vector<1x18xf32>
    %245 = tpu.concatenate %232, %233, %234, %235, %236, %237, %238, %239, %240, %241, %242, %243, %244 in 0 : vector<1x18xf32>, vector<1x18xf32>, vector<1x18xf32>, vector<1x18xf32>, vector<1x18xf32>, vector<1x18xf32>, vector<1x18xf32>, vector<1x18xf32>, vector<1x18xf32>, vector<1x18xf32>, vector<1x18xf32>, vector<1x18xf32>, vector<1x18xf32> -> vector<13x18xf32>
    %246 = vector.extract_strided_slice %0 {offsets = [1, 0, 0], sizes = [1, 16, 30], strides = [1, 1, 1]} : vector<2x16x30xf32> to vector<1x16x30xf32>
    %247 = vector.shape_cast %246 : vector<1x16x30xf32> to vector<16x30xf32>
    %248 = vector.extract_strided_slice %247 {offsets = [0, 0], sizes = [1, 30], strides = [1, 1]} : vector<16x30xf32> to vector<1x30xf32>
    %249 = vector.extract_strided_slice %248 {offsets = [0, 0], sizes = [1, 18], strides = [1, 1]} : vector<1x30xf32> to vector<1x18xf32>
    %250 = vector.extract_strided_slice %248 {offsets = [0, 1], sizes = [1, 18], strides = [1, 1]} : vector<1x30xf32> to vector<1x18xf32>
    %251 = vector.extract_strided_slice %248 {offsets = [0, 2], sizes = [1, 18], strides = [1, 1]} : vector<1x30xf32> to vector<1x18xf32>
    %252 = vector.extract_strided_slice %248 {offsets = [0, 3], sizes = [1, 18], strides = [1, 1]} : vector<1x30xf32> to vector<1x18xf32>
    %253 = vector.extract_strided_slice %248 {offsets = [0, 4], sizes = [1, 18], strides = [1, 1]} : vector<1x30xf32> to vector<1x18xf32>
    %254 = vector.extract_strided_slice %248 {offsets = [0, 5], sizes = [1, 18], strides = [1, 1]} : vector<1x30xf32> to vector<1x18xf32>
    %255 = vector.extract_strided_slice %248 {offsets = [0, 6], sizes = [1, 18], strides = [1, 1]} : vector<1x30xf32> to vector<1x18xf32>
    %256 = vector.extract_strided_slice %248 {offsets = [0, 7], sizes = [1, 18], strides = [1, 1]} : vector<1x30xf32> to vector<1x18xf32>
    %257 = vector.extract_strided_slice %248 {offsets = [0, 8], sizes = [1, 18], strides = [1, 1]} : vector<1x30xf32> to vector<1x18xf32>
    %258 = vector.extract_strided_slice %248 {offsets = [0, 9], sizes = [1, 18], strides = [1, 1]} : vector<1x30xf32> to vector<1x18xf32>
    %259 = vector.extract_strided_slice %248 {offsets = [0, 10], sizes = [1, 18], strides = [1, 1]} : vector<1x30xf32> to vector<1x18xf32>
    %260 = vector.extract_strided_slice %248 {offsets = [0, 11], sizes = [1, 18], strides = [1, 1]} : vector<1x30xf32> to vector<1x18xf32>
    %261 = vector.extract_strided_slice %248 {offsets = [0, 12], sizes = [1, 18], strides = [1, 1]} : vector<1x30xf32> to vector<1x18xf32>
    %262 = tpu.concatenate %249, %250, %251, %252, %253, %254, %255, %256, %257, %258, %259, %260, %261 in 0 : vector<1x18xf32>, vector<1x18xf32>, vector<1x18xf32>, vector<1x18xf32>, vector<1x18xf32>, vector<1x18xf32>, vector<1x18xf32>, vector<1x18xf32>, vector<1x18xf32>, vector<1x18xf32>, vector<1x18xf32>, vector<1x18xf32>, vector<1x18xf32> -> vector<13x18xf32>
    %263 = vector.extract_strided_slice %247 {offsets = [1, 0], sizes = [1, 30], strides = [1, 1]} : vector<16x30xf32> to vector<1x30xf32>
    %264 = vector.extract_strided_slice %263 {offsets = [0, 0], sizes = [1, 18], strides = [1, 1]} : vector<1x30xf32> to vector<1x18xf32>
    %265 = vector.extract_strided_slice %263 {offsets = [0, 1], sizes = [1, 18], strides = [1, 1]} : vector<1x30xf32> to vector<1x18xf32>
    %266 = vector.extract_strided_slice %263 {offsets = [0, 2], sizes = [1, 18], strides = [1, 1]} : vector<1x30xf32> to vector<1x18xf32>
    %267 = vector.extract_strided_slice %263 {offsets = [0, 3], sizes = [1, 18], strides = [1, 1]} : vector<1x30xf32> to vector<1x18xf32>
    %268 = vector.extract_strided_slice %263 {offsets = [0, 4], sizes = [1, 18], strides = [1, 1]} : vector<1x30xf32> to vector<1x18xf32>
    %269 = vector.extract_strided_slice %263 {offsets = [0, 5], sizes = [1, 18], strides = [1, 1]} : vector<1x30xf32> to vector<1x18xf32>
    %270 = vector.extract_strided_slice %263 {offsets = [0, 6], sizes = [1, 18], strides = [1, 1]} : vector<1x30xf32> to vector<1x18xf32>
    %271 = vector.extract_strided_slice %263 {offsets = [0, 7], sizes = [1, 18], strides = [1, 1]} : vector<1x30xf32> to vector<1x18xf32>
    %272 = vector.extract_strided_slice %263 {offsets = [0, 8], sizes = [1, 18], strides = [1, 1]} : vector<1x30xf32> to vector<1x18xf32>
    %273 = vector.extract_strided_slice %263 {offsets = [0, 9], sizes = [1, 18], strides = [1, 1]} : vector<1x30xf32> to vector<1x18xf32>
    %274 = vector.extract_strided_slice %263 {offsets = [0, 10], sizes = [1, 18], strides = [1, 1]} : vector<1x30xf32> to vector<1x18xf32>
    %275 = vector.extract_strided_slice %263 {offsets = [0, 11], sizes = [1, 18], strides = [1, 1]} : vector<1x30xf32> to vector<1x18xf32>
    %276 = vector.extract_strided_slice %263 {offsets = [0, 12], sizes = [1, 18], strides = [1, 1]} : vector<1x30xf32> to vector<1x18xf32>
    %277 = tpu.concatenate %264, %265, %266, %267, %268, %269, %270, %271, %272, %273, %274, %275, %276 in 0 : vector<1x18xf32>, vector<1x18xf32>, vector<1x18xf32>, vector<1x18xf32>, vector<1x18xf32>, vector<1x18xf32>, vector<1x18xf32>, vector<1x18xf32>, vector<1x18xf32>, vector<1x18xf32>, vector<1x18xf32>, vector<1x18xf32>, vector<1x18xf32> -> vector<13x18xf32>
    %278 = vector.extract_strided_slice %247 {offsets = [2, 0], sizes = [1, 30], strides = [1, 1]} : vector<16x30xf32> to vector<1x30xf32>
    %279 = vector.extract_strided_slice %278 {offsets = [0, 0], sizes = [1, 18], strides = [1, 1]} : vector<1x30xf32> to vector<1x18xf32>
    %280 = vector.extract_strided_slice %278 {offsets = [0, 1], sizes = [1, 18], strides = [1, 1]} : vector<1x30xf32> to vector<1x18xf32>
    %281 = vector.extract_strided_slice %278 {offsets = [0, 2], sizes = [1, 18], strides = [1, 1]} : vector<1x30xf32> to vector<1x18xf32>
    %282 = vector.extract_strided_slice %278 {offsets = [0, 3], sizes = [1, 18], strides = [1, 1]} : vector<1x30xf32> to vector<1x18xf32>
    %283 = vector.extract_strided_slice %278 {offsets = [0, 4], sizes = [1, 18], strides = [1, 1]} : vector<1x30xf32> to vector<1x18xf32>
    %284 = vector.extract_strided_slice %278 {offsets = [0, 5], sizes = [1, 18], strides = [1, 1]} : vector<1x30xf32> to vector<1x18xf32>
    %285 = vector.extract_strided_slice %278 {offsets = [0, 6], sizes = [1, 18], strides = [1, 1]} : vector<1x30xf32> to vector<1x18xf32>
    %286 = vector.extract_strided_slice %278 {offsets = [0, 7], sizes = [1, 18], strides = [1, 1]} : vector<1x30xf32> to vector<1x18xf32>
    %287 = vector.extract_strided_slice %278 {offsets = [0, 8], sizes = [1, 18], strides = [1, 1]} : vector<1x30xf32> to vector<1x18xf32>
    %288 = vector.extract_strided_slice %278 {offsets = [0, 9], sizes = [1, 18], strides = [1, 1]} : vector<1x30xf32> to vector<1x18xf32>
    %289 = vector.extract_strided_slice %278 {offsets = [0, 10], sizes = [1, 18], strides = [1, 1]} : vector<1x30xf32> to vector<1x18xf32>
    %290 = vector.extract_strided_slice %278 {offsets = [0, 11], sizes = [1, 18], strides = [1, 1]} : vector<1x30xf32> to vector<1x18xf32>
    %291 = vector.extract_strided_slice %278 {offsets = [0, 12], sizes = [1, 18], strides = [1, 1]} : vector<1x30xf32> to vector<1x18xf32>
    %292 = tpu.concatenate %279, %280, %281, %282, %283, %284, %285, %286, %287, %288, %289, %290, %291 in 0 : vector<1x18xf32>, vector<1x18xf32>, vector<1x18xf32>, vector<1x18xf32>, vector<1x18xf32>, vector<1x18xf32>, vector<1x18xf32>, vector<1x18xf32>, vector<1x18xf32>, vector<1x18xf32>, vector<1x18xf32>, vector<1x18xf32>, vector<1x18xf32> -> vector<13x18xf32>
    %293 = vector.extract_strided_slice %247 {offsets = [3, 0], sizes = [1, 30], strides = [1, 1]} : vector<16x30xf32> to vector<1x30xf32>
    %294 = vector.extract_strided_slice %293 {offsets = [0, 0], sizes = [1, 18], strides = [1, 1]} : vector<1x30xf32> to vector<1x18xf32>
    %295 = vector.extract_strided_slice %293 {offsets = [0, 1], sizes = [1, 18], strides = [1, 1]} : vector<1x30xf32> to vector<1x18xf32>
    %296 = vector.extract_strided_slice %293 {offsets = [0, 2], sizes = [1, 18], strides = [1, 1]} : vector<1x30xf32> to vector<1x18xf32>
    %297 = vector.extract_strided_slice %293 {offsets = [0, 3], sizes = [1, 18], strides = [1, 1]} : vector<1x30xf32> to vector<1x18xf32>
    %298 = vector.extract_strided_slice %293 {offsets = [0, 4], sizes = [1, 18], strides = [1, 1]} : vector<1x30xf32> to vector<1x18xf32>
    %299 = vector.extract_strided_slice %293 {offsets = [0, 5], sizes = [1, 18], strides = [1, 1]} : vector<1x30xf32> to vector<1x18xf32>
    %300 = vector.extract_strided_slice %293 {offsets = [0, 6], sizes = [1, 18], strides = [1, 1]} : vector<1x30xf32> to vector<1x18xf32>
    %301 = vector.extract_strided_slice %293 {offsets = [0, 7], sizes = [1, 18], strides = [1, 1]} : vector<1x30xf32> to vector<1x18xf32>
    %302 = vector.extract_strided_slice %293 {offsets = [0, 8], sizes = [1, 18], strides = [1, 1]} : vector<1x30xf32> to vector<1x18xf32>
    %303 = vector.extract_strided_slice %293 {offsets = [0, 9], sizes = [1, 18], strides = [1, 1]} : vector<1x30xf32> to vector<1x18xf32>
    %304 = vector.extract_strided_slice %293 {offsets = [0, 10], sizes = [1, 18], strides = [1, 1]} : vector<1x30xf32> to vector<1x18xf32>
    %305 = vector.extract_strided_slice %293 {offsets = [0, 11], sizes = [1, 18], strides = [1, 1]} : vector<1x30xf32> to vector<1x18xf32>
    %306 = vector.extract_strided_slice %293 {offsets = [0, 12], sizes = [1, 18], strides = [1, 1]} : vector<1x30xf32> to vector<1x18xf32>
    %307 = tpu.concatenate %294, %295, %296, %297, %298, %299, %300, %301, %302, %303, %304, %305, %306 in 0 : vector<1x18xf32>, vector<1x18xf32>, vector<1x18xf32>, vector<1x18xf32>, vector<1x18xf32>, vector<1x18xf32>, vector<1x18xf32>, vector<1x18xf32>, vector<1x18xf32>, vector<1x18xf32>, vector<1x18xf32>, vector<1x18xf32>, vector<1x18xf32> -> vector<13x18xf32>
    %308 = vector.extract_strided_slice %247 {offsets = [4, 0], sizes = [1, 30], strides = [1, 1]} : vector<16x30xf32> to vector<1x30xf32>
    %309 = vector.extract_strided_slice %308 {offsets = [0, 0], sizes = [1, 18], strides = [1, 1]} : vector<1x30xf32> to vector<1x18xf32>
    %310 = vector.extract_strided_slice %308 {offsets = [0, 1], sizes = [1, 18], strides = [1, 1]} : vector<1x30xf32> to vector<1x18xf32>
    %311 = vector.extract_strided_slice %308 {offsets = [0, 2], sizes = [1, 18], strides = [1, 1]} : vector<1x30xf32> to vector<1x18xf32>
    %312 = vector.extract_strided_slice %308 {offsets = [0, 3], sizes = [1, 18], strides = [1, 1]} : vector<1x30xf32> to vector<1x18xf32>
    %313 = vector.extract_strided_slice %308 {offsets = [0, 4], sizes = [1, 18], strides = [1, 1]} : vector<1x30xf32> to vector<1x18xf32>
    %314 = vector.extract_strided_slice %308 {offsets = [0, 5], sizes = [1, 18], strides = [1, 1]} : vector<1x30xf32> to vector<1x18xf32>
    %315 = vector.extract_strided_slice %308 {offsets = [0, 6], sizes = [1, 18], strides = [1, 1]} : vector<1x30xf32> to vector<1x18xf32>
    %316 = vector.extract_strided_slice %308 {offsets = [0, 7], sizes = [1, 18], strides = [1, 1]} : vector<1x30xf32> to vector<1x18xf32>
    %317 = vector.extract_strided_slice %308 {offsets = [0, 8], sizes = [1, 18], strides = [1, 1]} : vector<1x30xf32> to vector<1x18xf32>
    %318 = vector.extract_strided_slice %308 {offsets = [0, 9], sizes = [1, 18], strides = [1, 1]} : vector<1x30xf32> to vector<1x18xf32>
    %319 = vector.extract_strided_slice %308 {offsets = [0, 10], sizes = [1, 18], strides = [1, 1]} : vector<1x30xf32> to vector<1x18xf32>
    %320 = vector.extract_strided_slice %308 {offsets = [0, 11], sizes = [1, 18], strides = [1, 1]} : vector<1x30xf32> to vector<1x18xf32>
    %321 = vector.extract_strided_slice %308 {offsets = [0, 12], sizes = [1, 18], strides = [1, 1]} : vector<1x30xf32> to vector<1x18xf32>
    %322 = tpu.concatenate %309, %310, %311, %312, %313, %314, %315, %316, %317, %318, %319, %320, %321 in 0 : vector<1x18xf32>, vector<1x18xf32>, vector<1x18xf32>, vector<1x18xf32>, vector<1x18xf32>, vector<1x18xf32>, vector<1x18xf32>, vector<1x18xf32>, vector<1x18xf32>, vector<1x18xf32>, vector<1x18xf32>, vector<1x18xf32>, vector<1x18xf32> -> vector<13x18xf32>
    %323 = vector.extract_strided_slice %247 {offsets = [5, 0], sizes = [1, 30], strides = [1, 1]} : vector<16x30xf32> to vector<1x30xf32>
    %324 = vector.extract_strided_slice %323 {offsets = [0, 0], sizes = [1, 18], strides = [1, 1]} : vector<1x30xf32> to vector<1x18xf32>
    %325 = vector.extract_strided_slice %323 {offsets = [0, 1], sizes = [1, 18], strides = [1, 1]} : vector<1x30xf32> to vector<1x18xf32>
    %326 = vector.extract_strided_slice %323 {offsets = [0, 2], sizes = [1, 18], strides = [1, 1]} : vector<1x30xf32> to vector<1x18xf32>
    %327 = vector.extract_strided_slice %323 {offsets = [0, 3], sizes = [1, 18], strides = [1, 1]} : vector<1x30xf32> to vector<1x18xf32>
    %328 = vector.extract_strided_slice %323 {offsets = [0, 4], sizes = [1, 18], strides = [1, 1]} : vector<1x30xf32> to vector<1x18xf32>
    %329 = vector.extract_strided_slice %323 {offsets = [0, 5], sizes = [1, 18], strides = [1, 1]} : vector<1x30xf32> to vector<1x18xf32>
    %330 = vector.extract_strided_slice %323 {offsets = [0, 6], sizes = [1, 18], strides = [1, 1]} : vector<1x30xf32> to vector<1x18xf32>
    %331 = vector.extract_strided_slice %323 {offsets = [0, 7], sizes = [1, 18], strides = [1, 1]} : vector<1x30xf32> to vector<1x18xf32>
    %332 = vector.extract_strided_slice %323 {offsets = [0, 8], sizes = [1, 18], strides = [1, 1]} : vector<1x30xf32> to vector<1x18xf32>
    %333 = vector.extract_strided_slice %323 {offsets = [0, 9], sizes = [1, 18], strides = [1, 1]} : vector<1x30xf32> to vector<1x18xf32>
    %334 = vector.extract_strided_slice %323 {offsets = [0, 10], sizes = [1, 18], strides = [1, 1]} : vector<1x30xf32> to vector<1x18xf32>
    %335 = vector.extract_strided_slice %323 {offsets = [0, 11], sizes = [1, 18], strides = [1, 1]} : vector<1x30xf32> to vector<1x18xf32>
    %336 = vector.extract_strided_slice %323 {offsets = [0, 12], sizes = [1, 18], strides = [1, 1]} : vector<1x30xf32> to vector<1x18xf32>
    %337 = tpu.concatenate %324, %325, %326, %327, %328, %329, %330, %331, %332, %333, %334, %335, %336 in 0 : vector<1x18xf32>, vector<1x18xf32>, vector<1x18xf32>, vector<1x18xf32>, vector<1x18xf32>, vector<1x18xf32>, vector<1x18xf32>, vector<1x18xf32>, vector<1x18xf32>, vector<1x18xf32>, vector<1x18xf32>, vector<1x18xf32>, vector<1x18xf32> -> vector<13x18xf32>
    %338 = vector.extract_strided_slice %247 {offsets = [6, 0], sizes = [1, 30], strides = [1, 1]} : vector<16x30xf32> to vector<1x30xf32>
    %339 = vector.extract_strided_slice %338 {offsets = [0, 0], sizes = [1, 18], strides = [1, 1]} : vector<1x30xf32> to vector<1x18xf32>
    %340 = vector.extract_strided_slice %338 {offsets = [0, 1], sizes = [1, 18], strides = [1, 1]} : vector<1x30xf32> to vector<1x18xf32>
    %341 = vector.extract_strided_slice %338 {offsets = [0, 2], sizes = [1, 18], strides = [1, 1]} : vector<1x30xf32> to vector<1x18xf32>
    %342 = vector.extract_strided_slice %338 {offsets = [0, 3], sizes = [1, 18], strides = [1, 1]} : vector<1x30xf32> to vector<1x18xf32>
    %343 = vector.extract_strided_slice %338 {offsets = [0, 4], sizes = [1, 18], strides = [1, 1]} : vector<1x30xf32> to vector<1x18xf32>
    %344 = vector.extract_strided_slice %338 {offsets = [0, 5], sizes = [1, 18], strides = [1, 1]} : vector<1x30xf32> to vector<1x18xf32>
    %345 = vector.extract_strided_slice %338 {offsets = [0, 6], sizes = [1, 18], strides = [1, 1]} : vector<1x30xf32> to vector<1x18xf32>
    %346 = vector.extract_strided_slice %338 {offsets = [0, 7], sizes = [1, 18], strides = [1, 1]} : vector<1x30xf32> to vector<1x18xf32>
    %347 = vector.extract_strided_slice %338 {offsets = [0, 8], sizes = [1, 18], strides = [1, 1]} : vector<1x30xf32> to vector<1x18xf32>
    %348 = vector.extract_strided_slice %338 {offsets = [0, 9], sizes = [1, 18], strides = [1, 1]} : vector<1x30xf32> to vector<1x18xf32>
    %349 = vector.extract_strided_slice %338 {offsets = [0, 10], sizes = [1, 18], strides = [1, 1]} : vector<1x30xf32> to vector<1x18xf32>
    %350 = vector.extract_strided_slice %338 {offsets = [0, 11], sizes = [1, 18], strides = [1, 1]} : vector<1x30xf32> to vector<1x18xf32>
    %351 = vector.extract_strided_slice %338 {offsets = [0, 12], sizes = [1, 18], strides = [1, 1]} : vector<1x30xf32> to vector<1x18xf32>
    %352 = tpu.concatenate %339, %340, %341, %342, %343, %344, %345, %346, %347, %348, %349, %350, %351 in 0 : vector<1x18xf32>, vector<1x18xf32>, vector<1x18xf32>, vector<1x18xf32>, vector<1x18xf32>, vector<1x18xf32>, vector<1x18xf32>, vector<1x18xf32>, vector<1x18xf32>, vector<1x18xf32>, vector<1x18xf32>, vector<1x18xf32>, vector<1x18xf32> -> vector<13x18xf32>
    %353 = vector.extract_strided_slice %247 {offsets = [7, 0], sizes = [1, 30], strides = [1, 1]} : vector<16x30xf32> to vector<1x30xf32>
    %354 = vector.extract_strided_slice %353 {offsets = [0, 0], sizes = [1, 18], strides = [1, 1]} : vector<1x30xf32> to vector<1x18xf32>
    %355 = vector.extract_strided_slice %353 {offsets = [0, 1], sizes = [1, 18], strides = [1, 1]} : vector<1x30xf32> to vector<1x18xf32>
    %356 = vector.extract_strided_slice %353 {offsets = [0, 2], sizes = [1, 18], strides = [1, 1]} : vector<1x30xf32> to vector<1x18xf32>
    %357 = vector.extract_strided_slice %353 {offsets = [0, 3], sizes = [1, 18], strides = [1, 1]} : vector<1x30xf32> to vector<1x18xf32>
    %358 = vector.extract_strided_slice %353 {offsets = [0, 4], sizes = [1, 18], strides = [1, 1]} : vector<1x30xf32> to vector<1x18xf32>
    %359 = vector.extract_strided_slice %353 {offsets = [0, 5], sizes = [1, 18], strides = [1, 1]} : vector<1x30xf32> to vector<1x18xf32>
    %360 = vector.extract_strided_slice %353 {offsets = [0, 6], sizes = [1, 18], strides = [1, 1]} : vector<1x30xf32> to vector<1x18xf32>
    %361 = vector.extract_strided_slice %353 {offsets = [0, 7], sizes = [1, 18], strides = [1, 1]} : vector<1x30xf32> to vector<1x18xf32>
    %362 = vector.extract_strided_slice %353 {offsets = [0, 8], sizes = [1, 18], strides = [1, 1]} : vector<1x30xf32> to vector<1x18xf32>
    %363 = vector.extract_strided_slice %353 {offsets = [0, 9], sizes = [1, 18], strides = [1, 1]} : vector<1x30xf32> to vector<1x18xf32>
    %364 = vector.extract_strided_slice %353 {offsets = [0, 10], sizes = [1, 18], strides = [1, 1]} : vector<1x30xf32> to vector<1x18xf32>
    %365 = vector.extract_strided_slice %353 {offsets = [0, 11], sizes = [1, 18], strides = [1, 1]} : vector<1x30xf32> to vector<1x18xf32>
    %366 = vector.extract_strided_slice %353 {offsets = [0, 12], sizes = [1, 18], strides = [1, 1]} : vector<1x30xf32> to vector<1x18xf32>
    %367 = tpu.concatenate %354, %355, %356, %357, %358, %359, %360, %361, %362, %363, %364, %365, %366 in 0 : vector<1x18xf32>, vector<1x18xf32>, vector<1x18xf32>, vector<1x18xf32>, vector<1x18xf32>, vector<1x18xf32>, vector<1x18xf32>, vector<1x18xf32>, vector<1x18xf32>, vector<1x18xf32>, vector<1x18xf32>, vector<1x18xf32>, vector<1x18xf32> -> vector<13x18xf32>
    %368 = vector.extract_strided_slice %247 {offsets = [8, 0], sizes = [1, 30], strides = [1, 1]} : vector<16x30xf32> to vector<1x30xf32>
    %369 = vector.extract_strided_slice %368 {offsets = [0, 0], sizes = [1, 18], strides = [1, 1]} : vector<1x30xf32> to vector<1x18xf32>
    %370 = vector.extract_strided_slice %368 {offsets = [0, 1], sizes = [1, 18], strides = [1, 1]} : vector<1x30xf32> to vector<1x18xf32>
    %371 = vector.extract_strided_slice %368 {offsets = [0, 2], sizes = [1, 18], strides = [1, 1]} : vector<1x30xf32> to vector<1x18xf32>
    %372 = vector.extract_strided_slice %368 {offsets = [0, 3], sizes = [1, 18], strides = [1, 1]} : vector<1x30xf32> to vector<1x18xf32>
    %373 = vector.extract_strided_slice %368 {offsets = [0, 4], sizes = [1, 18], strides = [1, 1]} : vector<1x30xf32> to vector<1x18xf32>
    %374 = vector.extract_strided_slice %368 {offsets = [0, 5], sizes = [1, 18], strides = [1, 1]} : vector<1x30xf32> to vector<1x18xf32>
    %375 = vector.extract_strided_slice %368 {offsets = [0, 6], sizes = [1, 18], strides = [1, 1]} : vector<1x30xf32> to vector<1x18xf32>
    %376 = vector.extract_strided_slice %368 {offsets = [0, 7], sizes = [1, 18], strides = [1, 1]} : vector<1x30xf32> to vector<1x18xf32>
    %377 = vector.extract_strided_slice %368 {offsets = [0, 8], sizes = [1, 18], strides = [1, 1]} : vector<1x30xf32> to vector<1x18xf32>
    %378 = vector.extract_strided_slice %368 {offsets = [0, 9], sizes = [1, 18], strides = [1, 1]} : vector<1x30xf32> to vector<1x18xf32>
    %379 = vector.extract_strided_slice %368 {offsets = [0, 10], sizes = [1, 18], strides = [1, 1]} : vector<1x30xf32> to vector<1x18xf32>
    %380 = vector.extract_strided_slice %368 {offsets = [0, 11], sizes = [1, 18], strides = [1, 1]} : vector<1x30xf32> to vector<1x18xf32>
    %381 = vector.extract_strided_slice %368 {offsets = [0, 12], sizes = [1, 18], strides = [1, 1]} : vector<1x30xf32> to vector<1x18xf32>
    %382 = tpu.concatenate %369, %370, %371, %372, %373, %374, %375, %376, %377, %378, %379, %380, %381 in 0 : vector<1x18xf32>, vector<1x18xf32>, vector<1x18xf32>, vector<1x18xf32>, vector<1x18xf32>, vector<1x18xf32>, vector<1x18xf32>, vector<1x18xf32>, vector<1x18xf32>, vector<1x18xf32>, vector<1x18xf32>, vector<1x18xf32>, vector<1x18xf32> -> vector<13x18xf32>
    %383 = vector.extract_strided_slice %247 {offsets = [9, 0], sizes = [1, 30], strides = [1, 1]} : vector<16x30xf32> to vector<1x30xf32>
    %384 = vector.extract_strided_slice %383 {offsets = [0, 0], sizes = [1, 18], strides = [1, 1]} : vector<1x30xf32> to vector<1x18xf32>
    %385 = vector.extract_strided_slice %383 {offsets = [0, 1], sizes = [1, 18], strides = [1, 1]} : vector<1x30xf32> to vector<1x18xf32>
    %386 = vector.extract_strided_slice %383 {offsets = [0, 2], sizes = [1, 18], strides = [1, 1]} : vector<1x30xf32> to vector<1x18xf32>
    %387 = vector.extract_strided_slice %383 {offsets = [0, 3], sizes = [1, 18], strides = [1, 1]} : vector<1x30xf32> to vector<1x18xf32>
    %388 = vector.extract_strided_slice %383 {offsets = [0, 4], sizes = [1, 18], strides = [1, 1]} : vector<1x30xf32> to vector<1x18xf32>
    %389 = vector.extract_strided_slice %383 {offsets = [0, 5], sizes = [1, 18], strides = [1, 1]} : vector<1x30xf32> to vector<1x18xf32>
    %390 = vector.extract_strided_slice %383 {offsets = [0, 6], sizes = [1, 18], strides = [1, 1]} : vector<1x30xf32> to vector<1x18xf32>
    %391 = vector.extract_strided_slice %383 {offsets = [0, 7], sizes = [1, 18], strides = [1, 1]} : vector<1x30xf32> to vector<1x18xf32>
    %392 = vector.extract_strided_slice %383 {offsets = [0, 8], sizes = [1, 18], strides = [1, 1]} : vector<1x30xf32> to vector<1x18xf32>
    %393 = vector.extract_strided_slice %383 {offsets = [0, 9], sizes = [1, 18], strides = [1, 1]} : vector<1x30xf32> to vector<1x18xf32>
    %394 = vector.extract_strided_slice %383 {offsets = [0, 10], sizes = [1, 18], strides = [1, 1]} : vector<1x30xf32> to vector<1x18xf32>
    %395 = vector.extract_strided_slice %383 {offsets = [0, 11], sizes = [1, 18], strides = [1, 1]} : vector<1x30xf32> to vector<1x18xf32>
    %396 = vector.extract_strided_slice %383 {offsets = [0, 12], sizes = [1, 18], strides = [1, 1]} : vector<1x30xf32> to vector<1x18xf32>
    %397 = tpu.concatenate %384, %385, %386, %387, %388, %389, %390, %391, %392, %393, %394, %395, %396 in 0 : vector<1x18xf32>, vector<1x18xf32>, vector<1x18xf32>, vector<1x18xf32>, vector<1x18xf32>, vector<1x18xf32>, vector<1x18xf32>, vector<1x18xf32>, vector<1x18xf32>, vector<1x18xf32>, vector<1x18xf32>, vector<1x18xf32>, vector<1x18xf32> -> vector<13x18xf32>
    %398 = vector.extract_strided_slice %247 {offsets = [10, 0], sizes = [1, 30], strides = [1, 1]} : vector<16x30xf32> to vector<1x30xf32>
    %399 = vector.extract_strided_slice %398 {offsets = [0, 0], sizes = [1, 18], strides = [1, 1]} : vector<1x30xf32> to vector<1x18xf32>
    %400 = vector.extract_strided_slice %398 {offsets = [0, 1], sizes = [1, 18], strides = [1, 1]} : vector<1x30xf32> to vector<1x18xf32>
    %401 = vector.extract_strided_slice %398 {offsets = [0, 2], sizes = [1, 18], strides = [1, 1]} : vector<1x30xf32> to vector<1x18xf32>
    %402 = vector.extract_strided_slice %398 {offsets = [0, 3], sizes = [1, 18], strides = [1, 1]} : vector<1x30xf32> to vector<1x18xf32>
    %403 = vector.extract_strided_slice %398 {offsets = [0, 4], sizes = [1, 18], strides = [1, 1]} : vector<1x30xf32> to vector<1x18xf32>
    %404 = vector.extract_strided_slice %398 {offsets = [0, 5], sizes = [1, 18], strides = [1, 1]} : vector<1x30xf32> to vector<1x18xf32>
    %405 = vector.extract_strided_slice %398 {offsets = [0, 6], sizes = [1, 18], strides = [1, 1]} : vector<1x30xf32> to vector<1x18xf32>
    %406 = vector.extract_strided_slice %398 {offsets = [0, 7], sizes = [1, 18], strides = [1, 1]} : vector<1x30xf32> to vector<1x18xf32>
    %407 = vector.extract_strided_slice %398 {offsets = [0, 8], sizes = [1, 18], strides = [1, 1]} : vector<1x30xf32> to vector<1x18xf32>
    %408 = vector.extract_strided_slice %398 {offsets = [0, 9], sizes = [1, 18], strides = [1, 1]} : vector<1x30xf32> to vector<1x18xf32>
    %409 = vector.extract_strided_slice %398 {offsets = [0, 10], sizes = [1, 18], strides = [1, 1]} : vector<1x30xf32> to vector<1x18xf32>
    %410 = vector.extract_strided_slice %398 {offsets = [0, 11], sizes = [1, 18], strides = [1, 1]} : vector<1x30xf32> to vector<1x18xf32>
    %411 = vector.extract_strided_slice %398 {offsets = [0, 12], sizes = [1, 18], strides = [1, 1]} : vector<1x30xf32> to vector<1x18xf32>
    %412 = tpu.concatenate %399, %400, %401, %402, %403, %404, %405, %406, %407, %408, %409, %410, %411 in 0 : vector<1x18xf32>, vector<1x18xf32>, vector<1x18xf32>, vector<1x18xf32>, vector<1x18xf32>, vector<1x18xf32>, vector<1x18xf32>, vector<1x18xf32>, vector<1x18xf32>, vector<1x18xf32>, vector<1x18xf32>, vector<1x18xf32>, vector<1x18xf32> -> vector<13x18xf32>
    %413 = vector.extract_strided_slice %247 {offsets = [11, 0], sizes = [1, 30], strides = [1, 1]} : vector<16x30xf32> to vector<1x30xf32>
    %414 = vector.extract_strided_slice %413 {offsets = [0, 0], sizes = [1, 18], strides = [1, 1]} : vector<1x30xf32> to vector<1x18xf32>
    %415 = vector.extract_strided_slice %413 {offsets = [0, 1], sizes = [1, 18], strides = [1, 1]} : vector<1x30xf32> to vector<1x18xf32>
    %416 = vector.extract_strided_slice %413 {offsets = [0, 2], sizes = [1, 18], strides = [1, 1]} : vector<1x30xf32> to vector<1x18xf32>
    %417 = vector.extract_strided_slice %413 {offsets = [0, 3], sizes = [1, 18], strides = [1, 1]} : vector<1x30xf32> to vector<1x18xf32>
    %418 = vector.extract_strided_slice %413 {offsets = [0, 4], sizes = [1, 18], strides = [1, 1]} : vector<1x30xf32> to vector<1x18xf32>
    %419 = vector.extract_strided_slice %413 {offsets = [0, 5], sizes = [1, 18], strides = [1, 1]} : vector<1x30xf32> to vector<1x18xf32>
    %420 = vector.extract_strided_slice %413 {offsets = [0, 6], sizes = [1, 18], strides = [1, 1]} : vector<1x30xf32> to vector<1x18xf32>
    %421 = vector.extract_strided_slice %413 {offsets = [0, 7], sizes = [1, 18], strides = [1, 1]} : vector<1x30xf32> to vector<1x18xf32>
    %422 = vector.extract_strided_slice %413 {offsets = [0, 8], sizes = [1, 18], strides = [1, 1]} : vector<1x30xf32> to vector<1x18xf32>
    %423 = vector.extract_strided_slice %413 {offsets = [0, 9], sizes = [1, 18], strides = [1, 1]} : vector<1x30xf32> to vector<1x18xf32>
    %424 = vector.extract_strided_slice %413 {offsets = [0, 10], sizes = [1, 18], strides = [1, 1]} : vector<1x30xf32> to vector<1x18xf32>
    %425 = vector.extract_strided_slice %413 {offsets = [0, 11], sizes = [1, 18], strides = [1, 1]} : vector<1x30xf32> to vector<1x18xf32>
    %426 = vector.extract_strided_slice %413 {offsets = [0, 12], sizes = [1, 18], strides = [1, 1]} : vector<1x30xf32> to vector<1x18xf32>
    %427 = tpu.concatenate %414, %415, %416, %417, %418, %419, %420, %421, %422, %423, %424, %425, %426 in 0 : vector<1x18xf32>, vector<1x18xf32>, vector<1x18xf32>, vector<1x18xf32>, vector<1x18xf32>, vector<1x18xf32>, vector<1x18xf32>, vector<1x18xf32>, vector<1x18xf32>, vector<1x18xf32>, vector<1x18xf32>, vector<1x18xf32>, vector<1x18xf32> -> vector<13x18xf32>
    %428 = vector.extract_strided_slice %247 {offsets = [12, 0], sizes = [1, 30], strides = [1, 1]} : vector<16x30xf32> to vector<1x30xf32>
    %429 = vector.extract_strided_slice %428 {offsets = [0, 0], sizes = [1, 18], strides = [1, 1]} : vector<1x30xf32> to vector<1x18xf32>
    %430 = vector.extract_strided_slice %428 {offsets = [0, 1], sizes = [1, 18], strides = [1, 1]} : vector<1x30xf32> to vector<1x18xf32>
    %431 = vector.extract_strided_slice %428 {offsets = [0, 2], sizes = [1, 18], strides = [1, 1]} : vector<1x30xf32> to vector<1x18xf32>
    %432 = vector.extract_strided_slice %428 {offsets = [0, 3], sizes = [1, 18], strides = [1, 1]} : vector<1x30xf32> to vector<1x18xf32>
    %433 = vector.extract_strided_slice %428 {offsets = [0, 4], sizes = [1, 18], strides = [1, 1]} : vector<1x30xf32> to vector<1x18xf32>
    %434 = vector.extract_strided_slice %428 {offsets = [0, 5], sizes = [1, 18], strides = [1, 1]} : vector<1x30xf32> to vector<1x18xf32>
    %435 = vector.extract_strided_slice %428 {offsets = [0, 6], sizes = [1, 18], strides = [1, 1]} : vector<1x30xf32> to vector<1x18xf32>
    %436 = vector.extract_strided_slice %428 {offsets = [0, 7], sizes = [1, 18], strides = [1, 1]} : vector<1x30xf32> to vector<1x18xf32>
    %437 = vector.extract_strided_slice %428 {offsets = [0, 8], sizes = [1, 18], strides = [1, 1]} : vector<1x30xf32> to vector<1x18xf32>
    %438 = vector.extract_strided_slice %428 {offsets = [0, 9], sizes = [1, 18], strides = [1, 1]} : vector<1x30xf32> to vector<1x18xf32>
    %439 = vector.extract_strided_slice %428 {offsets = [0, 10], sizes = [1, 18], strides = [1, 1]} : vector<1x30xf32> to vector<1x18xf32>
    %440 = vector.extract_strided_slice %428 {offsets = [0, 11], sizes = [1, 18], strides = [1, 1]} : vector<1x30xf32> to vector<1x18xf32>
    %441 = vector.extract_strided_slice %428 {offsets = [0, 12], sizes = [1, 18], strides = [1, 1]} : vector<1x30xf32> to vector<1x18xf32>
    %442 = tpu.concatenate %429, %430, %431, %432, %433, %434, %435, %436, %437, %438, %439, %440, %441 in 0 : vector<1x18xf32>, vector<1x18xf32>, vector<1x18xf32>, vector<1x18xf32>, vector<1x18xf32>, vector<1x18xf32>, vector<1x18xf32>, vector<1x18xf32>, vector<1x18xf32>, vector<1x18xf32>, vector<1x18xf32>, vector<1x18xf32>, vector<1x18xf32> -> vector<13x18xf32>
    %443 = vector.extract_strided_slice %247 {offsets = [13, 0], sizes = [1, 30], strides = [1, 1]} : vector<16x30xf32> to vector<1x30xf32>
    %444 = vector.extract_strided_slice %443 {offsets = [0, 0], sizes = [1, 18], strides = [1, 1]} : vector<1x30xf32> to vector<1x18xf32>
    %445 = vector.extract_strided_slice %443 {offsets = [0, 1], sizes = [1, 18], strides = [1, 1]} : vector<1x30xf32> to vector<1x18xf32>
    %446 = vector.extract_strided_slice %443 {offsets = [0, 2], sizes = [1, 18], strides = [1, 1]} : vector<1x30xf32> to vector<1x18xf32>
    %447 = vector.extract_strided_slice %443 {offsets = [0, 3], sizes = [1, 18], strides = [1, 1]} : vector<1x30xf32> to vector<1x18xf32>
    %448 = vector.extract_strided_slice %443 {offsets = [0, 4], sizes = [1, 18], strides = [1, 1]} : vector<1x30xf32> to vector<1x18xf32>
    %449 = vector.extract_strided_slice %443 {offsets = [0, 5], sizes = [1, 18], strides = [1, 1]} : vector<1x30xf32> to vector<1x18xf32>
    %450 = vector.extract_strided_slice %443 {offsets = [0, 6], sizes = [1, 18], strides = [1, 1]} : vector<1x30xf32> to vector<1x18xf32>
    %451 = vector.extract_strided_slice %443 {offsets = [0, 7], sizes = [1, 18], strides = [1, 1]} : vector<1x30xf32> to vector<1x18xf32>
    %452 = vector.extract_strided_slice %443 {offsets = [0, 8], sizes = [1, 18], strides = [1, 1]} : vector<1x30xf32> to vector<1x18xf32>
    %453 = vector.extract_strided_slice %443 {offsets = [0, 9], sizes = [1, 18], strides = [1, 1]} : vector<1x30xf32> to vector<1x18xf32>
    %454 = vector.extract_strided_slice %443 {offsets = [0, 10], sizes = [1, 18], strides = [1, 1]} : vector<1x30xf32> to vector<1x18xf32>
    %455 = vector.extract_strided_slice %443 {offsets = [0, 11], sizes = [1, 18], strides = [1, 1]} : vector<1x30xf32> to vector<1x18xf32>
    %456 = vector.extract_strided_slice %443 {offsets = [0, 12], sizes = [1, 18], strides = [1, 1]} : vector<1x30xf32> to vector<1x18xf32>
    %457 = tpu.concatenate %444, %445, %446, %447, %448, %449, %450, %451, %452, %453, %454, %455, %456 in 0 : vector<1x18xf32>, vector<1x18xf32>, vector<1x18xf32>, vector<1x18xf32>, vector<1x18xf32>, vector<1x18xf32>, vector<1x18xf32>, vector<1x18xf32>, vector<1x18xf32>, vector<1x18xf32>, vector<1x18xf32>, vector<1x18xf32>, vector<1x18xf32> -> vector<13x18xf32>
    %458 = vector.extract_strided_slice %247 {offsets = [14, 0], sizes = [1, 30], strides = [1, 1]} : vector<16x30xf32> to vector<1x30xf32>
    %459 = vector.extract_strided_slice %458 {offsets = [0, 0], sizes = [1, 18], strides = [1, 1]} : vector<1x30xf32> to vector<1x18xf32>
    %460 = vector.extract_strided_slice %458 {offsets = [0, 1], sizes = [1, 18], strides = [1, 1]} : vector<1x30xf32> to vector<1x18xf32>
    %461 = vector.extract_strided_slice %458 {offsets = [0, 2], sizes = [1, 18], strides = [1, 1]} : vector<1x30xf32> to vector<1x18xf32>
    %462 = vector.extract_strided_slice %458 {offsets = [0, 3], sizes = [1, 18], strides = [1, 1]} : vector<1x30xf32> to vector<1x18xf32>
    %463 = vector.extract_strided_slice %458 {offsets = [0, 4], sizes = [1, 18], strides = [1, 1]} : vector<1x30xf32> to vector<1x18xf32>
    %464 = vector.extract_strided_slice %458 {offsets = [0, 5], sizes = [1, 18], strides = [1, 1]} : vector<1x30xf32> to vector<1x18xf32>
    %465 = vector.extract_strided_slice %458 {offsets = [0, 6], sizes = [1, 18], strides = [1, 1]} : vector<1x30xf32> to vector<1x18xf32>
    %466 = vector.extract_strided_slice %458 {offsets = [0, 7], sizes = [1, 18], strides = [1, 1]} : vector<1x30xf32> to vector<1x18xf32>
    %467 = vector.extract_strided_slice %458 {offsets = [0, 8], sizes = [1, 18], strides = [1, 1]} : vector<1x30xf32> to vector<1x18xf32>
    %468 = vector.extract_strided_slice %458 {offsets = [0, 9], sizes = [1, 18], strides = [1, 1]} : vector<1x30xf32> to vector<1x18xf32>
    %469 = vector.extract_strided_slice %458 {offsets = [0, 10], sizes = [1, 18], strides = [1, 1]} : vector<1x30xf32> to vector<1x18xf32>
    %470 = vector.extract_strided_slice %458 {offsets = [0, 11], sizes = [1, 18], strides = [1, 1]} : vector<1x30xf32> to vector<1x18xf32>
    %471 = vector.extract_strided_slice %458 {offsets = [0, 12], sizes = [1, 18], strides = [1, 1]} : vector<1x30xf32> to vector<1x18xf32>
    %472 = tpu.concatenate %459, %460, %461, %462, %463, %464, %465, %466, %467, %468, %469, %470, %471 in 0 : vector<1x18xf32>, vector<1x18xf32>, vector<1x18xf32>, vector<1x18xf32>, vector<1x18xf32>, vector<1x18xf32>, vector<1x18xf32>, vector<1x18xf32>, vector<1x18xf32>, vector<1x18xf32>, vector<1x18xf32>, vector<1x18xf32>, vector<1x18xf32> -> vector<13x18xf32>
    %473 = vector.extract_strided_slice %247 {offsets = [15, 0], sizes = [1, 30], strides = [1, 1]} : vector<16x30xf32> to vector<1x30xf32>
    %474 = vector.extract_strided_slice %473 {offsets = [0, 0], sizes = [1, 18], strides = [1, 1]} : vector<1x30xf32> to vector<1x18xf32>
    %475 = vector.extract_strided_slice %473 {offsets = [0, 1], sizes = [1, 18], strides = [1, 1]} : vector<1x30xf32> to vector<1x18xf32>
    %476 = vector.extract_strided_slice %473 {offsets = [0, 2], sizes = [1, 18], strides = [1, 1]} : vector<1x30xf32> to vector<1x18xf32>
    %477 = vector.extract_strided_slice %473 {offsets = [0, 3], sizes = [1, 18], strides = [1, 1]} : vector<1x30xf32> to vector<1x18xf32>
    %478 = vector.extract_strided_slice %473 {offsets = [0, 4], sizes = [1, 18], strides = [1, 1]} : vector<1x30xf32> to vector<1x18xf32>
    %479 = vector.extract_strided_slice %473 {offsets = [0, 5], sizes = [1, 18], strides = [1, 1]} : vector<1x30xf32> to vector<1x18xf32>
    %480 = vector.extract_strided_slice %473 {offsets = [0, 6], sizes = [1, 18], strides = [1, 1]} : vector<1x30xf32> to vector<1x18xf32>
    %481 = vector.extract_strided_slice %473 {offsets = [0, 7], sizes = [1, 18], strides = [1, 1]} : vector<1x30xf32> to vector<1x18xf32>
    %482 = vector.extract_strided_slice %473 {offsets = [0, 8], sizes = [1, 18], strides = [1, 1]} : vector<1x30xf32> to vector<1x18xf32>
    %483 = vector.extract_strided_slice %473 {offsets = [0, 9], sizes = [1, 18], strides = [1, 1]} : vector<1x30xf32> to vector<1x18xf32>
    %484 = vector.extract_strided_slice %473 {offsets = [0, 10], sizes = [1, 18], strides = [1, 1]} : vector<1x30xf32> to vector<1x18xf32>
    %485 = vector.extract_strided_slice %473 {offsets = [0, 11], sizes = [1, 18], strides = [1, 1]} : vector<1x30xf32> to vector<1x18xf32>
    %486 = vector.extract_strided_slice %473 {offsets = [0, 12], sizes = [1, 18], strides = [1, 1]} : vector<1x30xf32> to vector<1x18xf32>
    %487 = tpu.concatenate %474, %475, %476, %477, %478, %479, %480, %481, %482, %483, %484, %485, %486 in 0 : vector<1x18xf32>, vector<1x18xf32>, vector<1x18xf32>, vector<1x18xf32>, vector<1x18xf32>, vector<1x18xf32>, vector<1x18xf32>, vector<1x18xf32>, vector<1x18xf32>, vector<1x18xf32>, vector<1x18xf32>, vector<1x18xf32>, vector<1x18xf32> -> vector<13x18xf32>
    %488 = tpu.concatenate %20, %35, %50, %65 in 0 : vector<13x18xf32>, vector<13x18xf32>, vector<13x18xf32>, vector<13x18xf32> -> vector<52x18xf32>
    %489 = tpu.concatenate %262, %277, %292, %307 in 0 : vector<13x18xf32>, vector<13x18xf32>, vector<13x18xf32>, vector<13x18xf32> -> vector<52x18xf32>
    %490 = tpu.concatenate %488, %489 in 1 : vector<52x18xf32>, vector<52x18xf32> -> vector<52x36xf32>
    %cst = arith.constant dense<0.000000e+00> : vector<40x36xf32>
    %491 = tpu.matmul %1, %490, %cst {dimension_numbers = #tpu.dot_dimension_numbers<[1], [0], [0], [1], [0, 0, 1, 1], [], []>} : vector<40x52xf32>, vector<52x36xf32>, vector<40x36xf32> -> vector<40x36xf32>
    %492 = vector.broadcast %2 : vector<40x1xf32> to vector<40x36xf32>
    %493 = arith.addf %491, %492 : vector<40x36xf32>
    %494 = arith.mulf %493, %493 : vector<40x36xf32>
    %cst_8 = arith.constant dense<0.000000e+00> : vector<40x10xf32>
    %495 = tpu.matmul %494, %3, %cst_8 {dimension_numbers = #tpu.dot_dimension_numbers<[1], [0], [0], [1], [0, 0, 1, 1], [], []>} : vector<40x36xf32>, vector<36x10xf32>, vector<40x10xf32> -> vector<40x10xf32>
    %496 = vector.extract_strided_slice %495 {offsets = [0, 0], sizes = [40, 5], strides = [1, 1]} : vector<40x10xf32> to vector<40x5xf32>
    %497 = vector.extract_strided_slice %495 {offsets = [0, 5], sizes = [40, 5], strides = [1, 1]} : vector<40x10xf32> to vector<40x5xf32>
    %498 = tpu.concatenate %35, %50, %65, %80 in 0 : vector<13x18xf32>, vector<13x18xf32>, vector<13x18xf32>, vector<13x18xf32> -> vector<52x18xf32>
    %499 = tpu.concatenate %277, %292, %307, %322 in 0 : vector<13x18xf32>, vector<13x18xf32>, vector<13x18xf32>, vector<13x18xf32> -> vector<52x18xf32>
    %500 = tpu.concatenate %498, %499 in 1 : vector<52x18xf32>, vector<52x18xf32> -> vector<52x36xf32>
    %cst_9 = arith.constant dense<0.000000e+00> : vector<40x36xf32>
    %501 = tpu.matmul %1, %500, %cst_9 {dimension_numbers = #tpu.dot_dimension_numbers<[1], [0], [0], [1], [0, 0, 1, 1], [], []>} : vector<40x52xf32>, vector<52x36xf32>, vector<40x36xf32> -> vector<40x36xf32>
    %502 = vector.broadcast %2 : vector<40x1xf32> to vector<40x36xf32>
    %503 = arith.addf %501, %502 : vector<40x36xf32>
    %504 = arith.mulf %503, %503 : vector<40x36xf32>
    %cst_10 = arith.constant dense<0.000000e+00> : vector<40x10xf32>
    %505 = tpu.matmul %504, %3, %cst_10 {dimension_numbers = #tpu.dot_dimension_numbers<[1], [0], [0], [1], [0, 0, 1, 1], [], []>} : vector<40x36xf32>, vector<36x10xf32>, vector<40x10xf32> -> vector<40x10xf32>
    %506 = vector.extract_strided_slice %505 {offsets = [0, 0], sizes = [40, 5], strides = [1, 1]} : vector<40x10xf32> to vector<40x5xf32>
    %507 = vector.extract_strided_slice %505 {offsets = [0, 5], sizes = [40, 5], strides = [1, 1]} : vector<40x10xf32> to vector<40x5xf32>
    %508 = tpu.concatenate %50, %65, %80, %95 in 0 : vector<13x18xf32>, vector<13x18xf32>, vector<13x18xf32>, vector<13x18xf32> -> vector<52x18xf32>
    %509 = tpu.concatenate %292, %307, %322, %337 in 0 : vector<13x18xf32>, vector<13x18xf32>, vector<13x18xf32>, vector<13x18xf32> -> vector<52x18xf32>
    %510 = tpu.concatenate %508, %509 in 1 : vector<52x18xf32>, vector<52x18xf32> -> vector<52x36xf32>
    %cst_11 = arith.constant dense<0.000000e+00> : vector<40x36xf32>
    %511 = tpu.matmul %1, %510, %cst_11 {dimension_numbers = #tpu.dot_dimension_numbers<[1], [0], [0], [1], [0, 0, 1, 1], [], []>} : vector<40x52xf32>, vector<52x36xf32>, vector<40x36xf32> -> vector<40x36xf32>
    %512 = vector.broadcast %2 : vector<40x1xf32> to vector<40x36xf32>
    %513 = arith.addf %511, %512 : vector<40x36xf32>
    %514 = arith.mulf %513, %513 : vector<40x36xf32>
    %cst_12 = arith.constant dense<0.000000e+00> : vector<40x10xf32>
    %515 = tpu.matmul %514, %3, %cst_12 {dimension_numbers = #tpu.dot_dimension_numbers<[1], [0], [0], [1], [0, 0, 1, 1], [], []>} : vector<40x36xf32>, vector<36x10xf32>, vector<40x10xf32> -> vector<40x10xf32>
    %516 = vector.extract_strided_slice %515 {offsets = [0, 0], sizes = [40, 5], strides = [1, 1]} : vector<40x10xf32> to vector<40x5xf32>
    %517 = vector.extract_strided_slice %515 {offsets = [0, 5], sizes = [40, 5], strides = [1, 1]} : vector<40x10xf32> to vector<40x5xf32>
    %518 = tpu.concatenate %65, %80, %95, %110 in 0 : vector<13x18xf32>, vector<13x18xf32>, vector<13x18xf32>, vector<13x18xf32> -> vector<52x18xf32>
    %519 = tpu.concatenate %307, %322, %337, %352 in 0 : vector<13x18xf32>, vector<13x18xf32>, vector<13x18xf32>, vector<13x18xf32> -> vector<52x18xf32>
    %520 = tpu.concatenate %518, %519 in 1 : vector<52x18xf32>, vector<52x18xf32> -> vector<52x36xf32>
    %cst_13 = arith.constant dense<0.000000e+00> : vector<40x36xf32>
    %521 = tpu.matmul %1, %520, %cst_13 {dimension_numbers = #tpu.dot_dimension_numbers<[1], [0], [0], [1], [0, 0, 1, 1], [], []>} : vector<40x52xf32>, vector<52x36xf32>, vector<40x36xf32> -> vector<40x36xf32>
    %522 = vector.broadcast %2 : vector<40x1xf32> to vector<40x36xf32>
    %523 = arith.addf %521, %522 : vector<40x36xf32>
    %524 = arith.mulf %523, %523 : vector<40x36xf32>
    %cst_14 = arith.constant dense<0.000000e+00> : vector<40x10xf32>
    %525 = tpu.matmul %524, %3, %cst_14 {dimension_numbers = #tpu.dot_dimension_numbers<[1], [0], [0], [1], [0, 0, 1, 1], [], []>} : vector<40x36xf32>, vector<36x10xf32>, vector<40x10xf32> -> vector<40x10xf32>
    %526 = vector.extract_strided_slice %525 {offsets = [0, 0], sizes = [40, 5], strides = [1, 1]} : vector<40x10xf32> to vector<40x5xf32>
    %527 = vector.extract_strided_slice %525 {offsets = [0, 5], sizes = [40, 5], strides = [1, 1]} : vector<40x10xf32> to vector<40x5xf32>
    %528 = tpu.concatenate %80, %95, %110, %125 in 0 : vector<13x18xf32>, vector<13x18xf32>, vector<13x18xf32>, vector<13x18xf32> -> vector<52x18xf32>
    %529 = tpu.concatenate %322, %337, %352, %367 in 0 : vector<13x18xf32>, vector<13x18xf32>, vector<13x18xf32>, vector<13x18xf32> -> vector<52x18xf32>
    %530 = tpu.concatenate %528, %529 in 1 : vector<52x18xf32>, vector<52x18xf32> -> vector<52x36xf32>
    %cst_15 = arith.constant dense<0.000000e+00> : vector<40x36xf32>
    %531 = tpu.matmul %1, %530, %cst_15 {dimension_numbers = #tpu.dot_dimension_numbers<[1], [0], [0], [1], [0, 0, 1, 1], [], []>} : vector<40x52xf32>, vector<52x36xf32>, vector<40x36xf32> -> vector<40x36xf32>
    %532 = vector.broadcast %2 : vector<40x1xf32> to vector<40x36xf32>
    %533 = arith.addf %531, %532 : vector<40x36xf32>
    %534 = arith.mulf %533, %533 : vector<40x36xf32>
    %cst_16 = arith.constant dense<0.000000e+00> : vector<40x10xf32>
    %535 = tpu.matmul %534, %3, %cst_16 {dimension_numbers = #tpu.dot_dimension_numbers<[1], [0], [0], [1], [0, 0, 1, 1], [], []>} : vector<40x36xf32>, vector<36x10xf32>, vector<40x10xf32> -> vector<40x10xf32>
    %536 = vector.extract_strided_slice %535 {offsets = [0, 0], sizes = [40, 5], strides = [1, 1]} : vector<40x10xf32> to vector<40x5xf32>
    %537 = vector.extract_strided_slice %535 {offsets = [0, 5], sizes = [40, 5], strides = [1, 1]} : vector<40x10xf32> to vector<40x5xf32>
    %538 = tpu.concatenate %95, %110, %125, %140 in 0 : vector<13x18xf32>, vector<13x18xf32>, vector<13x18xf32>, vector<13x18xf32> -> vector<52x18xf32>
    %539 = tpu.concatenate %337, %352, %367, %382 in 0 : vector<13x18xf32>, vector<13x18xf32>, vector<13x18xf32>, vector<13x18xf32> -> vector<52x18xf32>
    %540 = tpu.concatenate %538, %539 in 1 : vector<52x18xf32>, vector<52x18xf32> -> vector<52x36xf32>
    %cst_17 = arith.constant dense<0.000000e+00> : vector<40x36xf32>
    %541 = tpu.matmul %1, %540, %cst_17 {dimension_numbers = #tpu.dot_dimension_numbers<[1], [0], [0], [1], [0, 0, 1, 1], [], []>} : vector<40x52xf32>, vector<52x36xf32>, vector<40x36xf32> -> vector<40x36xf32>
    %542 = vector.broadcast %2 : vector<40x1xf32> to vector<40x36xf32>
    %543 = arith.addf %541, %542 : vector<40x36xf32>
    %544 = arith.mulf %543, %543 : vector<40x36xf32>
    %cst_18 = arith.constant dense<0.000000e+00> : vector<40x10xf32>
    %545 = tpu.matmul %544, %3, %cst_18 {dimension_numbers = #tpu.dot_dimension_numbers<[1], [0], [0], [1], [0, 0, 1, 1], [], []>} : vector<40x36xf32>, vector<36x10xf32>, vector<40x10xf32> -> vector<40x10xf32>
    %546 = vector.extract_strided_slice %545 {offsets = [0, 0], sizes = [40, 5], strides = [1, 1]} : vector<40x10xf32> to vector<40x5xf32>
    %547 = vector.extract_strided_slice %545 {offsets = [0, 5], sizes = [40, 5], strides = [1, 1]} : vector<40x10xf32> to vector<40x5xf32>
    %548 = tpu.concatenate %110, %125, %140, %155 in 0 : vector<13x18xf32>, vector<13x18xf32>, vector<13x18xf32>, vector<13x18xf32> -> vector<52x18xf32>
    %549 = tpu.concatenate %352, %367, %382, %397 in 0 : vector<13x18xf32>, vector<13x18xf32>, vector<13x18xf32>, vector<13x18xf32> -> vector<52x18xf32>
    %550 = tpu.concatenate %548, %549 in 1 : vector<52x18xf32>, vector<52x18xf32> -> vector<52x36xf32>
    %cst_19 = arith.constant dense<0.000000e+00> : vector<40x36xf32>
    %551 = tpu.matmul %1, %550, %cst_19 {dimension_numbers = #tpu.dot_dimension_numbers<[1], [0], [0], [1], [0, 0, 1, 1], [], []>} : vector<40x52xf32>, vector<52x36xf32>, vector<40x36xf32> -> vector<40x36xf32>
    %552 = vector.broadcast %2 : vector<40x1xf32> to vector<40x36xf32>
    %553 = arith.addf %551, %552 : vector<40x36xf32>
    %554 = arith.mulf %553, %553 : vector<40x36xf32>
    %cst_20 = arith.constant dense<0.000000e+00> : vector<40x10xf32>
    %555 = tpu.matmul %554, %3, %cst_20 {dimension_numbers = #tpu.dot_dimension_numbers<[1], [0], [0], [1], [0, 0, 1, 1], [], []>} : vector<40x36xf32>, vector<36x10xf32>, vector<40x10xf32> -> vector<40x10xf32>
    %556 = vector.extract_strided_slice %555 {offsets = [0, 0], sizes = [40, 5], strides = [1, 1]} : vector<40x10xf32> to vector<40x5xf32>
    %557 = vector.extract_strided_slice %555 {offsets = [0, 5], sizes = [40, 5], strides = [1, 1]} : vector<40x10xf32> to vector<40x5xf32>
    %558 = tpu.concatenate %125, %140, %155, %170 in 0 : vector<13x18xf32>, vector<13x18xf32>, vector<13x18xf32>, vector<13x18xf32> -> vector<52x18xf32>
    %559 = tpu.concatenate %367, %382, %397, %412 in 0 : vector<13x18xf32>, vector<13x18xf32>, vector<13x18xf32>, vector<13x18xf32> -> vector<52x18xf32>
    %560 = tpu.concatenate %558, %559 in 1 : vector<52x18xf32>, vector<52x18xf32> -> vector<52x36xf32>
    %cst_21 = arith.constant dense<0.000000e+00> : vector<40x36xf32>
    %561 = tpu.matmul %1, %560, %cst_21 {dimension_numbers = #tpu.dot_dimension_numbers<[1], [0], [0], [1], [0, 0, 1, 1], [], []>} : vector<40x52xf32>, vector<52x36xf32>, vector<40x36xf32> -> vector<40x36xf32>
    %562 = vector.broadcast %2 : vector<40x1xf32> to vector<40x36xf32>
    %563 = arith.addf %561, %562 : vector<40x36xf32>
    %564 = arith.mulf %563, %563 : vector<40x36xf32>
    %cst_22 = arith.constant dense<0.000000e+00> : vector<40x10xf32>
    %565 = tpu.matmul %564, %3, %cst_22 {dimension_numbers = #tpu.dot_dimension_numbers<[1], [0], [0], [1], [0, 0, 1, 1], [], []>} : vector<40x36xf32>, vector<36x10xf32>, vector<40x10xf32> -> vector<40x10xf32>
    %566 = vector.extract_strided_slice %565 {offsets = [0, 0], sizes = [40, 5], strides = [1, 1]} : vector<40x10xf32> to vector<40x5xf32>
    %567 = vector.extract_strided_slice %565 {offsets = [0, 5], sizes = [40, 5], strides = [1, 1]} : vector<40x10xf32> to vector<40x5xf32>
    %568 = tpu.concatenate %140, %155, %170, %185 in 0 : vector<13x18xf32>, vector<13x18xf32>, vector<13x18xf32>, vector<13x18xf32> -> vector<52x18xf32>
    %569 = tpu.concatenate %382, %397, %412, %427 in 0 : vector<13x18xf32>, vector<13x18xf32>, vector<13x18xf32>, vector<13x18xf32> -> vector<52x18xf32>
    %570 = tpu.concatenate %568, %569 in 1 : vector<52x18xf32>, vector<52x18xf32> -> vector<52x36xf32>
    %cst_23 = arith.constant dense<0.000000e+00> : vector<40x36xf32>
    %571 = tpu.matmul %1, %570, %cst_23 {dimension_numbers = #tpu.dot_dimension_numbers<[1], [0], [0], [1], [0, 0, 1, 1], [], []>} : vector<40x52xf32>, vector<52x36xf32>, vector<40x36xf32> -> vector<40x36xf32>
    %572 = vector.broadcast %2 : vector<40x1xf32> to vector<40x36xf32>
    %573 = arith.addf %571, %572 : vector<40x36xf32>
    %574 = arith.mulf %573, %573 : vector<40x36xf32>
    %cst_24 = arith.constant dense<0.000000e+00> : vector<40x10xf32>
    %575 = tpu.matmul %574, %3, %cst_24 {dimension_numbers = #tpu.dot_dimension_numbers<[1], [0], [0], [1], [0, 0, 1, 1], [], []>} : vector<40x36xf32>, vector<36x10xf32>, vector<40x10xf32> -> vector<40x10xf32>
    %576 = vector.extract_strided_slice %575 {offsets = [0, 0], sizes = [40, 5], strides = [1, 1]} : vector<40x10xf32> to vector<40x5xf32>
    %577 = vector.extract_strided_slice %575 {offsets = [0, 5], sizes = [40, 5], strides = [1, 1]} : vector<40x10xf32> to vector<40x5xf32>
    %578 = tpu.concatenate %155, %170, %185, %200 in 0 : vector<13x18xf32>, vector<13x18xf32>, vector<13x18xf32>, vector<13x18xf32> -> vector<52x18xf32>
    %579 = tpu.concatenate %397, %412, %427, %442 in 0 : vector<13x18xf32>, vector<13x18xf32>, vector<13x18xf32>, vector<13x18xf32> -> vector<52x18xf32>
    %580 = tpu.concatenate %578, %579 in 1 : vector<52x18xf32>, vector<52x18xf32> -> vector<52x36xf32>
    %cst_25 = arith.constant dense<0.000000e+00> : vector<40x36xf32>
    %581 = tpu.matmul %1, %580, %cst_25 {dimension_numbers = #tpu.dot_dimension_numbers<[1], [0], [0], [1], [0, 0, 1, 1], [], []>} : vector<40x52xf32>, vector<52x36xf32>, vector<40x36xf32> -> vector<40x36xf32>
    %582 = vector.broadcast %2 : vector<40x1xf32> to vector<40x36xf32>
    %583 = arith.addf %581, %582 : vector<40x36xf32>
    %584 = arith.mulf %583, %583 : vector<40x36xf32>
    %cst_26 = arith.constant dense<0.000000e+00> : vector<40x10xf32>
    %585 = tpu.matmul %584, %3, %cst_26 {dimension_numbers = #tpu.dot_dimension_numbers<[1], [0], [0], [1], [0, 0, 1, 1], [], []>} : vector<40x36xf32>, vector<36x10xf32>, vector<40x10xf32> -> vector<40x10xf32>
    %586 = vector.extract_strided_slice %585 {offsets = [0, 0], sizes = [40, 5], strides = [1, 1]} : vector<40x10xf32> to vector<40x5xf32>
    %587 = vector.extract_strided_slice %585 {offsets = [0, 5], sizes = [40, 5], strides = [1, 1]} : vector<40x10xf32> to vector<40x5xf32>
    %588 = tpu.concatenate %170, %185, %200, %215 in 0 : vector<13x18xf32>, vector<13x18xf32>, vector<13x18xf32>, vector<13x18xf32> -> vector<52x18xf32>
    %589 = tpu.concatenate %412, %427, %442, %457 in 0 : vector<13x18xf32>, vector<13x18xf32>, vector<13x18xf32>, vector<13x18xf32> -> vector<52x18xf32>
    %590 = tpu.concatenate %588, %589 in 1 : vector<52x18xf32>, vector<52x18xf32> -> vector<52x36xf32>
    %cst_27 = arith.constant dense<0.000000e+00> : vector<40x36xf32>
    %591 = tpu.matmul %1, %590, %cst_27 {dimension_numbers = #tpu.dot_dimension_numbers<[1], [0], [0], [1], [0, 0, 1, 1], [], []>} : vector<40x52xf32>, vector<52x36xf32>, vector<40x36xf32> -> vector<40x36xf32>
    %592 = vector.broadcast %2 : vector<40x1xf32> to vector<40x36xf32>
    %593 = arith.addf %591, %592 : vector<40x36xf32>
    %594 = arith.mulf %593, %593 : vector<40x36xf32>
    %cst_28 = arith.constant dense<0.000000e+00> : vector<40x10xf32>
    %595 = tpu.matmul %594, %3, %cst_28 {dimension_numbers = #tpu.dot_dimension_numbers<[1], [0], [0], [1], [0, 0, 1, 1], [], []>} : vector<40x36xf32>, vector<36x10xf32>, vector<40x10xf32> -> vector<40x10xf32>
    %596 = vector.extract_strided_slice %595 {offsets = [0, 0], sizes = [40, 5], strides = [1, 1]} : vector<40x10xf32> to vector<40x5xf32>
    %597 = vector.extract_strided_slice %595 {offsets = [0, 5], sizes = [40, 5], strides = [1, 1]} : vector<40x10xf32> to vector<40x5xf32>
    %598 = tpu.concatenate %185, %200, %215, %230 in 0 : vector<13x18xf32>, vector<13x18xf32>, vector<13x18xf32>, vector<13x18xf32> -> vector<52x18xf32>
    %599 = tpu.concatenate %427, %442, %457, %472 in 0 : vector<13x18xf32>, vector<13x18xf32>, vector<13x18xf32>, vector<13x18xf32> -> vector<52x18xf32>
    %600 = tpu.concatenate %598, %599 in 1 : vector<52x18xf32>, vector<52x18xf32> -> vector<52x36xf32>
    %cst_29 = arith.constant dense<0.000000e+00> : vector<40x36xf32>
    %601 = tpu.matmul %1, %600, %cst_29 {dimension_numbers = #tpu.dot_dimension_numbers<[1], [0], [0], [1], [0, 0, 1, 1], [], []>} : vector<40x52xf32>, vector<52x36xf32>, vector<40x36xf32> -> vector<40x36xf32>
    %602 = vector.broadcast %2 : vector<40x1xf32> to vector<40x36xf32>
    %603 = arith.addf %601, %602 : vector<40x36xf32>
    %604 = arith.mulf %603, %603 : vector<40x36xf32>
    %cst_30 = arith.constant dense<0.000000e+00> : vector<40x10xf32>
    %605 = tpu.matmul %604, %3, %cst_30 {dimension_numbers = #tpu.dot_dimension_numbers<[1], [0], [0], [1], [0, 0, 1, 1], [], []>} : vector<40x36xf32>, vector<36x10xf32>, vector<40x10xf32> -> vector<40x10xf32>
    %606 = vector.extract_strided_slice %605 {offsets = [0, 0], sizes = [40, 5], strides = [1, 1]} : vector<40x10xf32> to vector<40x5xf32>
    %607 = vector.extract_strided_slice %605 {offsets = [0, 5], sizes = [40, 5], strides = [1, 1]} : vector<40x10xf32> to vector<40x5xf32>
    %608 = tpu.concatenate %200, %215, %230, %245 in 0 : vector<13x18xf32>, vector<13x18xf32>, vector<13x18xf32>, vector<13x18xf32> -> vector<52x18xf32>
    %609 = tpu.concatenate %442, %457, %472, %487 in 0 : vector<13x18xf32>, vector<13x18xf32>, vector<13x18xf32>, vector<13x18xf32> -> vector<52x18xf32>
    %610 = tpu.concatenate %608, %609 in 1 : vector<52x18xf32>, vector<52x18xf32> -> vector<52x36xf32>
    %cst_31 = arith.constant dense<0.000000e+00> : vector<40x36xf32>
    %611 = tpu.matmul %1, %610, %cst_31 {dimension_numbers = #tpu.dot_dimension_numbers<[1], [0], [0], [1], [0, 0, 1, 1], [], []>} : vector<40x52xf32>, vector<52x36xf32>, vector<40x36xf32> -> vector<40x36xf32>
    %612 = vector.broadcast %2 : vector<40x1xf32> to vector<40x36xf32>
    %613 = arith.addf %611, %612 : vector<40x36xf32>
    %614 = arith.mulf %613, %613 : vector<40x36xf32>
    %cst_32 = arith.constant dense<0.000000e+00> : vector<40x10xf32>
    %615 = tpu.matmul %614, %3, %cst_32 {dimension_numbers = #tpu.dot_dimension_numbers<[1], [0], [0], [1], [0, 0, 1, 1], [], []>} : vector<40x36xf32>, vector<36x10xf32>, vector<40x10xf32> -> vector<40x10xf32>
    %616 = vector.extract_strided_slice %615 {offsets = [0, 0], sizes = [40, 5], strides = [1, 1]} : vector<40x10xf32> to vector<40x5xf32>
    %617 = vector.extract_strided_slice %615 {offsets = [0, 5], sizes = [40, 5], strides = [1, 1]} : vector<40x10xf32> to vector<40x5xf32>
    %618 = tpu.concatenate %496, %506, %516, %526, %536, %546, %556, %566, %576, %586, %596, %606, %616 in 1 : vector<40x5xf32>, vector<40x5xf32>, vector<40x5xf32>, vector<40x5xf32>, vector<40x5xf32>, vector<40x5xf32>, vector<40x5xf32>, vector<40x5xf32>, vector<40x5xf32>, vector<40x5xf32>, vector<40x5xf32>, vector<40x5xf32>, vector<40x5xf32> -> vector<40x65xf32>
    %619 = math.log %618 : vector<40x65xf32>
    %c0_33 = arith.constant 0 : index
    %c0_34 = arith.constant 0 : index
    %c0_35 = arith.constant 0 : index
    %620 = vector.load %arg5[%c0_33, %c0_34, %c0_35] : memref<2x40x65xf32, #tpu.memory_space<vmem>>, vector<1x40x65xf32>
    %621 = vector.shape_cast %620 : vector<1x40x65xf32> to vector<40x65xf32>
    %622 = arith.mulf %619, %621 : vector<40x65xf32>
    %c0_36 = arith.constant 0 : index
    %c0_37 = arith.constant 0 : index
    %c0_38 = arith.constant 0 : index
    %623 = vector.load %arg6[%c0_36, %c0_37, %c0_38] : memref<2x40x65xf32, #tpu.memory_space<vmem>>, vector<1x40x65xf32>
    %624 = vector.shape_cast %623 : vector<1x40x65xf32> to vector<40x65xf32>
    %625 = vector.shape_cast %622 : vector<40x65xf32> to vector<1x40x65xf32>
    tpu.vector_store %arg6[%c0_36, %c0_37, %c0_38], %625 {strides = array<i32>} : memref<2x40x65xf32, #tpu.memory_space<vmem>>, vector<1x40x65xf32>,
    %626 = tpu.concatenate %497, %507, %517, %527, %537, %547, %557, %567, %577, %587, %597, %607, %617 in 1 : vector<40x5xf32>, vector<40x5xf32>, vector<40x5xf32>, vector<40x5xf32>, vector<40x5xf32>, vector<40x5xf32>, vector<40x5xf32>, vector<40x5xf32>, vector<40x5xf32>, vector<40x5xf32>, vector<40x5xf32>, vector<40x5xf32>, vector<40x5xf32> -> vector<40x65xf32>
    %627 = math.log %626 : vector<40x65xf32>
    %c1 = arith.constant 1 : index
    %c0_39 = arith.constant 0 : index
    %c0_40 = arith.constant 0 : index
    %628 = vector.load %arg5[%c1, %c0_39, %c0_40] : memref<2x40x65xf32, #tpu.memory_space<vmem>>, vector<1x40x65xf32>
    %629 = vector.shape_cast %628 : vector<1x40x65xf32> to vector<40x65xf32>
    %630 = arith.mulf %627, %629 : vector<40x65xf32>
    %c1_41 = arith.constant 1 : index
    %c0_42 = arith.constant 0 : index
    %c0_43 = arith.constant 0 : index
    %631 = vector.load %arg6[%c1_41, %c0_42, %c0_43] : memref<2x40x65xf32, #tpu.memory_space<vmem>>, vector<1x40x65xf32>
    %632 = vector.shape_cast %631 : vector<1x40x65xf32> to vector<40x65xf32>
    %633 = vector.shape_cast %630 : vector<40x65xf32> to vector<1x40x65xf32>
    tpu.vector_store %arg6[%c1_41, %c0_42, %c0_43], %633 {strides = array<i32>} : memref<2x40x65xf32, #tpu.memory_space<vmem>>, vector<1x40x65xf32>,
    return
  }
  func.func @transform_0(%arg0: i32) -> (i32, i32, i32) {
    %c0_i32 = arith.constant 0 : i32
    %c0_i32_0 = arith.constant 0 : i32
    %c0_i32_1 = arith.constant 0 : i32
    return %arg0, %c0_i32, %c0_i32_0 : i32, i32, i32
  }
  func.func @transform_1(%arg0: i32) -> (i32, i32) {
    %c0_i32 = arith.constant 0 : i32
    %c0_i32_0 = arith.constant 0 : i32
    %c0_i32_1 = arith.constant 0 : i32
    return %c0_i32, %c0_i32_0 : i32, i32
  }
  func.func @transform_2(%arg0: i32) -> (i32, i32) {
    %c0_i32 = arith.constant 0 : i32
    %c0_i32_0 = arith.constant 0 : i32
    %c0_i32_1 = arith.constant 0 : i32
    return %c0_i32, %c0_i32_0 : i32, i32
  }
  func.func @transform_3(%arg0: i32) -> (i32, i32) {
    %c0_i32 = arith.constant 0 : i32
    %c0_i32_0 = arith.constant 0 : i32
    %c0_i32_1 = arith.constant 0 : i32
    return %c0_i32, %c0_i32_0 : i32, i32
  }
  func.func @transform_4(%arg0: i32) -> (i32, i32, i32) {
    %c0_i32 = arith.constant 0 : i32
    %c0_i32_0 = arith.constant 0 : i32
    %c0_i32_1 = arith.constant 0 : i32
    return %arg0, %c0_i32, %c0_i32_0 : i32, i32, i32
  }
  func.func @transform_5(%arg0: i32) -> (i32, i32, i32) {
    %c0_i32 = arith.constant 0 : i32
    %c0_i32_0 = arith.constant 0 : i32
    %c0_i32_1 = arith.constant 0 : i32
    return %arg0, %c0_i32, %c0_i32_0 : i32, i32, i32
  }
}

</mosaic_0001>

<llo_original>
// kernel: tpu_custom_call.1
$region0: #{tpu_custom_call.1}
  #allocation0 [shape = 'u32[]', space=smem, size = 0x4, offset = 0x4, fixed_abs, tag = 'smem constant byte address 0x4 - core index']
  #allocation1 [shape = 'u32[144,128]{1,0:T(1,128)}', space=vmem, size = 0x12000, scoped, tag = 'internal scratch']
  %s0 = inlined_call_operand.vmem [shape: f32[2,16,30], index: 0, kind: input, shape index: {}]
  %s1 = inlined_call_operand.hbm [shape: f32[40,52], index: 1, kind: input, shape index: {}]
  %s2 = inlined_call_operand.vmem [shape: f32[40,1], index: 2, kind: input, shape index: {}]
  %s3 = inlined_call_operand.vmem [shape: f32[36,10], index: 3, kind: input, shape index: {}]
  %s4 = inlined_call_operand.vmem [shape: f32[2,40,65], index: 4, kind: input, shape index: {}]
  %s5 = inlined_call_operand.hbm [shape: f32[2,40,65], index: 5, kind: output, shape index: {}]
  %s6 = sld [smem:[#allocation0]]
  $region34: #{tpu_custom_call.1} parent=0
    _
  %s8 = ssub.s32 1, %s6
  %s9 = scalar_select 0, %s8, %s6
  $region1: #{tpu_custom_call.1} parent=0
    #allocation2 [shape = 'u8[20480]{0}', space=vmem, size = 0x5000, scoped, tag = 'input window, operand 1, single buffered']
    #allocation3 [shape = 's32[1]{0}', space=sflag, size = 0x4, scoped, tag = 'scoped memory for tpu_custom_call.1']
    #allocation4 [shape = 's32[1]{0}', space=sflag, size = 0x4, scoped, tag = 'scoped memory for tpu_custom_call.1']
    #allocation5 [shape = 'u8[40960]{0}', space=vmem, size = 0xa000, scoped, tag = 'output window, operand 0, single buffered']
    %10 = vsyncpa [#allocation3], 0
    %11 = vsyncpa [#allocation4], 0
    // Predicated region
    $region2: #{tpu_custom_call.1} parent=1 // pred_check
      _
    $region3: #{tpu_custom_call.1} parent=1 // pred_check_branch
      %13 = sbr.rel (0) target = $region5
    $region4: #{tpu_custom_call.1} parent=1 // pred_region
      _
    $region5: #{tpu_custom_call.1} parent=1 // pred_fallthru
      _
    // Predicated region
    $region6: #{tpu_custom_call.1} parent=1 // pred_check
      _
    $region7: #{tpu_custom_call.1} parent=1 // pred_check_branch
      %15 = sbr.rel (0) target = $region9
    $region8: #{tpu_custom_call.1} parent=1 // pred_region
      %s17 = ssub.s32 640, 640
      %18 = vsyncadd [#allocation3], %s17
      %s19 = sshll.u32 [#allocation2], 4
      %s20 = int_to_ptr.vmem [resolvable:$true] %s19
      %25 = dma.hbm_to_vmem [thread:$0]  %s1, 640, %s20, [#allocation3], 128, 128, 8
    $region9: #{tpu_custom_call.1} parent=1 // pred_fallthru
      _
    // Predicated region
    $region10: #{tpu_custom_call.1} parent=1 // pred_check
      _
    $region11: #{tpu_custom_call.1} parent=1 // pred_check_branch
      %27 = sbr.rel (0) target = $region13
    $region12: #{tpu_custom_call.1} parent=1 // pred_region
      _
    $region13: #{tpu_custom_call.1} parent=1 // pred_fallthru
      _
    // Predicated region
    $region14: #{tpu_custom_call.1} parent=1 // pred_check
      _
    $region15: #{tpu_custom_call.1} parent=1 // pred_check_branch
      %29 = sbr.rel (0) target = $region17
    $region16: #{tpu_custom_call.1} parent=1 // pred_region
      _
    $region17: #{tpu_custom_call.1} parent=1 // pred_fallthru
      _
    // Predicated region
    $region18: #{tpu_custom_call.1} parent=1 // pred_check
      _
    $region19: #{tpu_custom_call.1} parent=1 // pred_check_branch
      %31 = sbr.rel (0) target = $region21
    $region20: #{tpu_custom_call.1} parent=1 // pred_region
      _
    $region21: #{tpu_custom_call.1} parent=1 // pred_fallthru
      _
    // Predicated region
    $region22: #{tpu_custom_call.1} parent=1 // pred_check
      _
    $region23: #{tpu_custom_call.1} parent=1 // pred_check_branch
      %33 = sbr.rel (0) target = $region25
    $region24: #{tpu_custom_call.1} parent=1 // pred_region
      %34 = dma.done [#allocation3], 640
    $region25: #{tpu_custom_call.1} parent=1 // pred_fallthru
      _
    %v35 = vld [vmem:[%s0] sm:$0xff]
    %v36 = vld [vmem:[%s0 + $0x8] sm:$0xff]
    %v37 = vld [vmem:[%s0 + $0x10] sm:$0xff]
    %v38 = vld [vmem:[%s0 + $0x18] sm:$0xff]
    %v39 = vld [vmem:[#allocation2] sm:$0xff]
    %v40 = vld [vmem:[#allocation2 + $0x8] sm:$0xff]
    %v41 = vld [vmem:[#allocation2 + $0x10] sm:$0xff]
    %v42 = vld [vmem:[#allocation2 + $0x18] sm:$0xff]
    %v43 = vld [vmem:[#allocation2 + $0x20] sm:$0xff]
    %v44 = vld [vmem:[%s2] sm:$0xff]
    %v45 = vld [vmem:[%s2 + $0x8] sm:$0xff]
    %v46 = vld [vmem:[%s2 + $0x10] sm:$0xff]
    %v47 = vld [vmem:[%s2 + $0x18] sm:$0xff]
    %v48 = vld [vmem:[%s2 + $0x20] sm:$0xff]
    %v49 = vld [vmem:[%s3] sm:$0xff]
    %v50 = vld [vmem:[%s3 + $0x8] sm:$0xff]
    %v51 = vld [vmem:[%s3 + $0x10] sm:$0xff]
    %v52 = vld [vmem:[%s3 + $0x18] sm:$0xff]
    %v53 = vld [vmem:[%s3 + $0x20] sm:$0xf]
    %v55 = vrot.slane %v35, 7
    %56 = vrot.lane.b32.xlu0 %v55, 127
    %v57 = vpop.permute.xlu0 %56
    %v59 = vrot.slane %v35, 6
    %60 = vrot.lane.b32.xlu0 %v59, 126
    %v61 = vpop.permute.xlu0 %60
    %v63 = vrot.slane %v35, 5
    %64 = vrot.lane.b32.xlu0 %v63, 125
    %v65 = vpop.permute.xlu0 %64
    %v67 = vrot.slane %v35, 4
    %68 = vrot.lane.b32.xlu0 %v67, 124
    %v69 = vpop.permute.xlu0 %68
    %v71 = vrot.slane %v35, 3
    %72 = vrot.lane.b32.xlu0 %v71, 123
    %v73 = vpop.permute.xlu0 %72
    %v75 = vrot.slane %v35, 2
    %76 = vrot.lane.b32.xlu0 %v75, 122
    %v77 = vpop.permute.xlu0 %76
    %v79 = vrot.slane %v35, 1
    %80 = vrot.lane.b32.xlu0 %v79, 121
    %v81 = vpop.permute.xlu0 %80
    %83 = vrot.lane.b32.xlu0 %v35, 120
    %v84 = vpop.permute.xlu0 %83
    %86 = vrot.lane.b32.xlu0 %v55, 119
    %v87 = vpop.permute.xlu0 %86
    %89 = vrot.lane.b32.xlu0 %v59, 118
    %v90 = vpop.permute.xlu0 %89
    %92 = vrot.lane.b32.xlu0 %v63, 117
    %v93 = vpop.permute.xlu0 %92
    %95 = vrot.lane.b32.xlu0 %v67, 116
    %v96 = vpop.permute.xlu0 %95
    %vm98 = vcmask 1040384
    %v99 = vsel %vm98, %v35, %v57
    %vm100 = vcmask 1041408
    %v101 = vsel %vm100, %v99, %v61
    %vm102 = vcmask 1042432
    %v103 = vsel %vm102, %v101, %v65
    %vm104 = vcmask 1043456
    %v105 = vsel %vm104, %v103, %v69
    %vm106 = vcmask 1044480
    %v107 = vsel %vm106, %v105, %v73
    %vm108 = vcmask 1045504
    %v109 = vsel %vm108, %v107, %v77
    %vm110 = vcmask 1046528
    %v111 = vsel %vm110, %v109, %v81
    %v112 = vsel %vm98, %v84, %v87
    %v113 = vsel %vm100, %v112, %v90
    %v114 = vsel %vm102, %v113, %v93
    %v115 = vsel %vm104, %v114, %v96
    %117 = vrot.lane.b32.xlu0 %v35, 127
    %v118 = vpop.permute.xlu0 %117
    %120 = vrot.lane.b32.xlu0 %v55, 126
    %v121 = vpop.permute.xlu0 %120
    %123 = vrot.lane.b32.xlu0 %v59, 125
    %v124 = vpop.permute.xlu0 %123
    %126 = vrot.lane.b32.xlu0 %v63, 124
    %v127 = vpop.permute.xlu0 %126
    %129 = vrot.lane.b32.xlu0 %v67, 123
    %v130 = vpop.permute.xlu0 %129
    %132 = vrot.lane.b32.xlu0 %v71, 122
    %v133 = vpop.permute.xlu0 %132
    %135 = vrot.lane.b32.xlu0 %v75, 121
    %v136 = vpop.permute.xlu0 %135
    %138 = vrot.lane.b32.xlu0 %v79, 120
    %v139 = vpop.permute.xlu0 %138
    %141 = vrot.lane.b32.xlu0 %v35, 119
    %v142 = vpop.permute.xlu0 %141
    %144 = vrot.lane.b32.xlu0 %v55, 118
    %v145 = vpop.permute.xlu0 %144
    %147 = vrot.lane.b32.xlu0 %v59, 117
    %v148 = vpop.permute.xlu0 %147
    %150 = vrot.lane.b32.xlu0 %v63, 116
    %v151 = vpop.permute.xlu0 %150
    %v153 = vsel %vm98, %v79, %v118
    %v154 = vsel %vm100, %v153, %v121
    %v155 = vsel %vm102, %v154, %v124
    %v156 = vsel %vm104, %v155, %v127
    %v157 = vsel %vm106, %v156, %v130
    %v158 = vsel %vm108, %v157, %v133
    %v159 = vsel %vm110, %v158, %v136
    %v160 = vsel %vm98, %v139, %v142
    %v161 = vsel %vm100, %v160, %v145
    %v162 = vsel %vm102, %v161, %v148
    %v163 = vsel %vm104, %v162, %v151
    %165 = vrot.lane.b32.xlu0 %v79, 127
    %v166 = vpop.permute.xlu0 %165
    %168 = vrot.lane.b32.xlu0 %v35, 126
    %v169 = vpop.permute.xlu0 %168
    %171 = vrot.lane.b32.xlu0 %v55, 125
    %v172 = vpop.permute.xlu0 %171
    %174 = vrot.lane.b32.xlu0 %v59, 124
    %v175 = vpop.permute.xlu0 %174
    %177 = vrot.lane.b32.xlu0 %v63, 123
    %v178 = vpop.permute.xlu0 %177
    %180 = vrot.lane.b32.xlu0 %v67, 122
    %v181 = vpop.permute.xlu0 %180
    %183 = vrot.lane.b32.xlu0 %v71, 121
    %v184 = vpop.permute.xlu0 %183
    %186 = vrot.lane.b32.xlu0 %v75, 120
    %v187 = vpop.permute.xlu0 %186
    %189 = vrot.lane.b32.xlu0 %v79, 119
    %v190 = vpop.permute.xlu0 %189
    %192 = vrot.lane.b32.xlu0 %v35, 118
    %v193 = vpop.permute.xlu0 %192
    %195 = vrot.lane.b32.xlu0 %v55, 117
    %v196 = vpop.permute.xlu0 %195
    %198 = vrot.lane.b32.xlu0 %v59, 116
    %v199 = vpop.permute.xlu0 %198
    %v201 = vsel %vm98, %v75, %v166
    %v202 = vsel %vm100, %v201, %v169
    %v203 = vsel %vm102, %v202, %v172
    %v204 = vsel %vm104, %v203, %v175
    %v205 = vsel %vm106, %v204, %v178
    %v206 = vsel %vm108, %v205, %v181
    %v207 = vsel %vm110, %v206, %v184
    %v208 = vsel %vm98, %v187, %v190
    %v209 = vsel %vm100, %v208, %v193
    %v210 = vsel %vm102, %v209, %v196
    %v211 = vsel %vm104, %v210, %v199
    %213 = vrot.lane.b32.xlu0 %v75, 127
    %v214 = vpop.permute.xlu0 %213
    %216 = vrot.lane.b32.xlu0 %v79, 126
    %v217 = vpop.permute.xlu0 %216
    %219 = vrot.lane.b32.xlu0 %v35, 125
    %v220 = vpop.permute.xlu0 %219
    %222 = vrot.lane.b32.xlu0 %v55, 124
    %v223 = vpop.permute.xlu0 %222
    %225 = vrot.lane.b32.xlu0 %v59, 123
    %v226 = vpop.permute.xlu0 %225
    %228 = vrot.lane.b32.xlu0 %v63, 122
    %v229 = vpop.permute.xlu0 %228
    %231 = vrot.lane.b32.xlu0 %v67, 121
    %v232 = vpop.permute.xlu0 %231
    %234 = vrot.lane.b32.xlu0 %v71, 120
    %v235 = vpop.permute.xlu0 %234
    %237 = vrot.lane.b32.xlu0 %v75, 119
    %v238 = vpop.permute.xlu0 %237
    %240 = vrot.lane.b32.xlu0 %v79, 118
    %v241 = vpop.permute.xlu0 %240
    %243 = vrot.lane.b32.xlu0 %v35, 117
    %v244 = vpop.permute.xlu0 %243
    %246 = vrot.lane.b32.xlu0 %v55, 116
    %v247 = vpop.permute.xlu0 %246
    %v249 = vsel %vm98, %v71, %v214
    %v250 = vsel %vm100, %v249, %v217
    %v251 = vsel %vm102, %v250, %v220
    %v252 = vsel %vm104, %v251, %v223
    %v253 = vsel %vm106, %v252, %v226
    %v254 = vsel %vm108, %v253, %v229
    %v255 = vsel %vm110, %v254, %v232
    %v256 = vsel %vm98, %v235, %v238
    %v257 = vsel %vm100, %v256, %v241
    %v258 = vsel %vm102, %v257, %v244
    %v259 = vsel %vm104, %v258, %v247
    %261 = vrot.lane.b32.xlu0 %v71, 127
    %v262 = vpop.permute.xlu0 %261
    %264 = vrot.lane.b32.xlu0 %v75, 126
    %v265 = vpop.permute.xlu0 %264
    %267 = vrot.lane.b32.xlu0 %v79, 125
    %v268 = vpop.permute.xlu0 %267
    %270 = vrot.lane.b32.xlu0 %v35, 124
    %v271 = vpop.permute.xlu0 %270
    %273 = vrot.lane.b32.xlu0 %v55, 123
    %v274 = vpop.permute.xlu0 %273
    %276 = vrot.lane.b32.xlu0 %v59, 122
    %v277 = vpop.permute.xlu0 %276
    %279 = vrot.lane.b32.xlu0 %v63, 121
    %v280 = vpop.permute.xlu0 %279
    %282 = vrot.lane.b32.xlu0 %v67, 120
    %v283 = vpop.permute.xlu0 %282
    %285 = vrot.lane.b32.xlu0 %v71, 119
    %v286 = vpop.permute.xlu0 %285
    %288 = vrot.lane.b32.xlu0 %v75, 118
    %v289 = vpop.permute.xlu0 %288
    %291 = vrot.lane.b32.xlu0 %v79, 117
    %v292 = vpop.permute.xlu0 %291
    %294 = vrot.lane.b32.xlu0 %v35, 116
    %v295 = vpop.permute.xlu0 %294
    %v297 = vsel %vm98, %v67, %v262
    %v298 = vsel %vm100, %v297, %v265
    %v299 = vsel %vm102, %v298, %v268
    %v300 = vsel %vm104, %v299, %v271
    %v301 = vsel %vm106, %v300, %v274
    %v302 = vsel %vm108, %v301, %v277
    %v303 = vsel %vm110, %v302, %v280
    %v304 = vsel %vm98, %v283, %v286
    %v305 = vsel %vm100, %v304, %v289
    %v306 = vsel %vm102, %v305, %v292
    %v307 = vsel %vm104, %v306, %v295
    %309 = vrot.lane.b32.xlu0 %v67, 127
    %v310 = vpop.permute.xlu0 %309
    %312 = vrot.lane.b32.xlu0 %v71, 126
    %v313 = vpop.permute.xlu0 %312
    %315 = vrot.lane.b32.xlu0 %v75, 125
    %v316 = vpop.permute.xlu0 %315
    %318 = vrot.lane.b32.xlu0 %v79, 124
    %v319 = vpop.permute.xlu0 %318
    %321 = vrot.lane.b32.xlu0 %v35, 123
    %v322 = vpop.permute.xlu0 %321
    %324 = vrot.lane.b32.xlu0 %v55, 122
    %v325 = vpop.permute.xlu0 %324
    %327 = vrot.lane.b32.xlu0 %v59, 121
    %v328 = vpop.permute.xlu0 %327
    %330 = vrot.lane.b32.xlu0 %v63, 120
    %v331 = vpop.permute.xlu0 %330
    %333 = vrot.lane.b32.xlu0 %v67, 119
    %v334 = vpop.permute.xlu0 %333
    %336 = vrot.lane.b32.xlu0 %v71, 118
    %v337 = vpop.permute.xlu0 %336
    %339 = vrot.lane.b32.xlu0 %v75, 117
    %v340 = vpop.permute.xlu0 %339
    %342 = vrot.lane.b32.xlu0 %v79, 116
    %v343 = vpop.permute.xlu0 %342
    %v345 = vsel %vm98, %v63, %v310
    %v346 = vsel %vm100, %v345, %v313
    %v347 = vsel %vm102, %v346, %v316
    %v348 = vsel %vm104, %v347, %v319
    %v349 = vsel %vm106, %v348, %v322
    %v350 = vsel %vm108, %v349, %v325
    %v351 = vsel %vm110, %v350, %v328
    %v352 = vsel %vm98, %v331, %v334
    %v353 = vsel %vm100, %v352, %v337
    %v354 = vsel %vm102, %v353, %v340
    %v355 = vsel %vm104, %v354, %v343
    %357 = vrot.lane.b32.xlu0 %v63, 127
    %v358 = vpop.permute.xlu0 %357
    %360 = vrot.lane.b32.xlu0 %v67, 126
    %v361 = vpop.permute.xlu0 %360
    %363 = vrot.lane.b32.xlu0 %v71, 125
    %v364 = vpop.permute.xlu0 %363
    %366 = vrot.lane.b32.xlu0 %v75, 124
    %v367 = vpop.permute.xlu0 %366
    %369 = vrot.lane.b32.xlu0 %v79, 123
    %v370 = vpop.permute.xlu0 %369
    %372 = vrot.lane.b32.xlu0 %v35, 122
    %v373 = vpop.permute.xlu0 %372
    %375 = vrot.lane.b32.xlu0 %v55, 121
    %v376 = vpop.permute.xlu0 %375
    %378 = vrot.lane.b32.xlu0 %v59, 120
    %v379 = vpop.permute.xlu0 %378
    %381 = vrot.lane.b32.xlu0 %v63, 119
    %v382 = vpop.permute.xlu0 %381
    %384 = vrot.lane.b32.xlu0 %v67, 118
    %v385 = vpop.permute.xlu0 %384
    %387 = vrot.lane.b32.xlu0 %v71, 117
    %v388 = vpop.permute.xlu0 %387
    %390 = vrot.lane.b32.xlu0 %v75, 116
    %v391 = vpop.permute.xlu0 %390
    %v393 = vsel %vm98, %v59, %v358
    %v394 = vsel %vm100, %v393, %v361
    %v395 = vsel %vm102, %v394, %v364
    %v396 = vsel %vm104, %v395, %v367
    %v397 = vsel %vm106, %v396, %v370
    %v398 = vsel %vm108, %v397, %v373
    %v399 = vsel %vm110, %v398, %v376
    %v400 = vsel %vm98, %v379, %v382
    %v401 = vsel %vm100, %v400, %v385
    %v402 = vsel %vm102, %v401, %v388
    %v403 = vsel %vm104, %v402, %v391
    %405 = vrot.lane.b32.xlu0 %v59, 127
    %v406 = vpop.permute.xlu0 %405
    %408 = vrot.lane.b32.xlu0 %v63, 126
    %v409 = vpop.permute.xlu0 %408
    %411 = vrot.lane.b32.xlu0 %v67, 125
    %v412 = vpop.permute.xlu0 %411
    %414 = vrot.lane.b32.xlu0 %v71, 124
    %v415 = vpop.permute.xlu0 %414
    %417 = vrot.lane.b32.xlu0 %v75, 123
    %v418 = vpop.permute.xlu0 %417
    %420 = vrot.lane.b32.xlu0 %v79, 122
    %v421 = vpop.permute.xlu0 %420
    %423 = vrot.lane.b32.xlu0 %v35, 121
    %v424 = vpop.permute.xlu0 %423
    %426 = vrot.lane.b32.xlu0 %v55, 120
    %v427 = vpop.permute.xlu0 %426
    %429 = vrot.lane.b32.xlu0 %v59, 119
    %v430 = vpop.permute.xlu0 %429
    %432 = vrot.lane.b32.xlu0 %v63, 118
    %v433 = vpop.permute.xlu0 %432
    %435 = vrot.lane.b32.xlu0 %v67, 117
    %v436 = vpop.permute.xlu0 %435
    %438 = vrot.lane.b32.xlu0 %v71, 116
    %v439 = vpop.permute.xlu0 %438
    %v441 = vsel %vm98, %v55, %v406
    %v442 = vsel %vm100, %v441, %v409
    %v443 = vsel %vm102, %v442, %v412
    %v444 = vsel %vm104, %v443, %v415
    %v445 = vsel %vm106, %v444, %v418
    %v446 = vsel %vm108, %v445, %v421
    %v447 = vsel %vm110, %v446, %v424
    %v448 = vsel %vm98, %v427, %v430
    %v449 = vsel %vm100, %v448, %v433
    %v450 = vsel %vm102, %v449, %v436
    %v451 = vsel %vm104, %v450, %v439
    %v453 = vrot.slane %v36, 7
    %454 = vrot.lane.b32.xlu0 %v453, 127
    %v455 = vpop.permute.xlu0 %454
    %v457 = vrot.slane %v36, 6
    %458 = vrot.lane.b32.xlu0 %v457, 126
    %v459 = vpop.permute.xlu0 %458
    %v461 = vrot.slane %v36, 5
    %462 = vrot.lane.b32.xlu0 %v461, 125
    %v463 = vpop.permute.xlu0 %462
    %v465 = vrot.slane %v36, 4
    %466 = vrot.lane.b32.xlu0 %v465, 124
    %v467 = vpop.permute.xlu0 %466
    %v469 = vrot.slane %v36, 3
    %470 = vrot.lane.b32.xlu0 %v469, 123
    %v471 = vpop.permute.xlu0 %470
    %v473 = vrot.slane %v36, 2
    %474 = vrot.lane.b32.xlu0 %v473, 122
    %v475 = vpop.permute.xlu0 %474
    %v477 = vrot.slane %v36, 1
    %478 = vrot.lane.b32.xlu0 %v477, 121
    %v479 = vpop.permute.xlu0 %478
    %481 = vrot.lane.b32.xlu0 %v36, 120
    %v482 = vpop.permute.xlu0 %481
    %484 = vrot.lane.b32.xlu0 %v453, 119
    %v485 = vpop.permute.xlu0 %484
    %487 = vrot.lane.b32.xlu0 %v457, 118
    %v488 = vpop.permute.xlu0 %487
    %490 = vrot.lane.b32.xlu0 %v461, 117
    %v491 = vpop.permute.xlu0 %490
    %493 = vrot.lane.b32.xlu0 %v465, 116
    %v494 = vpop.permute.xlu0 %493
    %v496 = vsel %vm98, %v36, %v455
    %v497 = vsel %vm100, %v496, %v459
    %v498 = vsel %vm102, %v497, %v463
    %v499 = vsel %vm104, %v498, %v467
    %v500 = vsel %vm106, %v499, %v471
    %v501 = vsel %vm108, %v500, %v475
    %v502 = vsel %vm110, %v501, %v479
    %v503 = vsel %vm98, %v482, %v485
    %v504 = vsel %vm100, %v503, %v488
    %v505 = vsel %vm102, %v504, %v491
    %v506 = vsel %vm104, %v505, %v494
    %508 = vrot.lane.b32.xlu0 %v36, 127
    %v509 = vpop.permute.xlu0 %508
    %511 = vrot.lane.b32.xlu0 %v453, 126
    %v512 = vpop.permute.xlu0 %511
    %514 = vrot.lane.b32.xlu0 %v457, 125
    %v515 = vpop.permute.xlu0 %514
    %517 = vrot.lane.b32.xlu0 %v461, 124
    %v518 = vpop.permute.xlu0 %517
    %520 = vrot.lane.b32.xlu0 %v465, 123
    %v521 = vpop.permute.xlu0 %520
    %523 = vrot.lane.b32.xlu0 %v469, 122
    %v524 = vpop.permute.xlu0 %523
    %526 = vrot.lane.b32.xlu0 %v473, 121
    %v527 = vpop.permute.xlu0 %526
    %529 = vrot.lane.b32.xlu0 %v477, 120
    %v530 = vpop.permute.xlu0 %529
    %532 = vrot.lane.b32.xlu0 %v36, 119
    %v533 = vpop.permute.xlu0 %532
    %535 = vrot.lane.b32.xlu0 %v453, 118
    %v536 = vpop.permute.xlu0 %535
    %538 = vrot.lane.b32.xlu0 %v457, 117
    %v539 = vpop.permute.xlu0 %538
    %541 = vrot.lane.b32.xlu0 %v461, 116
    %v542 = vpop.permute.xlu0 %541
    %v544 = vsel %vm98, %v477, %v509
    %v545 = vsel %vm100, %v544, %v512
    %v546 = vsel %vm102, %v545, %v515
    %v547 = vsel %vm104, %v546, %v518
    %v548 = vsel %vm106, %v547, %v521
    %v549 = vsel %vm108, %v548, %v524
    %v550 = vsel %vm110, %v549, %v527
    %v551 = vsel %vm98, %v530, %v533
    %v552 = vsel %vm100, %v551, %v536
    %v553 = vsel %vm102, %v552, %v539
    %v554 = vsel %vm104, %v553, %v542
    %556 = vrot.lane.b32.xlu0 %v477, 127
    %v557 = vpop.permute.xlu0 %556
    %559 = vrot.lane.b32.xlu0 %v36, 126
    %v560 = vpop.permute.xlu0 %559
    %562 = vrot.lane.b32.xlu0 %v453, 125
    %v563 = vpop.permute.xlu0 %562
    %565 = vrot.lane.b32.xlu0 %v457, 124
    %v566 = vpop.permute.xlu0 %565
    %568 = vrot.lane.b32.xlu0 %v461, 123
    %v569 = vpop.permute.xlu0 %568
    %571 = vrot.lane.b32.xlu0 %v465, 122
    %v572 = vpop.permute.xlu0 %571
    %574 = vrot.lane.b32.xlu0 %v469, 121
    %v575 = vpop.permute.xlu0 %574
    %577 = vrot.lane.b32.xlu0 %v473, 120
    %v578 = vpop.permute.xlu0 %577
    %580 = vrot.lane.b32.xlu0 %v477, 119
    %v581 = vpop.permute.xlu0 %580
    %583 = vrot.lane.b32.xlu0 %v36, 118
    %v584 = vpop.permute.xlu0 %583
    %586 = vrot.lane.b32.xlu0 %v453, 117
    %v587 = vpop.permute.xlu0 %586
    %589 = vrot.lane.b32.xlu0 %v457, 116
    %v590 = vpop.permute.xlu0 %589
    %v592 = vsel %vm98, %v473, %v557
    %v593 = vsel %vm100, %v592, %v560
    %v594 = vsel %vm102, %v593, %v563
    %v595 = vsel %vm104, %v594, %v566
    %v596 = vsel %vm106, %v595, %v569
    %v597 = vsel %vm108, %v596, %v572
    %v598 = vsel %vm110, %v597, %v575
    %v599 = vsel %vm98, %v578, %v581
    %v600 = vsel %vm100, %v599, %v584
    %v601 = vsel %vm102, %v600, %v587
    %v602 = vsel %vm104, %v601, %v590
    %604 = vrot.lane.b32.xlu0 %v473, 127
    %v605 = vpop.permute.xlu0 %604
    %607 = vrot.lane.b32.xlu0 %v477, 126
    %v608 = vpop.permute.xlu0 %607
    %610 = vrot.lane.b32.xlu0 %v36, 125
    %v611 = vpop.permute.xlu0 %610
    %613 = vrot.lane.b32.xlu0 %v453, 124
    %v614 = vpop.permute.xlu0 %613
    %616 = vrot.lane.b32.xlu0 %v457, 123
    %v617 = vpop.permute.xlu0 %616
    %619 = vrot.lane.b32.xlu0 %v461, 122
    %v620 = vpop.permute.xlu0 %619
    %622 = vrot.lane.b32.xlu0 %v465, 121
    %v623 = vpop.permute.xlu0 %622
    %625 = vrot.lane.b32.xlu0 %v469, 120
    %v626 = vpop.permute.xlu0 %625
    %628 = vrot.lane.b32.xlu0 %v473, 119
    %v629 = vpop.permute.xlu0 %628
    %631 = vrot.lane.b32.xlu0 %v477, 118
    %v632 = vpop.permute.xlu0 %631
    %634 = vrot.lane.b32.xlu0 %v36, 117
    %v635 = vpop.permute.xlu0 %634
    %637 = vrot.lane.b32.xlu0 %v453, 116
    %v638 = vpop.permute.xlu0 %637
    %v640 = vsel %vm98, %v469, %v605
    %v641 = vsel %vm100, %v640, %v608
    %v642 = vsel %vm102, %v641, %v611
    %v643 = vsel %vm104, %v642, %v614
    %v644 = vsel %vm106, %v643, %v617
    %v645 = vsel %vm108, %v644, %v620
    %v646 = vsel %vm110, %v645, %v623
    %v647 = vsel %vm98, %v626, %v629
    %v648 = vsel %vm100, %v647, %v632
    %v649 = vsel %vm102, %v648, %v635
    %v650 = vsel %vm104, %v649, %v638
    %652 = vrot.lane.b32.xlu0 %v469, 127
    %v653 = vpop.permute.xlu0 %652
    %655 = vrot.lane.b32.xlu0 %v473, 126
    %v656 = vpop.permute.xlu0 %655
    %658 = vrot.lane.b32.xlu0 %v477, 125
    %v659 = vpop.permute.xlu0 %658
    %661 = vrot.lane.b32.xlu0 %v36, 124
    %v662 = vpop.permute.xlu0 %661
    %664 = vrot.lane.b32.xlu0 %v453, 123
    %v665 = vpop.permute.xlu0 %664
    %667 = vrot.lane.b32.xlu0 %v457, 122
    %v668 = vpop.permute.xlu0 %667
    %670 = vrot.lane.b32.xlu0 %v461, 121
    %v671 = vpop.permute.xlu0 %670
    %673 = vrot.lane.b32.xlu0 %v465, 120
    %v674 = vpop.permute.xlu0 %673
    %676 = vrot.lane.b32.xlu0 %v469, 119
    %v677 = vpop.permute.xlu0 %676
    %679 = vrot.lane.b32.xlu0 %v473, 118
    %v680 = vpop.permute.xlu0 %679
    %682 = vrot.lane.b32.xlu0 %v477, 117
    %v683 = vpop.permute.xlu0 %682
    %685 = vrot.lane.b32.xlu0 %v36, 116
    %v686 = vpop.permute.xlu0 %685
    %v688 = vsel %vm98, %v465, %v653
    %v689 = vsel %vm100, %v688, %v656
    %v690 = vsel %vm102, %v689, %v659
    %v691 = vsel %vm104, %v690, %v662
    %v692 = vsel %vm106, %v691, %v665
    %v693 = vsel %vm108, %v692, %v668
    %v694 = vsel %vm110, %v693, %v671
    %v695 = vsel %vm98, %v674, %v677
    %v696 = vsel %vm100, %v695, %v680
    %v697 = vsel %vm102, %v696, %v683
    %v698 = vsel %vm104, %v697, %v686
    %700 = vrot.lane.b32.xlu0 %v465, 127
    %v701 = vpop.permute.xlu0 %700
    %703 = vrot.lane.b32.xlu0 %v469, 126
    %v704 = vpop.permute.xlu0 %703
    %706 = vrot.lane.b32.xlu0 %v473, 125
    %v707 = vpop.permute.xlu0 %706
    %709 = vrot.lane.b32.xlu0 %v477, 124
    %v710 = vpop.permute.xlu0 %709
    %712 = vrot.lane.b32.xlu0 %v36, 123
    %v713 = vpop.permute.xlu0 %712
    %715 = vrot.lane.b32.xlu0 %v453, 122
    %v716 = vpop.permute.xlu0 %715
    %718 = vrot.lane.b32.xlu0 %v457, 121
    %v719 = vpop.permute.xlu0 %718
    %721 = vrot.lane.b32.xlu0 %v461, 120
    %v722 = vpop.permute.xlu0 %721
    %724 = vrot.lane.b32.xlu0 %v465, 119
    %v725 = vpop.permute.xlu0 %724
    %727 = vrot.lane.b32.xlu0 %v469, 118
    %v728 = vpop.permute.xlu0 %727
    %730 = vrot.lane.b32.xlu0 %v473, 117
    %v731 = vpop.permute.xlu0 %730
    %733 = vrot.lane.b32.xlu0 %v477, 116
    %v734 = vpop.permute.xlu0 %733
    %v736 = vsel %vm98, %v461, %v701
    %v737 = vsel %vm100, %v736, %v704
    %v738 = vsel %vm102, %v737, %v707
    %v739 = vsel %vm104, %v738, %v710
    %v740 = vsel %vm106, %v739, %v713
    %v741 = vsel %vm108, %v740, %v716
    %v742 = vsel %vm110, %v741, %v719
    %v743 = vsel %vm98, %v722, %v725
    %v744 = vsel %vm100, %v743, %v728
    %v745 = vsel %vm102, %v744, %v731
    %v746 = vsel %vm104, %v745, %v734
    %748 = vrot.lane.b32.xlu0 %v461, 127
    %v749 = vpop.permute.xlu0 %748
    %751 = vrot.lane.b32.xlu0 %v465, 126
    %v752 = vpop.permute.xlu0 %751
    %754 = vrot.lane.b32.xlu0 %v469, 125
    %v755 = vpop.permute.xlu0 %754
    %757 = vrot.lane.b32.xlu0 %v473, 124
    %v758 = vpop.permute.xlu0 %757
    %760 = vrot.lane.b32.xlu0 %v477, 123
    %v761 = vpop.permute.xlu0 %760
    %763 = vrot.lane.b32.xlu0 %v36, 122
    %v764 = vpop.permute.xlu0 %763
    %766 = vrot.lane.b32.xlu0 %v453, 121
    %v767 = vpop.permute.xlu0 %766
    %769 = vrot.lane.b32.xlu0 %v457, 120
    %v770 = vpop.permute.xlu0 %769
    %772 = vrot.lane.b32.xlu0 %v461, 119
    %v773 = vpop.permute.xlu0 %772
    %775 = vrot.lane.b32.xlu0 %v465, 118
    %v776 = vpop.permute.xlu0 %775
    %778 = vrot.lane.b32.xlu0 %v469, 117
    %v779 = vpop.permute.xlu0 %778
    %781 = vrot.lane.b32.xlu0 %v473, 116
    %v782 = vpop.permute.xlu0 %781
    %v784 = vsel %vm98, %v457, %v749
    %v785 = vsel %vm100, %v784, %v752
    %v786 = vsel %vm102, %v785, %v755
    %v787 = vsel %vm104, %v786, %v758
    %v788 = vsel %vm106, %v787, %v761
    %v789 = vsel %vm108, %v788, %v764
    %v790 = vsel %vm110, %v789, %v767
    %v791 = vsel %vm98, %v770, %v773
    %v792 = vsel %vm100, %v791, %v776
    %v793 = vsel %vm102, %v792, %v779
    %v794 = vsel %vm104, %v793, %v782
    %796 = vrot.lane.b32.xlu0 %v457, 127
    %v797 = vpop.permute.xlu0 %796
    %799 = vrot.lane.b32.xlu0 %v461, 126
    %v800 = vpop.permute.xlu0 %799
    %802 = vrot.lane.b32.xlu0 %v465, 125
    %v803 = vpop.permute.xlu0 %802
    %805 = vrot.lane.b32.xlu0 %v469, 124
    %v806 = vpop.permute.xlu0 %805
    %808 = vrot.lane.b32.xlu0 %v473, 123
    %v809 = vpop.permute.xlu0 %808
    %811 = vrot.lane.b32.xlu0 %v477, 122
    %v812 = vpop.permute.xlu0 %811
    %814 = vrot.lane.b32.xlu0 %v36, 121
    %v815 = vpop.permute.xlu0 %814
    %817 = vrot.lane.b32.xlu0 %v453, 120
    %v818 = vpop.permute.xlu0 %817
    %820 = vrot.lane.b32.xlu0 %v457, 119
    %v821 = vpop.permute.xlu0 %820
    %823 = vrot.lane.b32.xlu0 %v461, 118
    %v824 = vpop.permute.xlu0 %823
    %826 = vrot.lane.b32.xlu0 %v465, 117
    %v827 = vpop.permute.xlu0 %826
    %829 = vrot.lane.b32.xlu0 %v469, 116
    %v830 = vpop.permute.xlu0 %829
    %v832 = vsel %vm98, %v453, %v797
    %v833 = vsel %vm100, %v832, %v800
    %v834 = vsel %vm102, %v833, %v803
    %v835 = vsel %vm104, %v834, %v806
    %v836 = vsel %vm106, %v835, %v809
    %v837 = vsel %vm108, %v836, %v812
    %v838 = vsel %vm110, %v837, %v815
    %v839 = vsel %vm98, %v818, %v821
    %v840 = vsel %vm100, %v839, %v824
    %v841 = vsel %vm102, %v840, %v827
    %v842 = vsel %vm104, %v841, %v830
    %v844 = vrot.slane %v37, 7
    %845 = vrot.lane.b32.xlu0 %v844, 127
    %v846 = vpop.permute.xlu0 %845
    %v848 = vrot.slane %v37, 6
    %849 = vrot.lane.b32.xlu0 %v848, 126
    %v850 = vpop.permute.xlu0 %849
    %v852 = vrot.slane %v37, 5
    %853 = vrot.lane.b32.xlu0 %v852, 125
    %v854 = vpop.permute.xlu0 %853
    %v856 = vrot.slane %v37, 4
    %857 = vrot.lane.b32.xlu0 %v856, 124
    %v858 = vpop.permute.xlu0 %857
    %v860 = vrot.slane %v37, 3
    %861 = vrot.lane.b32.xlu0 %v860, 123
    %v862 = vpop.permute.xlu0 %861
    %v864 = vrot.slane %v37, 2
    %865 = vrot.lane.b32.xlu0 %v864, 122
    %v866 = vpop.permute.xlu0 %865
    %v868 = vrot.slane %v37, 1
    %869 = vrot.lane.b32.xlu0 %v868, 121
    %v870 = vpop.permute.xlu0 %869
    %872 = vrot.lane.b32.xlu0 %v37, 120
    %v873 = vpop.permute.xlu0 %872
    %875 = vrot.lane.b32.xlu0 %v844, 119
    %v876 = vpop.permute.xlu0 %875
    %878 = vrot.lane.b32.xlu0 %v848, 118
    %v879 = vpop.permute.xlu0 %878
    %881 = vrot.lane.b32.xlu0 %v852, 117
    %v882 = vpop.permute.xlu0 %881
    %884 = vrot.lane.b32.xlu0 %v856, 116
    %v885 = vpop.permute.xlu0 %884
    %v887 = vsel %vm98, %v37, %v846
    %v888 = vsel %vm100, %v887, %v850
    %v889 = vsel %vm102, %v888, %v854
    %v890 = vsel %vm104, %v889, %v858
    %v891 = vsel %vm106, %v890, %v862
    %v892 = vsel %vm108, %v891, %v866
    %v893 = vsel %vm110, %v892, %v870
    %v894 = vsel %vm98, %v873, %v876
    %v895 = vsel %vm100, %v894, %v879
    %v896 = vsel %vm102, %v895, %v882
    %v897 = vsel %vm104, %v896, %v885
    %899 = vrot.lane.b32.xlu0 %v37, 127
    %v900 = vpop.permute.xlu0 %899
    %902 = vrot.lane.b32.xlu0 %v844, 126
    %v903 = vpop.permute.xlu0 %902
    %905 = vrot.lane.b32.xlu0 %v848, 125
    %v906 = vpop.permute.xlu0 %905
    %908 = vrot.lane.b32.xlu0 %v852, 124
    %v909 = vpop.permute.xlu0 %908
    %911 = vrot.lane.b32.xlu0 %v856, 123
    %v912 = vpop.permute.xlu0 %911
    %914 = vrot.lane.b32.xlu0 %v860, 122
    %v915 = vpop.permute.xlu0 %914
    %917 = vrot.lane.b32.xlu0 %v864, 121
    %v918 = vpop.permute.xlu0 %917
    %920 = vrot.lane.b32.xlu0 %v868, 120
    %v921 = vpop.permute.xlu0 %920
    %923 = vrot.lane.b32.xlu0 %v37, 119
    %v924 = vpop.permute.xlu0 %923
    %926 = vrot.lane.b32.xlu0 %v844, 118
    %v927 = vpop.permute.xlu0 %926
    %929 = vrot.lane.b32.xlu0 %v848, 117
    %v930 = vpop.permute.xlu0 %929
    %932 = vrot.lane.b32.xlu0 %v852, 116
    %v933 = vpop.permute.xlu0 %932
    %v935 = vsel %vm98, %v868, %v900
    %v936 = vsel %vm100, %v935, %v903
    %v937 = vsel %vm102, %v936, %v906
    %v938 = vsel %vm104, %v937, %v909
    %v939 = vsel %vm106, %v938, %v912
    %v940 = vsel %vm108, %v939, %v915
    %v941 = vsel %vm110, %v940, %v918
    %v942 = vsel %vm98, %v921, %v924
    %v943 = vsel %vm100, %v942, %v927
    %v944 = vsel %vm102, %v943, %v930
    %v945 = vsel %vm104, %v944, %v933
    %947 = vrot.lane.b32.xlu0 %v868, 127
    %v948 = vpop.permute.xlu0 %947
    %950 = vrot.lane.b32.xlu0 %v37, 126
    %v951 = vpop.permute.xlu0 %950
    %953 = vrot.lane.b32.xlu0 %v844, 125
    %v954 = vpop.permute.xlu0 %953
    %956 = vrot.lane.b32.xlu0 %v848, 124
    %v957 = vpop.permute.xlu0 %956
    %959 = vrot.lane.b32.xlu0 %v852, 123
    %v960 = vpop.permute.xlu0 %959
    %962 = vrot.lane.b32.xlu0 %v856, 122
    %v963 = vpop.permute.xlu0 %962
    %965 = vrot.lane.b32.xlu0 %v860, 121
    %v966 = vpop.permute.xlu0 %965
    %968 = vrot.lane.b32.xlu0 %v864, 120
    %v969 = vpop.permute.xlu0 %968
    %971 = vrot.lane.b32.xlu0 %v868, 119
    %v972 = vpop.permute.xlu0 %971
    %974 = vrot.lane.b32.xlu0 %v37, 118
    %v975 = vpop.permute.xlu0 %974
    %977 = vrot.lane.b32.xlu0 %v844, 117
    %v978 = vpop.permute.xlu0 %977
    %980 = vrot.lane.b32.xlu0 %v848, 116
    %v981 = vpop.permute.xlu0 %980
    %v983 = vsel %vm98, %v864, %v948
    %v984 = vsel %vm100, %v983, %v951
    %v985 = vsel %vm102, %v984, %v954
    %v986 = vsel %vm104, %v985, %v957
    %v987 = vsel %vm106, %v986, %v960
    %v988 = vsel %vm108, %v987, %v963
    %v989 = vsel %vm110, %v988, %v966
    %v990 = vsel %vm98, %v969, %v972
    %v991 = vsel %vm100, %v990, %v975
    %v992 = vsel %vm102, %v991, %v978
    %v993 = vsel %vm104, %v992, %v981
    %995 = vrot.lane.b32.xlu0 %v864, 127
    %v996 = vpop.permute.xlu0 %995
    %998 = vrot.lane.b32.xlu0 %v868, 126
    %v999 = vpop.permute.xlu0 %998
    %1001 = vrot.lane.b32.xlu0 %v37, 125
    %v1002 = vpop.permute.xlu0 %1001
    %1004 = vrot.lane.b32.xlu0 %v844, 124
    %v1005 = vpop.permute.xlu0 %1004
    %1007 = vrot.lane.b32.xlu0 %v848, 123
    %v1008 = vpop.permute.xlu0 %1007
    %1010 = vrot.lane.b32.xlu0 %v852, 122
    %v1011 = vpop.permute.xlu0 %1010
    %1013 = vrot.lane.b32.xlu0 %v856, 121
    %v1014 = vpop.permute.xlu0 %1013
    %1016 = vrot.lane.b32.xlu0 %v860, 120
    %v1017 = vpop.permute.xlu0 %1016
    %1019 = vrot.lane.b32.xlu0 %v864, 119
    %v1020 = vpop.permute.xlu0 %1019
    %1022 = vrot.lane.b32.xlu0 %v868, 118
    %v1023 = vpop.permute.xlu0 %1022
    %1025 = vrot.lane.b32.xlu0 %v37, 117
    %v1026 = vpop.permute.xlu0 %1025
    %1028 = vrot.lane.b32.xlu0 %v844, 116
    %v1029 = vpop.permute.xlu0 %1028
    %v1031 = vsel %vm98, %v860, %v996
    %v1032 = vsel %vm100, %v1031, %v999
    %v1033 = vsel %vm102, %v1032, %v1002
    %v1034 = vsel %vm104, %v1033, %v1005
    %v1035 = vsel %vm106, %v1034, %v1008
    %v1036 = vsel %vm108, %v1035, %v1011
    %v1037 = vsel %vm110, %v1036, %v1014
    %v1038 = vsel %vm98, %v1017, %v1020
    %v1039 = vsel %vm100, %v1038, %v1023
    %v1040 = vsel %vm102, %v1039, %v1026
    %v1041 = vsel %vm104, %v1040, %v1029
    %1043 = vrot.lane.b32.xlu0 %v860, 127
    %v1044 = vpop.permute.xlu0 %1043
    %1046 = vrot.lane.b32.xlu0 %v864, 126
    %v1047 = vpop.permute.xlu0 %1046
    %1049 = vrot.lane.b32.xlu0 %v868, 125
    %v1050 = vpop.permute.xlu0 %1049
    %1052 = vrot.lane.b32.xlu0 %v37, 124
    %v1053 = vpop.permute.xlu0 %1052
    %1055 = vrot.lane.b32.xlu0 %v844, 123
    %v1056 = vpop.permute.xlu0 %1055
    %1058 = vrot.lane.b32.xlu0 %v848, 122
    %v1059 = vpop.permute.xlu0 %1058
    %1061 = vrot.lane.b32.xlu0 %v852, 121
    %v1062 = vpop.permute.xlu0 %1061
    %1064 = vrot.lane.b32.xlu0 %v856, 120
    %v1065 = vpop.permute.xlu0 %1064
    %1067 = vrot.lane.b32.xlu0 %v860, 119
    %v1068 = vpop.permute.xlu0 %1067
    %1070 = vrot.lane.b32.xlu0 %v864, 118
    %v1071 = vpop.permute.xlu0 %1070
    %1073 = vrot.lane.b32.xlu0 %v868, 117
    %v1074 = vpop.permute.xlu0 %1073
    %1076 = vrot.lane.b32.xlu0 %v37, 116
    %v1077 = vpop.permute.xlu0 %1076
    %v1079 = vsel %vm98, %v856, %v1044
    %v1080 = vsel %vm100, %v1079, %v1047
    %v1081 = vsel %vm102, %v1080, %v1050
    %v1082 = vsel %vm104, %v1081, %v1053
    %v1083 = vsel %vm106, %v1082, %v1056
    %v1084 = vsel %vm108, %v1083, %v1059
    %v1085 = vsel %vm110, %v1084, %v1062
    %v1086 = vsel %vm98, %v1065, %v1068
    %v1087 = vsel %vm100, %v1086, %v1071
    %v1088 = vsel %vm102, %v1087, %v1074
    %v1089 = vsel %vm104, %v1088, %v1077
    %1091 = vrot.lane.b32.xlu0 %v856, 127
    %v1092 = vpop.permute.xlu0 %1091
    %1094 = vrot.lane.b32.xlu0 %v860, 126
    %v1095 = vpop.permute.xlu0 %1094
    %1097 = vrot.lane.b32.xlu0 %v864, 125
    %v1098 = vpop.permute.xlu0 %1097
    %1100 = vrot.lane.b32.xlu0 %v868, 124
    %v1101 = vpop.permute.xlu0 %1100
    %1103 = vrot.lane.b32.xlu0 %v37, 123
    %v1104 = vpop.permute.xlu0 %1103
    %1106 = vrot.lane.b32.xlu0 %v844, 122
    %v1107 = vpop.permute.xlu0 %1106
    %1109 = vrot.lane.b32.xlu0 %v848, 121
    %v1110 = vpop.permute.xlu0 %1109
    %1112 = vrot.lane.b32.xlu0 %v852, 120
    %v1113 = vpop.permute.xlu0 %1112
    %1115 = vrot.lane.b32.xlu0 %v856, 119
    %v1116 = vpop.permute.xlu0 %1115
    %1118 = vrot.lane.b32.xlu0 %v860, 118
    %v1119 = vpop.permute.xlu0 %1118
    %1121 = vrot.lane.b32.xlu0 %v864, 117
    %v1122 = vpop.permute.xlu0 %1121
    %1124 = vrot.lane.b32.xlu0 %v868, 116
    %v1125 = vpop.permute.xlu0 %1124
    %v1127 = vsel %vm98, %v852, %v1092
    %v1128 = vsel %vm100, %v1127, %v1095
    %v1129 = vsel %vm102, %v1128, %v1098
    %v1130 = vsel %vm104, %v1129, %v1101
    %v1131 = vsel %vm106, %v1130, %v1104
    %v1132 = vsel %vm108, %v1131, %v1107
    %v1133 = vsel %vm110, %v1132, %v1110
    %v1134 = vsel %vm98, %v1113, %v1116
    %v1135 = vsel %vm100, %v1134, %v1119
    %v1136 = vsel %vm102, %v1135, %v1122
    %v1137 = vsel %vm104, %v1136, %v1125
    %1139 = vrot.lane.b32.xlu0 %v852, 127
    %v1140 = vpop.permute.xlu0 %1139
    %1142 = vrot.lane.b32.xlu0 %v856, 126
    %v1143 = vpop.permute.xlu0 %1142
    %1145 = vrot.lane.b32.xlu0 %v860, 125
    %v1146 = vpop.permute.xlu0 %1145
    %1148 = vrot.lane.b32.xlu0 %v864, 124
    %v1149 = vpop.permute.xlu0 %1148
    %1151 = vrot.lane.b32.xlu0 %v868, 123
    %v1152 = vpop.permute.xlu0 %1151
    %1154 = vrot.lane.b32.xlu0 %v37, 122
    %v1155 = vpop.permute.xlu0 %1154
    %1157 = vrot.lane.b32.xlu0 %v844, 121
    %v1158 = vpop.permute.xlu0 %1157
    %1160 = vrot.lane.b32.xlu0 %v848, 120
    %v1161 = vpop.permute.xlu0 %1160
    %1163 = vrot.lane.b32.xlu0 %v852, 119
    %v1164 = vpop.permute.xlu0 %1163
    %1166 = vrot.lane.b32.xlu0 %v856, 118
    %v1167 = vpop.permute.xlu0 %1166
    %1169 = vrot.lane.b32.xlu0 %v860, 117
    %v1170 = vpop.permute.xlu0 %1169
    %1172 = vrot.lane.b32.xlu0 %v864, 116
    %v1173 = vpop.permute.xlu0 %1172
    %v1175 = vsel %vm98, %v848, %v1140
    %v1176 = vsel %vm100, %v1175, %v1143
    %v1177 = vsel %vm102, %v1176, %v1146
    %v1178 = vsel %vm104, %v1177, %v1149
    %v1179 = vsel %vm106, %v1178, %v1152
    %v1180 = vsel %vm108, %v1179, %v1155
    %v1181 = vsel %vm110, %v1180, %v1158
    %v1182 = vsel %vm98, %v1161, %v1164
    %v1183 = vsel %vm100, %v1182, %v1167
    %v1184 = vsel %vm102, %v1183, %v1170
    %v1185 = vsel %vm104, %v1184, %v1173
    %1187 = vrot.lane.b32.xlu0 %v848, 127
    %v1188 = vpop.permute.xlu0 %1187
    %1190 = vrot.lane.b32.xlu0 %v852, 126
    %v1191 = vpop.permute.xlu0 %1190
    %1193 = vrot.lane.b32.xlu0 %v856, 125
    %v1194 = vpop.permute.xlu0 %1193
    %1196 = vrot.lane.b32.xlu0 %v860, 124
    %v1197 = vpop.permute.xlu0 %1196
    %1199 = vrot.lane.b32.xlu0 %v864, 123
    %v1200 = vpop.permute.xlu0 %1199
    %1202 = vrot.lane.b32.xlu0 %v868, 122
    %v1203 = vpop.permute.xlu0 %1202
    %1205 = vrot.lane.b32.xlu0 %v37, 121
    %v1206 = vpop.permute.xlu0 %1205
    %1208 = vrot.lane.b32.xlu0 %v844, 120
    %v1209 = vpop.permute.xlu0 %1208
    %1211 = vrot.lane.b32.xlu0 %v848, 119
    %v1212 = vpop.permute.xlu0 %1211
    %1214 = vrot.lane.b32.xlu0 %v852, 118
    %v1215 = vpop.permute.xlu0 %1214
    %1217 = vrot.lane.b32.xlu0 %v856, 117
    %v1218 = vpop.permute.xlu0 %1217
    %1220 = vrot.lane.b32.xlu0 %v860, 116
    %v1221 = vpop.permute.xlu0 %1220
    %v1223 = vsel %vm98, %v844, %v1188
    %v1224 = vsel %vm100, %v1223, %v1191
    %v1225 = vsel %vm102, %v1224, %v1194
    %v1226 = vsel %vm104, %v1225, %v1197
    %v1227 = vsel %vm106, %v1226, %v1200
    %v1228 = vsel %vm108, %v1227, %v1203
    %v1229 = vsel %vm110, %v1228, %v1206
    %v1230 = vsel %vm98, %v1209, %v1212
    %v1231 = vsel %vm100, %v1230, %v1215
    %v1232 = vsel %vm102, %v1231, %v1218
    %v1233 = vsel %vm104, %v1232, %v1221
    %v1235 = vrot.slane %v38, 7
    %1236 = vrot.lane.b32.xlu0 %v1235, 127
    %v1237 = vpop.permute.xlu0 %1236
    %v1239 = vrot.slane %v38, 6
    %1240 = vrot.lane.b32.xlu0 %v1239, 126
    %v1241 = vpop.permute.xlu0 %1240
    %v1243 = vrot.slane %v38, 5
    %1244 = vrot.lane.b32.xlu0 %v1243, 125
    %v1245 = vpop.permute.xlu0 %1244
    %v1247 = vrot.slane %v38, 4
    %1248 = vrot.lane.b32.xlu0 %v1247, 124
    %v1249 = vpop.permute.xlu0 %1248
    %v1251 = vrot.slane %v38, 3
    %1252 = vrot.lane.b32.xlu0 %v1251, 123
    %v1253 = vpop.permute.xlu0 %1252
    %v1255 = vrot.slane %v38, 2
    %1256 = vrot.lane.b32.xlu0 %v1255, 122
    %v1257 = vpop.permute.xlu0 %1256
    %v1259 = vrot.slane %v38, 1
    %1260 = vrot.lane.b32.xlu0 %v1259, 121
    %v1261 = vpop.permute.xlu0 %1260
    %1263 = vrot.lane.b32.xlu0 %v38, 120
    %v1264 = vpop.permute.xlu0 %1263
    %1266 = vrot.lane.b32.xlu0 %v1235, 119
    %v1267 = vpop.permute.xlu0 %1266
    %1269 = vrot.lane.b32.xlu0 %v1239, 118
    %v1270 = vpop.permute.xlu0 %1269
    %1272 = vrot.lane.b32.xlu0 %v1243, 117
    %v1273 = vpop.permute.xlu0 %1272
    %1275 = vrot.lane.b32.xlu0 %v1247, 116
    %v1276 = vpop.permute.xlu0 %1275
    %v1278 = vsel %vm98, %v38, %v1237
    %v1279 = vsel %vm100, %v1278, %v1241
    %v1280 = vsel %vm102, %v1279, %v1245
    %v1281 = vsel %vm104, %v1280, %v1249
    %v1282 = vsel %vm106, %v1281, %v1253
    %v1283 = vsel %vm108, %v1282, %v1257
    %v1284 = vsel %vm110, %v1283, %v1261
    %v1285 = vsel %vm98, %v1264, %v1267
    %v1286 = vsel %vm100, %v1285, %v1270
    %v1287 = vsel %vm102, %v1286, %v1273
    %v1288 = vsel %vm104, %v1287, %v1276
    %1290 = vrot.lane.b32.xlu0 %v38, 127
    %v1291 = vpop.permute.xlu0 %1290
    %1293 = vrot.lane.b32.xlu0 %v1235, 126
    %v1294 = vpop.permute.xlu0 %1293
    %1296 = vrot.lane.b32.xlu0 %v1239, 125
    %v1297 = vpop.permute.xlu0 %1296
    %1299 = vrot.lane.b32.xlu0 %v1243, 124
    %v1300 = vpop.permute.xlu0 %1299
    %1302 = vrot.lane.b32.xlu0 %v1247, 123
    %v1303 = vpop.permute.xlu0 %1302
    %1305 = vrot.lane.b32.xlu0 %v1251, 122
    %v1306 = vpop.permute.xlu0 %1305
    %1308 = vrot.lane.b32.xlu0 %v1255, 121
    %v1309 = vpop.permute.xlu0 %1308
    %1311 = vrot.lane.b32.xlu0 %v1259, 120
    %v1312 = vpop.permute.xlu0 %1311
    %1314 = vrot.lane.b32.xlu0 %v38, 119
    %v1315 = vpop.permute.xlu0 %1314
    %1317 = vrot.lane.b32.xlu0 %v1235, 118
    %v1318 = vpop.permute.xlu0 %1317
    %1320 = vrot.lane.b32.xlu0 %v1239, 117
    %v1321 = vpop.permute.xlu0 %1320
    %1323 = vrot.lane.b32.xlu0 %v1243, 116
    %v1324 = vpop.permute.xlu0 %1323
    %v1326 = vsel %vm98, %v1259, %v1291
    %v1327 = vsel %vm100, %v1326, %v1294
    %v1328 = vsel %vm102, %v1327, %v1297
    %v1329 = vsel %vm104, %v1328, %v1300
    %v1330 = vsel %vm106, %v1329, %v1303
    %v1331 = vsel %vm108, %v1330, %v1306
    %v1332 = vsel %vm110, %v1331, %v1309
    %v1333 = vsel %vm98, %v1312, %v1315
    %v1334 = vsel %vm100, %v1333, %v1318
    %v1335 = vsel %vm102, %v1334, %v1321
    %v1336 = vsel %vm104, %v1335, %v1324
    %1338 = vrot.lane.b32.xlu0 %v1259, 127
    %v1339 = vpop.permute.xlu0 %1338
    %1341 = vrot.lane.b32.xlu0 %v38, 126
    %v1342 = vpop.permute.xlu0 %1341
    %1344 = vrot.lane.b32.xlu0 %v1235, 125
    %v1345 = vpop.permute.xlu0 %1344
    %1347 = vrot.lane.b32.xlu0 %v1239, 124
    %v1348 = vpop.permute.xlu0 %1347
    %1350 = vrot.lane.b32.xlu0 %v1243, 123
    %v1351 = vpop.permute.xlu0 %1350
    %1353 = vrot.lane.b32.xlu0 %v1247, 122
    %v1354 = vpop.permute.xlu0 %1353
    %1356 = vrot.lane.b32.xlu0 %v1251, 121
    %v1357 = vpop.permute.xlu0 %1356
    %1359 = vrot.lane.b32.xlu0 %v1255, 120
    %v1360 = vpop.permute.xlu0 %1359
    %1362 = vrot.lane.b32.xlu0 %v1259, 119
    %v1363 = vpop.permute.xlu0 %1362
    %1365 = vrot.lane.b32.xlu0 %v38, 118
    %v1366 = vpop.permute.xlu0 %1365
    %1368 = vrot.lane.b32.xlu0 %v1235, 117
    %v1369 = vpop.permute.xlu0 %1368
    %1371 = vrot.lane.b32.xlu0 %v1239, 116
    %v1372 = vpop.permute.xlu0 %1371
    %v1374 = vsel %vm98, %v1255, %v1339
    %v1375 = vsel %vm100, %v1374, %v1342
    %v1376 = vsel %vm102, %v1375, %v1345
    %v1377 = vsel %vm104, %v1376, %v1348
    %v1378 = vsel %vm106, %v1377, %v1351
    %v1379 = vsel %vm108, %v1378, %v1354
    %v1380 = vsel %vm110, %v1379, %v1357
    %v1381 = vsel %vm98, %v1360, %v1363
    %v1382 = vsel %vm100, %v1381, %v1366
    %v1383 = vsel %vm102, %v1382, %v1369
    %v1384 = vsel %vm104, %v1383, %v1372
    %1386 = vrot.lane.b32.xlu0 %v1255, 127
    %v1387 = vpop.permute.xlu0 %1386
    %1389 = vrot.lane.b32.xlu0 %v1259, 126
    %v1390 = vpop.permute.xlu0 %1389
    %1392 = vrot.lane.b32.xlu0 %v38, 125
    %v1393 = vpop.permute.xlu0 %1392
    %1395 = vrot.lane.b32.xlu0 %v1235, 124
    %v1396 = vpop.permute.xlu0 %1395
    %1398 = vrot.lane.b32.xlu0 %v1239, 123
    %v1399 = vpop.permute.xlu0 %1398
    %1401 = vrot.lane.b32.xlu0 %v1243, 122
    %v1402 = vpop.permute.xlu0 %1401
    %1404 = vrot.lane.b32.xlu0 %v1247, 121
    %v1405 = vpop.permute.xlu0 %1404
    %1407 = vrot.lane.b32.xlu0 %v1251, 120
    %v1408 = vpop.permute.xlu0 %1407
    %1410 = vrot.lane.b32.xlu0 %v1255, 119
    %v1411 = vpop.permute.xlu0 %1410
    %1413 = vrot.lane.b32.xlu0 %v1259, 118
    %v1414 = vpop.permute.xlu0 %1413
    %1416 = vrot.lane.b32.xlu0 %v38, 117
    %v1417 = vpop.permute.xlu0 %1416
    %1419 = vrot.lane.b32.xlu0 %v1235, 116
    %v1420 = vpop.permute.xlu0 %1419
    %v1422 = vsel %vm98, %v1251, %v1387
    %v1423 = vsel %vm100, %v1422, %v1390
    %v1424 = vsel %vm102, %v1423, %v1393
    %v1425 = vsel %vm104, %v1424, %v1396
    %v1426 = vsel %vm106, %v1425, %v1399
    %v1427 = vsel %vm108, %v1426, %v1402
    %v1428 = vsel %vm110, %v1427, %v1405
    %v1429 = vsel %vm98, %v1408, %v1411
    %v1430 = vsel %vm100, %v1429, %v1414
    %v1431 = vsel %vm102, %v1430, %v1417
    %v1432 = vsel %vm104, %v1431, %v1420
    %1434 = vrot.lane.b32.xlu0 %v1251, 127
    %v1435 = vpop.permute.xlu0 %1434
    %1437 = vrot.lane.b32.xlu0 %v1255, 126
    %v1438 = vpop.permute.xlu0 %1437
    %1440 = vrot.lane.b32.xlu0 %v1259, 125
    %v1441 = vpop.permute.xlu0 %1440
    %1443 = vrot.lane.b32.xlu0 %v38, 124
    %v1444 = vpop.permute.xlu0 %1443
    %1446 = vrot.lane.b32.xlu0 %v1235, 123
    %v1447 = vpop.permute.xlu0 %1446
    %1449 = vrot.lane.b32.xlu0 %v1239, 122
    %v1450 = vpop.permute.xlu0 %1449
    %1452 = vrot.lane.b32.xlu0 %v1243, 121
    %v1453 = vpop.permute.xlu0 %1452
    %1455 = vrot.lane.b32.xlu0 %v1247, 120
    %v1456 = vpop.permute.xlu0 %1455
    %1458 = vrot.lane.b32.xlu0 %v1251, 119
    %v1459 = vpop.permute.xlu0 %1458
    %1461 = vrot.lane.b32.xlu0 %v1255, 118
    %v1462 = vpop.permute.xlu0 %1461
    %1464 = vrot.lane.b32.xlu0 %v1259, 117
    %v1465 = vpop.permute.xlu0 %1464
    %1467 = vrot.lane.b32.xlu0 %v38, 116
    %v1468 = vpop.permute.xlu0 %1467
    %v1470 = vsel %vm98, %v1247, %v1435
    %v1471 = vsel %vm100, %v1470, %v1438
    %v1472 = vsel %vm102, %v1471, %v1441
    %v1473 = vsel %vm104, %v1472, %v1444
    %v1474 = vsel %vm106, %v1473, %v1447
    %v1475 = vsel %vm108, %v1474, %v1450
    %v1476 = vsel %vm110, %v1475, %v1453
    %v1477 = vsel %vm98, %v1456, %v1459
    %v1478 = vsel %vm100, %v1477, %v1462
    %v1479 = vsel %vm102, %v1478, %v1465
    %v1480 = vsel %vm104, %v1479, %v1468
    %1482 = vrot.lane.b32.xlu0 %v1247, 127
    %v1483 = vpop.permute.xlu0 %1482
    %1485 = vrot.lane.b32.xlu0 %v1251, 126
    %v1486 = vpop.permute.xlu0 %1485
    %1488 = vrot.lane.b32.xlu0 %v1255, 125
    %v1489 = vpop.permute.xlu0 %1488
    %1491 = vrot.lane.b32.xlu0 %v1259, 124
    %v1492 = vpop.permute.xlu0 %1491
    %1494 = vrot.lane.b32.xlu0 %v38, 123
    %v1495 = vpop.permute.xlu0 %1494
    %1497 = vrot.lane.b32.xlu0 %v1235, 122
    %v1498 = vpop.permute.xlu0 %1497
    %1500 = vrot.lane.b32.xlu0 %v1239, 121
    %v1501 = vpop.permute.xlu0 %1500
    %1503 = vrot.lane.b32.xlu0 %v1243, 120
    %v1504 = vpop.permute.xlu0 %1503
    %1506 = vrot.lane.b32.xlu0 %v1247, 119
    %v1507 = vpop.permute.xlu0 %1506
    %1509 = vrot.lane.b32.xlu0 %v1251, 118
    %v1510 = vpop.permute.xlu0 %1509
    %1512 = vrot.lane.b32.xlu0 %v1255, 117
    %v1513 = vpop.permute.xlu0 %1512
    %1515 = vrot.lane.b32.xlu0 %v1259, 116
    %v1516 = vpop.permute.xlu0 %1515
    %v1518 = vsel %vm98, %v1243, %v1483
    %v1519 = vsel %vm100, %v1518, %v1486
    %v1520 = vsel %vm102, %v1519, %v1489
    %v1521 = vsel %vm104, %v1520, %v1492
    %v1522 = vsel %vm106, %v1521, %v1495
    %v1523 = vsel %vm108, %v1522, %v1498
    %v1524 = vsel %vm110, %v1523, %v1501
    %v1525 = vsel %vm98, %v1504, %v1507
    %v1526 = vsel %vm100, %v1525, %v1510
    %v1527 = vsel %vm102, %v1526, %v1513
    %v1528 = vsel %vm104, %v1527, %v1516
    %1530 = vrot.lane.b32.xlu0 %v1243, 127
    %v1531 = vpop.permute.xlu0 %1530
    %1533 = vrot.lane.b32.xlu0 %v1247, 126
    %v1534 = vpop.permute.xlu0 %1533
    %1536 = vrot.lane.b32.xlu0 %v1251, 125
    %v1537 = vpop.permute.xlu0 %1536
    %1539 = vrot.lane.b32.xlu0 %v1255, 124
    %v1540 = vpop.permute.xlu0 %1539
    %1542 = vrot.lane.b32.xlu0 %v1259, 123
    %v1543 = vpop.permute.xlu0 %1542
    %1545 = vrot.lane.b32.xlu0 %v38, 122
    %v1546 = vpop.permute.xlu0 %1545
    %1548 = vrot.lane.b32.xlu0 %v1235, 121
    %v1549 = vpop.permute.xlu0 %1548
    %1551 = vrot.lane.b32.xlu0 %v1239, 120
    %v1552 = vpop.permute.xlu0 %1551
    %1554 = vrot.lane.b32.xlu0 %v1243, 119
    %v1555 = vpop.permute.xlu0 %1554
    %1557 = vrot.lane.b32.xlu0 %v1247, 118
    %v1558 = vpop.permute.xlu0 %1557
    %1560 = vrot.lane.b32.xlu0 %v1251, 117
    %v1561 = vpop.permute.xlu0 %1560
    %1563 = vrot.lane.b32.xlu0 %v1255, 116
    %v1564 = vpop.permute.xlu0 %1563
    %v1566 = vsel %vm98, %v1239, %v1531
    %v1567 = vsel %vm100, %v1566, %v1534
    %v1568 = vsel %vm102, %v1567, %v1537
    %v1569 = vsel %vm104, %v1568, %v1540
    %v1570 = vsel %vm106, %v1569, %v1543
    %v1571 = vsel %vm108, %v1570, %v1546
    %v1572 = vsel %vm110, %v1571, %v1549
    %v1573 = vsel %vm98, %v1552, %v1555
    %v1574 = vsel %vm100, %v1573, %v1558
    %v1575 = vsel %vm102, %v1574, %v1561
    %v1576 = vsel %vm104, %v1575, %v1564
    %1578 = vrot.lane.b32.xlu0 %v1239, 127
    %v1579 = vpop.permute.xlu0 %1578
    %1581 = vrot.lane.b32.xlu0 %v1243, 126
    %v1582 = vpop.permute.xlu0 %1581
    %1584 = vrot.lane.b32.xlu0 %v1247, 125
    %v1585 = vpop.permute.xlu0 %1584
    %1587 = vrot.lane.b32.xlu0 %v1251, 124
    %v1588 = vpop.permute.xlu0 %1587
    %1590 = vrot.lane.b32.xlu0 %v1255, 123
    %v1591 = vpop.permute.xlu0 %1590
    %1593 = vrot.lane.b32.xlu0 %v1259, 122
    %v1594 = vpop.permute.xlu0 %1593
    %1596 = vrot.lane.b32.xlu0 %v38, 121
    %v1597 = vpop.permute.xlu0 %1596
    %1599 = vrot.lane.b32.xlu0 %v1235, 120
    %v1600 = vpop.permute.xlu0 %1599
    %1602 = vrot.lane.b32.xlu0 %v1239, 119
    %v1603 = vpop.permute.xlu0 %1602
    %1605 = vrot.lane.b32.xlu0 %v1243, 118
    %v1606 = vpop.permute.xlu0 %1605
    %1608 = vrot.lane.b32.xlu0 %v1247, 117
    %v1609 = vpop.permute.xlu0 %1608
    %1611 = vrot.lane.b32.xlu0 %v1251, 116
    %v1612 = vpop.permute.xlu0 %1611
    %v1614 = vsel %vm98, %v1235, %v1579
    %v1615 = vsel %vm100, %v1614, %v1582
    %v1616 = vsel %vm102, %v1615, %v1585
    %v1617 = vsel %vm104, %v1616, %v1588
    %v1618 = vsel %vm106, %v1617, %v1591
    %v1619 = vsel %vm108, %v1618, %v1594
    %v1620 = vsel %vm110, %v1619, %v1597
    %v1621 = vsel %vm98, %v1600, %v1603
    %v1622 = vsel %vm100, %v1621, %v1606
    %v1623 = vsel %vm102, %v1622, %v1609
    %v1624 = vsel %vm104, %v1623, %v1612
    %v1627 = vrot.slane %v159, 3
    %v1628 = vrot.slane %v163, 3
    %v1629 = vsel %vm106, %v1627, %v1628
    %v1635 = vrot.slane %v207, 6
    %v1636 = vrot.slane %v211, 6
    %v1637 = vsel %vm100, %v1635, %v1636
    %v1642 = vrot.slane %v255, 1
    %v1643 = vrot.slane %v259, 1
    %v1644 = vsel %vm110, %v1642, %v1643
    %v1648 = vsel %vm106, %v115, %v1627
    %v1649 = vsel %vm100, %v1628, %v1635
    %v1650 = vsel %vm110, %v1637, %v1642
    %v1653 = vrot.slane %v941, 3
    %v1654 = vrot.slane %v945, 3
    %v1655 = vsel %vm106, %v1653, %v1654
    %v1660 = vrot.slane %v989, 6
    %v1661 = vrot.slane %v993, 6
    %v1662 = vsel %vm100, %v1660, %v1661
    %v1667 = vrot.slane %v1037, 1
    %v1668 = vrot.slane %v1041, 1
    %v1669 = vsel %vm110, %v1667, %v1668
    %v1671 = vsel %vm106, %v897, %v1653
    %v1672 = vsel %vm100, %v1654, %v1660
    %v1673 = vsel %vm110, %v1662, %v1667
    %1678 = vrot.lane.b32.xlu0 %v893, 18
    %v1679 = vpop.permute.xlu0 %1678
    %1680 = vrot.lane.b32.xlu0 %v1671, 18
    %v1681 = vpop.permute.xlu0 %1680
    %1682 = vrot.lane.b32.xlu0 %v1655, 18
    %v1683 = vpop.permute.xlu0 %1682
    %1684 = vrot.lane.b32.xlu0 %v1672, 18
    %v1685 = vpop.permute.xlu0 %1684
    %1686 = vrot.lane.b32.xlu0 %v1673, 18
    %v1687 = vpop.permute.xlu0 %1686
    %1688 = vrot.lane.b32.xlu0 %v1669, 18
    %v1689 = vpop.permute.xlu0 %1688
    %1690 = vrot.lane.b32.xlu0 %v1668, 18
    %v1691 = vpop.permute.xlu0 %1690
    %vm1699 = vcmask 146432
    %v1700 = vsel %vm1699, %v111, %v1679
    %v1701 = vsel %vm1699, %v1648, %v1681
    %v1702 = vsel %vm1699, %v1629, %v1683
    %v1703 = vsel %vm1699, %v1649, %v1685
    %v1704 = vsel %vm1699, %v1650, %v1687
    %v1705 = vsel %vm1699, %v1644, %v1689
    %v1706 = vsel %vm1699, %v1643, %v1691
    %1708 = vset.pattern.permute.xlu0 0
    %1709 = vperm.xlu0 %1708, %v44
    %v1710 = vpop.permute.xlu0 %1709
    %1713 = vset.pattern.permute.xlu0 0
    %1714 = vperm.xlu0 %1713, %v45
    %v1715 = vpop.permute.xlu0 %1714
    %1718 = vset.pattern.permute.xlu0 0
    %1719 = vperm.xlu0 %1718, %v46
    %v1720 = vpop.permute.xlu0 %1719
    %1723 = vset.pattern.permute.xlu0 0
    %1724 = vperm.xlu0 %1723, %v47
    %v1725 = vpop.permute.xlu0 %1724
    %1728 = vset.pattern.permute.xlu0 0
    %1729 = vperm.xlu0 %1728, %v48
    %v1730 = vpop.permute.xlu0 %1729
    %vm1732 = vcmask 424960
    %v1734 = vsel %vm1732, %v39, 0
    %v1737 = vsel %vm1732, %v40, 0
    %v1740 = vsel %vm1732, %v41, 0
    %v1743 = vsel %vm1732, %v42, 0
    %v1746 = vsel %vm1732, %v43, 0
    %v1749 = vsel %vm104, %v1706, 0
    %1751 = vmatprep.subr.mxu0 0.0
    %1752 = vmatpush1.msra.mxu0 %v1700
    %1753 = vmatprep.subr.mxu0 0.0
    %1754 = vmatpush1.msra.mxu0 %v1701
    %1755 = vmatprep.subr.mxu0 0.0
    %1756 = vmatpush1.msra.mxu0 %v1702
    %1757 = vmatprep.subr.mxu0 0.0
    %1758 = vmatpush1.msra.mxu0 %v1703
    %1759 = vmatprep.subr.mxu0 0.0
    %1760 = vmatpush1.msra.mxu0 %v1704
    %1761 = vmatprep.subr.mxu0 0.0
    %1762 = vmatpush1.msra.mxu0 %v1705
    %1763 = vmatprep.subr.mxu0 0.0
    %1764 = vmatpush1.msra.mxu0 %v1749
    %1765 = vmatprep.subr.mxu0 0.0
    %1766 = vmatpush1.msra.mxu0 0.0
    %1767 = vmatprep.subr.mxu0 0.0
    %1768 = vmatpush1.msra.mxu0 0.0
    %1769 = vmatprep.subr.mxu0 0.0
    %1770 = vmatpush1.msra.mxu0 0.0
    %1771 = vmatprep.subr.mxu0 0.0
    %1772 = vmatpush1.msra.mxu0 0.0
    %1773 = vmatprep.subr.mxu0 0.0
    %1774 = vmatpush1.msra.mxu0 0.0
    %1775 = vmatprep.subr.mxu0 0.0
    %1776 = vmatpush1.msra.mxu0 0.0
    %1777 = vmatprep.subr.mxu0 0.0
    %1778 = vmatpush1.msra.mxu0 0.0
    %1779 = vmatprep.subr.mxu0 0.0
    %1780 = vmatpush1.msra.mxu0 0.0
    %1781 = vmatprep.subr.mxu0 0.0
    %1782 = vmatpush1.msra.mxu0 0.0
    %1783 = vmatprep.subr.mxu0 0.0
    %1784 = vmatpush1.msra.mxu0 0.0
    %1785 = vmatprep.subr.mxu0 0.0
    %1786 = vmatpush1.msra.mxu0 0.0
    %1787 = vmatprep.subr.mxu0 0.0
    %1788 = vmatpush1.msra.mxu0 0.0
    %1789 = vmatprep.subr.mxu0 0.0
    %1790 = vmatpush1.msra.mxu0 0.0
    %1791 = vmatprep.subr.mxu0 0.0
    %1792 = vmatpush1.msra.mxu0 0.0
    %1793 = vmatprep.subr.mxu0 0.0
    %1794 = vmatpush1.msra.mxu0 0.0
    %1795 = vmatprep.subr.mxu0 0.0
    %1796 = vmatpush1.msra.mxu0 0.0
    %1797 = vmatprep.subr.mxu0 0.0
    %1798 = vmatpush1.msra.mxu0 0.0
    %1799 = vmatprep.subr.mxu0 0.0
    %1800 = vmatpush1.msra.mxu0 0.0
    %1801 = vmatprep.subr.mxu0 0.0
    %1802 = vmatpush1.msra.mxu0 0.0
    %1803 = vmatprep.subr.mxu0 0.0
    %1804 = vmatpush1.msra.mxu0 0.0
    %1805 = vmatprep.subr.mxu0 0.0
    %1806 = vmatpush1.msra.mxu0 0.0
    %1807 = vmatprep.subr.mxu0 0.0
    %1808 = vmatpush1.msra.mxu0 0.0
    %1809 = vmatprep.subr.mxu0 0.0
    %1810 = vmatpush1.msra.mxu0 0.0
    %1811 = vmatprep.subr.mxu0 0.0
    %1812 = vmatpush1.msra.mxu0 0.0
    %1813 = vmatprep.subr.mxu0 0.0
    %1814 = vmatpush1.msra.mxu0 0.0
    %1815 = vmatprep.mubr.f32.mxu0 0.0
    %1816 = vmatmul.mubr.f32.gmra.mrb[0].mxu0 %v1734
    %v1817 = vpop.f32.mrb[0].mxu0
    %v1818 = vadd.f32 %v1710, %v1817
    %v1819 = vpop.f32.mrb[0].mxu0
    %1820 = vmatprep.mubr.f32.mxu0 0.0
    %1821 = vmatmul.mubr.f32.gmra.mrb[0].mxu0 %v1737
    %v1822 = vpop.f32.mrb[0].mxu0
    %v1823 = vadd.f32 %v1715, %v1822
    %v1824 = vpop.f32.mrb[0].mxu0
    %1825 = vmatprep.mubr.f32.mxu0 0.0
    %1826 = vmatmul.mubr.f32.gmra.mrb[0].mxu0 %v1740
    %v1827 = vpop.f32.mrb[0].mxu0
    %v1828 = vadd.f32 %v1720, %v1827
    %v1829 = vpop.f32.mrb[0].mxu0
    %1830 = vmatprep.mubr.f32.mxu0 0.0
    %1831 = vmatmul.mubr.f32.gmra.mrb[0].mxu0 %v1743
    %v1832 = vpop.f32.mrb[0].mxu0
    %v1833 = vadd.f32 %v1725, %v1832
    %v1834 = vpop.f32.mrb[0].mxu0
    %1835 = vmatprep.mubr.f32.mxu0 0.0
    %1836 = vmatmul.mubr.f32.gmra.mrb[0].mxu0 %v1746
    %v1837 = vpop.f32.mrb[0].mxu0
    %v1838 = vadd.f32 %v1730, %v1837
    %v1839 = vpop.f32.mrb[0].mxu0
    %1840 = vdwg.mxu0
    %v1841 = vmul.f32 %v1818, %v1818
    %v1842 = vmul.f32 %v1823, %v1823
    %v1843 = vmul.f32 %v1828, %v1828
    %v1844 = vmul.f32 %v1833, %v1833
    %v1845 = vmul.f32 %v1838, %v1838
    %vm1846 = vcmask 293888
    %v1848 = vsel %vm1846, %v1841, 0
    %v1851 = vsel %vm1846, %v1842, 0
    %v1854 = vsel %vm1846, %v1843, 0
    %v1857 = vsel %vm1846, %v1844, 0
    %v1860 = vsel %vm1846, %v1845, 0
    %v1863 = vsel %vm104, %v53, 0
    %1865 = vmatprep.subr.mxu0 0.0
    %1866 = vmatpush1.msra.mxu0 %v49
    %1867 = vmatprep.subr.mxu0 0.0
    %1868 = vmatpush1.msra.mxu0 %v50
    %1869 = vmatprep.subr.mxu0 0.0
    %1870 = vmatpush1.msra.mxu0 %v51
    %1871 = vmatprep.subr.mxu0 0.0
    %1872 = vmatpush1.msra.mxu0 %v52
    %1873 = vmatprep.subr.mxu0 0.0
    %1874 = vmatpush1.msra.mxu0 %v1863
    %1875 = vmatprep.subr.mxu0 0.0
    %1876 = vmatpush1.msra.mxu0 0.0
    %1877 = vmatprep.subr.mxu0 0.0
    %1878 = vmatpush1.msra.mxu0 0.0
    %1879 = vmatprep.subr.mxu0 0.0
    %1880 = vmatpush1.msra.mxu0 0.0
    %1881 = vmatprep.subr.mxu0 0.0
    %1882 = vmatpush1.msra.mxu0 0.0
    %1883 = vmatprep.subr.mxu0 0.0
    %1884 = vmatpush1.msra.mxu0 0.0
    %1885 = vmatprep.subr.mxu0 0.0
    %1886 = vmatpush1.msra.mxu0 0.0
    %1887 = vmatprep.subr.mxu0 0.0
    %1888 = vmatpush1.msra.mxu0 0.0
    %1889 = vmatprep.subr.mxu0 0.0
    %1890 = vmatpush1.msra.mxu0 0.0
    %1891 = vmatprep.subr.mxu0 0.0
    %1892 = vmatpush1.msra.mxu0 0.0
    %1893 = vmatprep.subr.mxu0 0.0
    %1894 = vmatpush1.msra.mxu0 0.0
    %1895 = vmatprep.subr.mxu0 0.0
    %1896 = vmatpush1.msra.mxu0 0.0
    %1897 = vmatprep.subr.mxu0 0.0
    %1898 = vmatpush1.msra.mxu0 0.0
    %1899 = vmatprep.subr.mxu0 0.0
    %1900 = vmatpush1.msra.mxu0 0.0
    %1901 = vmatprep.subr.mxu0 0.0
    %1902 = vmatpush1.msra.mxu0 0.0
    %1903 = vmatprep.subr.mxu0 0.0
    %1904 = vmatpush1.msra.mxu0 0.0
    %1905 = vmatprep.subr.mxu0 0.0
    %1906 = vmatpush1.msra.mxu0 0.0
    %1907 = vmatprep.subr.mxu0 0.0
    %1908 = vmatpush1.msra.mxu0 0.0
    %1909 = vmatprep.subr.mxu0 0.0
    %1910 = vmatpush1.msra.mxu0 0.0
    %1911 = vmatprep.subr.mxu0 0.0
    %1912 = vmatpush1.msra.mxu0 0.0
    %1913 = vmatprep.subr.mxu0 0.0
    %1914 = vmatpush1.msra.mxu0 0.0
    %1915 = vmatprep.subr.mxu0 0.0
    %1916 = vmatpush1.msra.mxu0 0.0
    %1917 = vmatprep.subr.mxu0 0.0
    %1918 = vmatpush1.msra.mxu0 0.0
    %1919 = vmatprep.subr.mxu0 0.0
    %1920 = vmatpush1.msra.mxu0 0.0
    %1921 = vmatprep.subr.mxu0 0.0
    %1922 = vmatpush1.msra.mxu0 0.0
    %1923 = vmatprep.subr.mxu0 0.0
    %1924 = vmatpush1.msra.mxu0 0.0
    %1925 = vmatprep.subr.mxu0 0.0
    %1926 = vmatpush1.msra.mxu0 0.0
    %1927 = vmatprep.subr.mxu0 0.0
    %1928 = vmatpush1.msra.mxu0 0.0
    %1929 = vmatprep.mubr.f32.mxu0 0.0
    %1930 = vmatmul.mubr.f32.gmra.mrb[0].mxu0 %v1848
    %v1931 = vpop.f32.mrb[0].mxu0
    %v1932 = vadd.f32 0.0, %v1931
    %v1933 = vpop.f32.mrb[0].mxu0
    %1934 = vmatprep.mubr.f32.mxu0 0.0
    %1935 = vmatmul.mubr.f32.gmra.mrb[0].mxu0 %v1851
    %v1936 = vpop.f32.mrb[0].mxu0
    %v1937 = vadd.f32 0.0, %v1936
    %v1938 = vpop.f32.mrb[0].mxu0
    %1939 = vmatprep.mubr.f32.mxu0 0.0
    %1940 = vmatmul.mubr.f32.gmra.mrb[0].mxu0 %v1854
    %v1941 = vpop.f32.mrb[0].mxu0
    %v1942 = vadd.f32 0.0, %v1941
    %v1943 = vpop.f32.mrb[0].mxu0
    %1944 = vmatprep.mubr.f32.mxu0 0.0
    %1945 = vmatmul.mubr.f32.gmra.mrb[0].mxu0 %v1857
    %v1946 = vpop.f32.mrb[0].mxu0
    %v1947 = vadd.f32 0.0, %v1946
    %v1948 = vpop.f32.mrb[0].mxu0
    %1949 = vmatprep.mubr.f32.mxu0 0.0
    %1950 = vmatmul.mubr.f32.gmra.mrb[0].mxu0 %v1860
    %v1951 = vpop.f32.mrb[0].mxu0
    %v1952 = vadd.f32 0.0, %v1951
    %v1953 = vpop.f32.mrb[0].mxu0
    %1954 = vdwg.mxu0
    %v1955 = vrot.slane %v207, 3
    %v1956 = vrot.slane %v211, 3
    %v1957 = vsel %vm106, %v1955, %v1956
    %v1961 = vrot.slane %v255, 6
    %v1962 = vrot.slane %v259, 6
    %v1963 = vsel %vm100, %v1961, %v1962
    %v1968 = vrot.slane %v303, 1
    %v1969 = vrot.slane %v307, 1
    %v1970 = vsel %vm110, %v1968, %v1969
    %v1974 = vsel %vm106, %v163, %v1955
    %v1975 = vsel %vm100, %v1956, %v1961
    %v1976 = vsel %vm110, %v1963, %v1968
    %v1977 = vrot.slane %v989, 3
    %v1978 = vrot.slane %v993, 3
    %v1979 = vsel %vm106, %v1977, %v1978
    %v1982 = vrot.slane %v1037, 6
    %v1983 = vrot.slane %v1041, 6
    %v1984 = vsel %vm100, %v1982, %v1983
    %v1989 = vrot.slane %v1085, 1
    %v1990 = vrot.slane %v1089, 1
    %v1991 = vsel %vm110, %v1989, %v1990
    %v1993 = vsel %vm106, %v945, %v1977
    %v1994 = vsel %vm100, %v1978, %v1982
    %v1995 = vsel %vm110, %v1984, %v1989
    %1999 = vrot.lane.b32.xlu0 %v941, 18
    %v2000 = vpop.permute.xlu0 %1999
    %2001 = vrot.lane.b32.xlu0 %v1993, 18
    %v2002 = vpop.permute.xlu0 %2001
    %2003 = vrot.lane.b32.xlu0 %v1979, 18
    %v2004 = vpop.permute.xlu0 %2003
    %2005 = vrot.lane.b32.xlu0 %v1994, 18
    %v2006 = vpop.permute.xlu0 %2005
    %2007 = vrot.lane.b32.xlu0 %v1995, 18
    %v2008 = vpop.permute.xlu0 %2007
    %2009 = vrot.lane.b32.xlu0 %v1991, 18
    %v2010 = vpop.permute.xlu0 %2009
    %2011 = vrot.lane.b32.xlu0 %v1990, 18
    %v2012 = vpop.permute.xlu0 %2011
    %v2020 = vsel %vm1699, %v159, %v2000
    %v2021 = vsel %vm1699, %v1974, %v2002
    %v2022 = vsel %vm1699, %v1957, %v2004
    %v2023 = vsel %vm1699, %v1975, %v2006
    %v2024 = vsel %vm1699, %v1976, %v2008
    %v2025 = vsel %vm1699, %v1970, %v2010
    %v2026 = vsel %vm1699, %v1969, %v2012
    %v2028 = vsel %vm104, %v2026, 0
    %2030 = vmatprep.subr.mxu0 0.0
    %2031 = vmatpush1.msra.mxu0 %v2020
    %2032 = vmatprep.subr.mxu0 0.0
    %2033 = vmatpush1.msra.mxu0 %v2021
    %2034 = vmatprep.subr.mxu0 0.0
    %2035 = vmatpush1.msra.mxu0 %v2022
    %2036 = vmatprep.subr.mxu0 0.0
    %2037 = vmatpush1.msra.mxu0 %v2023
    %2038 = vmatprep.subr.mxu0 0.0
    %2039 = vmatpush1.msra.mxu0 %v2024
    %2040 = vmatprep.subr.mxu0 0.0
    %2041 = vmatpush1.msra.mxu0 %v2025
    %2042 = vmatprep.subr.mxu0 0.0
    %2043 = vmatpush1.msra.mxu0 %v2028
    %2044 = vmatprep.subr.mxu0 0.0
    %2045 = vmatpush1.msra.mxu0 0.0
    %2046 = vmatprep.subr.mxu0 0.0
    %2047 = vmatpush1.msra.mxu0 0.0
    %2048 = vmatprep.subr.mxu0 0.0
    %2049 = vmatpush1.msra.mxu0 0.0
    %2050 = vmatprep.subr.mxu0 0.0
    %2051 = vmatpush1.msra.mxu0 0.0
    %2052 = vmatprep.subr.mxu0 0.0
    %2053 = vmatpush1.msra.mxu0 0.0
    %2054 = vmatprep.subr.mxu0 0.0
    %2055 = vmatpush1.msra.mxu0 0.0
    %2056 = vmatprep.subr.mxu0 0.0
    %2057 = vmatpush1.msra.mxu0 0.0
    %2058 = vmatprep.subr.mxu0 0.0
    %2059 = vmatpush1.msra.mxu0 0.0
    %2060 = vmatprep.subr.mxu0 0.0
    %2061 = vmatpush1.msra.mxu0 0.0
    %2062 = vmatprep.subr.mxu0 0.0
    %2063 = vmatpush1.msra.mxu0 0.0
    %2064 = vmatprep.subr.mxu0 0.0
    %2065 = vmatpush1.msra.mxu0 0.0
    %2066 = vmatprep.subr.mxu0 0.0
    %2067 = vmatpush1.msra.mxu0 0.0
    %2068 = vmatprep.subr.mxu0 0.0
    %2069 = vmatpush1.msra.mxu0 0.0
    %2070 = vmatprep.subr.mxu0 0.0
    %2071 = vmatpush1.msra.mxu0 0.0
    %2072 = vmatprep.subr.mxu0 0.0
    %2073 = vmatpush1.msra.mxu0 0.0
    %2074 = vmatprep.subr.mxu0 0.0
    %2075 = vmatpush1.msra.mxu0 0.0
    %2076 = vmatprep.subr.mxu0 0.0
    %2077 = vmatpush1.msra.mxu0 0.0
    %2078 = vmatprep.subr.mxu0 0.0
    %2079 = vmatpush1.msra.mxu0 0.0
    %2080 = vmatprep.subr.mxu0 0.0
    %2081 = vmatpush1.msra.mxu0 0.0
    %2082 = vmatprep.subr.mxu0 0.0
    %2083 = vmatpush1.msra.mxu0 0.0
    %2084 = vmatprep.subr.mxu0 0.0
    %2085 = vmatpush1.msra.mxu0 0.0
    %2086 = vmatprep.subr.mxu0 0.0
    %2087 = vmatpush1.msra.mxu0 0.0
    %2088 = vmatprep.subr.mxu0 0.0
    %2089 = vmatpush1.msra.mxu0 0.0
    %2090 = vmatprep.subr.mxu0 0.0
    %2091 = vmatpush1.msra.mxu0 0.0
    %2092 = vmatprep.subr.mxu0 0.0
    %2093 = vmatpush1.msra.mxu0 0.0
    %2094 = vmatprep.mubr.f32.mxu0 0.0
    %2095 = vmatmul.mubr.f32.gmra.mrb[0].mxu0 %v1734
    %v2096 = vpop.f32.mrb[0].mxu0
    %v2097 = vadd.f32 %v1710, %v2096
    %v2098 = vpop.f32.mrb[0].mxu0
    %2099 = vmatprep.mubr.f32.mxu0 0.0
    %2100 = vmatmul.mubr.f32.gmra.mrb[0].mxu0 %v1737
    %v2101 = vpop.f32.mrb[0].mxu0
    %v2102 = vadd.f32 %v1715, %v2101
    %v2103 = vpop.f32.mrb[0].mxu0
    %2104 = vmatprep.mubr.f32.mxu0 0.0
    %2105 = vmatmul.mubr.f32.gmra.mrb[0].mxu0 %v1740
    %v2106 = vpop.f32.mrb[0].mxu0
    %v2107 = vadd.f32 %v1720, %v2106
    %v2108 = vpop.f32.mrb[0].mxu0
    %2109 = vmatprep.mubr.f32.mxu0 0.0
    %2110 = vmatmul.mubr.f32.gmra.mrb[0].mxu0 %v1743
    %v2111 = vpop.f32.mrb[0].mxu0
    %v2112 = vadd.f32 %v1725, %v2111
    %v2113 = vpop.f32.mrb[0].mxu0
    %2114 = vmatprep.mubr.f32.mxu0 0.0
    %2115 = vmatmul.mubr.f32.gmra.mrb[0].mxu0 %v1746
    %v2116 = vpop.f32.mrb[0].mxu0
    %v2117 = vadd.f32 %v1730, %v2116
    %v2118 = vpop.f32.mrb[0].mxu0
    %2119 = vdwg.mxu0
    %v2120 = vmul.f32 %v2097, %v2097
    %v2121 = vmul.f32 %v2102, %v2102
    %v2122 = vmul.f32 %v2107, %v2107
    %v2123 = vmul.f32 %v2112, %v2112
    %v2124 = vmul.f32 %v2117, %v2117
    %v2126 = vsel %vm1846, %v2120, 0
    %v2129 = vsel %vm1846, %v2121, 0
    %v2132 = vsel %vm1846, %v2122, 0
    %v2135 = vsel %vm1846, %v2123, 0
    %v2138 = vsel %vm1846, %v2124, 0
    %2140 = vmatprep.subr.mxu0 0.0
    %2141 = vmatpush1.msra.mxu0 %v49
    %2142 = vmatprep.subr.mxu0 0.0
    %2143 = vmatpush1.msra.mxu0 %v50
    %2144 = vmatprep.subr.mxu0 0.0
    %2145 = vmatpush1.msra.mxu0 %v51
    %2146 = vmatprep.subr.mxu0 0.0
    %2147 = vmatpush1.msra.mxu0 %v52
    %2148 = vmatprep.subr.mxu0 0.0
    %2149 = vmatpush1.msra.mxu0 %v1863
    %2150 = vmatprep.subr.mxu0 0.0
    %2151 = vmatpush1.msra.mxu0 0.0
    %2152 = vmatprep.subr.mxu0 0.0
    %2153 = vmatpush1.msra.mxu0 0.0
    %2154 = vmatprep.subr.mxu0 0.0
    %2155 = vmatpush1.msra.mxu0 0.0
    %2156 = vmatprep.subr.mxu0 0.0
    %2157 = vmatpush1.msra.mxu0 0.0
    %2158 = vmatprep.subr.mxu0 0.0
    %2159 = vmatpush1.msra.mxu0 0.0
    %2160 = vmatprep.subr.mxu0 0.0
    %2161 = vmatpush1.msra.mxu0 0.0
    %2162 = vmatprep.subr.mxu0 0.0
    %2163 = vmatpush1.msra.mxu0 0.0
    %2164 = vmatprep.subr.mxu0 0.0
    %2165 = vmatpush1.msra.mxu0 0.0
    %2166 = vmatprep.subr.mxu0 0.0
    %2167 = vmatpush1.msra.mxu0 0.0
    %2168 = vmatprep.subr.mxu0 0.0
    %2169 = vmatpush1.msra.mxu0 0.0
    %2170 = vmatprep.subr.mxu0 0.0
    %2171 = vmatpush1.msra.mxu0 0.0
    %2172 = vmatprep.subr.mxu0 0.0
    %2173 = vmatpush1.msra.mxu0 0.0
    %2174 = vmatprep.subr.mxu0 0.0
    %2175 = vmatpush1.msra.mxu0 0.0
    %2176 = vmatprep.subr.mxu0 0.0
    %2177 = vmatpush1.msra.mxu0 0.0
    %2178 = vmatprep.subr.mxu0 0.0
    %2179 = vmatpush1.msra.mxu0 0.0
    %2180 = vmatprep.subr.mxu0 0.0
    %2181 = vmatpush1.msra.mxu0 0.0
    %2182 = vmatprep.subr.mxu0 0.0
    %2183 = vmatpush1.msra.mxu0 0.0
    %2184 = vmatprep.subr.mxu0 0.0
    %2185 = vmatpush1.msra.mxu0 0.0
    %2186 = vmatprep.subr.mxu0 0.0
    %2187 = vmatpush1.msra.mxu0 0.0
    %2188 = vmatprep.subr.mxu0 0.0
    %2189 = vmatpush1.msra.mxu0 0.0
    %2190 = vmatprep.subr.mxu0 0.0
    %2191 = vmatpush1.msra.mxu0 0.0
    %2192 = vmatprep.subr.mxu0 0.0
    %2193 = vmatpush1.msra.mxu0 0.0
    %2194 = vmatprep.subr.mxu0 0.0
    %2195 = vmatpush1.msra.mxu0 0.0
    %2196 = vmatprep.subr.mxu0 0.0
    %2197 = vmatpush1.msra.mxu0 0.0
    %2198 = vmatprep.subr.mxu0 0.0
    %2199 = vmatpush1.msra.mxu0 0.0
    %2200 = vmatprep.subr.mxu0 0.0
    %2201 = vmatpush1.msra.mxu0 0.0
    %2202 = vmatprep.subr.mxu0 0.0
    %2203 = vmatpush1.msra.mxu0 0.0
    %2204 = vmatprep.mubr.f32.mxu0 0.0
    %2205 = vmatmul.mubr.f32.gmra.mrb[0].mxu0 %v2126
    %v2206 = vpop.f32.mrb[0].mxu0
    %v2207 = vadd.f32 0.0, %v2206
    %v2208 = vpop.f32.mrb[0].mxu0
    %2209 = vmatprep.mubr.f32.mxu0 0.0
    %2210 = vmatmul.mubr.f32.gmra.mrb[0].mxu0 %v2129
    %v2211 = vpop.f32.mrb[0].mxu0
    %v2212 = vadd.f32 0.0, %v2211
    %v2213 = vpop.f32.mrb[0].mxu0
    %2214 = vmatprep.mubr.f32.mxu0 0.0
    %2215 = vmatmul.mubr.f32.gmra.mrb[0].mxu0 %v2132
    %v2216 = vpop.f32.mrb[0].mxu0
    %v2217 = vadd.f32 0.0, %v2216
    %v2218 = vpop.f32.mrb[0].mxu0
    %2219 = vmatprep.mubr.f32.mxu0 0.0
    %2220 = vmatmul.mubr.f32.gmra.mrb[0].mxu0 %v2135
    %v2221 = vpop.f32.mrb[0].mxu0
    %v2222 = vadd.f32 0.0, %v2221
    %v2223 = vpop.f32.mrb[0].mxu0
    %2224 = vmatprep.mubr.f32.mxu0 0.0
    %2225 = vmatmul.mubr.f32.gmra.mrb[0].mxu0 %v2138
    %v2226 = vpop.f32.mrb[0].mxu0
    %v2227 = vadd.f32 0.0, %v2226
    %v2228 = vpop.f32.mrb[0].mxu0
    %2229 = vdwg.mxu0
    %v2230 = vrot.slane %v255, 3
    %v2231 = vrot.slane %v259, 3
    %v2232 = vsel %vm106, %v2230, %v2231
    %v2236 = vrot.slane %v303, 6
    %v2237 = vrot.slane %v307, 6
    %v2238 = vsel %vm100, %v2236, %v2237
    %v2243 = vrot.slane %v351, 1
    %v2244 = vrot.slane %v355, 1
    %v2245 = vsel %vm110, %v2243, %v2244
    %v2249 = vsel %vm106, %v211, %v2230
    %v2250 = vsel %vm100, %v2231, %v2236
    %v2251 = vsel %vm110, %v2238, %v2243
    %v2252 = vrot.slane %v1037, 3
    %v2253 = vrot.slane %v1041, 3
    %v2254 = vsel %vm106, %v2252, %v2253
    %v2257 = vrot.slane %v1085, 6
    %v2258 = vrot.slane %v1089, 6
    %v2259 = vsel %vm100, %v2257, %v2258
    %v2264 = vrot.slane %v1133, 1
    %v2265 = vrot.slane %v1137, 1
    %v2266 = vsel %vm110, %v2264, %v2265
    %v2268 = vsel %vm106, %v993, %v2252
    %v2269 = vsel %vm100, %v2253, %v2257
    %v2270 = vsel %vm110, %v2259, %v2264
    %2274 = vrot.lane.b32.xlu0 %v989, 18
    %v2275 = vpop.permute.xlu0 %2274
    %2276 = vrot.lane.b32.xlu0 %v2268, 18
    %v2277 = vpop.permute.xlu0 %2276
    %2278 = vrot.lane.b32.xlu0 %v2254, 18
    %v2279 = vpop.permute.xlu0 %2278
    %2280 = vrot.lane.b32.xlu0 %v2269, 18
    %v2281 = vpop.permute.xlu0 %2280
    %2282 = vrot.lane.b32.xlu0 %v2270, 18
    %v2283 = vpop.permute.xlu0 %2282
    %2284 = vrot.lane.b32.xlu0 %v2266, 18
    %v2285 = vpop.permute.xlu0 %2284
    %2286 = vrot.lane.b32.xlu0 %v2265, 18
    %v2287 = vpop.permute.xlu0 %2286
    %v2295 = vsel %vm1699, %v207, %v2275
    %v2296 = vsel %vm1699, %v2249, %v2277
    %v2297 = vsel %vm1699, %v2232, %v2279
    %v2298 = vsel %vm1699, %v2250, %v2281
    %v2299 = vsel %vm1699, %v2251, %v2283
    %v2300 = vsel %vm1699, %v2245, %v2285
    %v2301 = vsel %vm1699, %v2244, %v2287
    %v2303 = vsel %vm104, %v2301, 0
    %2305 = vmatprep.subr.mxu0 0.0
    %2306 = vmatpush1.msra.mxu0 %v2295
    %2307 = vmatprep.subr.mxu0 0.0
    %2308 = vmatpush1.msra.mxu0 %v2296
    %2309 = vmatprep.subr.mxu0 0.0
    %2310 = vmatpush1.msra.mxu0 %v2297
    %2311 = vmatprep.subr.mxu0 0.0
    %2312 = vmatpush1.msra.mxu0 %v2298
    %2313 = vmatprep.subr.mxu0 0.0
    %2314 = vmatpush1.msra.mxu0 %v2299
    %2315 = vmatprep.subr.mxu0 0.0
    %2316 = vmatpush1.msra.mxu0 %v2300
    %2317 = vmatprep.subr.mxu0 0.0
    %2318 = vmatpush1.msra.mxu0 %v2303
    %2319 = vmatprep.subr.mxu0 0.0
    %2320 = vmatpush1.msra.mxu0 0.0
    %2321 = vmatprep.subr.mxu0 0.0
    %2322 = vmatpush1.msra.mxu0 0.0
    %2323 = vmatprep.subr.mxu0 0.0
    %2324 = vmatpush1.msra.mxu0 0.0
    %2325 = vmatprep.subr.mxu0 0.0
    %2326 = vmatpush1.msra.mxu0 0.0
    %2327 = vmatprep.subr.mxu0 0.0
    %2328 = vmatpush1.msra.mxu0 0.0
    %2329 = vmatprep.subr.mxu0 0.0
    %2330 = vmatpush1.msra.mxu0 0.0
    %2331 = vmatprep.subr.mxu0 0.0
    %2332 = vmatpush1.msra.mxu0 0.0
    %2333 = vmatprep.subr.mxu0 0.0
    %2334 = vmatpush1.msra.mxu0 0.0
    %2335 = vmatprep.subr.mxu0 0.0
    %2336 = vmatpush1.msra.mxu0 0.0
    %2337 = vmatprep.subr.mxu0 0.0
    %2338 = vmatpush1.msra.mxu0 0.0
    %2339 = vmatprep.subr.mxu0 0.0
    %2340 = vmatpush1.msra.mxu0 0.0
    %2341 = vmatprep.subr.mxu0 0.0
    %2342 = vmatpush1.msra.mxu0 0.0
    %2343 = vmatprep.subr.mxu0 0.0
    %2344 = vmatpush1.msra.mxu0 0.0
    %2345 = vmatprep.subr.mxu0 0.0
    %2346 = vmatpush1.msra.mxu0 0.0
    %2347 = vmatprep.subr.mxu0 0.0
    %2348 = vmatpush1.msra.mxu0 0.0
    %2349 = vmatprep.subr.mxu0 0.0
    %2350 = vmatpush1.msra.mxu0 0.0
    %2351 = vmatprep.subr.mxu0 0.0
    %2352 = vmatpush1.msra.mxu0 0.0
    %2353 = vmatprep.subr.mxu0 0.0
    %2354 = vmatpush1.msra.mxu0 0.0
    %2355 = vmatprep.subr.mxu0 0.0
    %2356 = vmatpush1.msra.mxu0 0.0
    %2357 = vmatprep.subr.mxu0 0.0
    %2358 = vmatpush1.msra.mxu0 0.0
    %2359 = vmatprep.subr.mxu0 0.0
    %2360 = vmatpush1.msra.mxu0 0.0
    %2361 = vmatprep.subr.mxu0 0.0
    %2362 = vmatpush1.msra.mxu0 0.0
    %2363 = vmatprep.subr.mxu0 0.0
    %2364 = vmatpush1.msra.mxu0 0.0
    %2365 = vmatprep.subr.mxu0 0.0
    %2366 = vmatpush1.msra.mxu0 0.0
    %2367 = vmatprep.subr.mxu0 0.0
    %2368 = vmatpush1.msra.mxu0 0.0
    %2369 = vmatprep.mubr.f32.mxu0 0.0
    %2370 = vmatmul.mubr.f32.gmra.mrb[0].mxu0 %v1734
    %v2371 = vpop.f32.mrb[0].mxu0
    %v2372 = vadd.f32 %v1710, %v2371
    %v2373 = vpop.f32.mrb[0].mxu0
    %2374 = vmatprep.mubr.f32.mxu0 0.0
    %2375 = vmatmul.mubr.f32.gmra.mrb[0].mxu0 %v1737
    %v2376 = vpop.f32.mrb[0].mxu0
    %v2377 = vadd.f32 %v1715, %v2376
    %v2378 = vpop.f32.mrb[0].mxu0
    %2379 = vmatprep.mubr.f32.mxu0 0.0
    %2380 = vmatmul.mubr.f32.gmra.mrb[0].mxu0 %v1740
    %v2381 = vpop.f32.mrb[0].mxu0
    %v2382 = vadd.f32 %v1720, %v2381
    %v2383 = vpop.f32.mrb[0].mxu0
    %2384 = vmatprep.mubr.f32.mxu0 0.0
    %2385 = vmatmul.mubr.f32.gmra.mrb[0].mxu0 %v1743
    %v2386 = vpop.f32.mrb[0].mxu0
    %v2387 = vadd.f32 %v1725, %v2386
    %v2388 = vpop.f32.mrb[0].mxu0
    %2389 = vmatprep.mubr.f32.mxu0 0.0
    %2390 = vmatmul.mubr.f32.gmra.mrb[0].mxu0 %v1746
    %v2391 = vpop.f32.mrb[0].mxu0
    %v2392 = vadd.f32 %v1730, %v2391
    %v2393 = vpop.f32.mrb[0].mxu0
    %2394 = vdwg.mxu0
    %v2395 = vmul.f32 %v2372, %v2372
    %v2396 = vmul.f32 %v2377, %v2377
    %v2397 = vmul.f32 %v2382, %v2382
    %v2398 = vmul.f32 %v2387, %v2387
    %v2399 = vmul.f32 %v2392, %v2392
    %v2401 = vsel %vm1846, %v2395, 0
    %v2404 = vsel %vm1846, %v2396, 0
    %v2407 = vsel %vm1846, %v2397, 0
    %v2410 = vsel %vm1846, %v2398, 0
    %v2413 = vsel %vm1846, %v2399, 0
    %2415 = vmatprep.subr.mxu0 0.0
    %2416 = vmatpush1.msra.mxu0 %v49
    %2417 = vmatprep.subr.mxu0 0.0
    %2418 = vmatpush1.msra.mxu0 %v50
    %2419 = vmatprep.subr.mxu0 0.0
    %2420 = vmatpush1.msra.mxu0 %v51
    %2421 = vmatprep.subr.mxu0 0.0
    %2422 = vmatpush1.msra.mxu0 %v52
    %2423 = vmatprep.subr.mxu0 0.0
    %2424 = vmatpush1.msra.mxu0 %v1863
    %2425 = vmatprep.subr.mxu0 0.0
    %2426 = vmatpush1.msra.mxu0 0.0
    %2427 = vmatprep.subr.mxu0 0.0
    %2428 = vmatpush1.msra.mxu0 0.0
    %2429 = vmatprep.subr.mxu0 0.0
    %2430 = vmatpush1.msra.mxu0 0.0
    %2431 = vmatprep.subr.mxu0 0.0
    %2432 = vmatpush1.msra.mxu0 0.0
    %2433 = vmatprep.subr.mxu0 0.0
    %2434 = vmatpush1.msra.mxu0 0.0
    %2435 = vmatprep.subr.mxu0 0.0
    %2436 = vmatpush1.msra.mxu0 0.0
    %2437 = vmatprep.subr.mxu0 0.0
    %2438 = vmatpush1.msra.mxu0 0.0
    %2439 = vmatprep.subr.mxu0 0.0
    %2440 = vmatpush1.msra.mxu0 0.0
    %2441 = vmatprep.subr.mxu0 0.0
    %2442 = vmatpush1.msra.mxu0 0.0
    %2443 = vmatprep.subr.mxu0 0.0
    %2444 = vmatpush1.msra.mxu0 0.0
    %2445 = vmatprep.subr.mxu0 0.0
    %2446 = vmatpush1.msra.mxu0 0.0
    %2447 = vmatprep.subr.mxu0 0.0
    %2448 = vmatpush1.msra.mxu0 0.0
    %2449 = vmatprep.subr.mxu0 0.0
    %2450 = vmatpush1.msra.mxu0 0.0
    %2451 = vmatprep.subr.mxu0 0.0
    %2452 = vmatpush1.msra.mxu0 0.0
    %2453 = vmatprep.subr.mxu0 0.0
    %2454 = vmatpush1.msra.mxu0 0.0
    %2455 = vmatprep.subr.mxu0 0.0
    %2456 = vmatpush1.msra.mxu0 0.0
    %2457 = vmatprep.subr.mxu0 0.0
    %2458 = vmatpush1.msra.mxu0 0.0
    %2459 = vmatprep.subr.mxu0 0.0
    %2460 = vmatpush1.msra.mxu0 0.0
    %2461 = vmatprep.subr.mxu0 0.0
    %2462 = vmatpush1.msra.mxu0 0.0
    %2463 = vmatprep.subr.mxu0 0.0
    %2464 = vmatpush1.msra.mxu0 0.0
    %2465 = vmatprep.subr.mxu0 0.0
    %2466 = vmatpush1.msra.mxu0 0.0
    %2467 = vmatprep.subr.mxu0 0.0
    %2468 = vmatpush1.msra.mxu0 0.0
    %2469 = vmatprep.subr.mxu0 0.0
    %2470 = vmatpush1.msra.mxu0 0.0
    %2471 = vmatprep.subr.mxu0 0.0
    %2472 = vmatpush1.msra.mxu0 0.0
    %2473 = vmatprep.subr.mxu0 0.0
    %2474 = vmatpush1.msra.mxu0 0.0
    %2475 = vmatprep.subr.mxu0 0.0
    %2476 = vmatpush1.msra.mxu0 0.0
    %2477 = vmatprep.subr.mxu0 0.0
    %2478 = vmatpush1.msra.mxu0 0.0
    %2479 = vmatprep.mubr.f32.mxu0 0.0
    %2480 = vmatmul.mubr.f32.gmra.mrb[0].mxu0 %v2401
    %v2481 = vpop.f32.mrb[0].mxu0
    %v2482 = vadd.f32 0.0, %v2481
    %v2483 = vpop.f32.mrb[0].mxu0
    %2484 = vmatprep.mubr.f32.mxu0 0.0
    %2485 = vmatmul.mubr.f32.gmra.mrb[0].mxu0 %v2404
    %v2486 = vpop.f32.mrb[0].mxu0
    %v2487 = vadd.f32 0.0, %v2486
    %v2488 = vpop.f32.mrb[0].mxu0
    %2489 = vmatprep.mubr.f32.mxu0 0.0
    %2490 = vmatmul.mubr.f32.gmra.mrb[0].mxu0 %v2407
    %v2491 = vpop.f32.mrb[0].mxu0
    %v2492 = vadd.f32 0.0, %v2491
    %v2493 = vpop.f32.mrb[0].mxu0
    %2494 = vmatprep.mubr.f32.mxu0 0.0
    %2495 = vmatmul.mubr.f32.gmra.mrb[0].mxu0 %v2410
    %v2496 = vpop.f32.mrb[0].mxu0
    %v2497 = vadd.f32 0.0, %v2496
    %v2498 = vpop.f32.mrb[0].mxu0
    %2499 = vmatprep.mubr.f32.mxu0 0.0
    %2500 = vmatmul.mubr.f32.gmra.mrb[0].mxu0 %v2413
    %v2501 = vpop.f32.mrb[0].mxu0
    %v2502 = vadd.f32 0.0, %v2501
    %v2503 = vpop.f32.mrb[0].mxu0
    %2504 = vdwg.mxu0
    %v2505 = vrot.slane %v303, 3
    %v2506 = vrot.slane %v307, 3
    %v2507 = vsel %vm106, %v2505, %v2506
    %v2511 = vrot.slane %v351, 6
    %v2512 = vrot.slane %v355, 6
    %v2513 = vsel %vm100, %v2511, %v2512
    %v2518 = vrot.slane %v399, 1
    %v2519 = vrot.slane %v403, 1
    %v2520 = vsel %vm110, %v2518, %v2519
    %v2524 = vsel %vm106, %v259, %v2505
    %v2525 = vsel %vm100, %v2506, %v2511
    %v2526 = vsel %vm110, %v2513, %v2518
    %v2527 = vrot.slane %v1085, 3
    %v2528 = vrot.slane %v1089, 3
    %v2529 = vsel %vm106, %v2527, %v2528
    %v2532 = vrot.slane %v1133, 6
    %v2533 = vrot.slane %v1137, 6
    %v2534 = vsel %vm100, %v2532, %v2533
    %v2539 = vrot.slane %v1181, 1
    %v2540 = vrot.slane %v1185, 1
    %v2541 = vsel %vm110, %v2539, %v2540
    %v2543 = vsel %vm106, %v1041, %v2527
    %v2544 = vsel %vm100, %v2528, %v2532
    %v2545 = vsel %vm110, %v2534, %v2539
    %2549 = vrot.lane.b32.xlu0 %v1037, 18
    %v2550 = vpop.permute.xlu0 %2549
    %2551 = vrot.lane.b32.xlu0 %v2543, 18
    %v2552 = vpop.permute.xlu0 %2551
    %2553 = vrot.lane.b32.xlu0 %v2529, 18
    %v2554 = vpop.permute.xlu0 %2553
    %2555 = vrot.lane.b32.xlu0 %v2544, 18
    %v2556 = vpop.permute.xlu0 %2555
    %2557 = vrot.lane.b32.xlu0 %v2545, 18
    %v2558 = vpop.permute.xlu0 %2557
    %2559 = vrot.lane.b32.xlu0 %v2541, 18
    %v2560 = vpop.permute.xlu0 %2559
    %2561 = vrot.lane.b32.xlu0 %v2540, 18
    %v2562 = vpop.permute.xlu0 %2561
    %v2570 = vsel %vm1699, %v255, %v2550
    %v2571 = vsel %vm1699, %v2524, %v2552
    %v2572 = vsel %vm1699, %v2507, %v2554
    %v2573 = vsel %vm1699, %v2525, %v2556
    %v2574 = vsel %vm1699, %v2526, %v2558
    %v2575 = vsel %vm1699, %v2520, %v2560
    %v2576 = vsel %vm1699, %v2519, %v2562
    %v2578 = vsel %vm104, %v2576, 0
    %2580 = vmatprep.subr.mxu0 0.0
    %2581 = vmatpush1.msra.mxu0 %v2570
    %2582 = vmatprep.subr.mxu0 0.0
    %2583 = vmatpush1.msra.mxu0 %v2571
    %2584 = vmatprep.subr.mxu0 0.0
    %2585 = vmatpush1.msra.mxu0 %v2572
    %2586 = vmatprep.subr.mxu0 0.0
    %2587 = vmatpush1.msra.mxu0 %v2573
    %2588 = vmatprep.subr.mxu0 0.0
    %2589 = vmatpush1.msra.mxu0 %v2574
    %2590 = vmatprep.subr.mxu0 0.0
    %2591 = vmatpush1.msra.mxu0 %v2575
    %2592 = vmatprep.subr.mxu0 0.0
    %2593 = vmatpush1.msra.mxu0 %v2578
    %2594 = vmatprep.subr.mxu0 0.0
    %2595 = vmatpush1.msra.mxu0 0.0
    %2596 = vmatprep.subr.mxu0 0.0
    %2597 = vmatpush1.msra.mxu0 0.0
    %2598 = vmatprep.subr.mxu0 0.0
    %2599 = vmatpush1.msra.mxu0 0.0
    %2600 = vmatprep.subr.mxu0 0.0
    %2601 = vmatpush1.msra.mxu0 0.0
    %2602 = vmatprep.subr.mxu0 0.0
    %2603 = vmatpush1.msra.mxu0 0.0
    %2604 = vmatprep.subr.mxu0 0.0
    %2605 = vmatpush1.msra.mxu0 0.0
    %2606 = vmatprep.subr.mxu0 0.0
    %2607 = vmatpush1.msra.mxu0 0.0
    %2608 = vmatprep.subr.mxu0 0.0
    %2609 = vmatpush1.msra.mxu0 0.0
    %2610 = vmatprep.subr.mxu0 0.0
    %2611 = vmatpush1.msra.mxu0 0.0
    %2612 = vmatprep.subr.mxu0 0.0
    %2613 = vmatpush1.msra.mxu0 0.0
    %2614 = vmatprep.subr.mxu0 0.0
    %2615 = vmatpush1.msra.mxu0 0.0
    %2616 = vmatprep.subr.mxu0 0.0
    %2617 = vmatpush1.msra.mxu0 0.0
    %2618 = vmatprep.subr.mxu0 0.0
    %2619 = vmatpush1.msra.mxu0 0.0
    %2620 = vmatprep.subr.mxu0 0.0
    %2621 = vmatpush1.msra.mxu0 0.0
    %2622 = vmatprep.subr.mxu0 0.0
    %2623 = vmatpush1.msra.mxu0 0.0
    %2624 = vmatprep.subr.mxu0 0.0
    %2625 = vmatpush1.msra.mxu0 0.0
    %2626 = vmatprep.subr.mxu0 0.0
    %2627 = vmatpush1.msra.mxu0 0.0
    %2628 = vmatprep.subr.mxu0 0.0
    %2629 = vmatpush1.msra.mxu0 0.0
    %2630 = vmatprep.subr.mxu0 0.0
    %2631 = vmatpush1.msra.mxu0 0.0
    %2632 = vmatprep.subr.mxu0 0.0
    %2633 = vmatpush1.msra.mxu0 0.0
    %2634 = vmatprep.subr.mxu0 0.0
    %2635 = vmatpush1.msra.mxu0 0.0
    %2636 = vmatprep.subr.mxu0 0.0
    %2637 = vmatpush1.msra.mxu0 0.0
    %2638 = vmatprep.subr.mxu0 0.0
    %2639 = vmatpush1.msra.mxu0 0.0
    %2640 = vmatprep.subr.mxu0 0.0
    %2641 = vmatpush1.msra.mxu0 0.0
    %2642 = vmatprep.subr.mxu0 0.0
    %2643 = vmatpush1.msra.mxu0 0.0
    %2644 = vmatprep.mubr.f32.mxu0 0.0
    %2645 = vmatmul.mubr.f32.gmra.mrb[0].mxu0 %v1734
    %v2646 = vpop.f32.mrb[0].mxu0
    %v2647 = vadd.f32 %v1710, %v2646
    %v2648 = vpop.f32.mrb[0].mxu0
    %2649 = vmatprep.mubr.f32.mxu0 0.0
    %2650 = vmatmul.mubr.f32.gmra.mrb[0].mxu0 %v1737
    %v2651 = vpop.f32.mrb[0].mxu0
    %v2652 = vadd.f32 %v1715, %v2651
    %v2653 = vpop.f32.mrb[0].mxu0
    %2654 = vmatprep.mubr.f32.mxu0 0.0
    %2655 = vmatmul.mubr.f32.gmra.mrb[0].mxu0 %v1740
    %v2656 = vpop.f32.mrb[0].mxu0
    %v2657 = vadd.f32 %v1720, %v2656
    %v2658 = vpop.f32.mrb[0].mxu0
    %2659 = vmatprep.mubr.f32.mxu0 0.0
    %2660 = vmatmul.mubr.f32.gmra.mrb[0].mxu0 %v1743
    %v2661 = vpop.f32.mrb[0].mxu0
    %v2662 = vadd.f32 %v1725, %v2661
    %v2663 = vpop.f32.mrb[0].mxu0
    %2664 = vmatprep.mubr.f32.mxu0 0.0
    %2665 = vmatmul.mubr.f32.gmra.mrb[0].mxu0 %v1746
    %v2666 = vpop.f32.mrb[0].mxu0
    %v2667 = vadd.f32 %v1730, %v2666
    %v2668 = vpop.f32.mrb[0].mxu0
    %2669 = vdwg.mxu0
    %v2670 = vmul.f32 %v2647, %v2647
    %v2671 = vmul.f32 %v2652, %v2652
    %v2672 = vmul.f32 %v2657, %v2657
    %v2673 = vmul.f32 %v2662, %v2662
    %v2674 = vmul.f32 %v2667, %v2667
    %v2676 = vsel %vm1846, %v2670, 0
    %v2679 = vsel %vm1846, %v2671, 0
    %v2682 = vsel %vm1846, %v2672, 0
    %v2685 = vsel %vm1846, %v2673, 0
    %v2688 = vsel %vm1846, %v2674, 0
    %2690 = vmatprep.subr.mxu0 0.0
    %2691 = vmatpush1.msra.mxu0 %v49
    %2692 = vmatprep.subr.mxu0 0.0
    %2693 = vmatpush1.msra.mxu0 %v50
    %2694 = vmatprep.subr.mxu0 0.0
    %2695 = vmatpush1.msra.mxu0 %v51
    %2696 = vmatprep.subr.mxu0 0.0
    %2697 = vmatpush1.msra.mxu0 %v52
    %2698 = vmatprep.subr.mxu0 0.0
    %2699 = vmatpush1.msra.mxu0 %v1863
    %2700 = vmatprep.subr.mxu0 0.0
    %2701 = vmatpush1.msra.mxu0 0.0
    %2702 = vmatprep.subr.mxu0 0.0
    %2703 = vmatpush1.msra.mxu0 0.0
    %2704 = vmatprep.subr.mxu0 0.0
    %2705 = vmatpush1.msra.mxu0 0.0
    %2706 = vmatprep.subr.mxu0 0.0
    %2707 = vmatpush1.msra.mxu0 0.0
    %2708 = vmatprep.subr.mxu0 0.0
    %2709 = vmatpush1.msra.mxu0 0.0
    %2710 = vmatprep.subr.mxu0 0.0
    %2711 = vmatpush1.msra.mxu0 0.0
    %2712 = vmatprep.subr.mxu0 0.0
    %2713 = vmatpush1.msra.mxu0 0.0
    %2714 = vmatprep.subr.mxu0 0.0
    %2715 = vmatpush1.msra.mxu0 0.0
    %2716 = vmatprep.subr.mxu0 0.0
    %2717 = vmatpush1.msra.mxu0 0.0
    %2718 = vmatprep.subr.mxu0 0.0
    %2719 = vmatpush1.msra.mxu0 0.0
    %2720 = vmatprep.subr.mxu0 0.0
    %2721 = vmatpush1.msra.mxu0 0.0
    %2722 = vmatprep.subr.mxu0 0.0
    %2723 = vmatpush1.msra.mxu0 0.0
    %2724 = vmatprep.subr.mxu0 0.0
    %2725 = vmatpush1.msra.mxu0 0.0
    %2726 = vmatprep.subr.mxu0 0.0
    %2727 = vmatpush1.msra.mxu0 0.0
    %2728 = vmatprep.subr.mxu0 0.0
    %2729 = vmatpush1.msra.mxu0 0.0
    %2730 = vmatprep.subr.mxu0 0.0
    %2731 = vmatpush1.msra.mxu0 0.0
    %2732 = vmatprep.subr.mxu0 0.0
    %2733 = vmatpush1.msra.mxu0 0.0
    %2734 = vmatprep.subr.mxu0 0.0
    %2735 = vmatpush1.msra.mxu0 0.0
    %2736 = vmatprep.subr.mxu0 0.0
    %2737 = vmatpush1.msra.mxu0 0.0
    %2738 = vmatprep.subr.mxu0 0.0
    %2739 = vmatpush1.msra.mxu0 0.0
    %2740 = vmatprep.subr.mxu0 0.0
    %2741 = vmatpush1.msra.mxu0 0.0
    %2742 = vmatprep.subr.mxu0 0.0
    %2743 = vmatpush1.msra.mxu0 0.0
    %2744 = vmatprep.subr.mxu0 0.0
    %2745 = vmatpush1.msra.mxu0 0.0
    %2746 = vmatprep.subr.mxu0 0.0
    %2747 = vmatpush1.msra.mxu0 0.0
    %2748 = vmatprep.subr.mxu0 0.0
    %2749 = vmatpush1.msra.mxu0 0.0
    %2750 = vmatprep.subr.mxu0 0.0
    %2751 = vmatpush1.msra.mxu0 0.0
    %2752 = vmatprep.subr.mxu0 0.0
    %2753 = vmatpush1.msra.mxu0 0.0
    %2754 = vmatprep.mubr.f32.mxu0 0.0
    %2755 = vmatmul.mubr.f32.gmra.mrb[0].mxu0 %v2676
    %v2756 = vpop.f32.mrb[0].mxu0
    %v2757 = vadd.f32 0.0, %v2756
    %v2758 = vpop.f32.mrb[0].mxu0
    %2759 = vmatprep.mubr.f32.mxu0 0.0
    %2760 = vmatmul.mubr.f32.gmra.mrb[0].mxu0 %v2679
    %v2761 = vpop.f32.mrb[0].mxu0
    %v2762 = vadd.f32 0.0, %v2761
    %v2763 = vpop.f32.mrb[0].mxu0
    %2764 = vmatprep.mubr.f32.mxu0 0.0
    %2765 = vmatmul.mubr.f32.gmra.mrb[0].mxu0 %v2682
    %v2766 = vpop.f32.mrb[0].mxu0
    %v2767 = vadd.f32 0.0, %v2766
    %v2768 = vpop.f32.mrb[0].mxu0
    %2769 = vmatprep.mubr.f32.mxu0 0.0
    %2770 = vmatmul.mubr.f32.gmra.mrb[0].mxu0 %v2685
    %v2771 = vpop.f32.mrb[0].mxu0
    %v2772 = vadd.f32 0.0, %v2771
    %v2773 = vpop.f32.mrb[0].mxu0
    %2774 = vmatprep.mubr.f32.mxu0 0.0
    %2775 = vmatmul.mubr.f32.gmra.mrb[0].mxu0 %v2688
    %v2776 = vpop.f32.mrb[0].mxu0
    %v2777 = vadd.f32 0.0, %v2776
    %v2778 = vpop.f32.mrb[0].mxu0
    %2779 = vdwg.mxu0
    %v2780 = vrot.slane %v351, 3
    %v2781 = vrot.slane %v355, 3
    %v2782 = vsel %vm106, %v2780, %v2781
    %v2786 = vrot.slane %v399, 6
    %v2787 = vrot.slane %v403, 6
    %v2788 = vsel %vm100, %v2786, %v2787
    %v2793 = vrot.slane %v447, 1
    %v2794 = vrot.slane %v451, 1
    %v2795 = vsel %vm110, %v2793, %v2794
    %v2799 = vsel %vm106, %v307, %v2780
    %v2800 = vsel %vm100, %v2781, %v2786
    %v2801 = vsel %vm110, %v2788, %v2793
    %v2802 = vrot.slane %v1133, 3
    %v2803 = vrot.slane %v1137, 3
    %v2804 = vsel %vm106, %v2802, %v2803
    %v2807 = vrot.slane %v1181, 6
    %v2808 = vrot.slane %v1185, 6
    %v2809 = vsel %vm100, %v2807, %v2808
    %v2814 = vrot.slane %v1229, 1
    %v2815 = vrot.slane %v1233, 1
    %v2816 = vsel %vm110, %v2814, %v2815
    %v2818 = vsel %vm106, %v1089, %v2802
    %v2819 = vsel %vm100, %v2803, %v2807
    %v2820 = vsel %vm110, %v2809, %v2814
    %2824 = vrot.lane.b32.xlu0 %v1085, 18
    %v2825 = vpop.permute.xlu0 %2824
    %2826 = vrot.lane.b32.xlu0 %v2818, 18
    %v2827 = vpop.permute.xlu0 %2826
    %2828 = vrot.lane.b32.xlu0 %v2804, 18
    %v2829 = vpop.permute.xlu0 %2828
    %2830 = vrot.lane.b32.xlu0 %v2819, 18
    %v2831 = vpop.permute.xlu0 %2830
    %2832 = vrot.lane.b32.xlu0 %v2820, 18
    %v2833 = vpop.permute.xlu0 %2832
    %2834 = vrot.lane.b32.xlu0 %v2816, 18
    %v2835 = vpop.permute.xlu0 %2834
    %2836 = vrot.lane.b32.xlu0 %v2815, 18
    %v2837 = vpop.permute.xlu0 %2836
    %v2845 = vsel %vm1699, %v303, %v2825
    %v2846 = vsel %vm1699, %v2799, %v2827
    %v2847 = vsel %vm1699, %v2782, %v2829
    %v2848 = vsel %vm1699, %v2800, %v2831
    %v2849 = vsel %vm1699, %v2801, %v2833
    %v2850 = vsel %vm1699, %v2795, %v2835
    %v2851 = vsel %vm1699, %v2794, %v2837
    %v2853 = vsel %vm104, %v2851, 0
    %2855 = vmatprep.subr.mxu0 0.0
    %2856 = vmatpush1.msra.mxu0 %v2845
    %2857 = vmatprep.subr.mxu0 0.0
    %2858 = vmatpush1.msra.mxu0 %v2846
    %2859 = vmatprep.subr.mxu0 0.0
    %2860 = vmatpush1.msra.mxu0 %v2847
    %2861 = vmatprep.subr.mxu0 0.0
    %2862 = vmatpush1.msra.mxu0 %v2848
    %2863 = vmatprep.subr.mxu0 0.0
    %2864 = vmatpush1.msra.mxu0 %v2849
    %2865 = vmatprep.subr.mxu0 0.0
    %2866 = vmatpush1.msra.mxu0 %v2850
    %2867 = vmatprep.subr.mxu0 0.0
    %2868 = vmatpush1.msra.mxu0 %v2853
    %2869 = vmatprep.subr.mxu0 0.0
    %2870 = vmatpush1.msra.mxu0 0.0
    %2871 = vmatprep.subr.mxu0 0.0
    %2872 = vmatpush1.msra.mxu0 0.0
    %2873 = vmatprep.subr.mxu0 0.0
    %2874 = vmatpush1.msra.mxu0 0.0
    %2875 = vmatprep.subr.mxu0 0.0
    %2876 = vmatpush1.msra.mxu0 0.0
    %2877 = vmatprep.subr.mxu0 0.0
    %2878 = vmatpush1.msra.mxu0 0.0
    %2879 = vmatprep.subr.mxu0 0.0
    %2880 = vmatpush1.msra.mxu0 0.0
    %2881 = vmatprep.subr.mxu0 0.0
    %2882 = vmatpush1.msra.mxu0 0.0
    %2883 = vmatprep.subr.mxu0 0.0
    %2884 = vmatpush1.msra.mxu0 0.0
    %2885 = vmatprep.subr.mxu0 0.0
    %2886 = vmatpush1.msra.mxu0 0.0
    %2887 = vmatprep.subr.mxu0 0.0
    %2888 = vmatpush1.msra.mxu0 0.0
    %2889 = vmatprep.subr.mxu0 0.0
    %2890 = vmatpush1.msra.mxu0 0.0
    %2891 = vmatprep.subr.mxu0 0.0
    %2892 = vmatpush1.msra.mxu0 0.0
    %2893 = vmatprep.subr.mxu0 0.0
    %2894 = vmatpush1.msra.mxu0 0.0
    %2895 = vmatprep.subr.mxu0 0.0
    %2896 = vmatpush1.msra.mxu0 0.0
    %2897 = vmatprep.subr.mxu0 0.0
    %2898 = vmatpush1.msra.mxu0 0.0
    %2899 = vmatprep.subr.mxu0 0.0
    %2900 = vmatpush1.msra.mxu0 0.0
    %2901 = vmatprep.subr.mxu0 0.0
    %2902 = vmatpush1.msra.mxu0 0.0
    %2903 = vmatprep.subr.mxu0 0.0
    %2904 = vmatpush1.msra.mxu0 0.0
    %2905 = vmatprep.subr.mxu0 0.0
    %2906 = vmatpush1.msra.mxu0 0.0
    %2907 = vmatprep.subr.mxu0 0.0
    %2908 = vmatpush1.msra.mxu0 0.0
    %2909 = vmatprep.subr.mxu0 0.0
    %2910 = vmatpush1.msra.mxu0 0.0
    %2911 = vmatprep.subr.mxu0 0.0
    %2912 = vmatpush1.msra.mxu0 0.0
    %2913 = vmatprep.subr.mxu0 0.0
    %2914 = vmatpush1.msra.mxu0 0.0
    %2915 = vmatprep.subr.mxu0 0.0
    %2916 = vmatpush1.msra.mxu0 0.0
    %2917 = vmatprep.subr.mxu0 0.0
    %2918 = vmatpush1.msra.mxu0 0.0
    %2919 = vmatprep.mubr.f32.mxu0 0.0
    %2920 = vmatmul.mubr.f32.gmra.mrb[0].mxu0 %v1734
    %v2921 = vpop.f32.mrb[0].mxu0
    %v2922 = vadd.f32 %v1710, %v2921
    %v2923 = vpop.f32.mrb[0].mxu0
    %2924 = vmatprep.mubr.f32.mxu0 0.0
    %2925 = vmatmul.mubr.f32.gmra.mrb[0].mxu0 %v1737
    %v2926 = vpop.f32.mrb[0].mxu0
    %v2927 = vadd.f32 %v1715, %v2926
    %v2928 = vpop.f32.mrb[0].mxu0
    %2929 = vmatprep.mubr.f32.mxu0 0.0
    %2930 = vmatmul.mubr.f32.gmra.mrb[0].mxu0 %v1740
    %v2931 = vpop.f32.mrb[0].mxu0
    %v2932 = vadd.f32 %v1720, %v2931
    %v2933 = vpop.f32.mrb[0].mxu0
    %2934 = vmatprep.mubr.f32.mxu0 0.0
    %2935 = vmatmul.mubr.f32.gmra.mrb[0].mxu0 %v1743
    %v2936 = vpop.f32.mrb[0].mxu0
    %v2937 = vadd.f32 %v1725, %v2936
    %v2938 = vpop.f32.mrb[0].mxu0
    %2939 = vmatprep.mubr.f32.mxu0 0.0
    %2940 = vmatmul.mubr.f32.gmra.mrb[0].mxu0 %v1746
    %v2941 = vpop.f32.mrb[0].mxu0
    %v2942 = vadd.f32 %v1730, %v2941
    %v2943 = vpop.f32.mrb[0].mxu0
    %2944 = vdwg.mxu0
    %v2945 = vmul.f32 %v2922, %v2922
    %v2946 = vmul.f32 %v2927, %v2927
    %v2947 = vmul.f32 %v2932, %v2932
    %v2948 = vmul.f32 %v2937, %v2937
    %v2949 = vmul.f32 %v2942, %v2942
    %v2951 = vsel %vm1846, %v2945, 0
    %v2954 = vsel %vm1846, %v2946, 0
    %v2957 = vsel %vm1846, %v2947, 0
    %v2960 = vsel %vm1846, %v2948, 0
    %v2963 = vsel %vm1846, %v2949, 0
    %2965 = vmatprep.subr.mxu0 0.0
    %2966 = vmatpush1.msra.mxu0 %v49
    %2967 = vmatprep.subr.mxu0 0.0
    %2968 = vmatpush1.msra.mxu0 %v50
    %2969 = vmatprep.subr.mxu0 0.0
    %2970 = vmatpush1.msra.mxu0 %v51
    %2971 = vmatprep.subr.mxu0 0.0
    %2972 = vmatpush1.msra.mxu0 %v52
    %2973 = vmatprep.subr.mxu0 0.0
    %2974 = vmatpush1.msra.mxu0 %v1863
    %2975 = vmatprep.subr.mxu0 0.0
    %2976 = vmatpush1.msra.mxu0 0.0
    %2977 = vmatprep.subr.mxu0 0.0
    %2978 = vmatpush1.msra.mxu0 0.0
    %2979 = vmatprep.subr.mxu0 0.0
    %2980 = vmatpush1.msra.mxu0 0.0
    %2981 = vmatprep.subr.mxu0 0.0
    %2982 = vmatpush1.msra.mxu0 0.0
    %2983 = vmatprep.subr.mxu0 0.0
    %2984 = vmatpush1.msra.mxu0 0.0
    %2985 = vmatprep.subr.mxu0 0.0
    %2986 = vmatpush1.msra.mxu0 0.0
    %2987 = vmatprep.subr.mxu0 0.0
    %2988 = vmatpush1.msra.mxu0 0.0
    %2989 = vmatprep.subr.mxu0 0.0
    %2990 = vmatpush1.msra.mxu0 0.0
    %2991 = vmatprep.subr.mxu0 0.0
    %2992 = vmatpush1.msra.mxu0 0.0
    %2993 = vmatprep.subr.mxu0 0.0
    %2994 = vmatpush1.msra.mxu0 0.0
    %2995 = vmatprep.subr.mxu0 0.0
    %2996 = vmatpush1.msra.mxu0 0.0
    %2997 = vmatprep.subr.mxu0 0.0
    %2998 = vmatpush1.msra.mxu0 0.0
    %2999 = vmatprep.subr.mxu0 0.0
    %3000 = vmatpush1.msra.mxu0 0.0
    %3001 = vmatprep.subr.mxu0 0.0
    %3002 = vmatpush1.msra.mxu0 0.0
    %3003 = vmatprep.subr.mxu0 0.0
    %3004 = vmatpush1.msra.mxu0 0.0
    %3005 = vmatprep.subr.mxu0 0.0
    %3006 = vmatpush1.msra.mxu0 0.0
    %3007 = vmatprep.subr.mxu0 0.0
    %3008 = vmatpush1.msra.mxu0 0.0
    %3009 = vmatprep.subr.mxu0 0.0
    %3010 = vmatpush1.msra.mxu0 0.0
    %3011 = vmatprep.subr.mxu0 0.0
    %3012 = vmatpush1.msra.mxu0 0.0
    %3013 = vmatprep.subr.mxu0 0.0
    %3014 = vmatpush1.msra.mxu0 0.0
    %3015 = vmatprep.subr.mxu0 0.0
    %3016 = vmatpush1.msra.mxu0 0.0
    %3017 = vmatprep.subr.mxu0 0.0
    %3018 = vmatpush1.msra.mxu0 0.0
    %3019 = vmatprep.subr.mxu0 0.0
    %3020 = vmatpush1.msra.mxu0 0.0
    %3021 = vmatprep.subr.mxu0 0.0
    %3022 = vmatpush1.msra.mxu0 0.0
    %3023 = vmatprep.subr.mxu0 0.0
    %3024 = vmatpush1.msra.mxu0 0.0
    %3025 = vmatprep.subr.mxu0 0.0
    %3026 = vmatpush1.msra.mxu0 0.0
    %3027 = vmatprep.subr.mxu0 0.0
    %3028 = vmatpush1.msra.mxu0 0.0
    %3029 = vmatprep.mubr.f32.mxu0 0.0
    %3030 = vmatmul.mubr.f32.gmra.mrb[0].mxu0 %v2951
    %v3031 = vpop.f32.mrb[0].mxu0
    %v3032 = vadd.f32 0.0, %v3031
    %v3033 = vpop.f32.mrb[0].mxu0
    %3034 = vmatprep.mubr.f32.mxu0 0.0
    %3035 = vmatmul.mubr.f32.gmra.mrb[0].mxu0 %v2954
    %v3036 = vpop.f32.mrb[0].mxu0
    %v3037 = vadd.f32 0.0, %v3036
    %v3038 = vpop.f32.mrb[0].mxu0
    %3039 = vmatprep.mubr.f32.mxu0 0.0
    %3040 = vmatmul.mubr.f32.gmra.mrb[0].mxu0 %v2957
    %v3041 = vpop.f32.mrb[0].mxu0
    %v3042 = vadd.f32 0.0, %v3041
    %v3043 = vpop.f32.mrb[0].mxu0
    %3044 = vmatprep.mubr.f32.mxu0 0.0
    %3045 = vmatmul.mubr.f32.gmra.mrb[0].mxu0 %v2960
    %v3046 = vpop.f32.mrb[0].mxu0
    %v3047 = vadd.f32 0.0, %v3046
    %v3048 = vpop.f32.mrb[0].mxu0
    %3049 = vmatprep.mubr.f32.mxu0 0.0
    %3050 = vmatmul.mubr.f32.gmra.mrb[0].mxu0 %v2963
    %v3051 = vpop.f32.mrb[0].mxu0
    %v3052 = vadd.f32 0.0, %v3051
    %v3053 = vpop.f32.mrb[0].mxu0
    %3054 = vdwg.mxu0
    %v3055 = vrot.slane %v399, 3
    %v3056 = vrot.slane %v403, 3
    %v3057 = vsel %vm106, %v3055, %v3056
    %v3061 = vrot.slane %v447, 6
    %v3062 = vrot.slane %v451, 6
    %v3063 = vsel %vm100, %v3061, %v3062
    %v3068 = vrot.slane %v502, 1
    %v3069 = vrot.slane %v506, 1
    %v3070 = vsel %vm110, %v3068, %v3069
    %v3074 = vsel %vm106, %v355, %v3055
    %v3075 = vsel %vm100, %v3056, %v3061
    %v3076 = vsel %vm110, %v3063, %v3068
    %v3077 = vrot.slane %v1181, 3
    %v3078 = vrot.slane %v1185, 3
    %v3079 = vsel %vm106, %v3077, %v3078
    %v3082 = vrot.slane %v1229, 6
    %v3083 = vrot.slane %v1233, 6
    %v3084 = vsel %vm100, %v3082, %v3083
    %v3089 = vrot.slane %v1284, 1
    %v3090 = vrot.slane %v1288, 1
    %v3091 = vsel %vm110, %v3089, %v3090
    %v3093 = vsel %vm106, %v1137, %v3077
    %v3094 = vsel %vm100, %v3078, %v3082
    %v3095 = vsel %vm110, %v3084, %v3089
    %3099 = vrot.lane.b32.xlu0 %v1133, 18
    %v3100 = vpop.permute.xlu0 %3099
    %3101 = vrot.lane.b32.xlu0 %v3093, 18
    %v3102 = vpop.permute.xlu0 %3101
    %3103 = vrot.lane.b32.xlu0 %v3079, 18
    %v3104 = vpop.permute.xlu0 %3103
    %3105 = vrot.lane.b32.xlu0 %v3094, 18
    %v3106 = vpop.permute.xlu0 %3105
    %3107 = vrot.lane.b32.xlu0 %v3095, 18
    %v3108 = vpop.permute.xlu0 %3107
    %3109 = vrot.lane.b32.xlu0 %v3091, 18
    %v3110 = vpop.permute.xlu0 %3109
    %3111 = vrot.lane.b32.xlu0 %v3090, 18
    %v3112 = vpop.permute.xlu0 %3111
    %v3120 = vsel %vm1699, %v351, %v3100
    %v3121 = vsel %vm1699, %v3074, %v3102
    %v3122 = vsel %vm1699, %v3057, %v3104
    %v3123 = vsel %vm1699, %v3075, %v3106
    %v3124 = vsel %vm1699, %v3076, %v3108
    %v3125 = vsel %vm1699, %v3070, %v3110
    %v3126 = vsel %vm1699, %v3069, %v3112
    %v3128 = vsel %vm104, %v3126, 0
    %3130 = vmatprep.subr.mxu0 0.0
    %3131 = vmatpush1.msra.mxu0 %v3120
    %3132 = vmatprep.subr.mxu0 0.0
    %3133 = vmatpush1.msra.mxu0 %v3121
    %3134 = vmatprep.subr.mxu0 0.0
    %3135 = vmatpush1.msra.mxu0 %v3122
    %3136 = vmatprep.subr.mxu0 0.0
    %3137 = vmatpush1.msra.mxu0 %v3123
    %3138 = vmatprep.subr.mxu0 0.0
    %3139 = vmatpush1.msra.mxu0 %v3124
    %3140 = vmatprep.subr.mxu0 0.0
    %3141 = vmatpush1.msra.mxu0 %v3125
    %3142 = vmatprep.subr.mxu0 0.0
    %3143 = vmatpush1.msra.mxu0 %v3128
    %3144 = vmatprep.subr.mxu0 0.0
    %3145 = vmatpush1.msra.mxu0 0.0
    %3146 = vmatprep.subr.mxu0 0.0
    %3147 = vmatpush1.msra.mxu0 0.0
    %3148 = vmatprep.subr.mxu0 0.0
    %3149 = vmatpush1.msra.mxu0 0.0
    %3150 = vmatprep.subr.mxu0 0.0
    %3151 = vmatpush1.msra.mxu0 0.0
    %3152 = vmatprep.subr.mxu0 0.0
    %3153 = vmatpush1.msra.mxu0 0.0
    %3154 = vmatprep.subr.mxu0 0.0
    %3155 = vmatpush1.msra.mxu0 0.0
    %3156 = vmatprep.subr.mxu0 0.0
    %3157 = vmatpush1.msra.mxu0 0.0
    %3158 = vmatprep.subr.mxu0 0.0
    %3159 = vmatpush1.msra.mxu0 0.0
    %3160 = vmatprep.subr.mxu0 0.0
    %3161 = vmatpush1.msra.mxu0 0.0
    %3162 = vmatprep.subr.mxu0 0.0
    %3163 = vmatpush1.msra.mxu0 0.0
    %3164 = vmatprep.subr.mxu0 0.0
    %3165 = vmatpush1.msra.mxu0 0.0
    %3166 = vmatprep.subr.mxu0 0.0
    %3167 = vmatpush1.msra.mxu0 0.0
    %3168 = vmatprep.subr.mxu0 0.0
    %3169 = vmatpush1.msra.mxu0 0.0
    %3170 = vmatprep.subr.mxu0 0.0
    %3171 = vmatpush1.msra.mxu0 0.0
    %3172 = vmatprep.subr.mxu0 0.0
    %3173 = vmatpush1.msra.mxu0 0.0
    %3174 = vmatprep.subr.mxu0 0.0
    %3175 = vmatpush1.msra.mxu0 0.0
    %3176 = vmatprep.subr.mxu0 0.0
    %3177 = vmatpush1.msra.mxu0 0.0
    %3178 = vmatprep.subr.mxu0 0.0
    %3179 = vmatpush1.msra.mxu0 0.0
    %3180 = vmatprep.subr.mxu0 0.0
    %3181 = vmatpush1.msra.mxu0 0.0
    %3182 = vmatprep.subr.mxu0 0.0
    %3183 = vmatpush1.msra.mxu0 0.0
    %3184 = vmatprep.subr.mxu0 0.0
    %3185 = vmatpush1.msra.mxu0 0.0
    %3186 = vmatprep.subr.mxu0 0.0
    %3187 = vmatpush1.msra.mxu0 0.0
    %3188 = vmatprep.subr.mxu0 0.0
    %3189 = vmatpush1.msra.mxu0 0.0
    %3190 = vmatprep.subr.mxu0 0.0
    %3191 = vmatpush1.msra.mxu0 0.0
    %3192 = vmatprep.subr.mxu0 0.0
    %3193 = vmatpush1.msra.mxu0 0.0
    %3194 = vmatprep.mubr.f32.mxu0 0.0
    %3195 = vmatmul.mubr.f32.gmra.mrb[0].mxu0 %v1734
    %v3196 = vpop.f32.mrb[0].mxu0
    %v3197 = vadd.f32 %v1710, %v3196
    %v3198 = vpop.f32.mrb[0].mxu0
    %3199 = vmatprep.mubr.f32.mxu0 0.0
    %3200 = vmatmul.mubr.f32.gmra.mrb[0].mxu0 %v1737
    %v3201 = vpop.f32.mrb[0].mxu0
    %v3202 = vadd.f32 %v1715, %v3201
    %v3203 = vpop.f32.mrb[0].mxu0
    %3204 = vmatprep.mubr.f32.mxu0 0.0
    %3205 = vmatmul.mubr.f32.gmra.mrb[0].mxu0 %v1740
    %v3206 = vpop.f32.mrb[0].mxu0
    %v3207 = vadd.f32 %v1720, %v3206
    %v3208 = vpop.f32.mrb[0].mxu0
    %3209 = vmatprep.mubr.f32.mxu0 0.0
    %3210 = vmatmul.mubr.f32.gmra.mrb[0].mxu0 %v1743
    %v3211 = vpop.f32.mrb[0].mxu0
    %v3212 = vadd.f32 %v1725, %v3211
    %v3213 = vpop.f32.mrb[0].mxu0
    %3214 = vmatprep.mubr.f32.mxu0 0.0
    %3215 = vmatmul.mubr.f32.gmra.mrb[0].mxu0 %v1746
    %v3216 = vpop.f32.mrb[0].mxu0
    %v3217 = vadd.f32 %v1730, %v3216
    %v3218 = vpop.f32.mrb[0].mxu0
    %3219 = vdwg.mxu0
    %v3220 = vmul.f32 %v3197, %v3197
    %v3221 = vmul.f32 %v3202, %v3202
    %v3222 = vmul.f32 %v3207, %v3207
    %v3223 = vmul.f32 %v3212, %v3212
    %v3224 = vmul.f32 %v3217, %v3217
    %v3226 = vsel %vm1846, %v3220, 0
    %v3229 = vsel %vm1846, %v3221, 0
    %v3232 = vsel %vm1846, %v3222, 0
    %v3235 = vsel %vm1846, %v3223, 0
    %v3238 = vsel %vm1846, %v3224, 0
    %3240 = vmatprep.subr.mxu0 0.0
    %3241 = vmatpush1.msra.mxu0 %v49
    %3242 = vmatprep.subr.mxu0 0.0
    %3243 = vmatpush1.msra.mxu0 %v50
    %3244 = vmatprep.subr.mxu0 0.0
    %3245 = vmatpush1.msra.mxu0 %v51
    %3246 = vmatprep.subr.mxu0 0.0
    %3247 = vmatpush1.msra.mxu0 %v52
    %3248 = vmatprep.subr.mxu0 0.0
    %3249 = vmatpush1.msra.mxu0 %v1863
    %3250 = vmatprep.subr.mxu0 0.0
    %3251 = vmatpush1.msra.mxu0 0.0
    %3252 = vmatprep.subr.mxu0 0.0
    %3253 = vmatpush1.msra.mxu0 0.0
    %3254 = vmatprep.subr.mxu0 0.0
    %3255 = vmatpush1.msra.mxu0 0.0
    %3256 = vmatprep.subr.mxu0 0.0
    %3257 = vmatpush1.msra.mxu0 0.0
    %3258 = vmatprep.subr.mxu0 0.0
    %3259 = vmatpush1.msra.mxu0 0.0
    %3260 = vmatprep.subr.mxu0 0.0
    %3261 = vmatpush1.msra.mxu0 0.0
    %3262 = vmatprep.subr.mxu0 0.0
    %3263 = vmatpush1.msra.mxu0 0.0
    %3264 = vmatprep.subr.mxu0 0.0
    %3265 = vmatpush1.msra.mxu0 0.0
    %3266 = vmatprep.subr.mxu0 0.0
    %3267 = vmatpush1.msra.mxu0 0.0
    %3268 = vmatprep.subr.mxu0 0.0
    %3269 = vmatpush1.msra.mxu0 0.0
    %3270 = vmatprep.subr.mxu0 0.0
    %3271 = vmatpush1.msra.mxu0 0.0
    %3272 = vmatprep.subr.mxu0 0.0
    %3273 = vmatpush1.msra.mxu0 0.0
    %3274 = vmatprep.subr.mxu0 0.0
    %3275 = vmatpush1.msra.mxu0 0.0
    %3276 = vmatprep.subr.mxu0 0.0
    %3277 = vmatpush1.msra.mxu0 0.0
    %3278 = vmatprep.subr.mxu0 0.0
    %3279 = vmatpush1.msra.mxu0 0.0
    %3280 = vmatprep.subr.mxu0 0.0
    %3281 = vmatpush1.msra.mxu0 0.0
    %3282 = vmatprep.subr.mxu0 0.0
    %3283 = vmatpush1.msra.mxu0 0.0
    %3284 = vmatprep.subr.mxu0 0.0
    %3285 = vmatpush1.msra.mxu0 0.0
    %3286 = vmatprep.subr.mxu0 0.0
    %3287 = vmatpush1.msra.mxu0 0.0
    %3288 = vmatprep.subr.mxu0 0.0
    %3289 = vmatpush1.msra.mxu0 0.0
    %3290 = vmatprep.subr.mxu0 0.0
    %3291 = vmatpush1.msra.mxu0 0.0
    %3292 = vmatprep.subr.mxu0 0.0
    %3293 = vmatpush1.msra.mxu0 0.0
    %3294 = vmatprep.subr.mxu0 0.0
    %3295 = vmatpush1.msra.mxu0 0.0
    %3296 = vmatprep.subr.mxu0 0.0
    %3297 = vmatpush1.msra.mxu0 0.0
    %3298 = vmatprep.subr.mxu0 0.0
    %3299 = vmatpush1.msra.mxu0 0.0
    %3300 = vmatprep.subr.mxu0 0.0
    %3301 = vmatpush1.msra.mxu0 0.0
    %3302 = vmatprep.subr.mxu0 0.0
    %3303 = vmatpush1.msra.mxu0 0.0
    %3304 = vmatprep.mubr.f32.mxu0 0.0
    %3305 = vmatmul.mubr.f32.gmra.mrb[0].mxu0 %v3226
    %v3306 = vpop.f32.mrb[0].mxu0
    %v3307 = vadd.f32 0.0, %v3306
    %v3308 = vpop.f32.mrb[0].mxu0
    %3309 = vmatprep.mubr.f32.mxu0 0.0
    %3310 = vmatmul.mubr.f32.gmra.mrb[0].mxu0 %v3229
    %v3311 = vpop.f32.mrb[0].mxu0
    %v3312 = vadd.f32 0.0, %v3311
    %v3313 = vpop.f32.mrb[0].mxu0
    %3314 = vmatprep.mubr.f32.mxu0 0.0
    %3315 = vmatmul.mubr.f32.gmra.mrb[0].mxu0 %v3232
    %v3316 = vpop.f32.mrb[0].mxu0
    %v3317 = vadd.f32 0.0, %v3316
    %v3318 = vpop.f32.mrb[0].mxu0
    %3319 = vmatprep.mubr.f32.mxu0 0.0
    %3320 = vmatmul.mubr.f32.gmra.mrb[0].mxu0 %v3235
    %v3321 = vpop.f32.mrb[0].mxu0
    %v3322 = vadd.f32 0.0, %v3321
    %v3323 = vpop.f32.mrb[0].mxu0
    %3324 = vmatprep.mubr.f32.mxu0 0.0
    %3325 = vmatmul.mubr.f32.gmra.mrb[0].mxu0 %v3238
    %v3326 = vpop.f32.mrb[0].mxu0
    %v3327 = vadd.f32 0.0, %v3326
    %v3328 = vpop.f32.mrb[0].mxu0
    %3329 = vdwg.mxu0
    %v3330 = vrot.slane %v447, 3
    %v3331 = vrot.slane %v451, 3
    %v3332 = vsel %vm106, %v3330, %v3331
    %v3336 = vrot.slane %v502, 6
    %v3337 = vrot.slane %v506, 6
    %v3338 = vsel %vm100, %v3336, %v3337
    %v3343 = vrot.slane %v550, 1
    %v3344 = vrot.slane %v554, 1
    %v3345 = vsel %vm110, %v3343, %v3344
    %v3349 = vsel %vm106, %v403, %v3330
    %v3350 = vsel %vm100, %v3331, %v3336
    %v3351 = vsel %vm110, %v3338, %v3343
    %v3352 = vrot.slane %v1229, 3
    %v3353 = vrot.slane %v1233, 3
    %v3354 = vsel %vm106, %v3352, %v3353
    %v3357 = vrot.slane %v1284, 6
    %v3358 = vrot.slane %v1288, 6
    %v3359 = vsel %vm100, %v3357, %v3358
    %v3364 = vrot.slane %v1332, 1
    %v3365 = vrot.slane %v1336, 1
    %v3366 = vsel %vm110, %v3364, %v3365
    %v3368 = vsel %vm106, %v1185, %v3352
    %v3369 = vsel %vm100, %v3353, %v3357
    %v3370 = vsel %vm110, %v3359, %v3364
    %3374 = vrot.lane.b32.xlu0 %v1181, 18
    %v3375 = vpop.permute.xlu0 %3374
    %3376 = vrot.lane.b32.xlu0 %v3368, 18
    %v3377 = vpop.permute.xlu0 %3376
    %3378 = vrot.lane.b32.xlu0 %v3354, 18
    %v3379 = vpop.permute.xlu0 %3378
    %3380 = vrot.lane.b32.xlu0 %v3369, 18
    %v3381 = vpop.permute.xlu0 %3380
    %3382 = vrot.lane.b32.xlu0 %v3370, 18
    %v3383 = vpop.permute.xlu0 %3382
    %3384 = vrot.lane.b32.xlu0 %v3366, 18
    %v3385 = vpop.permute.xlu0 %3384
    %3386 = vrot.lane.b32.xlu0 %v3365, 18
    %v3387 = vpop.permute.xlu0 %3386
    %v3395 = vsel %vm1699, %v399, %v3375
    %v3396 = vsel %vm1699, %v3349, %v3377
    %v3397 = vsel %vm1699, %v3332, %v3379
    %v3398 = vsel %vm1699, %v3350, %v3381
    %v3399 = vsel %vm1699, %v3351, %v3383
    %v3400 = vsel %vm1699, %v3345, %v3385
    %v3401 = vsel %vm1699, %v3344, %v3387
    %v3403 = vsel %vm104, %v3401, 0
    %3405 = vmatprep.subr.mxu0 0.0
    %3406 = vmatpush1.msra.mxu0 %v3395
    %3407 = vmatprep.subr.mxu0 0.0
    %3408 = vmatpush1.msra.mxu0 %v3396
    %3409 = vmatprep.subr.mxu0 0.0
    %3410 = vmatpush1.msra.mxu0 %v3397
    %3411 = vmatprep.subr.mxu0 0.0
    %3412 = vmatpush1.msra.mxu0 %v3398
    %3413 = vmatprep.subr.mxu0 0.0
    %3414 = vmatpush1.msra.mxu0 %v3399
    %3415 = vmatprep.subr.mxu0 0.0
    %3416 = vmatpush1.msra.mxu0 %v3400
    %3417 = vmatprep.subr.mxu0 0.0
    %3418 = vmatpush1.msra.mxu0 %v3403
    %3419 = vmatprep.subr.mxu0 0.0
    %3420 = vmatpush1.msra.mxu0 0.0
    %3421 = vmatprep.subr.mxu0 0.0
    %3422 = vmatpush1.msra.mxu0 0.0
    %3423 = vmatprep.subr.mxu0 0.0
    %3424 = vmatpush1.msra.mxu0 0.0
    %3425 = vmatprep.subr.mxu0 0.0
    %3426 = vmatpush1.msra.mxu0 0.0
    %3427 = vmatprep.subr.mxu0 0.0
    %3428 = vmatpush1.msra.mxu0 0.0
    %3429 = vmatprep.subr.mxu0 0.0
    %3430 = vmatpush1.msra.mxu0 0.0
    %3431 = vmatprep.subr.mxu0 0.0
    %3432 = vmatpush1.msra.mxu0 0.0
    %3433 = vmatprep.subr.mxu0 0.0
    %3434 = vmatpush1.msra.mxu0 0.0
    %3435 = vmatprep.subr.mxu0 0.0
    %3436 = vmatpush1.msra.mxu0 0.0
    %3437 = vmatprep.subr.mxu0 0.0
    %3438 = vmatpush1.msra.mxu0 0.0
    %3439 = vmatprep.subr.mxu0 0.0
    %3440 = vmatpush1.msra.mxu0 0.0
    %3441 = vmatprep.subr.mxu0 0.0
    %3442 = vmatpush1.msra.mxu0 0.0
    %3443 = vmatprep.subr.mxu0 0.0
    %3444 = vmatpush1.msra.mxu0 0.0
    %3445 = vmatprep.subr.mxu0 0.0
    %3446 = vmatpush1.msra.mxu0 0.0
    %3447 = vmatprep.subr.mxu0 0.0
    %3448 = vmatpush1.msra.mxu0 0.0
    %3449 = vmatprep.subr.mxu0 0.0
    %3450 = vmatpush1.msra.mxu0 0.0
    %3451 = vmatprep.subr.mxu0 0.0
    %3452 = vmatpush1.msra.mxu0 0.0
    %3453 = vmatprep.subr.mxu0 0.0
    %3454 = vmatpush1.msra.mxu0 0.0
    %3455 = vmatprep.subr.mxu0 0.0
    %3456 = vmatpush1.msra.mxu0 0.0
    %3457 = vmatprep.subr.mxu0 0.0
    %3458 = vmatpush1.msra.mxu0 0.0
    %3459 = vmatprep.subr.mxu0 0.0
    %3460 = vmatpush1.msra.mxu0 0.0
    %3461 = vmatprep.subr.mxu0 0.0
    %3462 = vmatpush1.msra.mxu0 0.0
    %3463 = vmatprep.subr.mxu0 0.0
    %3464 = vmatpush1.msra.mxu0 0.0
    %3465 = vmatprep.subr.mxu0 0.0
    %3466 = vmatpush1.msra.mxu0 0.0
    %3467 = vmatprep.subr.mxu0 0.0
    %3468 = vmatpush1.msra.mxu0 0.0
    %3469 = vmatprep.mubr.f32.mxu0 0.0
    %3470 = vmatmul.mubr.f32.gmra.mrb[0].mxu0 %v1734
    %v3471 = vpop.f32.mrb[0].mxu0
    %v3472 = vadd.f32 %v1710, %v3471
    %v3473 = vpop.f32.mrb[0].mxu0
    %3474 = vmatprep.mubr.f32.mxu0 0.0
    %3475 = vmatmul.mubr.f32.gmra.mrb[0].mxu0 %v1737
    %v3476 = vpop.f32.mrb[0].mxu0
    %v3477 = vadd.f32 %v1715, %v3476
    %v3478 = vpop.f32.mrb[0].mxu0
    %3479 = vmatprep.mubr.f32.mxu0 0.0
    %3480 = vmatmul.mubr.f32.gmra.mrb[0].mxu0 %v1740
    %v3481 = vpop.f32.mrb[0].mxu0
    %v3482 = vadd.f32 %v1720, %v3481
    %v3483 = vpop.f32.mrb[0].mxu0
    %3484 = vmatprep.mubr.f32.mxu0 0.0
    %3485 = vmatmul.mubr.f32.gmra.mrb[0].mxu0 %v1743
    %v3486 = vpop.f32.mrb[0].mxu0
    %v3487 = vadd.f32 %v1725, %v3486
    %v3488 = vpop.f32.mrb[0].mxu0
    %3489 = vmatprep.mubr.f32.mxu0 0.0
    %3490 = vmatmul.mubr.f32.gmra.mrb[0].mxu0 %v1746
    %v3491 = vpop.f32.mrb[0].mxu0
    %v3492 = vadd.f32 %v1730, %v3491
    %v3493 = vpop.f32.mrb[0].mxu0
    %3494 = vdwg.mxu0
    %v3495 = vmul.f32 %v3472, %v3472
    %v3496 = vmul.f32 %v3477, %v3477
    %v3497 = vmul.f32 %v3482, %v3482
    %v3498 = vmul.f32 %v3487, %v3487
    %v3499 = vmul.f32 %v3492, %v3492
    %v3501 = vsel %vm1846, %v3495, 0
    %v3504 = vsel %vm1846, %v3496, 0
    %v3507 = vsel %vm1846, %v3497, 0
    %v3510 = vsel %vm1846, %v3498, 0
    %v3513 = vsel %vm1846, %v3499, 0
    %3515 = vmatprep.subr.mxu0 0.0
    %3516 = vmatpush1.msra.mxu0 %v49
    %3517 = vmatprep.subr.mxu0 0.0
    %3518 = vmatpush1.msra.mxu0 %v50
    %3519 = vmatprep.subr.mxu0 0.0
    %3520 = vmatpush1.msra.mxu0 %v51
    %3521 = vmatprep.subr.mxu0 0.0
    %3522 = vmatpush1.msra.mxu0 %v52
    %3523 = vmatprep.subr.mxu0 0.0
    %3524 = vmatpush1.msra.mxu0 %v1863
    %3525 = vmatprep.subr.mxu0 0.0
    %3526 = vmatpush1.msra.mxu0 0.0
    %3527 = vmatprep.subr.mxu0 0.0
    %3528 = vmatpush1.msra.mxu0 0.0
    %3529 = vmatprep.subr.mxu0 0.0
    %3530 = vmatpush1.msra.mxu0 0.0
    %3531 = vmatprep.subr.mxu0 0.0
    %3532 = vmatpush1.msra.mxu0 0.0
    %3533 = vmatprep.subr.mxu0 0.0
    %3534 = vmatpush1.msra.mxu0 0.0
    %3535 = vmatprep.subr.mxu0 0.0
    %3536 = vmatpush1.msra.mxu0 0.0
    %3537 = vmatprep.subr.mxu0 0.0
    %3538 = vmatpush1.msra.mxu0 0.0
    %3539 = vmatprep.subr.mxu0 0.0
    %3540 = vmatpush1.msra.mxu0 0.0
    %3541 = vmatprep.subr.mxu0 0.0
    %3542 = vmatpush1.msra.mxu0 0.0
    %3543 = vmatprep.subr.mxu0 0.0
    %3544 = vmatpush1.msra.mxu0 0.0
    %3545 = vmatprep.subr.mxu0 0.0
    %3546 = vmatpush1.msra.mxu0 0.0
    %3547 = vmatprep.subr.mxu0 0.0
    %3548 = vmatpush1.msra.mxu0 0.0
    %3549 = vmatprep.subr.mxu0 0.0
    %3550 = vmatpush1.msra.mxu0 0.0
    %3551 = vmatprep.subr.mxu0 0.0
    %3552 = vmatpush1.msra.mxu0 0.0
    %3553 = vmatprep.subr.mxu0 0.0
    %3554 = vmatpush1.msra.mxu0 0.0
    %3555 = vmatprep.subr.mxu0 0.0
    %3556 = vmatpush1.msra.mxu0 0.0
    %3557 = vmatprep.subr.mxu0 0.0
    %3558 = vmatpush1.msra.mxu0 0.0
    %3559 = vmatprep.subr.mxu0 0.0
    %3560 = vmatpush1.msra.mxu0 0.0
    %3561 = vmatprep.subr.mxu0 0.0
    %3562 = vmatpush1.msra.mxu0 0.0
    %3563 = vmatprep.subr.mxu0 0.0
    %3564 = vmatpush1.msra.mxu0 0.0
    %3565 = vmatprep.subr.mxu0 0.0
    %3566 = vmatpush1.msra.mxu0 0.0
    %3567 = vmatprep.subr.mxu0 0.0
    %3568 = vmatpush1.msra.mxu0 0.0
    %3569 = vmatprep.subr.mxu0 0.0
    %3570 = vmatpush1.msra.mxu0 0.0
    %3571 = vmatprep.subr.mxu0 0.0
    %3572 = vmatpush1.msra.mxu0 0.0
    %3573 = vmatprep.subr.mxu0 0.0
    %3574 = vmatpush1.msra.mxu0 0.0
    %3575 = vmatprep.subr.mxu0 0.0
    %3576 = vmatpush1.msra.mxu0 0.0
    %3577 = vmatprep.subr.mxu0 0.0
    %3578 = vmatpush1.msra.mxu0 0.0
    %3579 = vmatprep.mubr.f32.mxu0 0.0
    %3580 = vmatmul.mubr.f32.gmra.mrb[0].mxu0 %v3501
    %v3581 = vpop.f32.mrb[0].mxu0
    %v3582 = vadd.f32 0.0, %v3581
    %v3583 = vpop.f32.mrb[0].mxu0
    %3584 = vmatprep.mubr.f32.mxu0 0.0
    %3585 = vmatmul.mubr.f32.gmra.mrb[0].mxu0 %v3504
    %v3586 = vpop.f32.mrb[0].mxu0
    %v3587 = vadd.f32 0.0, %v3586
    %v3588 = vpop.f32.mrb[0].mxu0
    %3589 = vmatprep.mubr.f32.mxu0 0.0
    %3590 = vmatmul.mubr.f32.gmra.mrb[0].mxu0 %v3507
    %v3591 = vpop.f32.mrb[0].mxu0
    %v3592 = vadd.f32 0.0, %v3591
    %v3593 = vpop.f32.mrb[0].mxu0
    %3594 = vmatprep.mubr.f32.mxu0 0.0
    %3595 = vmatmul.mubr.f32.gmra.mrb[0].mxu0 %v3510
    %v3596 = vpop.f32.mrb[0].mxu0
    %v3597 = vadd.f32 0.0, %v3596
    %v3598 = vpop.f32.mrb[0].mxu0
    %3599 = vmatprep.mubr.f32.mxu0 0.0
    %3600 = vmatmul.mubr.f32.gmra.mrb[0].mxu0 %v3513
    %v3601 = vpop.f32.mrb[0].mxu0
    %v3602 = vadd.f32 0.0, %v3601
    %v3603 = vpop.f32.mrb[0].mxu0
    %3604 = vdwg.mxu0
    %v3605 = vrot.slane %v502, 3
    %v3606 = vrot.slane %v506, 3
    %v3607 = vsel %vm106, %v3605, %v3606
    %v3611 = vrot.slane %v550, 6
    %v3612 = vrot.slane %v554, 6
    %v3613 = vsel %vm100, %v3611, %v3612
    %v3618 = vrot.slane %v598, 1
    %v3619 = vrot.slane %v602, 1
    %v3620 = vsel %vm110, %v3618, %v3619
    %v3624 = vsel %vm106, %v451, %v3605
    %v3625 = vsel %vm100, %v3606, %v3611
    %v3626 = vsel %vm110, %v3613, %v3618
    %v3627 = vrot.slane %v1284, 3
    %v3628 = vrot.slane %v1288, 3
    %v3629 = vsel %vm106, %v3627, %v3628
    %v3632 = vrot.slane %v1332, 6
    %v3633 = vrot.slane %v1336, 6
    %v3634 = vsel %vm100, %v3632, %v3633
    %v3639 = vrot.slane %v1380, 1
    %v3640 = vrot.slane %v1384, 1
    %v3641 = vsel %vm110, %v3639, %v3640
    %v3643 = vsel %vm106, %v1233, %v3627
    %v3644 = vsel %vm100, %v3628, %v3632
    %v3645 = vsel %vm110, %v3634, %v3639
    %3649 = vrot.lane.b32.xlu0 %v1229, 18
    %v3650 = vpop.permute.xlu0 %3649
    %3651 = vrot.lane.b32.xlu0 %v3643, 18
    %v3652 = vpop.permute.xlu0 %3651
    %3653 = vrot.lane.b32.xlu0 %v3629, 18
    %v3654 = vpop.permute.xlu0 %3653
    %3655 = vrot.lane.b32.xlu0 %v3644, 18
    %v3656 = vpop.permute.xlu0 %3655
    %3657 = vrot.lane.b32.xlu0 %v3645, 18
    %v3658 = vpop.permute.xlu0 %3657
    %3659 = vrot.lane.b32.xlu0 %v3641, 18
    %v3660 = vpop.permute.xlu0 %3659
    %3661 = vrot.lane.b32.xlu0 %v3640, 18
    %v3662 = vpop.permute.xlu0 %3661
    %v3670 = vsel %vm1699, %v447, %v3650
    %v3671 = vsel %vm1699, %v3624, %v3652
    %v3672 = vsel %vm1699, %v3607, %v3654
    %v3673 = vsel %vm1699, %v3625, %v3656
    %v3674 = vsel %vm1699, %v3626, %v3658
    %v3675 = vsel %vm1699, %v3620, %v3660
    %v3676 = vsel %vm1699, %v3619, %v3662
    %v3678 = vsel %vm104, %v3676, 0
    %3680 = vmatprep.subr.mxu0 0.0
    %3681 = vmatpush1.msra.mxu0 %v3670
    %3682 = vmatprep.subr.mxu0 0.0
    %3683 = vmatpush1.msra.mxu0 %v3671
    %3684 = vmatprep.subr.mxu0 0.0
    %3685 = vmatpush1.msra.mxu0 %v3672
    %3686 = vmatprep.subr.mxu0 0.0
    %3687 = vmatpush1.msra.mxu0 %v3673
    %3688 = vmatprep.subr.mxu0 0.0
    %3689 = vmatpush1.msra.mxu0 %v3674
    %3690 = vmatprep.subr.mxu0 0.0
    %3691 = vmatpush1.msra.mxu0 %v3675
    %3692 = vmatprep.subr.mxu0 0.0
    %3693 = vmatpush1.msra.mxu0 %v3678
    %3694 = vmatprep.subr.mxu0 0.0
    %3695 = vmatpush1.msra.mxu0 0.0
    %3696 = vmatprep.subr.mxu0 0.0
    %3697 = vmatpush1.msra.mxu0 0.0
    %3698 = vmatprep.subr.mxu0 0.0
    %3699 = vmatpush1.msra.mxu0 0.0
    %3700 = vmatprep.subr.mxu0 0.0
    %3701 = vmatpush1.msra.mxu0 0.0
    %3702 = vmatprep.subr.mxu0 0.0
    %3703 = vmatpush1.msra.mxu0 0.0
    %3704 = vmatprep.subr.mxu0 0.0
    %3705 = vmatpush1.msra.mxu0 0.0
    %3706 = vmatprep.subr.mxu0 0.0
    %3707 = vmatpush1.msra.mxu0 0.0
    %3708 = vmatprep.subr.mxu0 0.0
    %3709 = vmatpush1.msra.mxu0 0.0
    %3710 = vmatprep.subr.mxu0 0.0
    %3711 = vmatpush1.msra.mxu0 0.0
    %3712 = vmatprep.subr.mxu0 0.0
    %3713 = vmatpush1.msra.mxu0 0.0
    %3714 = vmatprep.subr.mxu0 0.0
    %3715 = vmatpush1.msra.mxu0 0.0
    %3716 = vmatprep.subr.mxu0 0.0
    %3717 = vmatpush1.msra.mxu0 0.0
    %3718 = vmatprep.subr.mxu0 0.0
    %3719 = vmatpush1.msra.mxu0 0.0
    %3720 = vmatprep.subr.mxu0 0.0
    %3721 = vmatpush1.msra.mxu0 0.0
    %3722 = vmatprep.subr.mxu0 0.0
    %3723 = vmatpush1.msra.mxu0 0.0
    %3724 = vmatprep.subr.mxu0 0.0
    %3725 = vmatpush1.msra.mxu0 0.0
    %3726 = vmatprep.subr.mxu0 0.0
    %3727 = vmatpush1.msra.mxu0 0.0
    %3728 = vmatprep.subr.mxu0 0.0
    %3729 = vmatpush1.msra.mxu0 0.0
    %3730 = vmatprep.subr.mxu0 0.0
    %3731 = vmatpush1.msra.mxu0 0.0
    %3732 = vmatprep.subr.mxu0 0.0
    %3733 = vmatpush1.msra.mxu0 0.0
    %3734 = vmatprep.subr.mxu0 0.0
    %3735 = vmatpush1.msra.mxu0 0.0
    %3736 = vmatprep.subr.mxu0 0.0
    %3737 = vmatpush1.msra.mxu0 0.0
    %3738 = vmatprep.subr.mxu0 0.0
    %3739 = vmatpush1.msra.mxu0 0.0
    %3740 = vmatprep.subr.mxu0 0.0
    %3741 = vmatpush1.msra.mxu0 0.0
    %3742 = vmatprep.subr.mxu0 0.0
    %3743 = vmatpush1.msra.mxu0 0.0
    %3744 = vmatprep.mubr.f32.mxu0 0.0
    %3745 = vmatmul.mubr.f32.gmra.mrb[0].mxu0 %v1734
    %v3746 = vpop.f32.mrb[0].mxu0
    %v3747 = vadd.f32 %v1710, %v3746
    %v3748 = vpop.f32.mrb[0].mxu0
    %3749 = vmatprep.mubr.f32.mxu0 0.0
    %3750 = vmatmul.mubr.f32.gmra.mrb[0].mxu0 %v1737
    %v3751 = vpop.f32.mrb[0].mxu0
    %v3752 = vadd.f32 %v1715, %v3751
    %v3753 = vpop.f32.mrb[0].mxu0
    %3754 = vmatprep.mubr.f32.mxu0 0.0
    %3755 = vmatmul.mubr.f32.gmra.mrb[0].mxu0 %v1740
    %v3756 = vpop.f32.mrb[0].mxu0
    %v3757 = vadd.f32 %v1720, %v3756
    %v3758 = vpop.f32.mrb[0].mxu0
    %3759 = vmatprep.mubr.f32.mxu0 0.0
    %3760 = vmatmul.mubr.f32.gmra.mrb[0].mxu0 %v1743
    %v3761 = vpop.f32.mrb[0].mxu0
    %v3762 = vadd.f32 %v1725, %v3761
    %v3763 = vpop.f32.mrb[0].mxu0
    %3764 = vmatprep.mubr.f32.mxu0 0.0
    %3765 = vmatmul.mubr.f32.gmra.mrb[0].mxu0 %v1746
    %v3766 = vpop.f32.mrb[0].mxu0
    %v3767 = vadd.f32 %v1730, %v3766
    %v3768 = vpop.f32.mrb[0].mxu0
    %3769 = vdwg.mxu0
    %v3770 = vmul.f32 %v3747, %v3747
    %v3771 = vmul.f32 %v3752, %v3752
    %v3772 = vmul.f32 %v3757, %v3757
    %v3773 = vmul.f32 %v3762, %v3762
    %v3774 = vmul.f32 %v3767, %v3767
    %v3776 = vsel %vm1846, %v3770, 0
    %v3779 = vsel %vm1846, %v3771, 0
    %v3782 = vsel %vm1846, %v3772, 0
    %v3785 = vsel %vm1846, %v3773, 0
    %v3788 = vsel %vm1846, %v3774, 0
    %3790 = vmatprep.subr.mxu0 0.0
    %3791 = vmatpush1.msra.mxu0 %v49
    %3792 = vmatprep.subr.mxu0 0.0
    %3793 = vmatpush1.msra.mxu0 %v50
    %3794 = vmatprep.subr.mxu0 0.0
    %3795 = vmatpush1.msra.mxu0 %v51
    %3796 = vmatprep.subr.mxu0 0.0
    %3797 = vmatpush1.msra.mxu0 %v52
    %3798 = vmatprep.subr.mxu0 0.0
    %3799 = vmatpush1.msra.mxu0 %v1863
    %3800 = vmatprep.subr.mxu0 0.0
    %3801 = vmatpush1.msra.mxu0 0.0
    %3802 = vmatprep.subr.mxu0 0.0
    %3803 = vmatpush1.msra.mxu0 0.0
    %3804 = vmatprep.subr.mxu0 0.0
    %3805 = vmatpush1.msra.mxu0 0.0
    %3806 = vmatprep.subr.mxu0 0.0
    %3807 = vmatpush1.msra.mxu0 0.0
    %3808 = vmatprep.subr.mxu0 0.0
    %3809 = vmatpush1.msra.mxu0 0.0
    %3810 = vmatprep.subr.mxu0 0.0
    %3811 = vmatpush1.msra.mxu0 0.0
    %3812 = vmatprep.subr.mxu0 0.0
    %3813 = vmatpush1.msra.mxu0 0.0
    %3814 = vmatprep.subr.mxu0 0.0
    %3815 = vmatpush1.msra.mxu0 0.0
    %3816 = vmatprep.subr.mxu0 0.0
    %3817 = vmatpush1.msra.mxu0 0.0
    %3818 = vmatprep.subr.mxu0 0.0
    %3819 = vmatpush1.msra.mxu0 0.0
    %3820 = vmatprep.subr.mxu0 0.0
    %3821 = vmatpush1.msra.mxu0 0.0
    %3822 = vmatprep.subr.mxu0 0.0
    %3823 = vmatpush1.msra.mxu0 0.0
    %3824 = vmatprep.subr.mxu0 0.0
    %3825 = vmatpush1.msra.mxu0 0.0
    %3826 = vmatprep.subr.mxu0 0.0
    %3827 = vmatpush1.msra.mxu0 0.0
    %3828 = vmatprep.subr.mxu0 0.0
    %3829 = vmatpush1.msra.mxu0 0.0
    %3830 = vmatprep.subr.mxu0 0.0
    %3831 = vmatpush1.msra.mxu0 0.0
    %3832 = vmatprep.subr.mxu0 0.0
    %3833 = vmatpush1.msra.mxu0 0.0
    %3834 = vmatprep.subr.mxu0 0.0
    %3835 = vmatpush1.msra.mxu0 0.0
    %3836 = vmatprep.subr.mxu0 0.0
    %3837 = vmatpush1.msra.mxu0 0.0
    %3838 = vmatprep.subr.mxu0 0.0
    %3839 = vmatpush1.msra.mxu0 0.0
    %3840 = vmatprep.subr.mxu0 0.0
    %3841 = vmatpush1.msra.mxu0 0.0
    %3842 = vmatprep.subr.mxu0 0.0
    %3843 = vmatpush1.msra.mxu0 0.0
    %3844 = vmatprep.subr.mxu0 0.0
    %3845 = vmatpush1.msra.mxu0 0.0
    %3846 = vmatprep.subr.mxu0 0.0
    %3847 = vmatpush1.msra.mxu0 0.0
    %3848 = vmatprep.subr.mxu0 0.0
    %3849 = vmatpush1.msra.mxu0 0.0
    %3850 = vmatprep.subr.mxu0 0.0
    %3851 = vmatpush1.msra.mxu0 0.0
    %3852 = vmatprep.subr.mxu0 0.0
    %3853 = vmatpush1.msra.mxu0 0.0
    %3854 = vmatprep.mubr.f32.mxu0 0.0
    %3855 = vmatmul.mubr.f32.gmra.mrb[0].mxu0 %v3776
    %v3856 = vpop.f32.mrb[0].mxu0
    %v3857 = vadd.f32 0.0, %v3856
    %v3858 = vpop.f32.mrb[0].mxu0
    %3859 = vmatprep.mubr.f32.mxu0 0.0
    %3860 = vmatmul.mubr.f32.gmra.mrb[0].mxu0 %v3779
    %v3861 = vpop.f32.mrb[0].mxu0
    %v3862 = vadd.f32 0.0, %v3861
    %v3863 = vpop.f32.mrb[0].mxu0
    %3864 = vmatprep.mubr.f32.mxu0 0.0
    %3865 = vmatmul.mubr.f32.gmra.mrb[0].mxu0 %v3782
    %v3866 = vpop.f32.mrb[0].mxu0
    %v3867 = vadd.f32 0.0, %v3866
    %v3868 = vpop.f32.mrb[0].mxu0
    %3869 = vmatprep.mubr.f32.mxu0 0.0
    %3870 = vmatmul.mubr.f32.gmra.mrb[0].mxu0 %v3785
    %v3871 = vpop.f32.mrb[0].mxu0
    %v3872 = vadd.f32 0.0, %v3871
    %v3873 = vpop.f32.mrb[0].mxu0
    %3874 = vmatprep.mubr.f32.mxu0 0.0
    %3875 = vmatmul.mubr.f32.gmra.mrb[0].mxu0 %v3788
    %v3876 = vpop.f32.mrb[0].mxu0
    %v3877 = vadd.f32 0.0, %v3876
    %v3878 = vpop.f32.mrb[0].mxu0
    %3879 = vdwg.mxu0
    %v3880 = vrot.slane %v550, 3
    %v3881 = vrot.slane %v554, 3
    %v3882 = vsel %vm106, %v3880, %v3881
    %v3886 = vrot.slane %v598, 6
    %v3887 = vrot.slane %v602, 6
    %v3888 = vsel %vm100, %v3886, %v3887
    %v3893 = vrot.slane %v646, 1
    %v3894 = vrot.slane %v650, 1
    %v3895 = vsel %vm110, %v3893, %v3894
    %v3899 = vsel %vm106, %v506, %v3880
    %v3900 = vsel %vm100, %v3881, %v3886
    %v3901 = vsel %vm110, %v3888, %v3893
    %v3902 = vrot.slane %v1332, 3
    %v3903 = vrot.slane %v1336, 3
    %v3904 = vsel %vm106, %v3902, %v3903
    %v3907 = vrot.slane %v1380, 6
    %v3908 = vrot.slane %v1384, 6
    %v3909 = vsel %vm100, %v3907, %v3908
    %v3914 = vrot.slane %v1428, 1
    %v3915 = vrot.slane %v1432, 1
    %v3916 = vsel %vm110, %v3914, %v3915
    %v3918 = vsel %vm106, %v1288, %v3902
    %v3919 = vsel %vm100, %v3903, %v3907
    %v3920 = vsel %vm110, %v3909, %v3914
    %3924 = vrot.lane.b32.xlu0 %v1284, 18
    %v3925 = vpop.permute.xlu0 %3924
    %3926 = vrot.lane.b32.xlu0 %v3918, 18
    %v3927 = vpop.permute.xlu0 %3926
    %3928 = vrot.lane.b32.xlu0 %v3904, 18
    %v3929 = vpop.permute.xlu0 %3928
    %3930 = vrot.lane.b32.xlu0 %v3919, 18
    %v3931 = vpop.permute.xlu0 %3930
    %3932 = vrot.lane.b32.xlu0 %v3920, 18
    %v3933 = vpop.permute.xlu0 %3932
    %3934 = vrot.lane.b32.xlu0 %v3916, 18
    %v3935 = vpop.permute.xlu0 %3934
    %3936 = vrot.lane.b32.xlu0 %v3915, 18
    %v3937 = vpop.permute.xlu0 %3936
    %v3945 = vsel %vm1699, %v502, %v3925
    %v3946 = vsel %vm1699, %v3899, %v3927
    %v3947 = vsel %vm1699, %v3882, %v3929
    %v3948 = vsel %vm1699, %v3900, %v3931
    %v3949 = vsel %vm1699, %v3901, %v3933
    %v3950 = vsel %vm1699, %v3895, %v3935
    %v3951 = vsel %vm1699, %v3894, %v3937
    %v3953 = vsel %vm104, %v3951, 0
    %3955 = vmatprep.subr.mxu0 0.0
    %3956 = vmatpush1.msra.mxu0 %v3945
    %3957 = vmatprep.subr.mxu0 0.0
    %3958 = vmatpush1.msra.mxu0 %v3946
    %3959 = vmatprep.subr.mxu0 0.0
    %3960 = vmatpush1.msra.mxu0 %v3947
    %3961 = vmatprep.subr.mxu0 0.0
    %3962 = vmatpush1.msra.mxu0 %v3948
    %3963 = vmatprep.subr.mxu0 0.0
    %3964 = vmatpush1.msra.mxu0 %v3949
    %3965 = vmatprep.subr.mxu0 0.0
    %3966 = vmatpush1.msra.mxu0 %v3950
    %3967 = vmatprep.subr.mxu0 0.0
    %3968 = vmatpush1.msra.mxu0 %v3953
    %3969 = vmatprep.subr.mxu0 0.0
    %3970 = vmatpush1.msra.mxu0 0.0
    %3971 = vmatprep.subr.mxu0 0.0
    %3972 = vmatpush1.msra.mxu0 0.0
    %3973 = vmatprep.subr.mxu0 0.0
    %3974 = vmatpush1.msra.mxu0 0.0
    %3975 = vmatprep.subr.mxu0 0.0
    %3976 = vmatpush1.msra.mxu0 0.0
    %3977 = vmatprep.subr.mxu0 0.0
    %3978 = vmatpush1.msra.mxu0 0.0
    %3979 = vmatprep.subr.mxu0 0.0
    %3980 = vmatpush1.msra.mxu0 0.0
    %3981 = vmatprep.subr.mxu0 0.0
    %3982 = vmatpush1.msra.mxu0 0.0
    %3983 = vmatprep.subr.mxu0 0.0
    %3984 = vmatpush1.msra.mxu0 0.0
    %3985 = vmatprep.subr.mxu0 0.0
    %3986 = vmatpush1.msra.mxu0 0.0
    %3987 = vmatprep.subr.mxu0 0.0
    %3988 = vmatpush1.msra.mxu0 0.0
    %3989 = vmatprep.subr.mxu0 0.0
    %3990 = vmatpush1.msra.mxu0 0.0
    %3991 = vmatprep.subr.mxu0 0.0
    %3992 = vmatpush1.msra.mxu0 0.0
    %3993 = vmatprep.subr.mxu0 0.0
    %3994 = vmatpush1.msra.mxu0 0.0
    %3995 = vmatprep.subr.mxu0 0.0
    %3996 = vmatpush1.msra.mxu0 0.0
    %3997 = vmatprep.subr.mxu0 0.0
    %3998 = vmatpush1.msra.mxu0 0.0
    %3999 = vmatprep.subr.mxu0 0.0
    %4000 = vmatpush1.msra.mxu0 0.0
    %4001 = vmatprep.subr.mxu0 0.0
    %4002 = vmatpush1.msra.mxu0 0.0
    %4003 = vmatprep.subr.mxu0 0.0
    %4004 = vmatpush1.msra.mxu0 0.0
    %4005 = vmatprep.subr.mxu0 0.0
    %4006 = vmatpush1.msra.mxu0 0.0
    %4007 = vmatprep.subr.mxu0 0.0
    %4008 = vmatpush1.msra.mxu0 0.0
    %4009 = vmatprep.subr.mxu0 0.0
    %4010 = vmatpush1.msra.mxu0 0.0
    %4011 = vmatprep.subr.mxu0 0.0
    %4012 = vmatpush1.msra.mxu0 0.0
    %4013 = vmatprep.subr.mxu0 0.0
    %4014 = vmatpush1.msra.mxu0 0.0
    %4015 = vmatprep.subr.mxu0 0.0
    %4016 = vmatpush1.msra.mxu0 0.0
    %4017 = vmatprep.subr.mxu0 0.0
    %4018 = vmatpush1.msra.mxu0 0.0
    %4019 = vmatprep.mubr.f32.mxu0 0.0
    %4020 = vmatmul.mubr.f32.gmra.mrb[0].mxu0 %v1734
    %v4021 = vpop.f32.mrb[0].mxu0
    %v4022 = vadd.f32 %v1710, %v4021
    %v4023 = vpop.f32.mrb[0].mxu0
    %4024 = vmatprep.mubr.f32.mxu0 0.0
    %4025 = vmatmul.mubr.f32.gmra.mrb[0].mxu0 %v1737
    %v4026 = vpop.f32.mrb[0].mxu0
    %v4027 = vadd.f32 %v1715, %v4026
    %v4028 = vpop.f32.mrb[0].mxu0
    %4029 = vmatprep.mubr.f32.mxu0 0.0
    %4030 = vmatmul.mubr.f32.gmra.mrb[0].mxu0 %v1740
    %v4031 = vpop.f32.mrb[0].mxu0
    %v4032 = vadd.f32 %v1720, %v4031
    %v4033 = vpop.f32.mrb[0].mxu0
    %4034 = vmatprep.mubr.f32.mxu0 0.0
    %4035 = vmatmul.mubr.f32.gmra.mrb[0].mxu0 %v1743
    %v4036 = vpop.f32.mrb[0].mxu0
    %v4037 = vadd.f32 %v1725, %v4036
    %v4038 = vpop.f32.mrb[0].mxu0
    %4039 = vmatprep.mubr.f32.mxu0 0.0
    %4040 = vmatmul.mubr.f32.gmra.mrb[0].mxu0 %v1746
    %v4041 = vpop.f32.mrb[0].mxu0
    %v4042 = vadd.f32 %v1730, %v4041
    %v4043 = vpop.f32.mrb[0].mxu0
    %4044 = vdwg.mxu0
    %v4045 = vmul.f32 %v4022, %v4022
    %v4046 = vmul.f32 %v4027, %v4027
    %v4047 = vmul.f32 %v4032, %v4032
    %v4048 = vmul.f32 %v4037, %v4037
    %v4049 = vmul.f32 %v4042, %v4042
    %v4051 = vsel %vm1846, %v4045, 0
    %v4054 = vsel %vm1846, %v4046, 0
    %v4057 = vsel %vm1846, %v4047, 0
    %v4060 = vsel %vm1846, %v4048, 0
    %v4063 = vsel %vm1846, %v4049, 0
    %4065 = vmatprep.subr.mxu0 0.0
    %4066 = vmatpush1.msra.mxu0 %v49
    %4067 = vmatprep.subr.mxu0 0.0
    %4068 = vmatpush1.msra.mxu0 %v50
    %4069 = vmatprep.subr.mxu0 0.0
    %4070 = vmatpush1.msra.mxu0 %v51
    %4071 = vmatprep.subr.mxu0 0.0
    %4072 = vmatpush1.msra.mxu0 %v52
    %4073 = vmatprep.subr.mxu0 0.0
    %4074 = vmatpush1.msra.mxu0 %v1863
    %4075 = vmatprep.subr.mxu0 0.0
    %4076 = vmatpush1.msra.mxu0 0.0
    %4077 = vmatprep.subr.mxu0 0.0
    %4078 = vmatpush1.msra.mxu0 0.0
    %4079 = vmatprep.subr.mxu0 0.0
    %4080 = vmatpush1.msra.mxu0 0.0
    %4081 = vmatprep.subr.mxu0 0.0
    %4082 = vmatpush1.msra.mxu0 0.0
    %4083 = vmatprep.subr.mxu0 0.0
    %4084 = vmatpush1.msra.mxu0 0.0
    %4085 = vmatprep.subr.mxu0 0.0
    %4086 = vmatpush1.msra.mxu0 0.0
    %4087 = vmatprep.subr.mxu0 0.0
    %4088 = vmatpush1.msra.mxu0 0.0
    %4089 = vmatprep.subr.mxu0 0.0
    %4090 = vmatpush1.msra.mxu0 0.0
    %4091 = vmatprep.subr.mxu0 0.0
    %4092 = vmatpush1.msra.mxu0 0.0
    %4093 = vmatprep.subr.mxu0 0.0
    %4094 = vmatpush1.msra.mxu0 0.0
    %4095 = vmatprep.subr.mxu0 0.0
    %4096 = vmatpush1.msra.mxu0 0.0
    %4097 = vmatprep.subr.mxu0 0.0
    %4098 = vmatpush1.msra.mxu0 0.0
    %4099 = vmatprep.subr.mxu0 0.0
    %4100 = vmatpush1.msra.mxu0 0.0
    %4101 = vmatprep.subr.mxu0 0.0
    %4102 = vmatpush1.msra.mxu0 0.0
    %4103 = vmatprep.subr.mxu0 0.0
    %4104 = vmatpush1.msra.mxu0 0.0
    %4105 = vmatprep.subr.mxu0 0.0
    %4106 = vmatpush1.msra.mxu0 0.0
    %4107 = vmatprep.subr.mxu0 0.0
    %4108 = vmatpush1.msra.mxu0 0.0
    %4109 = vmatprep.subr.mxu0 0.0
    %4110 = vmatpush1.msra.mxu0 0.0
    %4111 = vmatprep.subr.mxu0 0.0
    %4112 = vmatpush1.msra.mxu0 0.0
    %4113 = vmatprep.subr.mxu0 0.0
    %4114 = vmatpush1.msra.mxu0 0.0
    %4115 = vmatprep.subr.mxu0 0.0
    %4116 = vmatpush1.msra.mxu0 0.0
    %4117 = vmatprep.subr.mxu0 0.0
    %4118 = vmatpush1.msra.mxu0 0.0
    %4119 = vmatprep.subr.mxu0 0.0
    %4120 = vmatpush1.msra.mxu0 0.0
    %4121 = vmatprep.subr.mxu0 0.0
    %4122 = vmatpush1.msra.mxu0 0.0
    %4123 = vmatprep.subr.mxu0 0.0
    %4124 = vmatpush1.msra.mxu0 0.0
    %4125 = vmatprep.subr.mxu0 0.0
    %4126 = vmatpush1.msra.mxu0 0.0
    %4127 = vmatprep.subr.mxu0 0.0
    %4128 = vmatpush1.msra.mxu0 0.0
    %4129 = vmatprep.mubr.f32.mxu0 0.0
    %4130 = vmatmul.mubr.f32.gmra.mrb[0].mxu0 %v4051
    %v4131 = vpop.f32.mrb[0].mxu0
    %v4132 = vadd.f32 0.0, %v4131
    %v4133 = vpop.f32.mrb[0].mxu0
    %4134 = vmatprep.mubr.f32.mxu0 0.0
    %4135 = vmatmul.mubr.f32.gmra.mrb[0].mxu0 %v4054
    %v4136 = vpop.f32.mrb[0].mxu0
    %v4137 = vadd.f32 0.0, %v4136
    %v4138 = vpop.f32.mrb[0].mxu0
    %4139 = vmatprep.mubr.f32.mxu0 0.0
    %4140 = vmatmul.mubr.f32.gmra.mrb[0].mxu0 %v4057
    %v4141 = vpop.f32.mrb[0].mxu0
    %v4142 = vadd.f32 0.0, %v4141
    %v4143 = vpop.f32.mrb[0].mxu0
    %4144 = vmatprep.mubr.f32.mxu0 0.0
    %4145 = vmatmul.mubr.f32.gmra.mrb[0].mxu0 %v4060
    %v4146 = vpop.f32.mrb[0].mxu0
    %v4147 = vadd.f32 0.0, %v4146
    %v4148 = vpop.f32.mrb[0].mxu0
    %4149 = vmatprep.mubr.f32.mxu0 0.0
    %4150 = vmatmul.mubr.f32.gmra.mrb[0].mxu0 %v4063
    %v4151 = vpop.f32.mrb[0].mxu0
    %v4152 = vadd.f32 0.0, %v4151
    %v4153 = vpop.f32.mrb[0].mxu0
    %4154 = vdwg.mxu0
    %v4155 = vrot.slane %v598, 3
    %v4156 = vrot.slane %v602, 3
    %v4157 = vsel %vm106, %v4155, %v4156
    %v4161 = vrot.slane %v646, 6
    %v4162 = vrot.slane %v650, 6
    %v4163 = vsel %vm100, %v4161, %v4162
    %v4168 = vrot.slane %v694, 1
    %v4169 = vrot.slane %v698, 1
    %v4170 = vsel %vm110, %v4168, %v4169
    %v4174 = vsel %vm106, %v554, %v4155
    %v4175 = vsel %vm100, %v4156, %v4161
    %v4176 = vsel %vm110, %v4163, %v4168
    %v4177 = vrot.slane %v1380, 3
    %v4178 = vrot.slane %v1384, 3
    %v4179 = vsel %vm106, %v4177, %v4178
    %v4182 = vrot.slane %v1428, 6
    %v4183 = vrot.slane %v1432, 6
    %v4184 = vsel %vm100, %v4182, %v4183
    %v4189 = vrot.slane %v1476, 1
    %v4190 = vrot.slane %v1480, 1
    %v4191 = vsel %vm110, %v4189, %v4190
    %v4193 = vsel %vm106, %v1336, %v4177
    %v4194 = vsel %vm100, %v4178, %v4182
    %v4195 = vsel %vm110, %v4184, %v4189
    %4199 = vrot.lane.b32.xlu0 %v1332, 18
    %v4200 = vpop.permute.xlu0 %4199
    %4201 = vrot.lane.b32.xlu0 %v4193, 18
    %v4202 = vpop.permute.xlu0 %4201
    %4203 = vrot.lane.b32.xlu0 %v4179, 18
    %v4204 = vpop.permute.xlu0 %4203
    %4205 = vrot.lane.b32.xlu0 %v4194, 18
    %v4206 = vpop.permute.xlu0 %4205
    %4207 = vrot.lane.b32.xlu0 %v4195, 18
    %v4208 = vpop.permute.xlu0 %4207
    %4209 = vrot.lane.b32.xlu0 %v4191, 18
    %v4210 = vpop.permute.xlu0 %4209
    %4211 = vrot.lane.b32.xlu0 %v4190, 18
    %v4212 = vpop.permute.xlu0 %4211
    %v4220 = vsel %vm1699, %v550, %v4200
    %v4221 = vsel %vm1699, %v4174, %v4202
    %v4222 = vsel %vm1699, %v4157, %v4204
    %v4223 = vsel %vm1699, %v4175, %v4206
    %v4224 = vsel %vm1699, %v4176, %v4208
    %v4225 = vsel %vm1699, %v4170, %v4210
    %v4226 = vsel %vm1699, %v4169, %v4212
    %v4228 = vsel %vm104, %v4226, 0
    %4230 = vmatprep.subr.mxu0 0.0
    %4231 = vmatpush1.msra.mxu0 %v4220
    %4232 = vmatprep.subr.mxu0 0.0
    %4233 = vmatpush1.msra.mxu0 %v4221
    %4234 = vmatprep.subr.mxu0 0.0
    %4235 = vmatpush1.msra.mxu0 %v4222
    %4236 = vmatprep.subr.mxu0 0.0
    %4237 = vmatpush1.msra.mxu0 %v4223
    %4238 = vmatprep.subr.mxu0 0.0
    %4239 = vmatpush1.msra.mxu0 %v4224
    %4240 = vmatprep.subr.mxu0 0.0
    %4241 = vmatpush1.msra.mxu0 %v4225
    %4242 = vmatprep.subr.mxu0 0.0
    %4243 = vmatpush1.msra.mxu0 %v4228
    %4244 = vmatprep.subr.mxu0 0.0
    %4245 = vmatpush1.msra.mxu0 0.0
    %4246 = vmatprep.subr.mxu0 0.0
    %4247 = vmatpush1.msra.mxu0 0.0
    %4248 = vmatprep.subr.mxu0 0.0
    %4249 = vmatpush1.msra.mxu0 0.0
    %4250 = vmatprep.subr.mxu0 0.0
    %4251 = vmatpush1.msra.mxu0 0.0
    %4252 = vmatprep.subr.mxu0 0.0
    %4253 = vmatpush1.msra.mxu0 0.0
    %4254 = vmatprep.subr.mxu0 0.0
    %4255 = vmatpush1.msra.mxu0 0.0
    %4256 = vmatprep.subr.mxu0 0.0
    %4257 = vmatpush1.msra.mxu0 0.0
    %4258 = vmatprep.subr.mxu0 0.0
    %4259 = vmatpush1.msra.mxu0 0.0
    %4260 = vmatprep.subr.mxu0 0.0
    %4261 = vmatpush1.msra.mxu0 0.0
    %4262 = vmatprep.subr.mxu0 0.0
    %4263 = vmatpush1.msra.mxu0 0.0
    %4264 = vmatprep.subr.mxu0 0.0
    %4265 = vmatpush1.msra.mxu0 0.0
    %4266 = vmatprep.subr.mxu0 0.0
    %4267 = vmatpush1.msra.mxu0 0.0
    %4268 = vmatprep.subr.mxu0 0.0
    %4269 = vmatpush1.msra.mxu0 0.0
    %4270 = vmatprep.subr.mxu0 0.0
    %4271 = vmatpush1.msra.mxu0 0.0
    %4272 = vmatprep.subr.mxu0 0.0
    %4273 = vmatpush1.msra.mxu0 0.0
    %4274 = vmatprep.subr.mxu0 0.0
    %4275 = vmatpush1.msra.mxu0 0.0
    %4276 = vmatprep.subr.mxu0 0.0
    %4277 = vmatpush1.msra.mxu0 0.0
    %4278 = vmatprep.subr.mxu0 0.0
    %4279 = vmatpush1.msra.mxu0 0.0
    %4280 = vmatprep.subr.mxu0 0.0
    %4281 = vmatpush1.msra.mxu0 0.0
    %4282 = vmatprep.subr.mxu0 0.0
    %4283 = vmatpush1.msra.mxu0 0.0
    %4284 = vmatprep.subr.mxu0 0.0
    %4285 = vmatpush1.msra.mxu0 0.0
    %4286 = vmatprep.subr.mxu0 0.0
    %4287 = vmatpush1.msra.mxu0 0.0
    %4288 = vmatprep.subr.mxu0 0.0
    %4289 = vmatpush1.msra.mxu0 0.0
    %4290 = vmatprep.subr.mxu0 0.0
    %4291 = vmatpush1.msra.mxu0 0.0
    %4292 = vmatprep.subr.mxu0 0.0
    %4293 = vmatpush1.msra.mxu0 0.0
    %4294 = vmatprep.mubr.f32.mxu0 0.0
    %4295 = vmatmul.mubr.f32.gmra.mrb[0].mxu0 %v1734
    %v4296 = vpop.f32.mrb[0].mxu0
    %v4297 = vadd.f32 %v1710, %v4296
    %v4298 = vpop.f32.mrb[0].mxu0
    %4299 = vmatprep.mubr.f32.mxu0 0.0
    %4300 = vmatmul.mubr.f32.gmra.mrb[0].mxu0 %v1737
    %v4301 = vpop.f32.mrb[0].mxu0
    %v4302 = vadd.f32 %v1715, %v4301
    %v4303 = vpop.f32.mrb[0].mxu0
    %4304 = vmatprep.mubr.f32.mxu0 0.0
    %4305 = vmatmul.mubr.f32.gmra.mrb[0].mxu0 %v1740
    %v4306 = vpop.f32.mrb[0].mxu0
    %v4307 = vadd.f32 %v1720, %v4306
    %v4308 = vpop.f32.mrb[0].mxu0
    %4309 = vmatprep.mubr.f32.mxu0 0.0
    %4310 = vmatmul.mubr.f32.gmra.mrb[0].mxu0 %v1743
    %v4311 = vpop.f32.mrb[0].mxu0
    %v4312 = vadd.f32 %v1725, %v4311
    %v4313 = vpop.f32.mrb[0].mxu0
    %4314 = vmatprep.mubr.f32.mxu0 0.0
    %4315 = vmatmul.mubr.f32.gmra.mrb[0].mxu0 %v1746
    %v4316 = vpop.f32.mrb[0].mxu0
    %v4317 = vadd.f32 %v1730, %v4316
    %v4318 = vpop.f32.mrb[0].mxu0
    %4319 = vdwg.mxu0
    %v4320 = vmul.f32 %v4297, %v4297
    %v4321 = vmul.f32 %v4302, %v4302
    %v4322 = vmul.f32 %v4307, %v4307
    %v4323 = vmul.f32 %v4312, %v4312
    %v4324 = vmul.f32 %v4317, %v4317
    %v4326 = vsel %vm1846, %v4320, 0
    %v4329 = vsel %vm1846, %v4321, 0
    %v4332 = vsel %vm1846, %v4322, 0
    %v4335 = vsel %vm1846, %v4323, 0
    %v4338 = vsel %vm1846, %v4324, 0
    %4340 = vmatprep.subr.mxu0 0.0
    %4341 = vmatpush1.msra.mxu0 %v49
    %4342 = vmatprep.subr.mxu0 0.0
    %4343 = vmatpush1.msra.mxu0 %v50
    %4344 = vmatprep.subr.mxu0 0.0
    %4345 = vmatpush1.msra.mxu0 %v51
    %4346 = vmatprep.subr.mxu0 0.0
    %4347 = vmatpush1.msra.mxu0 %v52
    %4348 = vmatprep.subr.mxu0 0.0
    %4349 = vmatpush1.msra.mxu0 %v1863
    %4350 = vmatprep.subr.mxu0 0.0
    %4351 = vmatpush1.msra.mxu0 0.0
    %4352 = vmatprep.subr.mxu0 0.0
    %4353 = vmatpush1.msra.mxu0 0.0
    %4354 = vmatprep.subr.mxu0 0.0
    %4355 = vmatpush1.msra.mxu0 0.0
    %4356 = vmatprep.subr.mxu0 0.0
    %4357 = vmatpush1.msra.mxu0 0.0
    %4358 = vmatprep.subr.mxu0 0.0
    %4359 = vmatpush1.msra.mxu0 0.0
    %4360 = vmatprep.subr.mxu0 0.0
    %4361 = vmatpush1.msra.mxu0 0.0
    %4362 = vmatprep.subr.mxu0 0.0
    %4363 = vmatpush1.msra.mxu0 0.0
    %4364 = vmatprep.subr.mxu0 0.0
    %4365 = vmatpush1.msra.mxu0 0.0
    %4366 = vmatprep.subr.mxu0 0.0
    %4367 = vmatpush1.msra.mxu0 0.0
    %4368 = vmatprep.subr.mxu0 0.0
    %4369 = vmatpush1.msra.mxu0 0.0
    %4370 = vmatprep.subr.mxu0 0.0
    %4371 = vmatpush1.msra.mxu0 0.0
    %4372 = vmatprep.subr.mxu0 0.0
    %4373 = vmatpush1.msra.mxu0 0.0
    %4374 = vmatprep.subr.mxu0 0.0
    %4375 = vmatpush1.msra.mxu0 0.0
    %4376 = vmatprep.subr.mxu0 0.0
    %4377 = vmatpush1.msra.mxu0 0.0
    %4378 = vmatprep.subr.mxu0 0.0
    %4379 = vmatpush1.msra.mxu0 0.0
    %4380 = vmatprep.subr.mxu0 0.0
    %4381 = vmatpush1.msra.mxu0 0.0
    %4382 = vmatprep.subr.mxu0 0.0
    %4383 = vmatpush1.msra.mxu0 0.0
    %4384 = vmatprep.subr.mxu0 0.0
    %4385 = vmatpush1.msra.mxu0 0.0
    %4386 = vmatprep.subr.mxu0 0.0
    %4387 = vmatpush1.msra.mxu0 0.0
    %4388 = vmatprep.subr.mxu0 0.0
    %4389 = vmatpush1.msra.mxu0 0.0
    %4390 = vmatprep.subr.mxu0 0.0
    %4391 = vmatpush1.msra.mxu0 0.0
    %4392 = vmatprep.subr.mxu0 0.0
    %4393 = vmatpush1.msra.mxu0 0.0
    %4394 = vmatprep.subr.mxu0 0.0
    %4395 = vmatpush1.msra.mxu0 0.0
    %4396 = vmatprep.subr.mxu0 0.0
    %4397 = vmatpush1.msra.mxu0 0.0
    %4398 = vmatprep.subr.mxu0 0.0
    %4399 = vmatpush1.msra.mxu0 0.0
    %4400 = vmatprep.subr.mxu0 0.0
    %4401 = vmatpush1.msra.mxu0 0.0
    %4402 = vmatprep.subr.mxu0 0.0
    %4403 = vmatpush1.msra.mxu0 0.0
    %4404 = vmatprep.mubr.f32.mxu0 0.0
    %4405 = vmatmul.mubr.f32.gmra.mrb[0].mxu0 %v4326
    %v4406 = vpop.f32.mrb[0].mxu0
    %v4407 = vadd.f32 0.0, %v4406
    %v4408 = vpop.f32.mrb[0].mxu0
    %4409 = vmatprep.mubr.f32.mxu0 0.0
    %4410 = vmatmul.mubr.f32.gmra.mrb[0].mxu0 %v4329
    %v4411 = vpop.f32.mrb[0].mxu0
    %v4412 = vadd.f32 0.0, %v4411
    %v4413 = vpop.f32.mrb[0].mxu0
    %4414 = vmatprep.mubr.f32.mxu0 0.0
    %4415 = vmatmul.mubr.f32.gmra.mrb[0].mxu0 %v4332
    %v4416 = vpop.f32.mrb[0].mxu0
    %v4417 = vadd.f32 0.0, %v4416
    %v4418 = vpop.f32.mrb[0].mxu0
    %4419 = vmatprep.mubr.f32.mxu0 0.0
    %4420 = vmatmul.mubr.f32.gmra.mrb[0].mxu0 %v4335
    %v4421 = vpop.f32.mrb[0].mxu0
    %v4422 = vadd.f32 0.0, %v4421
    %v4423 = vpop.f32.mrb[0].mxu0
    %4424 = vmatprep.mubr.f32.mxu0 0.0
    %4425 = vmatmul.mubr.f32.gmra.mrb[0].mxu0 %v4338
    %v4426 = vpop.f32.mrb[0].mxu0
    %v4427 = vadd.f32 0.0, %v4426
    %v4428 = vpop.f32.mrb[0].mxu0
    %4429 = vdwg.mxu0
    %v4430 = vrot.slane %v646, 3
    %v4431 = vrot.slane %v650, 3
    %v4432 = vsel %vm106, %v4430, %v4431
    %v4436 = vrot.slane %v694, 6
    %v4437 = vrot.slane %v698, 6
    %v4438 = vsel %vm100, %v4436, %v4437
    %v4443 = vrot.slane %v742, 1
    %v4444 = vrot.slane %v746, 1
    %v4445 = vsel %vm110, %v4443, %v4444
    %v4449 = vsel %vm106, %v602, %v4430
    %v4450 = vsel %vm100, %v4431, %v4436
    %v4451 = vsel %vm110, %v4438, %v4443
    %v4452 = vrot.slane %v1428, 3
    %v4453 = vrot.slane %v1432, 3
    %v4454 = vsel %vm106, %v4452, %v4453
    %v4457 = vrot.slane %v1476, 6
    %v4458 = vrot.slane %v1480, 6
    %v4459 = vsel %vm100, %v4457, %v4458
    %v4464 = vrot.slane %v1524, 1
    %v4465 = vrot.slane %v1528, 1
    %v4466 = vsel %vm110, %v4464, %v4465
    %v4468 = vsel %vm106, %v1384, %v4452
    %v4469 = vsel %vm100, %v4453, %v4457
    %v4470 = vsel %vm110, %v4459, %v4464
    %4474 = vrot.lane.b32.xlu0 %v1380, 18
    %v4475 = vpop.permute.xlu0 %4474
    %4476 = vrot.lane.b32.xlu0 %v4468, 18
    %v4477 = vpop.permute.xlu0 %4476
    %4478 = vrot.lane.b32.xlu0 %v4454, 18
    %v4479 = vpop.permute.xlu0 %4478
    %4480 = vrot.lane.b32.xlu0 %v4469, 18
    %v4481 = vpop.permute.xlu0 %4480
    %4482 = vrot.lane.b32.xlu0 %v4470, 18
    %v4483 = vpop.permute.xlu0 %4482
    %4484 = vrot.lane.b32.xlu0 %v4466, 18
    %v4485 = vpop.permute.xlu0 %4484
    %4486 = vrot.lane.b32.xlu0 %v4465, 18
    %v4487 = vpop.permute.xlu0 %4486
    %v4495 = vsel %vm1699, %v598, %v4475
    %v4496 = vsel %vm1699, %v4449, %v4477
    %v4497 = vsel %vm1699, %v4432, %v4479
    %v4498 = vsel %vm1699, %v4450, %v4481
    %v4499 = vsel %vm1699, %v4451, %v4483
    %v4500 = vsel %vm1699, %v4445, %v4485
    %v4501 = vsel %vm1699, %v4444, %v4487
    %v4503 = vsel %vm104, %v4501, 0
    %4505 = vmatprep.subr.mxu0 0.0
    %4506 = vmatpush1.msra.mxu0 %v4495
    %4507 = vmatprep.subr.mxu0 0.0
    %4508 = vmatpush1.msra.mxu0 %v4496
    %4509 = vmatprep.subr.mxu0 0.0
    %4510 = vmatpush1.msra.mxu0 %v4497
    %4511 = vmatprep.subr.mxu0 0.0
    %4512 = vmatpush1.msra.mxu0 %v4498
    %4513 = vmatprep.subr.mxu0 0.0
    %4514 = vmatpush1.msra.mxu0 %v4499
    %4515 = vmatprep.subr.mxu0 0.0
    %4516 = vmatpush1.msra.mxu0 %v4500
    %4517 = vmatprep.subr.mxu0 0.0
    %4518 = vmatpush1.msra.mxu0 %v4503
    %4519 = vmatprep.subr.mxu0 0.0
    %4520 = vmatpush1.msra.mxu0 0.0
    %4521 = vmatprep.subr.mxu0 0.0
    %4522 = vmatpush1.msra.mxu0 0.0
    %4523 = vmatprep.subr.mxu0 0.0
    %4524 = vmatpush1.msra.mxu0 0.0
    %4525 = vmatprep.subr.mxu0 0.0
    %4526 = vmatpush1.msra.mxu0 0.0
    %4527 = vmatprep.subr.mxu0 0.0
    %4528 = vmatpush1.msra.mxu0 0.0
    %4529 = vmatprep.subr.mxu0 0.0
    %4530 = vmatpush1.msra.mxu0 0.0
    %4531 = vmatprep.subr.mxu0 0.0
    %4532 = vmatpush1.msra.mxu0 0.0
    %4533 = vmatprep.subr.mxu0 0.0
    %4534 = vmatpush1.msra.mxu0 0.0
    %4535 = vmatprep.subr.mxu0 0.0
    %4536 = vmatpush1.msra.mxu0 0.0
    %4537 = vmatprep.subr.mxu0 0.0
    %4538 = vmatpush1.msra.mxu0 0.0
    %4539 = vmatprep.subr.mxu0 0.0
    %4540 = vmatpush1.msra.mxu0 0.0
    %4541 = vmatprep.subr.mxu0 0.0
    %4542 = vmatpush1.msra.mxu0 0.0
    %4543 = vmatprep.subr.mxu0 0.0
    %4544 = vmatpush1.msra.mxu0 0.0
    %4545 = vmatprep.subr.mxu0 0.0
    %4546 = vmatpush1.msra.mxu0 0.0
    %4547 = vmatprep.subr.mxu0 0.0
    %4548 = vmatpush1.msra.mxu0 0.0
    %4549 = vmatprep.subr.mxu0 0.0
    %4550 = vmatpush1.msra.mxu0 0.0
    %4551 = vmatprep.subr.mxu0 0.0
    %4552 = vmatpush1.msra.mxu0 0.0
    %4553 = vmatprep.subr.mxu0 0.0
    %4554 = vmatpush1.msra.mxu0 0.0
    %4555 = vmatprep.subr.mxu0 0.0
    %4556 = vmatpush1.msra.mxu0 0.0
    %4557 = vmatprep.subr.mxu0 0.0
    %4558 = vmatpush1.msra.mxu0 0.0
    %4559 = vmatprep.subr.mxu0 0.0
    %4560 = vmatpush1.msra.mxu0 0.0
    %4561 = vmatprep.subr.mxu0 0.0
    %4562 = vmatpush1.msra.mxu0 0.0
    %4563 = vmatprep.subr.mxu0 0.0
    %4564 = vmatpush1.msra.mxu0 0.0
    %4565 = vmatprep.subr.mxu0 0.0
    %4566 = vmatpush1.msra.mxu0 0.0
    %4567 = vmatprep.subr.mxu0 0.0
    %4568 = vmatpush1.msra.mxu0 0.0
    %4569 = vmatprep.mubr.f32.mxu0 0.0
    %4570 = vmatmul.mubr.f32.gmra.mrb[0].mxu0 %v1734
    %v4571 = vpop.f32.mrb[0].mxu0
    %v4572 = vadd.f32 %v1710, %v4571
    %v4573 = vpop.f32.mrb[0].mxu0
    %4574 = vmatprep.mubr.f32.mxu0 0.0
    %4575 = vmatmul.mubr.f32.gmra.mrb[0].mxu0 %v1737
    %v4576 = vpop.f32.mrb[0].mxu0
    %v4577 = vadd.f32 %v1715, %v4576
    %v4578 = vpop.f32.mrb[0].mxu0
    %4579 = vmatprep.mubr.f32.mxu0 0.0
    %4580 = vmatmul.mubr.f32.gmra.mrb[0].mxu0 %v1740
    %v4581 = vpop.f32.mrb[0].mxu0
    %v4582 = vadd.f32 %v1720, %v4581
    %v4583 = vpop.f32.mrb[0].mxu0
    %4584 = vmatprep.mubr.f32.mxu0 0.0
    %4585 = vmatmul.mubr.f32.gmra.mrb[0].mxu0 %v1743
    %v4586 = vpop.f32.mrb[0].mxu0
    %v4587 = vadd.f32 %v1725, %v4586
    %v4588 = vpop.f32.mrb[0].mxu0
    %4589 = vmatprep.mubr.f32.mxu0 0.0
    %4590 = vmatmul.mubr.f32.gmra.mrb[0].mxu0 %v1746
    %v4591 = vpop.f32.mrb[0].mxu0
    %v4592 = vadd.f32 %v1730, %v4591
    %v4593 = vpop.f32.mrb[0].mxu0
    %4594 = vdwg.mxu0
    %v4595 = vmul.f32 %v4572, %v4572
    %v4596 = vmul.f32 %v4577, %v4577
    %v4597 = vmul.f32 %v4582, %v4582
    %v4598 = vmul.f32 %v4587, %v4587
    %v4599 = vmul.f32 %v4592, %v4592
    %v4601 = vsel %vm1846, %v4595, 0
    %v4604 = vsel %vm1846, %v4596, 0
    %v4607 = vsel %vm1846, %v4597, 0
    %v4610 = vsel %vm1846, %v4598, 0
    %v4613 = vsel %vm1846, %v4599, 0
    %4615 = vmatprep.subr.mxu0 0.0
    %4616 = vmatpush1.msra.mxu0 %v49
    %4617 = vmatprep.subr.mxu0 0.0
    %4618 = vmatpush1.msra.mxu0 %v50
    %4619 = vmatprep.subr.mxu0 0.0
    %4620 = vmatpush1.msra.mxu0 %v51
    %4621 = vmatprep.subr.mxu0 0.0
    %4622 = vmatpush1.msra.mxu0 %v52
    %4623 = vmatprep.subr.mxu0 0.0
    %4624 = vmatpush1.msra.mxu0 %v1863
    %4625 = vmatprep.subr.mxu0 0.0
    %4626 = vmatpush1.msra.mxu0 0.0
    %4627 = vmatprep.subr.mxu0 0.0
    %4628 = vmatpush1.msra.mxu0 0.0
    %4629 = vmatprep.subr.mxu0 0.0
    %4630 = vmatpush1.msra.mxu0 0.0
    %4631 = vmatprep.subr.mxu0 0.0
    %4632 = vmatpush1.msra.mxu0 0.0
    %4633 = vmatprep.subr.mxu0 0.0
    %4634 = vmatpush1.msra.mxu0 0.0
    %4635 = vmatprep.subr.mxu0 0.0
    %4636 = vmatpush1.msra.mxu0 0.0
    %4637 = vmatprep.subr.mxu0 0.0
    %4638 = vmatpush1.msra.mxu0 0.0
    %4639 = vmatprep.subr.mxu0 0.0
    %4640 = vmatpush1.msra.mxu0 0.0
    %4641 = vmatprep.subr.mxu0 0.0
    %4642 = vmatpush1.msra.mxu0 0.0
    %4643 = vmatprep.subr.mxu0 0.0
    %4644 = vmatpush1.msra.mxu0 0.0
    %4645 = vmatprep.subr.mxu0 0.0
    %4646 = vmatpush1.msra.mxu0 0.0
    %4647 = vmatprep.subr.mxu0 0.0
    %4648 = vmatpush1.msra.mxu0 0.0
    %4649 = vmatprep.subr.mxu0 0.0
    %4650 = vmatpush1.msra.mxu0 0.0
    %4651 = vmatprep.subr.mxu0 0.0
    %4652 = vmatpush1.msra.mxu0 0.0
    %4653 = vmatprep.subr.mxu0 0.0
    %4654 = vmatpush1.msra.mxu0 0.0
    %4655 = vmatprep.subr.mxu0 0.0
    %4656 = vmatpush1.msra.mxu0 0.0
    %4657 = vmatprep.subr.mxu0 0.0
    %4658 = vmatpush1.msra.mxu0 0.0
    %4659 = vmatprep.subr.mxu0 0.0
    %4660 = vmatpush1.msra.mxu0 0.0
    %4661 = vmatprep.subr.mxu0 0.0
    %4662 = vmatpush1.msra.mxu0 0.0
    %4663 = vmatprep.subr.mxu0 0.0
    %4664 = vmatpush1.msra.mxu0 0.0
    %4665 = vmatprep.subr.mxu0 0.0
    %4666 = vmatpush1.msra.mxu0 0.0
    %4667 = vmatprep.subr.mxu0 0.0
    %4668 = vmatpush1.msra.mxu0 0.0
    %4669 = vmatprep.subr.mxu0 0.0
    %4670 = vmatpush1.msra.mxu0 0.0
    %4671 = vmatprep.subr.mxu0 0.0
    %4672 = vmatpush1.msra.mxu0 0.0
    %4673 = vmatprep.subr.mxu0 0.0
    %4674 = vmatpush1.msra.mxu0 0.0
    %4675 = vmatprep.subr.mxu0 0.0
    %4676 = vmatpush1.msra.mxu0 0.0
    %4677 = vmatprep.subr.mxu0 0.0
    %4678 = vmatpush1.msra.mxu0 0.0
    %4679 = vmatprep.mubr.f32.mxu0 0.0
    %4680 = vmatmul.mubr.f32.gmra.mrb[0].mxu0 %v4601
    %v4681 = vpop.f32.mrb[0].mxu0
    %v4682 = vadd.f32 0.0, %v4681
    %v4683 = vpop.f32.mrb[0].mxu0
    %4684 = vmatprep.mubr.f32.mxu0 0.0
    %4685 = vmatmul.mubr.f32.gmra.mrb[0].mxu0 %v4604
    %v4686 = vpop.f32.mrb[0].mxu0
    %v4687 = vadd.f32 0.0, %v4686
    %v4688 = vpop.f32.mrb[0].mxu0
    %4689 = vmatprep.mubr.f32.mxu0 0.0
    %4690 = vmatmul.mubr.f32.gmra.mrb[0].mxu0 %v4607
    %v4691 = vpop.f32.mrb[0].mxu0
    %v4692 = vadd.f32 0.0, %v4691
    %v4693 = vpop.f32.mrb[0].mxu0
    %4694 = vmatprep.mubr.f32.mxu0 0.0
    %4695 = vmatmul.mubr.f32.gmra.mrb[0].mxu0 %v4610
    %v4696 = vpop.f32.mrb[0].mxu0
    %v4697 = vadd.f32 0.0, %v4696
    %v4698 = vpop.f32.mrb[0].mxu0
    %4699 = vmatprep.mubr.f32.mxu0 0.0
    %4700 = vmatmul.mubr.f32.gmra.mrb[0].mxu0 %v4613
    %v4701 = vpop.f32.mrb[0].mxu0
    %v4702 = vadd.f32 0.0, %v4701
    %v4703 = vpop.f32.mrb[0].mxu0
    %4704 = vdwg.mxu0
    %v4705 = vrot.slane %v694, 3
    %v4706 = vrot.slane %v698, 3
    %v4707 = vsel %vm106, %v4705, %v4706
    %v4711 = vrot.slane %v742, 6
    %v4712 = vrot.slane %v746, 6
    %v4713 = vsel %vm100, %v4711, %v4712
    %v4718 = vrot.slane %v790, 1
    %v4719 = vrot.slane %v794, 1
    %v4720 = vsel %vm110, %v4718, %v4719
    %v4724 = vsel %vm106, %v650, %v4705
    %v4725 = vsel %vm100, %v4706, %v4711
    %v4726 = vsel %vm110, %v4713, %v4718
    %v4727 = vrot.slane %v1476, 3
    %v4728 = vrot.slane %v1480, 3
    %v4729 = vsel %vm106, %v4727, %v4728
    %v4732 = vrot.slane %v1524, 6
    %v4733 = vrot.slane %v1528, 6
    %v4734 = vsel %vm100, %v4732, %v4733
    %v4739 = vrot.slane %v1572, 1
    %v4740 = vrot.slane %v1576, 1
    %v4741 = vsel %vm110, %v4739, %v4740
    %v4743 = vsel %vm106, %v1432, %v4727
    %v4744 = vsel %vm100, %v4728, %v4732
    %v4745 = vsel %vm110, %v4734, %v4739
    %4749 = vrot.lane.b32.xlu0 %v1428, 18
    %v4750 = vpop.permute.xlu0 %4749
    %4751 = vrot.lane.b32.xlu0 %v4743, 18
    %v4752 = vpop.permute.xlu0 %4751
    %4753 = vrot.lane.b32.xlu0 %v4729, 18
    %v4754 = vpop.permute.xlu0 %4753
    %4755 = vrot.lane.b32.xlu0 %v4744, 18
    %v4756 = vpop.permute.xlu0 %4755
    %4757 = vrot.lane.b32.xlu0 %v4745, 18
    %v4758 = vpop.permute.xlu0 %4757
    %4759 = vrot.lane.b32.xlu0 %v4741, 18
    %v4760 = vpop.permute.xlu0 %4759
    %4761 = vrot.lane.b32.xlu0 %v4740, 18
    %v4762 = vpop.permute.xlu0 %4761
    %v4770 = vsel %vm1699, %v646, %v4750
    %v4771 = vsel %vm1699, %v4724, %v4752
    %v4772 = vsel %vm1699, %v4707, %v4754
    %v4773 = vsel %vm1699, %v4725, %v4756
    %v4774 = vsel %vm1699, %v4726, %v4758
    %v4775 = vsel %vm1699, %v4720, %v4760
    %v4776 = vsel %vm1699, %v4719, %v4762
    %v4778 = vsel %vm104, %v4776, 0
    %4780 = vmatprep.subr.mxu0 0.0
    %4781 = vmatpush1.msra.mxu0 %v4770
    %4782 = vmatprep.subr.mxu0 0.0
    %4783 = vmatpush1.msra.mxu0 %v4771
    %4784 = vmatprep.subr.mxu0 0.0
    %4785 = vmatpush1.msra.mxu0 %v4772
    %4786 = vmatprep.subr.mxu0 0.0
    %4787 = vmatpush1.msra.mxu0 %v4773
    %4788 = vmatprep.subr.mxu0 0.0
    %4789 = vmatpush1.msra.mxu0 %v4774
    %4790 = vmatprep.subr.mxu0 0.0
    %4791 = vmatpush1.msra.mxu0 %v4775
    %4792 = vmatprep.subr.mxu0 0.0
    %4793 = vmatpush1.msra.mxu0 %v4778
    %4794 = vmatprep.subr.mxu0 0.0
    %4795 = vmatpush1.msra.mxu0 0.0
    %4796 = vmatprep.subr.mxu0 0.0
    %4797 = vmatpush1.msra.mxu0 0.0
    %4798 = vmatprep.subr.mxu0 0.0
    %4799 = vmatpush1.msra.mxu0 0.0
    %4800 = vmatprep.subr.mxu0 0.0
    %4801 = vmatpush1.msra.mxu0 0.0
    %4802 = vmatprep.subr.mxu0 0.0
    %4803 = vmatpush1.msra.mxu0 0.0
    %4804 = vmatprep.subr.mxu0 0.0
    %4805 = vmatpush1.msra.mxu0 0.0
    %4806 = vmatprep.subr.mxu0 0.0
    %4807 = vmatpush1.msra.mxu0 0.0
    %4808 = vmatprep.subr.mxu0 0.0
    %4809 = vmatpush1.msra.mxu0 0.0
    %4810 = vmatprep.subr.mxu0 0.0
    %4811 = vmatpush1.msra.mxu0 0.0
    %4812 = vmatprep.subr.mxu0 0.0
    %4813 = vmatpush1.msra.mxu0 0.0
    %4814 = vmatprep.subr.mxu0 0.0
    %4815 = vmatpush1.msra.mxu0 0.0
    %4816 = vmatprep.subr.mxu0 0.0
    %4817 = vmatpush1.msra.mxu0 0.0
    %4818 = vmatprep.subr.mxu0 0.0
    %4819 = vmatpush1.msra.mxu0 0.0
    %4820 = vmatprep.subr.mxu0 0.0
    %4821 = vmatpush1.msra.mxu0 0.0
    %4822 = vmatprep.subr.mxu0 0.0
    %4823 = vmatpush1.msra.mxu0 0.0
    %4824 = vmatprep.subr.mxu0 0.0
    %4825 = vmatpush1.msra.mxu0 0.0
    %4826 = vmatprep.subr.mxu0 0.0
    %4827 = vmatpush1.msra.mxu0 0.0
    %4828 = vmatprep.subr.mxu0 0.0
    %4829 = vmatpush1.msra.mxu0 0.0
    %4830 = vmatprep.subr.mxu0 0.0
    %4831 = vmatpush1.msra.mxu0 0.0
    %4832 = vmatprep.subr.mxu0 0.0
    %4833 = vmatpush1.msra.mxu0 0.0
    %4834 = vmatprep.subr.mxu0 0.0
    %4835 = vmatpush1.msra.mxu0 0.0
    %4836 = vmatprep.subr.mxu0 0.0
    %4837 = vmatpush1.msra.mxu0 0.0
    %4838 = vmatprep.subr.mxu0 0.0
    %4839 = vmatpush1.msra.mxu0 0.0
    %4840 = vmatprep.subr.mxu0 0.0
    %4841 = vmatpush1.msra.mxu0 0.0
    %4842 = vmatprep.subr.mxu0 0.0
    %4843 = vmatpush1.msra.mxu0 0.0
    %4844 = vmatprep.mubr.f32.mxu0 0.0
    %4845 = vmatmul.mubr.f32.gmra.mrb[0].mxu0 %v1734
    %v4846 = vpop.f32.mrb[0].mxu0
    %v4847 = vadd.f32 %v1710, %v4846
    %v4848 = vpop.f32.mrb[0].mxu0
    %4849 = vmatprep.mubr.f32.mxu0 0.0
    %4850 = vmatmul.mubr.f32.gmra.mrb[0].mxu0 %v1737
    %v4851 = vpop.f32.mrb[0].mxu0
    %v4852 = vadd.f32 %v1715, %v4851
    %v4853 = vpop.f32.mrb[0].mxu0
    %4854 = vmatprep.mubr.f32.mxu0 0.0
    %4855 = vmatmul.mubr.f32.gmra.mrb[0].mxu0 %v1740
    %v4856 = vpop.f32.mrb[0].mxu0
    %v4857 = vadd.f32 %v1720, %v4856
    %v4858 = vpop.f32.mrb[0].mxu0
    %4859 = vmatprep.mubr.f32.mxu0 0.0
    %4860 = vmatmul.mubr.f32.gmra.mrb[0].mxu0 %v1743
    %v4861 = vpop.f32.mrb[0].mxu0
    %v4862 = vadd.f32 %v1725, %v4861
    %v4863 = vpop.f32.mrb[0].mxu0
    %4864 = vmatprep.mubr.f32.mxu0 0.0
    %4865 = vmatmul.mubr.f32.gmra.mrb[0].mxu0 %v1746
    %v4866 = vpop.f32.mrb[0].mxu0
    %v4867 = vadd.f32 %v1730, %v4866
    %v4868 = vpop.f32.mrb[0].mxu0
    %4869 = vdwg.mxu0
    %v4870 = vmul.f32 %v4847, %v4847
    %v4871 = vmul.f32 %v4852, %v4852
    %v4872 = vmul.f32 %v4857, %v4857
    %v4873 = vmul.f32 %v4862, %v4862
    %v4874 = vmul.f32 %v4867, %v4867
    %v4876 = vsel %vm1846, %v4870, 0
    %v4879 = vsel %vm1846, %v4871, 0
    %v4882 = vsel %vm1846, %v4872, 0
    %v4885 = vsel %vm1846, %v4873, 0
    %v4888 = vsel %vm1846, %v4874, 0
    %4890 = vmatprep.subr.mxu0 0.0
    %4891 = vmatpush1.msra.mxu0 %v49
    %4892 = vmatprep.subr.mxu0 0.0
    %4893 = vmatpush1.msra.mxu0 %v50
    %4894 = vmatprep.subr.mxu0 0.0
    %4895 = vmatpush1.msra.mxu0 %v51
    %4896 = vmatprep.subr.mxu0 0.0
    %4897 = vmatpush1.msra.mxu0 %v52
    %4898 = vmatprep.subr.mxu0 0.0
    %4899 = vmatpush1.msra.mxu0 %v1863
    %4900 = vmatprep.subr.mxu0 0.0
    %4901 = vmatpush1.msra.mxu0 0.0
    %4902 = vmatprep.subr.mxu0 0.0
    %4903 = vmatpush1.msra.mxu0 0.0
    %4904 = vmatprep.subr.mxu0 0.0
    %4905 = vmatpush1.msra.mxu0 0.0
    %4906 = vmatprep.subr.mxu0 0.0
    %4907 = vmatpush1.msra.mxu0 0.0
    %4908 = vmatprep.subr.mxu0 0.0
    %4909 = vmatpush1.msra.mxu0 0.0
    %4910 = vmatprep.subr.mxu0 0.0
    %4911 = vmatpush1.msra.mxu0 0.0
    %4912 = vmatprep.subr.mxu0 0.0
    %4913 = vmatpush1.msra.mxu0 0.0
    %4914 = vmatprep.subr.mxu0 0.0
    %4915 = vmatpush1.msra.mxu0 0.0
    %4916 = vmatprep.subr.mxu0 0.0
    %4917 = vmatpush1.msra.mxu0 0.0
    %4918 = vmatprep.subr.mxu0 0.0
    %4919 = vmatpush1.msra.mxu0 0.0
    %4920 = vmatprep.subr.mxu0 0.0
    %4921 = vmatpush1.msra.mxu0 0.0
    %4922 = vmatprep.subr.mxu0 0.0
    %4923 = vmatpush1.msra.mxu0 0.0
    %4924 = vmatprep.subr.mxu0 0.0
    %4925 = vmatpush1.msra.mxu0 0.0
    %4926 = vmatprep.subr.mxu0 0.0
    %4927 = vmatpush1.msra.mxu0 0.0
    %4928 = vmatprep.subr.mxu0 0.0
    %4929 = vmatpush1.msra.mxu0 0.0
    %4930 = vmatprep.subr.mxu0 0.0
    %4931 = vmatpush1.msra.mxu0 0.0
    %4932 = vmatprep.subr.mxu0 0.0
    %4933 = vmatpush1.msra.mxu0 0.0
    %4934 = vmatprep.subr.mxu0 0.0
    %4935 = vmatpush1.msra.mxu0 0.0
    %4936 = vmatprep.subr.mxu0 0.0
    %4937 = vmatpush1.msra.mxu0 0.0
    %4938 = vmatprep.subr.mxu0 0.0
    %4939 = vmatpush1.msra.mxu0 0.0
    %4940 = vmatprep.subr.mxu0 0.0
    %4941 = vmatpush1.msra.mxu0 0.0
    %4942 = vmatprep.subr.mxu0 0.0
    %4943 = vmatpush1.msra.mxu0 0.0
    %4944 = vmatprep.subr.mxu0 0.0
    %4945 = vmatpush1.msra.mxu0 0.0
    %4946 = vmatprep.subr.mxu0 0.0
    %4947 = vmatpush1.msra.mxu0 0.0
    %4948 = vmatprep.subr.mxu0 0.0
    %4949 = vmatpush1.msra.mxu0 0.0
    %4950 = vmatprep.subr.mxu0 0.0
    %4951 = vmatpush1.msra.mxu0 0.0
    %4952 = vmatprep.subr.mxu0 0.0
    %4953 = vmatpush1.msra.mxu0 0.0
    %4954 = vmatprep.mubr.f32.mxu0 0.0
    %4955 = vmatmul.mubr.f32.gmra.mrb[0].mxu0 %v4876
    %v4956 = vpop.f32.mrb[0].mxu0
    %v4957 = vadd.f32 0.0, %v4956
    %v4958 = vpop.f32.mrb[0].mxu0
    %4959 = vmatprep.mubr.f32.mxu0 0.0
    %4960 = vmatmul.mubr.f32.gmra.mrb[0].mxu0 %v4879
    %v4961 = vpop.f32.mrb[0].mxu0
    %v4962 = vadd.f32 0.0, %v4961
    %v4963 = vpop.f32.mrb[0].mxu0
    %4964 = vmatprep.mubr.f32.mxu0 0.0
    %4965 = vmatmul.mubr.f32.gmra.mrb[0].mxu0 %v4882
    %v4966 = vpop.f32.mrb[0].mxu0
    %v4967 = vadd.f32 0.0, %v4966
    %v4968 = vpop.f32.mrb[0].mxu0
    %4969 = vmatprep.mubr.f32.mxu0 0.0
    %4970 = vmatmul.mubr.f32.gmra.mrb[0].mxu0 %v4885
    %v4971 = vpop.f32.mrb[0].mxu0
    %v4972 = vadd.f32 0.0, %v4971
    %v4973 = vpop.f32.mrb[0].mxu0
    %4974 = vmatprep.mubr.f32.mxu0 0.0
    %4975 = vmatmul.mubr.f32.gmra.mrb[0].mxu0 %v4888
    %v4976 = vpop.f32.mrb[0].mxu0
    %v4977 = vadd.f32 0.0, %v4976
    %v4978 = vpop.f32.mrb[0].mxu0
    %4979 = vdwg.mxu0
    %v4980 = vrot.slane %v742, 3
    %v4981 = vrot.slane %v746, 3
    %v4982 = vsel %vm106, %v4980, %v4981
    %v4986 = vrot.slane %v790, 6
    %v4987 = vrot.slane %v794, 6
    %v4988 = vsel %vm100, %v4986, %v4987
    %v4993 = vrot.slane %v838, 1
    %v4994 = vrot.slane %v842, 1
    %v4995 = vsel %vm110, %v4993, %v4994
    %v4999 = vsel %vm106, %v698, %v4980
    %v5000 = vsel %vm100, %v4981, %v4986
    %v5001 = vsel %vm110, %v4988, %v4993
    %v5002 = vrot.slane %v1524, 3
    %v5003 = vrot.slane %v1528, 3
    %v5004 = vsel %vm106, %v5002, %v5003
    %v5007 = vrot.slane %v1572, 6
    %v5008 = vrot.slane %v1576, 6
    %v5009 = vsel %vm100, %v5007, %v5008
    %v5014 = vrot.slane %v1620, 1
    %v5015 = vrot.slane %v1624, 1
    %v5016 = vsel %vm110, %v5014, %v5015
    %v5018 = vsel %vm106, %v1480, %v5002
    %v5019 = vsel %vm100, %v5003, %v5007
    %v5020 = vsel %vm110, %v5009, %v5014
    %5024 = vrot.lane.b32.xlu0 %v1476, 18
    %v5025 = vpop.permute.xlu0 %5024
    %5026 = vrot.lane.b32.xlu0 %v5018, 18
    %v5027 = vpop.permute.xlu0 %5026
    %5028 = vrot.lane.b32.xlu0 %v5004, 18
    %v5029 = vpop.permute.xlu0 %5028
    %5030 = vrot.lane.b32.xlu0 %v5019, 18
    %v5031 = vpop.permute.xlu0 %5030
    %5032 = vrot.lane.b32.xlu0 %v5020, 18
    %v5033 = vpop.permute.xlu0 %5032
    %5034 = vrot.lane.b32.xlu0 %v5016, 18
    %v5035 = vpop.permute.xlu0 %5034
    %5036 = vrot.lane.b32.xlu0 %v5015, 18
    %v5037 = vpop.permute.xlu0 %5036
    %v5045 = vsel %vm1699, %v694, %v5025
    %v5046 = vsel %vm1699, %v4999, %v5027
    %v5047 = vsel %vm1699, %v4982, %v5029
    %v5048 = vsel %vm1699, %v5000, %v5031
    %v5049 = vsel %vm1699, %v5001, %v5033
    %v5050 = vsel %vm1699, %v4995, %v5035
    %v5051 = vsel %vm1699, %v4994, %v5037
    %v5053 = vsel %vm104, %v5051, 0
    %5055 = vmatprep.subr.mxu0 0.0
    %5056 = vmatpush1.msra.mxu0 %v5045
    %5057 = vmatprep.subr.mxu0 0.0
    %5058 = vmatpush1.msra.mxu0 %v5046
    %5059 = vmatprep.subr.mxu0 0.0
    %5060 = vmatpush1.msra.mxu0 %v5047
    %5061 = vmatprep.subr.mxu0 0.0
    %5062 = vmatpush1.msra.mxu0 %v5048
    %5063 = vmatprep.subr.mxu0 0.0
    %5064 = vmatpush1.msra.mxu0 %v5049
    %5065 = vmatprep.subr.mxu0 0.0
    %5066 = vmatpush1.msra.mxu0 %v5050
    %5067 = vmatprep.subr.mxu0 0.0
    %5068 = vmatpush1.msra.mxu0 %v5053
    %5069 = vmatprep.subr.mxu0 0.0
    %5070 = vmatpush1.msra.mxu0 0.0
    %5071 = vmatprep.subr.mxu0 0.0
    %5072 = vmatpush1.msra.mxu0 0.0
    %5073 = vmatprep.subr.mxu0 0.0
    %5074 = vmatpush1.msra.mxu0 0.0
    %5075 = vmatprep.subr.mxu0 0.0
    %5076 = vmatpush1.msra.mxu0 0.0
    %5077 = vmatprep.subr.mxu0 0.0
    %5078 = vmatpush1.msra.mxu0 0.0
    %5079 = vmatprep.subr.mxu0 0.0
    %5080 = vmatpush1.msra.mxu0 0.0
    %5081 = vmatprep.subr.mxu0 0.0
    %5082 = vmatpush1.msra.mxu0 0.0
    %5083 = vmatprep.subr.mxu0 0.0
    %5084 = vmatpush1.msra.mxu0 0.0
    %5085 = vmatprep.subr.mxu0 0.0
    %5086 = vmatpush1.msra.mxu0 0.0
    %5087 = vmatprep.subr.mxu0 0.0
    %5088 = vmatpush1.msra.mxu0 0.0
    %5089 = vmatprep.subr.mxu0 0.0
    %5090 = vmatpush1.msra.mxu0 0.0
    %5091 = vmatprep.subr.mxu0 0.0
    %5092 = vmatpush1.msra.mxu0 0.0
    %5093 = vmatprep.subr.mxu0 0.0
    %5094 = vmatpush1.msra.mxu0 0.0
    %5095 = vmatprep.subr.mxu0 0.0
    %5096 = vmatpush1.msra.mxu0 0.0
    %5097 = vmatprep.subr.mxu0 0.0
    %5098 = vmatpush1.msra.mxu0 0.0
    %5099 = vmatprep.subr.mxu0 0.0
    %5100 = vmatpush1.msra.mxu0 0.0
    %5101 = vmatprep.subr.mxu0 0.0
    %5102 = vmatpush1.msra.mxu0 0.0
    %5103 = vmatprep.subr.mxu0 0.0
    %5104 = vmatpush1.msra.mxu0 0.0
    %5105 = vmatprep.subr.mxu0 0.0
    %5106 = vmatpush1.msra.mxu0 0.0
    %5107 = vmatprep.subr.mxu0 0.0
    %5108 = vmatpush1.msra.mxu0 0.0
    %5109 = vmatprep.subr.mxu0 0.0
    %5110 = vmatpush1.msra.mxu0 0.0
    %5111 = vmatprep.subr.mxu0 0.0
    %5112 = vmatpush1.msra.mxu0 0.0
    %5113 = vmatprep.subr.mxu0 0.0
    %5114 = vmatpush1.msra.mxu0 0.0
    %5115 = vmatprep.subr.mxu0 0.0
    %5116 = vmatpush1.msra.mxu0 0.0
    %5117 = vmatprep.subr.mxu0 0.0
    %5118 = vmatpush1.msra.mxu0 0.0
    %5119 = vmatprep.mubr.f32.mxu0 0.0
    %5120 = vmatmul.mubr.f32.gmra.mrb[0].mxu0 %v1734
    %v5121 = vpop.f32.mrb[0].mxu0
    %v5122 = vadd.f32 %v1710, %v5121
    %v5123 = vpop.f32.mrb[0].mxu0
    %5124 = vmatprep.mubr.f32.mxu0 0.0
    %5125 = vmatmul.mubr.f32.gmra.mrb[0].mxu0 %v1737
    %v5126 = vpop.f32.mrb[0].mxu0
    %v5127 = vadd.f32 %v1715, %v5126
    %v5128 = vpop.f32.mrb[0].mxu0
    %5129 = vmatprep.mubr.f32.mxu0 0.0
    %5130 = vmatmul.mubr.f32.gmra.mrb[0].mxu0 %v1740
    %v5131 = vpop.f32.mrb[0].mxu0
    %v5132 = vadd.f32 %v1720, %v5131
    %v5133 = vpop.f32.mrb[0].mxu0
    %5134 = vmatprep.mubr.f32.mxu0 0.0
    %5135 = vmatmul.mubr.f32.gmra.mrb[0].mxu0 %v1743
    %v5136 = vpop.f32.mrb[0].mxu0
    %v5137 = vadd.f32 %v1725, %v5136
    %v5138 = vpop.f32.mrb[0].mxu0
    %5139 = vmatprep.mubr.f32.mxu0 0.0
    %5140 = vmatmul.mubr.f32.gmra.mrb[0].mxu0 %v1746
    %v5141 = vpop.f32.mrb[0].mxu0
    %v5142 = vadd.f32 %v1730, %v5141
    %v5143 = vpop.f32.mrb[0].mxu0
    %5144 = vdwg.mxu0
    %v5145 = vmul.f32 %v5122, %v5122
    %v5146 = vmul.f32 %v5127, %v5127
    %v5147 = vmul.f32 %v5132, %v5132
    %v5148 = vmul.f32 %v5137, %v5137
    %v5149 = vmul.f32 %v5142, %v5142
    %v5151 = vsel %vm1846, %v5145, 0
    %v5154 = vsel %vm1846, %v5146, 0
    %v5157 = vsel %vm1846, %v5147, 0
    %v5160 = vsel %vm1846, %v5148, 0
    %v5163 = vsel %vm1846, %v5149, 0
    %5165 = vmatprep.subr.mxu0 0.0
    %5166 = vmatpush1.msra.mxu0 %v49
    %5167 = vmatprep.subr.mxu0 0.0
    %5168 = vmatpush1.msra.mxu0 %v50
    %5169 = vmatprep.subr.mxu0 0.0
    %5170 = vmatpush1.msra.mxu0 %v51
    %5171 = vmatprep.subr.mxu0 0.0
    %5172 = vmatpush1.msra.mxu0 %v52
    %5173 = vmatprep.subr.mxu0 0.0
    %5174 = vmatpush1.msra.mxu0 %v1863
    %5175 = vmatprep.subr.mxu0 0.0
    %5176 = vmatpush1.msra.mxu0 0.0
    %5177 = vmatprep.subr.mxu0 0.0
    %5178 = vmatpush1.msra.mxu0 0.0
    %5179 = vmatprep.subr.mxu0 0.0
    %5180 = vmatpush1.msra.mxu0 0.0
    %5181 = vmatprep.subr.mxu0 0.0
    %5182 = vmatpush1.msra.mxu0 0.0
    %5183 = vmatprep.subr.mxu0 0.0
    %5184 = vmatpush1.msra.mxu0 0.0
    %5185 = vmatprep.subr.mxu0 0.0
    %5186 = vmatpush1.msra.mxu0 0.0
    %5187 = vmatprep.subr.mxu0 0.0
    %5188 = vmatpush1.msra.mxu0 0.0
    %5189 = vmatprep.subr.mxu0 0.0
    %5190 = vmatpush1.msra.mxu0 0.0
    %5191 = vmatprep.subr.mxu0 0.0
    %5192 = vmatpush1.msra.mxu0 0.0
    %5193 = vmatprep.subr.mxu0 0.0
    %5194 = vmatpush1.msra.mxu0 0.0
    %5195 = vmatprep.subr.mxu0 0.0
    %5196 = vmatpush1.msra.mxu0 0.0
    %5197 = vmatprep.subr.mxu0 0.0
    %5198 = vmatpush1.msra.mxu0 0.0
    %5199 = vmatprep.subr.mxu0 0.0
    %5200 = vmatpush1.msra.mxu0 0.0
    %5201 = vmatprep.subr.mxu0 0.0
    %5202 = vmatpush1.msra.mxu0 0.0
    %5203 = vmatprep.subr.mxu0 0.0
    %5204 = vmatpush1.msra.mxu0 0.0
    %5205 = vmatprep.subr.mxu0 0.0
    %5206 = vmatpush1.msra.mxu0 0.0
    %5207 = vmatprep.subr.mxu0 0.0
    %5208 = vmatpush1.msra.mxu0 0.0
    %5209 = vmatprep.subr.mxu0 0.0
    %5210 = vmatpush1.msra.mxu0 0.0
    %5211 = vmatprep.subr.mxu0 0.0
    %5212 = vmatpush1.msra.mxu0 0.0
    %5213 = vmatprep.subr.mxu0 0.0
    %5214 = vmatpush1.msra.mxu0 0.0
    %5215 = vmatprep.subr.mxu0 0.0
    %5216 = vmatpush1.msra.mxu0 0.0
    %5217 = vmatprep.subr.mxu0 0.0
    %5218 = vmatpush1.msra.mxu0 0.0
    %5219 = vmatprep.subr.mxu0 0.0
    %5220 = vmatpush1.msra.mxu0 0.0
    %5221 = vmatprep.subr.mxu0 0.0
    %5222 = vmatpush1.msra.mxu0 0.0
    %5223 = vmatprep.subr.mxu0 0.0
    %5224 = vmatpush1.msra.mxu0 0.0
    %5225 = vmatprep.subr.mxu0 0.0
    %5226 = vmatpush1.msra.mxu0 0.0
    %5227 = vmatprep.subr.mxu0 0.0
    %5228 = vmatpush1.msra.mxu0 0.0
    %5229 = vmatprep.mubr.f32.mxu0 0.0
    %5230 = vmatmul.mubr.f32.gmra.mrb[0].mxu0 %v5151
    %v5231 = vpop.f32.mrb[0].mxu0
    %v5232 = vadd.f32 0.0, %v5231
    %v5233 = vpop.f32.mrb[0].mxu0
    %5234 = vmatprep.mubr.f32.mxu0 0.0
    %5235 = vmatmul.mubr.f32.gmra.mrb[0].mxu0 %v5154
    %v5236 = vpop.f32.mrb[0].mxu0
    %v5237 = vadd.f32 0.0, %v5236
    %v5238 = vpop.f32.mrb[0].mxu0
    %5239 = vmatprep.mubr.f32.mxu0 0.0
    %5240 = vmatmul.mubr.f32.gmra.mrb[0].mxu0 %v5157
    %v5241 = vpop.f32.mrb[0].mxu0
    %v5242 = vadd.f32 0.0, %v5241
    %v5243 = vpop.f32.mrb[0].mxu0
    %5244 = vmatprep.mubr.f32.mxu0 0.0
    %5245 = vmatmul.mubr.f32.gmra.mrb[0].mxu0 %v5160
    %v5246 = vpop.f32.mrb[0].mxu0
    %v5247 = vadd.f32 0.0, %v5246
    %v5248 = vpop.f32.mrb[0].mxu0
    %5249 = vmatprep.mubr.f32.mxu0 0.0
    %5250 = vmatmul.mubr.f32.gmra.mrb[0].mxu0 %v5163
    %v5251 = vpop.f32.mrb[0].mxu0
    %v5252 = vadd.f32 0.0, %v5251
    %v5253 = vpop.f32.mrb[0].mxu0
    %5254 = vdwg.mxu0
    %5260 = vrot.lane.b32.xlu0 %v2207, 5
    %v5261 = vpop.permute.xlu0 %5260
    %5262 = vrot.lane.b32.xlu0 %v2212, 5
    %v5263 = vpop.permute.xlu0 %5262
    %5264 = vrot.lane.b32.xlu0 %v2217, 5
    %v5265 = vpop.permute.xlu0 %5264
    %5266 = vrot.lane.b32.xlu0 %v2222, 5
    %v5267 = vpop.permute.xlu0 %5266
    %5268 = vrot.lane.b32.xlu0 %v2227, 5
    %v5269 = vpop.permute.xlu0 %5268
    %5280 = vrot.lane.b32.xlu0 %v2482, 10
    %v5281 = vpop.permute.xlu0 %5280
    %5282 = vrot.lane.b32.xlu0 %v2487, 10
    %v5283 = vpop.permute.xlu0 %5282
    %5284 = vrot.lane.b32.xlu0 %v2492, 10
    %v5285 = vpop.permute.xlu0 %5284
    %5286 = vrot.lane.b32.xlu0 %v2497, 10
    %v5287 = vpop.permute.xlu0 %5286
    %5288 = vrot.lane.b32.xlu0 %v2502, 10
    %v5289 = vpop.permute.xlu0 %5288
    %5300 = vrot.lane.b32.xlu0 %v2757, 15
    %v5301 = vpop.permute.xlu0 %5300
    %5302 = vrot.lane.b32.xlu0 %v2762, 15
    %v5303 = vpop.permute.xlu0 %5302
    %5304 = vrot.lane.b32.xlu0 %v2767, 15
    %v5305 = vpop.permute.xlu0 %5304
    %5306 = vrot.lane.b32.xlu0 %v2772, 15
    %v5307 = vpop.permute.xlu0 %5306
    %5308 = vrot.lane.b32.xlu0 %v2777, 15
    %v5309 = vpop.permute.xlu0 %5308
    %5320 = vrot.lane.b32.xlu0 %v3032, 20
    %v5321 = vpop.permute.xlu0 %5320
    %5322 = vrot.lane.b32.xlu0 %v3037, 20
    %v5323 = vpop.permute.xlu0 %5322
    %5324 = vrot.lane.b32.xlu0 %v3042, 20
    %v5325 = vpop.permute.xlu0 %5324
    %5326 = vrot.lane.b32.xlu0 %v3047, 20
    %v5327 = vpop.permute.xlu0 %5326
    %5328 = vrot.lane.b32.xlu0 %v3052, 20
    %v5329 = vpop.permute.xlu0 %5328
    %5340 = vrot.lane.b32.xlu0 %v3307, 25
    %v5341 = vpop.permute.xlu0 %5340
    %5342 = vrot.lane.b32.xlu0 %v3312, 25
    %v5343 = vpop.permute.xlu0 %5342
    %5344 = vrot.lane.b32.xlu0 %v3317, 25
    %v5345 = vpop.permute.xlu0 %5344
    %5346 = vrot.lane.b32.xlu0 %v3322, 25
    %v5347 = vpop.permute.xlu0 %5346
    %5348 = vrot.lane.b32.xlu0 %v3327, 25
    %v5349 = vpop.permute.xlu0 %5348
    %5360 = vrot.lane.b32.xlu0 %v3582, 30
    %v5361 = vpop.permute.xlu0 %5360
    %5362 = vrot.lane.b32.xlu0 %v3587, 30
    %v5363 = vpop.permute.xlu0 %5362
    %5364 = vrot.lane.b32.xlu0 %v3592, 30
    %v5365 = vpop.permute.xlu0 %5364
    %5366 = vrot.lane.b32.xlu0 %v3597, 30
    %v5367 = vpop.permute.xlu0 %5366
    %5368 = vrot.lane.b32.xlu0 %v3602, 30
    %v5369 = vpop.permute.xlu0 %5368
    %5380 = vrot.lane.b32.xlu0 %v3857, 35
    %v5381 = vpop.permute.xlu0 %5380
    %5382 = vrot.lane.b32.xlu0 %v3862, 35
    %v5383 = vpop.permute.xlu0 %5382
    %5384 = vrot.lane.b32.xlu0 %v3867, 35
    %v5385 = vpop.permute.xlu0 %5384
    %5386 = vrot.lane.b32.xlu0 %v3872, 35
    %v5387 = vpop.permute.xlu0 %5386
    %5388 = vrot.lane.b32.xlu0 %v3877, 35
    %v5389 = vpop.permute.xlu0 %5388
    %5400 = vrot.lane.b32.xlu0 %v4132, 40
    %v5401 = vpop.permute.xlu0 %5400
    %5402 = vrot.lane.b32.xlu0 %v4137, 40
    %v5403 = vpop.permute.xlu0 %5402
    %5404 = vrot.lane.b32.xlu0 %v4142, 40
    %v5405 = vpop.permute.xlu0 %5404
    %5406 = vrot.lane.b32.xlu0 %v4147, 40
    %v5407 = vpop.permute.xlu0 %5406
    %5408 = vrot.lane.b32.xlu0 %v4152, 40
    %v5409 = vpop.permute.xlu0 %5408
    %5420 = vrot.lane.b32.xlu0 %v4407, 45
    %v5421 = vpop.permute.xlu0 %5420
    %5422 = vrot.lane.b32.xlu0 %v4412, 45
    %v5423 = vpop.permute.xlu0 %5422
    %5424 = vrot.lane.b32.xlu0 %v4417, 45
    %v5425 = vpop.permute.xlu0 %5424
    %5426 = vrot.lane.b32.xlu0 %v4422, 45
    %v5427 = vpop.permute.xlu0 %5426
    %5428 = vrot.lane.b32.xlu0 %v4427, 45
    %v5429 = vpop.permute.xlu0 %5428
    %5440 = vrot.lane.b32.xlu0 %v4682, 50
    %v5441 = vpop.permute.xlu0 %5440
    %5442 = vrot.lane.b32.xlu0 %v4687, 50
    %v5443 = vpop.permute.xlu0 %5442
    %5444 = vrot.lane.b32.xlu0 %v4692, 50
    %v5445 = vpop.permute.xlu0 %5444
    %5446 = vrot.lane.b32.xlu0 %v4697, 50
    %v5447 = vpop.permute.xlu0 %5446
    %5448 = vrot.lane.b32.xlu0 %v4702, 50
    %v5449 = vpop.permute.xlu0 %5448
    %5460 = vrot.lane.b32.xlu0 %v4957, 55
    %v5461 = vpop.permute.xlu0 %5460
    %5462 = vrot.lane.b32.xlu0 %v4962, 55
    %v5463 = vpop.permute.xlu0 %5462
    %5464 = vrot.lane.b32.xlu0 %v4967, 55
    %v5465 = vpop.permute.xlu0 %5464
    %5466 = vrot.lane.b32.xlu0 %v4972, 55
    %v5467 = vpop.permute.xlu0 %5466
    %5468 = vrot.lane.b32.xlu0 %v4977, 55
    %v5469 = vpop.permute.xlu0 %5468
    %5480 = vrot.lane.b32.xlu0 %v5232, 60
    %v5481 = vpop.permute.xlu0 %5480
    %5482 = vrot.lane.b32.xlu0 %v5237, 60
    %v5483 = vpop.permute.xlu0 %5482
    %5484 = vrot.lane.b32.xlu0 %v5242, 60
    %v5485 = vpop.permute.xlu0 %5484
    %5486 = vrot.lane.b32.xlu0 %v5247, 60
    %v5487 = vpop.permute.xlu0 %5486
    %5488 = vrot.lane.b32.xlu0 %v5252, 60
    %v5489 = vpop.permute.xlu0 %5488
    %vm5495 = vcmask 39936
    %v5496 = vsel %vm5495, %v1932, %v5261
    %v5497 = vsel %vm5495, %v1937, %v5263
    %v5498 = vsel %vm5495, %v1942, %v5265
    %v5499 = vsel %vm5495, %v1947, %v5267
    %v5500 = vsel %vm5495, %v1952, %v5269
    %vm5501 = vcmask 80896
    %v5502 = vsel %vm5501, %v5496, %v5281
    %v5503 = vsel %vm5501, %v5497, %v5283
    %v5504 = vsel %vm5501, %v5498, %v5285
    %v5505 = vsel %vm5501, %v5499, %v5287
    %v5506 = vsel %vm5501, %v5500, %v5289
    %vm5507 = vcmask 121856
    %v5508 = vsel %vm5507, %v5502, %v5301
    %v5509 = vsel %vm5507, %v5503, %v5303
    %v5510 = vsel %vm5507, %v5504, %v5305
    %v5511 = vsel %vm5507, %v5505, %v5307
    %v5512 = vsel %vm5507, %v5506, %v5309
    %vm5513 = vcmask 162816
    %v5514 = vsel %vm5513, %v5508, %v5321
    %v5515 = vsel %vm5513, %v5509, %v5323
    %v5516 = vsel %vm5513, %v5510, %v5325
    %v5517 = vsel %vm5513, %v5511, %v5327
    %v5518 = vsel %vm5513, %v5512, %v5329
    %vm5519 = vcmask 203776
    %v5520 = vsel %vm5519, %v5514, %v5341
    %v5521 = vsel %vm5519, %v5515, %v5343
    %v5522 = vsel %vm5519, %v5516, %v5345
    %v5523 = vsel %vm5519, %v5517, %v5347
    %v5524 = vsel %vm5519, %v5518, %v5349
    %vm5525 = vcmask 244736
    %v5526 = vsel %vm5525, %v5520, %v5361
    %v5527 = vsel %vm5525, %v5521, %v5363
    %v5528 = vsel %vm5525, %v5522, %v5365
    %v5529 = vsel %vm5525, %v5523, %v5367
    %v5530 = vsel %vm5525, %v5524, %v5369
    %vm5531 = vcmask 285696
    %v5532 = vsel %vm5531, %v5526, %v5381
    %v5533 = vsel %vm5531, %v5527, %v5383
    %v5534 = vsel %vm5531, %v5528, %v5385
    %v5535 = vsel %vm5531, %v5529, %v5387
    %v5536 = vsel %vm5531, %v5530, %v5389
    %vm5537 = vcmask 326656
    %v5538 = vsel %vm5537, %v5532, %v5401
    %v5539 = vsel %vm5537, %v5533, %v5403
    %v5540 = vsel %vm5537, %v5534, %v5405
    %v5541 = vsel %vm5537, %v5535, %v5407
    %v5542 = vsel %vm5537, %v5536, %v5409
    %vm5543 = vcmask 367616
    %v5544 = vsel %vm5543, %v5538, %v5421
    %v5545 = vsel %vm5543, %v5539, %v5423
    %v5546 = vsel %vm5543, %v5540, %v5425
    %v5547 = vsel %vm5543, %v5541, %v5427
    %v5548 = vsel %vm5543, %v5542, %v5429
    %vm5549 = vcmask 408576
    %v5550 = vsel %vm5549, %v5544, %v5441
    %v5551 = vsel %vm5549, %v5545, %v5443
    %v5552 = vsel %vm5549, %v5546, %v5445
    %v5553 = vsel %vm5549, %v5547, %v5447
    %v5554 = vsel %vm5549, %v5548, %v5449
    %vm5555 = vcmask 449536
    %v5556 = vsel %vm5555, %v5550, %v5461
    %v5557 = vsel %vm5555, %v5551, %v5463
    %v5558 = vsel %vm5555, %v5552, %v5465
    %v5559 = vsel %vm5555, %v5553, %v5467
    %v5560 = vsel %vm5555, %v5554, %v5469
    %vm5561 = vcmask 490496
    %v5562 = vsel %vm5561, %v5556, %v5481
    %v5563 = vsel %vm5561, %v5557, %v5483
    %v5564 = vsel %vm5561, %v5558, %v5485
    %v5565 = vsel %vm5561, %v5559, %v5487
    %v5566 = vsel %vm5561, %v5560, %v5489
    %v5567 = vlog2.pop %v5562
    %v5568 = vmul.f32 %v5567, 0.6931472
    %v5569 = vlog2.pop %v5563
    %v5570 = vmul.f32 %v5569, 0.6931472
    %v5571 = vlog2.pop %v5564
    %v5572 = vmul.f32 %v5571, 0.6931472
    %v5573 = vlog2.pop %v5565
    %v5574 = vmul.f32 %v5573, 0.6931472
    %v5575 = vlog2.pop %v5566
    %v5576 = vmul.f32 %v5575, 0.6931472
    %v5577 = vld [vmem:[%s4] sm:$0xff]
    %v5578 = vld [vmem:[%s4 + $0x8] sm:$0xff]
    %v5579 = vld [vmem:[%s4 + $0x10] sm:$0xff]
    %v5580 = vld [vmem:[%s4 + $0x18] sm:$0xff]
    %v5581 = vld [vmem:[%s4 + $0x20] sm:$0xff]
    %v5582 = vmul.f32 %v5568, %v5577
    %v5583 = vmul.f32 %v5570, %v5578
    %v5584 = vmul.f32 %v5572, %v5579
    %v5585 = vmul.f32 %v5574, %v5580
    %v5586 = vmul.f32 %v5576, %v5581
    %vm5587 = vcmask 531456
    %5588 = vst.msk [vmem:[#allocation5] sm:$0xff] %vm5587, %v5582
    %5589 = vst.msk [vmem:[#allocation5 + $0x8] sm:$0xff] %vm5587, %v5583
    %5590 = vst.msk [vmem:[#allocation5 + $0x10] sm:$0xff] %vm5587, %v5584
    %5591 = vst.msk [vmem:[#allocation5 + $0x18] sm:$0xff] %vm5587, %v5585
    %5592 = vst.msk [vmem:[#allocation5 + $0x20] sm:$0xff] %vm5587, %v5586
    %5598 = vrot.lane.b32.xlu0 %v1932, 123
    %v5599 = vpop.permute.xlu0 %5598
    %5600 = vrot.lane.b32.xlu0 %v1937, 123
    %v5601 = vpop.permute.xlu0 %5600
    %5602 = vrot.lane.b32.xlu0 %v1942, 123
    %v5603 = vpop.permute.xlu0 %5602
    %5604 = vrot.lane.b32.xlu0 %v1947, 123
    %v5605 = vpop.permute.xlu0 %5604
    %5606 = vrot.lane.b32.xlu0 %v1952, 123
    %v5607 = vpop.permute.xlu0 %5606
    %5613 = vrot.lane.b32.xlu0 %v2482, 5
    %v5614 = vpop.permute.xlu0 %5613
    %5615 = vrot.lane.b32.xlu0 %v2487, 5
    %v5616 = vpop.permute.xlu0 %5615
    %5617 = vrot.lane.b32.xlu0 %v2492, 5
    %v5618 = vpop.permute.xlu0 %5617
    %5619 = vrot.lane.b32.xlu0 %v2497, 5
    %v5620 = vpop.permute.xlu0 %5619
    %5621 = vrot.lane.b32.xlu0 %v2502, 5
    %v5622 = vpop.permute.xlu0 %5621
    %5628 = vrot.lane.b32.xlu0 %v2757, 10
    %v5629 = vpop.permute.xlu0 %5628
    %5630 = vrot.lane.b32.xlu0 %v2762, 10
    %v5631 = vpop.permute.xlu0 %5630
    %5632 = vrot.lane.b32.xlu0 %v2767, 10
    %v5633 = vpop.permute.xlu0 %5632
    %5634 = vrot.lane.b32.xlu0 %v2772, 10
    %v5635 = vpop.permute.xlu0 %5634
    %5636 = vrot.lane.b32.xlu0 %v2777, 10
    %v5637 = vpop.permute.xlu0 %5636
    %5643 = vrot.lane.b32.xlu0 %v3032, 15
    %v5644 = vpop.permute.xlu0 %5643
    %5645 = vrot.lane.b32.xlu0 %v3037, 15
    %v5646 = vpop.permute.xlu0 %5645
    %5647 = vrot.lane.b32.xlu0 %v3042, 15
    %v5648 = vpop.permute.xlu0 %5647
    %5649 = vrot.lane.b32.xlu0 %v3047, 15
    %v5650 = vpop.permute.xlu0 %5649
    %5651 = vrot.lane.b32.xlu0 %v3052, 15
    %v5652 = vpop.permute.xlu0 %5651
    %5658 = vrot.lane.b32.xlu0 %v3307, 20
    %v5659 = vpop.permute.xlu0 %5658
    %5660 = vrot.lane.b32.xlu0 %v3312, 20
    %v5661 = vpop.permute.xlu0 %5660
    %5662 = vrot.lane.b32.xlu0 %v3317, 20
    %v5663 = vpop.permute.xlu0 %5662
    %5664 = vrot.lane.b32.xlu0 %v3322, 20
    %v5665 = vpop.permute.xlu0 %5664
    %5666 = vrot.lane.b32.xlu0 %v3327, 20
    %v5667 = vpop.permute.xlu0 %5666
    %5673 = vrot.lane.b32.xlu0 %v3582, 25
    %v5674 = vpop.permute.xlu0 %5673
    %5675 = vrot.lane.b32.xlu0 %v3587, 25
    %v5676 = vpop.permute.xlu0 %5675
    %5677 = vrot.lane.b32.xlu0 %v3592, 25
    %v5678 = vpop.permute.xlu0 %5677
    %5679 = vrot.lane.b32.xlu0 %v3597, 25
    %v5680 = vpop.permute.xlu0 %5679
    %5681 = vrot.lane.b32.xlu0 %v3602, 25
    %v5682 = vpop.permute.xlu0 %5681
    %5688 = vrot.lane.b32.xlu0 %v3857, 30
    %v5689 = vpop.permute.xlu0 %5688
    %5690 = vrot.lane.b32.xlu0 %v3862, 30
    %v5691 = vpop.permute.xlu0 %5690
    %5692 = vrot.lane.b32.xlu0 %v3867, 30
    %v5693 = vpop.permute.xlu0 %5692
    %5694 = vrot.lane.b32.xlu0 %v3872, 30
    %v5695 = vpop.permute.xlu0 %5694
    %5696 = vrot.lane.b32.xlu0 %v3877, 30
    %v5697 = vpop.permute.xlu0 %5696
    %5703 = vrot.lane.b32.xlu0 %v4132, 35
    %v5704 = vpop.permute.xlu0 %5703
    %5705 = vrot.lane.b32.xlu0 %v4137, 35
    %v5706 = vpop.permute.xlu0 %5705
    %5707 = vrot.lane.b32.xlu0 %v4142, 35
    %v5708 = vpop.permute.xlu0 %5707
    %5709 = vrot.lane.b32.xlu0 %v4147, 35
    %v5710 = vpop.permute.xlu0 %5709
    %5711 = vrot.lane.b32.xlu0 %v4152, 35
    %v5712 = vpop.permute.xlu0 %5711
    %5718 = vrot.lane.b32.xlu0 %v4407, 40
    %v5719 = vpop.permute.xlu0 %5718
    %5720 = vrot.lane.b32.xlu0 %v4412, 40
    %v5721 = vpop.permute.xlu0 %5720
    %5722 = vrot.lane.b32.xlu0 %v4417, 40
    %v5723 = vpop.permute.xlu0 %5722
    %5724 = vrot.lane.b32.xlu0 %v4422, 40
    %v5725 = vpop.permute.xlu0 %5724
    %5726 = vrot.lane.b32.xlu0 %v4427, 40
    %v5727 = vpop.permute.xlu0 %5726
    %5733 = vrot.lane.b32.xlu0 %v4682, 45
    %v5734 = vpop.permute.xlu0 %5733
    %5735 = vrot.lane.b32.xlu0 %v4687, 45
    %v5736 = vpop.permute.xlu0 %5735
    %5737 = vrot.lane.b32.xlu0 %v4692, 45
    %v5738 = vpop.permute.xlu0 %5737
    %5739 = vrot.lane.b32.xlu0 %v4697, 45
    %v5740 = vpop.permute.xlu0 %5739
    %5741 = vrot.lane.b32.xlu0 %v4702, 45
    %v5742 = vpop.permute.xlu0 %5741
    %5748 = vrot.lane.b32.xlu0 %v4957, 50
    %v5749 = vpop.permute.xlu0 %5748
    %5750 = vrot.lane.b32.xlu0 %v4962, 50
    %v5751 = vpop.permute.xlu0 %5750
    %5752 = vrot.lane.b32.xlu0 %v4967, 50
    %v5753 = vpop.permute.xlu0 %5752
    %5754 = vrot.lane.b32.xlu0 %v4972, 50
    %v5755 = vpop.permute.xlu0 %5754
    %5756 = vrot.lane.b32.xlu0 %v4977, 50
    %v5757 = vpop.permute.xlu0 %5756
    %5763 = vrot.lane.b32.xlu0 %v5232, 55
    %v5764 = vpop.permute.xlu0 %5763
    %5765 = vrot.lane.b32.xlu0 %v5237, 55
    %v5766 = vpop.permute.xlu0 %5765
    %5767 = vrot.lane.b32.xlu0 %v5242, 55
    %v5768 = vpop.permute.xlu0 %5767
    %5769 = vrot.lane.b32.xlu0 %v5247, 55
    %v5770 = vpop.permute.xlu0 %5769
    %5771 = vrot.lane.b32.xlu0 %v5252, 55
    %v5772 = vpop.permute.xlu0 %5771
    %v5778 = vsel %vm5495, %v5599, %v2207
    %v5779 = vsel %vm5495, %v5601, %v2212
    %v5780 = vsel %vm5495, %v5603, %v2217
    %v5781 = vsel %vm5495, %v5605, %v2222
    %v5782 = vsel %vm5495, %v5607, %v2227
    %v5783 = vsel %vm5501, %v5778, %v5614
    %v5784 = vsel %vm5501, %v5779, %v5616
    %v5785 = vsel %vm5501, %v5780, %v5618
    %v5786 = vsel %vm5501, %v5781, %v5620
    %v5787 = vsel %vm5501, %v5782, %v5622
    %v5788 = vsel %vm5507, %v5783, %v5629
    %v5789 = vsel %vm5507, %v5784, %v5631
    %v5790 = vsel %vm5507, %v5785, %v5633
    %v5791 = vsel %vm5507, %v5786, %v5635
    %v5792 = vsel %vm5507, %v5787, %v5637
    %v5793 = vsel %vm5513, %v5788, %v5644
    %v5794 = vsel %vm5513, %v5789, %v5646
    %v5795 = vsel %vm5513, %v5790, %v5648
    %v5796 = vsel %vm5513, %v5791, %v5650
    %v5797 = vsel %vm5513, %v5792, %v5652
    %v5798 = vsel %vm5519, %v5793, %v5659
    %v5799 = vsel %vm5519, %v5794, %v5661
    %v5800 = vsel %vm5519, %v5795, %v5663
    %v5801 = vsel %vm5519, %v5796, %v5665
    %v5802 = vsel %vm5519, %v5797, %v5667
    %v5803 = vsel %vm5525, %v5798, %v5674
    %v5804 = vsel %vm5525, %v5799, %v5676
    %v5805 = vsel %vm5525, %v5800, %v5678
    %v5806 = vsel %vm5525, %v5801, %v5680
    %v5807 = vsel %vm5525, %v5802, %v5682
    %v5808 = vsel %vm5531, %v5803, %v5689
    %v5809 = vsel %vm5531, %v5804, %v5691
    %v5810 = vsel %vm5531, %v5805, %v5693
    %v5811 = vsel %vm5531, %v5806, %v5695
    %v5812 = vsel %vm5531, %v5807, %v5697
    %v5813 = vsel %vm5537, %v5808, %v5704
    %v5814 = vsel %vm5537, %v5809, %v5706
    %v5815 = vsel %vm5537, %v5810, %v5708
    %v5816 = vsel %vm5537, %v5811, %v5710
    %v5817 = vsel %vm5537, %v5812, %v5712
    %v5818 = vsel %vm5543, %v5813, %v5719
    %v5819 = vsel %vm5543, %v5814, %v5721
    %v5820 = vsel %vm5543, %v5815, %v5723
    %v5821 = vsel %vm5543, %v5816, %v5725
    %v5822 = vsel %vm5543, %v5817, %v5727
    %v5823 = vsel %vm5549, %v5818, %v5734
    %v5824 = vsel %vm5549, %v5819, %v5736
    %v5825 = vsel %vm5549, %v5820, %v5738
    %v5826 = vsel %vm5549, %v5821, %v5740
    %v5827 = vsel %vm5549, %v5822, %v5742
    %v5828 = vsel %vm5555, %v5823, %v5749
    %v5829 = vsel %vm5555, %v5824, %v5751
    %v5830 = vsel %vm5555, %v5825, %v5753
    %v5831 = vsel %vm5555, %v5826, %v5755
    %v5832 = vsel %vm5555, %v5827, %v5757
    %v5833 = vsel %vm5561, %v5828, %v5764
    %v5834 = vsel %vm5561, %v5829, %v5766
    %v5835 = vsel %vm5561, %v5830, %v5768
    %v5836 = vsel %vm5561, %v5831, %v5770
    %v5837 = vsel %vm5561, %v5832, %v5772
    %v5838 = vlog2.pop %v5833
    %v5839 = vmul.f32 %v5838, 0.6931472
    %v5840 = vlog2.pop %v5834
    %v5841 = vmul.f32 %v5840, 0.6931472
    %v5842 = vlog2.pop %v5835
    %v5843 = vmul.f32 %v5842, 0.6931472
    %v5844 = vlog2.pop %v5836
    %v5845 = vmul.f32 %v5844, 0.6931472
    %v5846 = vlog2.pop %v5837
    %v5847 = vmul.f32 %v5846, 0.6931472
    %s5848 = scalar_lea.vmem %s4, 40
    %v5849 = vld [vmem:[%s5848] sm:$0xff]
    %v5850 = vld [vmem:[%s5848 + $0x8] sm:$0xff]
    %v5851 = vld [vmem:[%s5848 + $0x10] sm:$0xff]
    %v5852 = vld [vmem:[%s5848 + $0x18] sm:$0xff]
    %v5853 = vld [vmem:[%s5848 + $0x20] sm:$0xff]
    %v5854 = vmul.f32 %v5839, %v5849
    %v5855 = vmul.f32 %v5841, %v5850
    %v5856 = vmul.f32 %v5843, %v5851
    %v5857 = vmul.f32 %v5845, %v5852
    %v5858 = vmul.f32 %v5847, %v5853
    %s5859 = scalar_lea.vmem [#allocation5], 40
    %5860 = vst.msk [vmem:[%s5859] sm:$0xff] %vm5587, %v5854
    %5861 = vst.msk [vmem:[%s5859 + $0x8] sm:$0xff] %vm5587, %v5855
    %5862 = vst.msk [vmem:[%s5859 + $0x10] sm:$0xff] %vm5587, %v5856
    %5863 = vst.msk [vmem:[%s5859 + $0x18] sm:$0xff] %vm5587, %v5857
    %5864 = vst.msk [vmem:[%s5859 + $0x20] sm:$0xff] %vm5587, %v5858
    // Predicated region
    $region26: #{tpu_custom_call.1} parent=1 // pred_check
      _
    $region27: #{tpu_custom_call.1} parent=1 // pred_check_branch
      %5866 = sbr.rel (0) target = $region29
    $region28: #{tpu_custom_call.1} parent=1 // pred_region
      %s5868 = ssub.s32 1280, 1280
      %5869 = vsyncadd [#allocation4], %s5868
      %s5870 = sshll.u32 [#allocation5], 4
      %s5871 = int_to_ptr.vmem [resolvable:$true] %s5870
      %5876 = dma.vmem_to_hbm [thread:$0]  %s5871, 1280, %s5, [#allocation4], 128, 128, 8
    $region29: #{tpu_custom_call.1} parent=1 // pred_fallthru
      _
    // Predicated region
    $region30: #{tpu_custom_call.1} parent=1 // pred_check
      _
    $region31: #{tpu_custom_call.1} parent=1 // pred_check_branch
      %5878 = sbr.rel (0) target = $region33
    $region32: #{tpu_custom_call.1} parent=1 // pred_region
      %5879 = dma.done [#allocation4], 1280
    $region33: #{tpu_custom_call.1} parent=1 // pred_fallthru
      _
    %5880 = vsyncpa [#allocation3], 1
    %5881 = vsyncpa [#allocation4], 1

</llo_original>
